<compile_context>
chip_gen: v6e
topology: v6e:2x2x1
jax: 0.10.0
libtpu: 0.0.40
codegen_flags: <defaults>
</compile_context>

<pallas_src>
import math
import jax
import jax.numpy as jnp
from jax.experimental import pallas as pl
from jax.experimental.pallas import tpu as pltpu

LANE = 128


# ----------------------------------------------------------------------------
# Pallas kernel factory: fused multi-layer LSTM recurrence + fc, single call
# ----------------------------------------------------------------------------
def _make_lstm_kernel(n_layers, window, batch, hp):
    three_hp = 3 * hp

    def kernel(xproj_ref, whh0_ref, wcat_ref, bias_ref, fcw_ref, fcb_ref,
               out_ref, fc_ref):
        """Single invocation; time + layer loops are compile-time unrolled.

        xproj_ref : (T_total, 4*Hp) f32  layer-0 projection (+bias), gate order
                                         [i,f,o,g], padded lanes zero.
        whh0_ref  : (Hp, 4*Hp)      bf16 layer-0 W_hh^T (gate-permuted, padded).
        wcat_ref  : (max(L-1,1), 2*Hp, 4*Hp) bf16  [W_ih^T ; W_hh^T] per layer>=1.
        bias_ref  : (max(L-1,1), 1, 4*Hp)   f32   combined bias per layer>=1.
        fcw_ref   : (Hp, Opad) bf16  fc weight (transposed, padded).
        fcb_ref   : (1, Opad)  f32   fc bias (padded).
        out_ref   : (W, B, Hp) f32   last-layer hidden per timestep (lane-dense).
        fc_ref    : (B, Opad)  f32   fc(h_n[-1]).
        """
        # Recurrent state as locals: f32 cell, bf16 hidden shadow for the MXU.
        c = [jnp.zeros((batch, hp), jnp.float32) for _ in range(n_layers)]
        h_bf = [jnp.zeros((batch, hp), jnp.bfloat16) for _ in range(n_layers)]

        for t in range(window):
            # Stride-1 windows: the batch of windows at time t is the
            # contiguous rows [t, t + batch) of the un-windowed projection.
            x_t = xproj_ref[t:t + batch, :]                    # (B, 4*Hp) f32

            h_below = None
            for l in range(n_layers):
                if l == 0:
                    gates = x_t + jnp.dot(
                        h_bf[0], whh0_ref[...],
                        preferred_element_type=jnp.float32)
                else:
                    # Fused input + recurrent matmul: one K=2*Hp MXU pass.
                    hin = jnp.concatenate([h_below, h_bf[l]], axis=1)
                    gates = jnp.dot(
                        hin, wcat_ref[l - 1],
                        preferred_element_type=jnp.float32) + bias_ref[l - 1]

                # Gate order [i, f, o, g]: 2 activation calls per layer.
                sig = jax.nn.sigmoid(gates[:, :three_hp])
                g_g = jnp.tanh(gates[:, three_hp:])
                i_g = sig[:, 0 * hp:1 * hp]
                f_g = sig[:, 1 * hp:2 * hp]
                o_g = sig[:, 2 * hp:3 * hp]

                c_new = f_g * c[l] + i_g * g_g
                h_new = o_g * jnp.tanh(c_new)

                c[l] = c_new
                h_bf[l] = h_new.astype(jnp.bfloat16)
                h_below = h_bf[l]

                if l == n_layers - 1:
                    out_ref[t, :, :] = h_new          # lane-dense (B, Hp) store

        # fc(h_n of last layer), bf16 operands, lane-dense padded output.
        fc_ref[...] = jnp.dot(
            h_bf[n_layers - 1], fcw_ref[...],
            preferred_element_type=jnp.float32) + fcb_ref[...]

    return kernel


def lstm_stack_forward(xproj, whh0, wcat_stack, bias_stack, fcw, fcb, *,
                       window, batch, n_layers):
    """Runs the fused LSTM stack + fc in a single pallas_call (no grid)."""
    four_hp = xproj.shape[1]
    hp = four_hp // 4
    opad = fcw.shape[1]

    kernel = _make_lstm_kernel(n_layers, window, batch, hp)
    vmem = lambda: pl.BlockSpec(memory_space=pltpu.MemorySpace.VMEM)

    return pl.pallas_call(
        kernel,
        out_shape=(jax.ShapeDtypeStruct((window, batch, hp), jnp.float32),
                   jax.ShapeDtypeStruct((batch, opad), jnp.float32)),
        in_specs=[vmem() for _ in range(6)],
        out_specs=(vmem(), vmem()),
    )(xproj, whh0, wcat_stack, bias_stack, fcw, fcb)


# ----------------------------------------------------------------------------
# Model wrapper (mirror of torch_LSTM: nn.LSTM(batch_first=True) + nn.Linear)
# ----------------------------------------------------------------------------
class PallasLSTM:
    # PyTorch gate order [i, f, g, o] -> kernel order [i, f, o, g]
    GATE_PERM = [0, 1, 3, 2]

    def __init__(self, window_size, input_size, output_size, hidden_dim,
                 n_layers, key):
        self.window_size = window_size
        self.hidden_dim = hidden_dim
        self.n_layers = n_layers
        self.output_size = output_size
        H = hidden_dim
        Hp = max(LANE, ((H + LANE - 1) // LANE) * LANE)
        Op = max(LANE, ((output_size + LANE - 1) // LANE) * LANE)
        self.hidden_pad = Hp
        self.out_pad = Op

        bound = 1.0 / math.sqrt(hidden_dim)
        raw_layers = []
        for layer in range(n_layers):
            in_sz = input_size if layer == 0 else hidden_dim
            key, k1, k2, k3, k4 = jax.random.split(key, 5)
            w_ih = jax.random.uniform(k1, (4 * H, in_sz), minval=-bound,
                                      maxval=bound, dtype=jnp.float32)
            w_hh = jax.random.uniform(k2, (4 * H, H), minval=-bound,
                                      maxval=bound, dtype=jnp.float32)
            b_ih = jax.random.uniform(k3, (4 * H,), minval=-bound,
                                      maxval=bound, dtype=jnp.float32)
            b_hh = jax.random.uniform(k4, (4 * H,), minval=-bound,
                                      maxval=bound, dtype=jnp.float32)
            raw_layers.append((w_ih, w_hh, b_ih + b_hh))

        # Layer-0 input weights stay unpadded: the projection is hoisted out
        # of the kernel and de-duplicated across the overlapping windows.
        self.w_ih0 = raw_layers[0][0]   # (4H, I)
        self.b0 = raw_layers[0][2]      # (4H,)

        def pad_gate_mat(w_t, in_dim):
            # (in_dim, 4H) PyTorch order -> (Hp, 4*Hp) kernel order, each gate
            # occupying its own full 128-lane tile.
            wt = w_t.reshape(in_dim, 4, H)[:, self.GATE_PERM, :]
            wt = jnp.pad(wt, ((0, Hp - in_dim), (0, 0), (0, Hp - H)))
            return wt.reshape(Hp, 4 * Hp)

        def pad_gate_vec(b):
            bp = b.reshape(4, H)[self.GATE_PERM, :]
            bp = jnp.pad(bp, ((0, 0), (0, Hp - H)))
            return bp.reshape(1, 4 * Hp)

        # Layer-0 recurrent weight (standalone matmul with the hoisted xproj).
        self.whh0 = pad_gate_mat(raw_layers[0][1].T, H).astype(jnp.bfloat16)

        # Layers >= 1: fused [W_ih^T ; W_hh^T] (2*Hp, 4*Hp) + combined bias.
        wcat_list, b_list = [], []
        for layer in range(1, n_layers):
            w_ih, w_hh, b = raw_layers[layer]
            wcat_list.append(jnp.concatenate(
                [pad_gate_mat(w_ih.T, H), pad_gate_mat(w_hh.T, H)], axis=0))
            b_list.append(pad_gate_vec(b))
        if not wcat_list:  # n_layers == 1: unused dummy slot
            wcat_list = [jnp.zeros((2 * Hp, 4 * Hp), jnp.float32)]
            b_list = [jnp.zeros((1, 4 * Hp), jnp.float32)]
        self.wcat_stack = jnp.stack(wcat_list).astype(jnp.bfloat16)
        self.bias_stack = jnp.stack(b_list)

        fbound = 1.0 / math.sqrt(hidden_dim)
        key, k5, k6 = jax.random.split(key, 3)
        fc_w = jax.random.uniform(k5, (output_size, H), minval=-fbound,
                                  maxval=fbound, dtype=jnp.float32)
        fc_b = jax.random.uniform(k6, (output_size,), minval=-fbound,
                                  maxval=fbound, dtype=jnp.float32)
        self.fcw = jnp.pad(fc_w.T, ((0, Hp - H), (0, Op - output_size))
                           ).astype(jnp.bfloat16)                  # (Hp, Op)
        self.fcb = jnp.pad(fc_b.reshape(1, output_size),
                           ((0, 0), (0, Op - output_size)))        # (1, Op)

    def __call__(self, x):
        # TODO(synk): utils.get_windows is not provided by the reference repo;
        # stride-1 sliding windows over the leading axis are assumed.
        T_total = x.shape[0]
        W = self.window_size
        H, Hp = self.hidden_dim, self.hidden_pad
        n_win = T_total - W + 1

        # Hoisted + de-duplicated layer-0 input projection: each raw timestep
        # is projected once even though it appears in up to W windows.  Passed
        # un-windowed; the kernel takes contiguous slices per timestep.
        xproj = x @ self.w_ih0.T + self.b0                  # (T_total, 4H)
        xproj = xproj.reshape(T_total, 4, H)[:, self.GATE_PERM, :]
        xproj = jnp.pad(xproj, ((0, 0), (0, 0), (0, Hp - H))
                        ).reshape(T_total, 4 * Hp)          # (T_total, 4*Hp)

        out_tm, fc_pad = lstm_stack_forward(
            xproj, self.whh0, self.wcat_stack, self.bias_stack,
            self.fcw, self.fcb,
            window=W, batch=n_win, n_layers=self.n_layers)

        # nn.LSTM(batch_first=True) output: (B, W, H); drop lane padding.
        out = jnp.transpose(out_tm, (1, 0, 2))[:, :, :H]
        fc_out = fc_pad[:, :self.output_size]
        return fc_out, out


# ----------------------------------------------------------------------------
# main
# ----------------------------------------------------------------------------
if __name__ == "__main__":
    key = jax.random.PRNGKey(0)
    k_x, k_p = jax.random.split(key)

    window_size = 8
    input_size = 4
    output_size = 2
    hidden_dim = 32
    n_layers = 2
    total_seq = 15  # -> 8 windows (batch = 8, one full sublane tile)

    x = jax.random.normal(k_x, (total_seq, input_size), dtype=jnp.float32)

    model = PallasLSTM(window_size, input_size, output_size, hidden_dim,
                       n_layers, k_p)

    fc_out, out = model(x)
    jax.block_until_ready(fc_out)
    jax.block_until_ready(out)

    assert fc_out.shape == (total_seq - window_size + 1, output_size)
    assert out.shape == (total_seq - window_size + 1, window_size, hidden_dim)
    print("KERNEL_OK")
</pallas_src>

<mosaic_0001>
module attributes {stable_mosaic.version = 11 : i64} {
  func.func @kernel(%arg0: memref<15x512xf32, #tpu.memory_space<vmem>>, %arg1: memref<128x512xbf16, #tpu.memory_space<vmem>>, %arg2: memref<1x256x512xbf16, #tpu.memory_space<vmem>>, %arg3: memref<1x1x512xf32, #tpu.memory_space<vmem>>, %arg4: memref<128x128xbf16, #tpu.memory_space<vmem>>, %arg5: memref<1x128xf32, #tpu.memory_space<vmem>>, %arg6: memref<8x8x128xf32, #tpu.memory_space<vmem>>, %arg7: memref<8x128xf32, #tpu.memory_space<vmem>>) attributes {dimension_semantics = [], scalar_prefetch = 0 : i64, scratch_operands = 0 : i64, tpu.core_type = #tpu.core_type<tc>} {
    %cst = arith.constant 0.000000e+00 : f32
    %0 = vector.broadcast %cst : f32 to vector<8x128xf32>
    %cst_0 = arith.constant 0.000000e+00 : f32
    %1 = vector.broadcast %cst_0 : f32 to vector<8x128xf32>
    %cst_1 = arith.constant 0.000000e+00 : bf16
    %2 = vector.broadcast %cst_1 : bf16 to vector<8x128xbf16>
    %cst_2 = arith.constant 0.000000e+00 : bf16
    %3 = vector.broadcast %cst_2 : bf16 to vector<8x128xbf16>
    %c0 = arith.constant 0 : index
    %c0_3 = arith.constant 0 : index
    %4 = vector.load %arg0[%c0, %c0_3] : memref<15x512xf32, #tpu.memory_space<vmem>>, vector<8x512xf32>
    %c0_4 = arith.constant 0 : index
    %c0_5 = arith.constant 0 : index
    %5 = vector.load %arg1[%c0_4, %c0_5] : memref<128x512xbf16, #tpu.memory_space<vmem>>, vector<128x512xbf16>
    %cst_6 = arith.constant dense<0.000000e+00> : vector<8x512xf32>
    %6 = tpu.matmul %2, %5, %cst_6 {dimension_numbers = #tpu.dot_dimension_numbers<[1], [0], [0], [1], [0, 0, 1, 1], [], []>} : vector<8x128xbf16>, vector<128x512xbf16>, vector<8x512xf32> -> vector<8x512xf32>
    %7 = arith.addf %4, %6 : vector<8x512xf32>
    %8 = vector.extract_strided_slice %7 {offsets = [0, 0], sizes = [8, 384], strides = [1, 1]} : vector<8x512xf32> to vector<8x384xf32>
    %9 = arith.negf %8 : vector<8x384xf32>
    %10 = math.exp %9 : vector<8x384xf32>
    %cst_7 = arith.constant 1.000000e+00 : f32
    %11 = vector.broadcast %cst_7 : f32 to vector<8x384xf32>
    %12 = arith.addf %11, %10 : vector<8x384xf32>
    %13 = arith.divf %11, %12 : vector<8x384xf32>
    %14 = vector.extract_strided_slice %7 {offsets = [0, 384], sizes = [8, 128], strides = [1, 1]} : vector<8x512xf32> to vector<8x128xf32>
    %15 = math.tanh %14 : vector<8x128xf32>
    %16 = vector.extract_strided_slice %13 {offsets = [0, 0], sizes = [8, 128], strides = [1, 1]} : vector<8x384xf32> to vector<8x128xf32>
    %17 = vector.extract_strided_slice %13 {offsets = [0, 128], sizes = [8, 128], strides = [1, 1]} : vector<8x384xf32> to vector<8x128xf32>
    %18 = vector.extract_strided_slice %13 {offsets = [0, 256], sizes = [8, 128], strides = [1, 1]} : vector<8x384xf32> to vector<8x128xf32>
    %19 = arith.mulf %17, %0 : vector<8x128xf32>
    %20 = arith.mulf %16, %15 : vector<8x128xf32>
    %21 = arith.addf %19, %20 : vector<8x128xf32>
    %22 = math.tanh %21 : vector<8x128xf32>
    %23 = arith.mulf %18, %22 : vector<8x128xf32>
    %24 = arith.truncf %23 : vector<8x128xf32> to vector<8x128xbf16>
    %25 = tpu.concatenate %24, %3 in 1 : vector<8x128xbf16>, vector<8x128xbf16> -> vector<8x256xbf16>
    %c0_8 = arith.constant 0 : index
    %c0_9 = arith.constant 0 : index
    %c0_10 = arith.constant 0 : index
    %26 = vector.load %arg2[%c0_8, %c0_9, %c0_10] : memref<1x256x512xbf16, #tpu.memory_space<vmem>>, vector<1x256x512xbf16>
    %27 = vector.shape_cast %26 : vector<1x256x512xbf16> to vector<256x512xbf16>
    %cst_11 = arith.constant dense<0.000000e+00> : vector<8x512xf32>
    %28 = tpu.matmul %25, %27, %cst_11 {dimension_numbers = #tpu.dot_dimension_numbers<[1], [0], [0], [1], [0, 0, 1, 1], [], []>} : vector<8x256xbf16>, vector<256x512xbf16>, vector<8x512xf32> -> vector<8x512xf32>
    %c0_12 = arith.constant 0 : index
    %c0_13 = arith.constant 0 : index
    %c0_14 = arith.constant 0 : index
    %29 = vector.load %arg3[%c0_12, %c0_13, %c0_14] : memref<1x1x512xf32, #tpu.memory_space<vmem>>, vector<1x1x512xf32>
    %30 = vector.shape_cast %29 : vector<1x1x512xf32> to vector<1x512xf32>
    %31 = vector.broadcast %30 : vector<1x512xf32> to vector<8x512xf32>
    %32 = arith.addf %28, %31 : vector<8x512xf32>
    %33 = vector.extract_strided_slice %32 {offsets = [0, 0], sizes = [8, 384], strides = [1, 1]} : vector<8x512xf32> to vector<8x384xf32>
    %34 = arith.negf %33 : vector<8x384xf32>
    %35 = math.exp %34 : vector<8x384xf32>
    %cst_15 = arith.constant 1.000000e+00 : f32
    %36 = vector.broadcast %cst_15 : f32 to vector<8x384xf32>
    %37 = arith.addf %36, %35 : vector<8x384xf32>
    %38 = arith.divf %36, %37 : vector<8x384xf32>
    %39 = vector.extract_strided_slice %32 {offsets = [0, 384], sizes = [8, 128], strides = [1, 1]} : vector<8x512xf32> to vector<8x128xf32>
    %40 = math.tanh %39 : vector<8x128xf32>
    %41 = vector.extract_strided_slice %38 {offsets = [0, 0], sizes = [8, 128], strides = [1, 1]} : vector<8x384xf32> to vector<8x128xf32>
    %42 = vector.extract_strided_slice %38 {offsets = [0, 128], sizes = [8, 128], strides = [1, 1]} : vector<8x384xf32> to vector<8x128xf32>
    %43 = vector.extract_strided_slice %38 {offsets = [0, 256], sizes = [8, 128], strides = [1, 1]} : vector<8x384xf32> to vector<8x128xf32>
    %44 = arith.mulf %42, %1 : vector<8x128xf32>
    %45 = arith.mulf %41, %40 : vector<8x128xf32>
    %46 = arith.addf %44, %45 : vector<8x128xf32>
    %47 = math.tanh %46 : vector<8x128xf32>
    %48 = arith.mulf %43, %47 : vector<8x128xf32>
    %49 = arith.truncf %48 : vector<8x128xf32> to vector<8x128xbf16>
    %c0_16 = arith.constant 0 : index
    %c0_17 = arith.constant 0 : index
    %c0_18 = arith.constant 0 : index
    %50 = vector.load %arg6[%c0_16, %c0_17, %c0_18] : memref<8x8x128xf32, #tpu.memory_space<vmem>>, vector<1x8x128xf32>
    %51 = vector.shape_cast %50 : vector<1x8x128xf32> to vector<8x128xf32>
    %52 = vector.shape_cast %48 : vector<8x128xf32> to vector<1x8x128xf32>
    tpu.vector_store %arg6[%c0_16, %c0_17, %c0_18], %52 {strides = array<i32>} : memref<8x8x128xf32, #tpu.memory_space<vmem>>, vector<1x8x128xf32>,
    %c1 = arith.constant 1 : index
    %c0_19 = arith.constant 0 : index
    %53 = vector.load %arg0[%c1, %c0_19] : memref<15x512xf32, #tpu.memory_space<vmem>>, vector<8x512xf32>
    %c0_20 = arith.constant 0 : index
    %c0_21 = arith.constant 0 : index
    %54 = vector.load %arg1[%c0_20, %c0_21] : memref<128x512xbf16, #tpu.memory_space<vmem>>, vector<128x512xbf16>
    %cst_22 = arith.constant dense<0.000000e+00> : vector<8x512xf32>
    %55 = tpu.matmul %24, %54, %cst_22 {dimension_numbers = #tpu.dot_dimension_numbers<[1], [0], [0], [1], [0, 0, 1, 1], [], []>} : vector<8x128xbf16>, vector<128x512xbf16>, vector<8x512xf32> -> vector<8x512xf32>
    %56 = arith.addf %53, %55 : vector<8x512xf32>
    %57 = vector.extract_strided_slice %56 {offsets = [0, 0], sizes = [8, 384], strides = [1, 1]} : vector<8x512xf32> to vector<8x384xf32>
    %58 = arith.negf %57 : vector<8x384xf32>
    %59 = math.exp %58 : vector<8x384xf32>
    %cst_23 = arith.constant 1.000000e+00 : f32
    %60 = vector.broadcast %cst_23 : f32 to vector<8x384xf32>
    %61 = arith.addf %60, %59 : vector<8x384xf32>
    %62 = arith.divf %60, %61 : vector<8x384xf32>
    %63 = vector.extract_strided_slice %56 {offsets = [0, 384], sizes = [8, 128], strides = [1, 1]} : vector<8x512xf32> to vector<8x128xf32>
    %64 = math.tanh %63 : vector<8x128xf32>
    %65 = vector.extract_strided_slice %62 {offsets = [0, 0], sizes = [8, 128], strides = [1, 1]} : vector<8x384xf32> to vector<8x128xf32>
    %66 = vector.extract_strided_slice %62 {offsets = [0, 128], sizes = [8, 128], strides = [1, 1]} : vector<8x384xf32> to vector<8x128xf32>
    %67 = vector.extract_strided_slice %62 {offsets = [0, 256], sizes = [8, 128], strides = [1, 1]} : vector<8x384xf32> to vector<8x128xf32>
    %68 = arith.mulf %66, %21 : vector<8x128xf32>
    %69 = arith.mulf %65, %64 : vector<8x128xf32>
    %70 = arith.addf %68, %69 : vector<8x128xf32>
    %71 = math.tanh %70 : vector<8x128xf32>
    %72 = arith.mulf %67, %71 : vector<8x128xf32>
    %73 = arith.truncf %72 : vector<8x128xf32> to vector<8x128xbf16>
    %74 = tpu.concatenate %73, %49 in 1 : vector<8x128xbf16>, vector<8x128xbf16> -> vector<8x256xbf16>
    %c0_24 = arith.constant 0 : index
    %c0_25 = arith.constant 0 : index
    %c0_26 = arith.constant 0 : index
    %75 = vector.load %arg2[%c0_24, %c0_25, %c0_26] : memref<1x256x512xbf16, #tpu.memory_space<vmem>>, vector<1x256x512xbf16>
    %76 = vector.shape_cast %75 : vector<1x256x512xbf16> to vector<256x512xbf16>
    %cst_27 = arith.constant dense<0.000000e+00> : vector<8x512xf32>
    %77 = tpu.matmul %74, %76, %cst_27 {dimension_numbers = #tpu.dot_dimension_numbers<[1], [0], [0], [1], [0, 0, 1, 1], [], []>} : vector<8x256xbf16>, vector<256x512xbf16>, vector<8x512xf32> -> vector<8x512xf32>
    %c0_28 = arith.constant 0 : index
    %c0_29 = arith.constant 0 : index
    %c0_30 = arith.constant 0 : index
    %78 = vector.load %arg3[%c0_28, %c0_29, %c0_30] : memref<1x1x512xf32, #tpu.memory_space<vmem>>, vector<1x1x512xf32>
    %79 = vector.shape_cast %78 : vector<1x1x512xf32> to vector<1x512xf32>
    %80 = vector.broadcast %79 : vector<1x512xf32> to vector<8x512xf32>
    %81 = arith.addf %77, %80 : vector<8x512xf32>
    %82 = vector.extract_strided_slice %81 {offsets = [0, 0], sizes = [8, 384], strides = [1, 1]} : vector<8x512xf32> to vector<8x384xf32>
    %83 = arith.negf %82 : vector<8x384xf32>
    %84 = math.exp %83 : vector<8x384xf32>
    %cst_31 = arith.constant 1.000000e+00 : f32
    %85 = vector.broadcast %cst_31 : f32 to vector<8x384xf32>
    %86 = arith.addf %85, %84 : vector<8x384xf32>
    %87 = arith.divf %85, %86 : vector<8x384xf32>
    %88 = vector.extract_strided_slice %81 {offsets = [0, 384], sizes = [8, 128], strides = [1, 1]} : vector<8x512xf32> to vector<8x128xf32>
    %89 = math.tanh %88 : vector<8x128xf32>
    %90 = vector.extract_strided_slice %87 {offsets = [0, 0], sizes = [8, 128], strides = [1, 1]} : vector<8x384xf32> to vector<8x128xf32>
    %91 = vector.extract_strided_slice %87 {offsets = [0, 128], sizes = [8, 128], strides = [1, 1]} : vector<8x384xf32> to vector<8x128xf32>
    %92 = vector.extract_strided_slice %87 {offsets = [0, 256], sizes = [8, 128], strides = [1, 1]} : vector<8x384xf32> to vector<8x128xf32>
    %93 = arith.mulf %91, %46 : vector<8x128xf32>
    %94 = arith.mulf %90, %89 : vector<8x128xf32>
    %95 = arith.addf %93, %94 : vector<8x128xf32>
    %96 = math.tanh %95 : vector<8x128xf32>
    %97 = arith.mulf %92, %96 : vector<8x128xf32>
    %98 = arith.truncf %97 : vector<8x128xf32> to vector<8x128xbf16>
    %c1_32 = arith.constant 1 : index
    %c0_33 = arith.constant 0 : index
    %c0_34 = arith.constant 0 : index
    %99 = vector.load %arg6[%c1_32, %c0_33, %c0_34] : memref<8x8x128xf32, #tpu.memory_space<vmem>>, vector<1x8x128xf32>
    %100 = vector.shape_cast %99 : vector<1x8x128xf32> to vector<8x128xf32>
    %101 = vector.shape_cast %97 : vector<8x128xf32> to vector<1x8x128xf32>
    tpu.vector_store %arg6[%c1_32, %c0_33, %c0_34], %101 {strides = array<i32>} : memref<8x8x128xf32, #tpu.memory_space<vmem>>, vector<1x8x128xf32>,
    %c2 = arith.constant 2 : index
    %c0_35 = arith.constant 0 : index
    %102 = vector.load %arg0[%c2, %c0_35] : memref<15x512xf32, #tpu.memory_space<vmem>>, vector<8x512xf32>
    %c0_36 = arith.constant 0 : index
    %c0_37 = arith.constant 0 : index
    %103 = vector.load %arg1[%c0_36, %c0_37] : memref<128x512xbf16, #tpu.memory_space<vmem>>, vector<128x512xbf16>
    %cst_38 = arith.constant dense<0.000000e+00> : vector<8x512xf32>
    %104 = tpu.matmul %73, %103, %cst_38 {dimension_numbers = #tpu.dot_dimension_numbers<[1], [0], [0], [1], [0, 0, 1, 1], [], []>} : vector<8x128xbf16>, vector<128x512xbf16>, vector<8x512xf32> -> vector<8x512xf32>
    %105 = arith.addf %102, %104 : vector<8x512xf32>
    %106 = vector.extract_strided_slice %105 {offsets = [0, 0], sizes = [8, 384], strides = [1, 1]} : vector<8x512xf32> to vector<8x384xf32>
    %107 = arith.negf %106 : vector<8x384xf32>
    %108 = math.exp %107 : vector<8x384xf32>
    %cst_39 = arith.constant 1.000000e+00 : f32
    %109 = vector.broadcast %cst_39 : f32 to vector<8x384xf32>
    %110 = arith.addf %109, %108 : vector<8x384xf32>
    %111 = arith.divf %109, %110 : vector<8x384xf32>
    %112 = vector.extract_strided_slice %105 {offsets = [0, 384], sizes = [8, 128], strides = [1, 1]} : vector<8x512xf32> to vector<8x128xf32>
    %113 = math.tanh %112 : vector<8x128xf32>
    %114 = vector.extract_strided_slice %111 {offsets = [0, 0], sizes = [8, 128], strides = [1, 1]} : vector<8x384xf32> to vector<8x128xf32>
    %115 = vector.extract_strided_slice %111 {offsets = [0, 128], sizes = [8, 128], strides = [1, 1]} : vector<8x384xf32> to vector<8x128xf32>
    %116 = vector.extract_strided_slice %111 {offsets = [0, 256], sizes = [8, 128], strides = [1, 1]} : vector<8x384xf32> to vector<8x128xf32>
    %117 = arith.mulf %115, %70 : vector<8x128xf32>
    %118 = arith.mulf %114, %113 : vector<8x128xf32>
    %119 = arith.addf %117, %118 : vector<8x128xf32>
    %120 = math.tanh %119 : vector<8x128xf32>
    %121 = arith.mulf %116, %120 : vector<8x128xf32>
    %122 = arith.truncf %121 : vector<8x128xf32> to vector<8x128xbf16>
    %123 = tpu.concatenate %122, %98 in 1 : vector<8x128xbf16>, vector<8x128xbf16> -> vector<8x256xbf16>
    %c0_40 = arith.constant 0 : index
    %c0_41 = arith.constant 0 : index
    %c0_42 = arith.constant 0 : index
    %124 = vector.load %arg2[%c0_40, %c0_41, %c0_42] : memref<1x256x512xbf16, #tpu.memory_space<vmem>>, vector<1x256x512xbf16>
    %125 = vector.shape_cast %124 : vector<1x256x512xbf16> to vector<256x512xbf16>
    %cst_43 = arith.constant dense<0.000000e+00> : vector<8x512xf32>
    %126 = tpu.matmul %123, %125, %cst_43 {dimension_numbers = #tpu.dot_dimension_numbers<[1], [0], [0], [1], [0, 0, 1, 1], [], []>} : vector<8x256xbf16>, vector<256x512xbf16>, vector<8x512xf32> -> vector<8x512xf32>
    %c0_44 = arith.constant 0 : index
    %c0_45 = arith.constant 0 : index
    %c0_46 = arith.constant 0 : index
    %127 = vector.load %arg3[%c0_44, %c0_45, %c0_46] : memref<1x1x512xf32, #tpu.memory_space<vmem>>, vector<1x1x512xf32>
    %128 = vector.shape_cast %127 : vector<1x1x512xf32> to vector<1x512xf32>
    %129 = vector.broadcast %128 : vector<1x512xf32> to vector<8x512xf32>
    %130 = arith.addf %126, %129 : vector<8x512xf32>
    %131 = vector.extract_strided_slice %130 {offsets = [0, 0], sizes = [8, 384], strides = [1, 1]} : vector<8x512xf32> to vector<8x384xf32>
    %132 = arith.negf %131 : vector<8x384xf32>
    %133 = math.exp %132 : vector<8x384xf32>
    %cst_47 = arith.constant 1.000000e+00 : f32
    %134 = vector.broadcast %cst_47 : f32 to vector<8x384xf32>
    %135 = arith.addf %134, %133 : vector<8x384xf32>
    %136 = arith.divf %134, %135 : vector<8x384xf32>
    %137 = vector.extract_strided_slice %130 {offsets = [0, 384], sizes = [8, 128], strides = [1, 1]} : vector<8x512xf32> to vector<8x128xf32>
    %138 = math.tanh %137 : vector<8x128xf32>
    %139 = vector.extract_strided_slice %136 {offsets = [0, 0], sizes = [8, 128], strides = [1, 1]} : vector<8x384xf32> to vector<8x128xf32>
    %140 = vector.extract_strided_slice %136 {offsets = [0, 128], sizes = [8, 128], strides = [1, 1]} : vector<8x384xf32> to vector<8x128xf32>
    %141 = vector.extract_strided_slice %136 {offsets = [0, 256], sizes = [8, 128], strides = [1, 1]} : vector<8x384xf32> to vector<8x128xf32>
    %142 = arith.mulf %140, %95 : vector<8x128xf32>
    %143 = arith.mulf %139, %138 : vector<8x128xf32>
    %144 = arith.addf %142, %143 : vector<8x128xf32>
    %145 = math.tanh %144 : vector<8x128xf32>
    %146 = arith.mulf %141, %145 : vector<8x128xf32>
    %147 = arith.truncf %146 : vector<8x128xf32> to vector<8x128xbf16>
    %c2_48 = arith.constant 2 : index
    %c0_49 = arith.constant 0 : index
    %c0_50 = arith.constant 0 : index
    %148 = vector.load %arg6[%c2_48, %c0_49, %c0_50] : memref<8x8x128xf32, #tpu.memory_space<vmem>>, vector<1x8x128xf32>
    %149 = vector.shape_cast %148 : vector<1x8x128xf32> to vector<8x128xf32>
    %150 = vector.shape_cast %146 : vector<8x128xf32> to vector<1x8x128xf32>
    tpu.vector_store %arg6[%c2_48, %c0_49, %c0_50], %150 {strides = array<i32>} : memref<8x8x128xf32, #tpu.memory_space<vmem>>, vector<1x8x128xf32>,
    %c3 = arith.constant 3 : index
    %c0_51 = arith.constant 0 : index
    %151 = vector.load %arg0[%c3, %c0_51] : memref<15x512xf32, #tpu.memory_space<vmem>>, vector<8x512xf32>
    %c0_52 = arith.constant 0 : index
    %c0_53 = arith.constant 0 : index
    %152 = vector.load %arg1[%c0_52, %c0_53] : memref<128x512xbf16, #tpu.memory_space<vmem>>, vector<128x512xbf16>
    %cst_54 = arith.constant dense<0.000000e+00> : vector<8x512xf32>
    %153 = tpu.matmul %122, %152, %cst_54 {dimension_numbers = #tpu.dot_dimension_numbers<[1], [0], [0], [1], [0, 0, 1, 1], [], []>} : vector<8x128xbf16>, vector<128x512xbf16>, vector<8x512xf32> -> vector<8x512xf32>
    %154 = arith.addf %151, %153 : vector<8x512xf32>
    %155 = vector.extract_strided_slice %154 {offsets = [0, 0], sizes = [8, 384], strides = [1, 1]} : vector<8x512xf32> to vector<8x384xf32>
    %156 = arith.negf %155 : vector<8x384xf32>
    %157 = math.exp %156 : vector<8x384xf32>
    %cst_55 = arith.constant 1.000000e+00 : f32
    %158 = vector.broadcast %cst_55 : f32 to vector<8x384xf32>
    %159 = arith.addf %158, %157 : vector<8x384xf32>
    %160 = arith.divf %158, %159 : vector<8x384xf32>
    %161 = vector.extract_strided_slice %154 {offsets = [0, 384], sizes = [8, 128], strides = [1, 1]} : vector<8x512xf32> to vector<8x128xf32>
    %162 = math.tanh %161 : vector<8x128xf32>
    %163 = vector.extract_strided_slice %160 {offsets = [0, 0], sizes = [8, 128], strides = [1, 1]} : vector<8x384xf32> to vector<8x128xf32>
    %164 = vector.extract_strided_slice %160 {offsets = [0, 128], sizes = [8, 128], strides = [1, 1]} : vector<8x384xf32> to vector<8x128xf32>
    %165 = vector.extract_strided_slice %160 {offsets = [0, 256], sizes = [8, 128], strides = [1, 1]} : vector<8x384xf32> to vector<8x128xf32>
    %166 = arith.mulf %164, %119 : vector<8x128xf32>
    %167 = arith.mulf %163, %162 : vector<8x128xf32>
    %168 = arith.addf %166, %167 : vector<8x128xf32>
    %169 = math.tanh %168 : vector<8x128xf32>
    %170 = arith.mulf %165, %169 : vector<8x128xf32>
    %171 = arith.truncf %170 : vector<8x128xf32> to vector<8x128xbf16>
    %172 = tpu.concatenate %171, %147 in 1 : vector<8x128xbf16>, vector<8x128xbf16> -> vector<8x256xbf16>
    %c0_56 = arith.constant 0 : index
    %c0_57 = arith.constant 0 : index
    %c0_58 = arith.constant 0 : index
    %173 = vector.load %arg2[%c0_56, %c0_57, %c0_58] : memref<1x256x512xbf16, #tpu.memory_space<vmem>>, vector<1x256x512xbf16>
    %174 = vector.shape_cast %173 : vector<1x256x512xbf16> to vector<256x512xbf16>
    %cst_59 = arith.constant dense<0.000000e+00> : vector<8x512xf32>
    %175 = tpu.matmul %172, %174, %cst_59 {dimension_numbers = #tpu.dot_dimension_numbers<[1], [0], [0], [1], [0, 0, 1, 1], [], []>} : vector<8x256xbf16>, vector<256x512xbf16>, vector<8x512xf32> -> vector<8x512xf32>
    %c0_60 = arith.constant 0 : index
    %c0_61 = arith.constant 0 : index
    %c0_62 = arith.constant 0 : index
    %176 = vector.load %arg3[%c0_60, %c0_61, %c0_62] : memref<1x1x512xf32, #tpu.memory_space<vmem>>, vector<1x1x512xf32>
    %177 = vector.shape_cast %176 : vector<1x1x512xf32> to vector<1x512xf32>
    %178 = vector.broadcast %177 : vector<1x512xf32> to vector<8x512xf32>
    %179 = arith.addf %175, %178 : vector<8x512xf32>
    %180 = vector.extract_strided_slice %179 {offsets = [0, 0], sizes = [8, 384], strides = [1, 1]} : vector<8x512xf32> to vector<8x384xf32>
    %181 = arith.negf %180 : vector<8x384xf32>
    %182 = math.exp %181 : vector<8x384xf32>
    %cst_63 = arith.constant 1.000000e+00 : f32
    %183 = vector.broadcast %cst_63 : f32 to vector<8x384xf32>
    %184 = arith.addf %183, %182 : vector<8x384xf32>
    %185 = arith.divf %183, %184 : vector<8x384xf32>
    %186 = vector.extract_strided_slice %179 {offsets = [0, 384], sizes = [8, 128], strides = [1, 1]} : vector<8x512xf32> to vector<8x128xf32>
    %187 = math.tanh %186 : vector<8x128xf32>
    %188 = vector.extract_strided_slice %185 {offsets = [0, 0], sizes = [8, 128], strides = [1, 1]} : vector<8x384xf32> to vector<8x128xf32>
    %189 = vector.extract_strided_slice %185 {offsets = [0, 128], sizes = [8, 128], strides = [1, 1]} : vector<8x384xf32> to vector<8x128xf32>
    %190 = vector.extract_strided_slice %185 {offsets = [0, 256], sizes = [8, 128], strides = [1, 1]} : vector<8x384xf32> to vector<8x128xf32>
    %191 = arith.mulf %189, %144 : vector<8x128xf32>
    %192 = arith.mulf %188, %187 : vector<8x128xf32>
    %193 = arith.addf %191, %192 : vector<8x128xf32>
    %194 = math.tanh %193 : vector<8x128xf32>
    %195 = arith.mulf %190, %194 : vector<8x128xf32>
    %196 = arith.truncf %195 : vector<8x128xf32> to vector<8x128xbf16>
    %c3_64 = arith.constant 3 : index
    %c0_65 = arith.constant 0 : index
    %c0_66 = arith.constant 0 : index
    %197 = vector.load %arg6[%c3_64, %c0_65, %c0_66] : memref<8x8x128xf32, #tpu.memory_space<vmem>>, vector<1x8x128xf32>
    %198 = vector.shape_cast %197 : vector<1x8x128xf32> to vector<8x128xf32>
    %199 = vector.shape_cast %195 : vector<8x128xf32> to vector<1x8x128xf32>
    tpu.vector_store %arg6[%c3_64, %c0_65, %c0_66], %199 {strides = array<i32>} : memref<8x8x128xf32, #tpu.memory_space<vmem>>, vector<1x8x128xf32>,
    %c4 = arith.constant 4 : index
    %c0_67 = arith.constant 0 : index
    %200 = vector.load %arg0[%c4, %c0_67] : memref<15x512xf32, #tpu.memory_space<vmem>>, vector<8x512xf32>
    %c0_68 = arith.constant 0 : index
    %c0_69 = arith.constant 0 : index
    %201 = vector.load %arg1[%c0_68, %c0_69] : memref<128x512xbf16, #tpu.memory_space<vmem>>, vector<128x512xbf16>
    %cst_70 = arith.constant dense<0.000000e+00> : vector<8x512xf32>
    %202 = tpu.matmul %171, %201, %cst_70 {dimension_numbers = #tpu.dot_dimension_numbers<[1], [0], [0], [1], [0, 0, 1, 1], [], []>} : vector<8x128xbf16>, vector<128x512xbf16>, vector<8x512xf32> -> vector<8x512xf32>
    %203 = arith.addf %200, %202 : vector<8x512xf32>
    %204 = vector.extract_strided_slice %203 {offsets = [0, 0], sizes = [8, 384], strides = [1, 1]} : vector<8x512xf32> to vector<8x384xf32>
    %205 = arith.negf %204 : vector<8x384xf32>
    %206 = math.exp %205 : vector<8x384xf32>
    %cst_71 = arith.constant 1.000000e+00 : f32
    %207 = vector.broadcast %cst_71 : f32 to vector<8x384xf32>
    %208 = arith.addf %207, %206 : vector<8x384xf32>
    %209 = arith.divf %207, %208 : vector<8x384xf32>
    %210 = vector.extract_strided_slice %203 {offsets = [0, 384], sizes = [8, 128], strides = [1, 1]} : vector<8x512xf32> to vector<8x128xf32>
    %211 = math.tanh %210 : vector<8x128xf32>
    %212 = vector.extract_strided_slice %209 {offsets = [0, 0], sizes = [8, 128], strides = [1, 1]} : vector<8x384xf32> to vector<8x128xf32>
    %213 = vector.extract_strided_slice %209 {offsets = [0, 128], sizes = [8, 128], strides = [1, 1]} : vector<8x384xf32> to vector<8x128xf32>
    %214 = vector.extract_strided_slice %209 {offsets = [0, 256], sizes = [8, 128], strides = [1, 1]} : vector<8x384xf32> to vector<8x128xf32>
    %215 = arith.mulf %213, %168 : vector<8x128xf32>
    %216 = arith.mulf %212, %211 : vector<8x128xf32>
    %217 = arith.addf %215, %216 : vector<8x128xf32>
    %218 = math.tanh %217 : vector<8x128xf32>
    %219 = arith.mulf %214, %218 : vector<8x128xf32>
    %220 = arith.truncf %219 : vector<8x128xf32> to vector<8x128xbf16>
    %221 = tpu.concatenate %220, %196 in 1 : vector<8x128xbf16>, vector<8x128xbf16> -> vector<8x256xbf16>
    %c0_72 = arith.constant 0 : index
    %c0_73 = arith.constant 0 : index
    %c0_74 = arith.constant 0 : index
    %222 = vector.load %arg2[%c0_72, %c0_73, %c0_74] : memref<1x256x512xbf16, #tpu.memory_space<vmem>>, vector<1x256x512xbf16>
    %223 = vector.shape_cast %222 : vector<1x256x512xbf16> to vector<256x512xbf16>
    %cst_75 = arith.constant dense<0.000000e+00> : vector<8x512xf32>
    %224 = tpu.matmul %221, %223, %cst_75 {dimension_numbers = #tpu.dot_dimension_numbers<[1], [0], [0], [1], [0, 0, 1, 1], [], []>} : vector<8x256xbf16>, vector<256x512xbf16>, vector<8x512xf32> -> vector<8x512xf32>
    %c0_76 = arith.constant 0 : index
    %c0_77 = arith.constant 0 : index
    %c0_78 = arith.constant 0 : index
    %225 = vector.load %arg3[%c0_76, %c0_77, %c0_78] : memref<1x1x512xf32, #tpu.memory_space<vmem>>, vector<1x1x512xf32>
    %226 = vector.shape_cast %225 : vector<1x1x512xf32> to vector<1x512xf32>
    %227 = vector.broadcast %226 : vector<1x512xf32> to vector<8x512xf32>
    %228 = arith.addf %224, %227 : vector<8x512xf32>
    %229 = vector.extract_strided_slice %228 {offsets = [0, 0], sizes = [8, 384], strides = [1, 1]} : vector<8x512xf32> to vector<8x384xf32>
    %230 = arith.negf %229 : vector<8x384xf32>
    %231 = math.exp %230 : vector<8x384xf32>
    %cst_79 = arith.constant 1.000000e+00 : f32
    %232 = vector.broadcast %cst_79 : f32 to vector<8x384xf32>
    %233 = arith.addf %232, %231 : vector<8x384xf32>
    %234 = arith.divf %232, %233 : vector<8x384xf32>
    %235 = vector.extract_strided_slice %228 {offsets = [0, 384], sizes = [8, 128], strides = [1, 1]} : vector<8x512xf32> to vector<8x128xf32>
    %236 = math.tanh %235 : vector<8x128xf32>
    %237 = vector.extract_strided_slice %234 {offsets = [0, 0], sizes = [8, 128], strides = [1, 1]} : vector<8x384xf32> to vector<8x128xf32>
    %238 = vector.extract_strided_slice %234 {offsets = [0, 128], sizes = [8, 128], strides = [1, 1]} : vector<8x384xf32> to vector<8x128xf32>
    %239 = vector.extract_strided_slice %234 {offsets = [0, 256], sizes = [8, 128], strides = [1, 1]} : vector<8x384xf32> to vector<8x128xf32>
    %240 = arith.mulf %238, %193 : vector<8x128xf32>
    %241 = arith.mulf %237, %236 : vector<8x128xf32>
    %242 = arith.addf %240, %241 : vector<8x128xf32>
    %243 = math.tanh %242 : vector<8x128xf32>
    %244 = arith.mulf %239, %243 : vector<8x128xf32>
    %245 = arith.truncf %244 : vector<8x128xf32> to vector<8x128xbf16>
    %c4_80 = arith.constant 4 : index
    %c0_81 = arith.constant 0 : index
    %c0_82 = arith.constant 0 : index
    %246 = vector.load %arg6[%c4_80, %c0_81, %c0_82] : memref<8x8x128xf32, #tpu.memory_space<vmem>>, vector<1x8x128xf32>
    %247 = vector.shape_cast %246 : vector<1x8x128xf32> to vector<8x128xf32>
    %248 = vector.shape_cast %244 : vector<8x128xf32> to vector<1x8x128xf32>
    tpu.vector_store %arg6[%c4_80, %c0_81, %c0_82], %248 {strides = array<i32>} : memref<8x8x128xf32, #tpu.memory_space<vmem>>, vector<1x8x128xf32>,
    %c5 = arith.constant 5 : index
    %c0_83 = arith.constant 0 : index
    %249 = vector.load %arg0[%c5, %c0_83] : memref<15x512xf32, #tpu.memory_space<vmem>>, vector<8x512xf32>
    %c0_84 = arith.constant 0 : index
    %c0_85 = arith.constant 0 : index
    %250 = vector.load %arg1[%c0_84, %c0_85] : memref<128x512xbf16, #tpu.memory_space<vmem>>, vector<128x512xbf16>
    %cst_86 = arith.constant dense<0.000000e+00> : vector<8x512xf32>
    %251 = tpu.matmul %220, %250, %cst_86 {dimension_numbers = #tpu.dot_dimension_numbers<[1], [0], [0], [1], [0, 0, 1, 1], [], []>} : vector<8x128xbf16>, vector<128x512xbf16>, vector<8x512xf32> -> vector<8x512xf32>
    %252 = arith.addf %249, %251 : vector<8x512xf32>
    %253 = vector.extract_strided_slice %252 {offsets = [0, 0], sizes = [8, 384], strides = [1, 1]} : vector<8x512xf32> to vector<8x384xf32>
    %254 = arith.negf %253 : vector<8x384xf32>
    %255 = math.exp %254 : vector<8x384xf32>
    %cst_87 = arith.constant 1.000000e+00 : f32
    %256 = vector.broadcast %cst_87 : f32 to vector<8x384xf32>
    %257 = arith.addf %256, %255 : vector<8x384xf32>
    %258 = arith.divf %256, %257 : vector<8x384xf32>
    %259 = vector.extract_strided_slice %252 {offsets = [0, 384], sizes = [8, 128], strides = [1, 1]} : vector<8x512xf32> to vector<8x128xf32>
    %260 = math.tanh %259 : vector<8x128xf32>
    %261 = vector.extract_strided_slice %258 {offsets = [0, 0], sizes = [8, 128], strides = [1, 1]} : vector<8x384xf32> to vector<8x128xf32>
    %262 = vector.extract_strided_slice %258 {offsets = [0, 128], sizes = [8, 128], strides = [1, 1]} : vector<8x384xf32> to vector<8x128xf32>
    %263 = vector.extract_strided_slice %258 {offsets = [0, 256], sizes = [8, 128], strides = [1, 1]} : vector<8x384xf32> to vector<8x128xf32>
    %264 = arith.mulf %262, %217 : vector<8x128xf32>
    %265 = arith.mulf %261, %260 : vector<8x128xf32>
    %266 = arith.addf %264, %265 : vector<8x128xf32>
    %267 = math.tanh %266 : vector<8x128xf32>
    %268 = arith.mulf %263, %267 : vector<8x128xf32>
    %269 = arith.truncf %268 : vector<8x128xf32> to vector<8x128xbf16>
    %270 = tpu.concatenate %269, %245 in 1 : vector<8x128xbf16>, vector<8x128xbf16> -> vector<8x256xbf16>
    %c0_88 = arith.constant 0 : index
    %c0_89 = arith.constant 0 : index
    %c0_90 = arith.constant 0 : index
    %271 = vector.load %arg2[%c0_88, %c0_89, %c0_90] : memref<1x256x512xbf16, #tpu.memory_space<vmem>>, vector<1x256x512xbf16>
    %272 = vector.shape_cast %271 : vector<1x256x512xbf16> to vector<256x512xbf16>
    %cst_91 = arith.constant dense<0.000000e+00> : vector<8x512xf32>
    %273 = tpu.matmul %270, %272, %cst_91 {dimension_numbers = #tpu.dot_dimension_numbers<[1], [0], [0], [1], [0, 0, 1, 1], [], []>} : vector<8x256xbf16>, vector<256x512xbf16>, vector<8x512xf32> -> vector<8x512xf32>
    %c0_92 = arith.constant 0 : index
    %c0_93 = arith.constant 0 : index
    %c0_94 = arith.constant 0 : index
    %274 = vector.load %arg3[%c0_92, %c0_93, %c0_94] : memref<1x1x512xf32, #tpu.memory_space<vmem>>, vector<1x1x512xf32>
    %275 = vector.shape_cast %274 : vector<1x1x512xf32> to vector<1x512xf32>
    %276 = vector.broadcast %275 : vector<1x512xf32> to vector<8x512xf32>
    %277 = arith.addf %273, %276 : vector<8x512xf32>
    %278 = vector.extract_strided_slice %277 {offsets = [0, 0], sizes = [8, 384], strides = [1, 1]} : vector<8x512xf32> to vector<8x384xf32>
    %279 = arith.negf %278 : vector<8x384xf32>
    %280 = math.exp %279 : vector<8x384xf32>
    %cst_95 = arith.constant 1.000000e+00 : f32
    %281 = vector.broadcast %cst_95 : f32 to vector<8x384xf32>
    %282 = arith.addf %281, %280 : vector<8x384xf32>
    %283 = arith.divf %281, %282 : vector<8x384xf32>
    %284 = vector.extract_strided_slice %277 {offsets = [0, 384], sizes = [8, 128], strides = [1, 1]} : vector<8x512xf32> to vector<8x128xf32>
    %285 = math.tanh %284 : vector<8x128xf32>
    %286 = vector.extract_strided_slice %283 {offsets = [0, 0], sizes = [8, 128], strides = [1, 1]} : vector<8x384xf32> to vector<8x128xf32>
    %287 = vector.extract_strided_slice %283 {offsets = [0, 128], sizes = [8, 128], strides = [1, 1]} : vector<8x384xf32> to vector<8x128xf32>
    %288 = vector.extract_strided_slice %283 {offsets = [0, 256], sizes = [8, 128], strides = [1, 1]} : vector<8x384xf32> to vector<8x128xf32>
    %289 = arith.mulf %287, %242 : vector<8x128xf32>
    %290 = arith.mulf %286, %285 : vector<8x128xf32>
    %291 = arith.addf %289, %290 : vector<8x128xf32>
    %292 = math.tanh %291 : vector<8x128xf32>
    %293 = arith.mulf %288, %292 : vector<8x128xf32>
    %294 = arith.truncf %293 : vector<8x128xf32> to vector<8x128xbf16>
    %c5_96 = arith.constant 5 : index
    %c0_97 = arith.constant 0 : index
    %c0_98 = arith.constant 0 : index
    %295 = vector.load %arg6[%c5_96, %c0_97, %c0_98] : memref<8x8x128xf32, #tpu.memory_space<vmem>>, vector<1x8x128xf32>
    %296 = vector.shape_cast %295 : vector<1x8x128xf32> to vector<8x128xf32>
    %297 = vector.shape_cast %293 : vector<8x128xf32> to vector<1x8x128xf32>
    tpu.vector_store %arg6[%c5_96, %c0_97, %c0_98], %297 {strides = array<i32>} : memref<8x8x128xf32, #tpu.memory_space<vmem>>, vector<1x8x128xf32>,
    %c6 = arith.constant 6 : index
    %c0_99 = arith.constant 0 : index
    %298 = vector.load %arg0[%c6, %c0_99] : memref<15x512xf32, #tpu.memory_space<vmem>>, vector<8x512xf32>
    %c0_100 = arith.constant 0 : index
    %c0_101 = arith.constant 0 : index
    %299 = vector.load %arg1[%c0_100, %c0_101] : memref<128x512xbf16, #tpu.memory_space<vmem>>, vector<128x512xbf16>
    %cst_102 = arith.constant dense<0.000000e+00> : vector<8x512xf32>
    %300 = tpu.matmul %269, %299, %cst_102 {dimension_numbers = #tpu.dot_dimension_numbers<[1], [0], [0], [1], [0, 0, 1, 1], [], []>} : vector<8x128xbf16>, vector<128x512xbf16>, vector<8x512xf32> -> vector<8x512xf32>
    %301 = arith.addf %298, %300 : vector<8x512xf32>
    %302 = vector.extract_strided_slice %301 {offsets = [0, 0], sizes = [8, 384], strides = [1, 1]} : vector<8x512xf32> to vector<8x384xf32>
    %303 = arith.negf %302 : vector<8x384xf32>
    %304 = math.exp %303 : vector<8x384xf32>
    %cst_103 = arith.constant 1.000000e+00 : f32
    %305 = vector.broadcast %cst_103 : f32 to vector<8x384xf32>
    %306 = arith.addf %305, %304 : vector<8x384xf32>
    %307 = arith.divf %305, %306 : vector<8x384xf32>
    %308 = vector.extract_strided_slice %301 {offsets = [0, 384], sizes = [8, 128], strides = [1, 1]} : vector<8x512xf32> to vector<8x128xf32>
    %309 = math.tanh %308 : vector<8x128xf32>
    %310 = vector.extract_strided_slice %307 {offsets = [0, 0], sizes = [8, 128], strides = [1, 1]} : vector<8x384xf32> to vector<8x128xf32>
    %311 = vector.extract_strided_slice %307 {offsets = [0, 128], sizes = [8, 128], strides = [1, 1]} : vector<8x384xf32> to vector<8x128xf32>
    %312 = vector.extract_strided_slice %307 {offsets = [0, 256], sizes = [8, 128], strides = [1, 1]} : vector<8x384xf32> to vector<8x128xf32>
    %313 = arith.mulf %311, %266 : vector<8x128xf32>
    %314 = arith.mulf %310, %309 : vector<8x128xf32>
    %315 = arith.addf %313, %314 : vector<8x128xf32>
    %316 = math.tanh %315 : vector<8x128xf32>
    %317 = arith.mulf %312, %316 : vector<8x128xf32>
    %318 = arith.truncf %317 : vector<8x128xf32> to vector<8x128xbf16>
    %319 = tpu.concatenate %318, %294 in 1 : vector<8x128xbf16>, vector<8x128xbf16> -> vector<8x256xbf16>
    %c0_104 = arith.constant 0 : index
    %c0_105 = arith.constant 0 : index
    %c0_106 = arith.constant 0 : index
    %320 = vector.load %arg2[%c0_104, %c0_105, %c0_106] : memref<1x256x512xbf16, #tpu.memory_space<vmem>>, vector<1x256x512xbf16>
    %321 = vector.shape_cast %320 : vector<1x256x512xbf16> to vector<256x512xbf16>
    %cst_107 = arith.constant dense<0.000000e+00> : vector<8x512xf32>
    %322 = tpu.matmul %319, %321, %cst_107 {dimension_numbers = #tpu.dot_dimension_numbers<[1], [0], [0], [1], [0, 0, 1, 1], [], []>} : vector<8x256xbf16>, vector<256x512xbf16>, vector<8x512xf32> -> vector<8x512xf32>
    %c0_108 = arith.constant 0 : index
    %c0_109 = arith.constant 0 : index
    %c0_110 = arith.constant 0 : index
    %323 = vector.load %arg3[%c0_108, %c0_109, %c0_110] : memref<1x1x512xf32, #tpu.memory_space<vmem>>, vector<1x1x512xf32>
    %324 = vector.shape_cast %323 : vector<1x1x512xf32> to vector<1x512xf32>
    %325 = vector.broadcast %324 : vector<1x512xf32> to vector<8x512xf32>
    %326 = arith.addf %322, %325 : vector<8x512xf32>
    %327 = vector.extract_strided_slice %326 {offsets = [0, 0], sizes = [8, 384], strides = [1, 1]} : vector<8x512xf32> to vector<8x384xf32>
    %328 = arith.negf %327 : vector<8x384xf32>
    %329 = math.exp %328 : vector<8x384xf32>
    %cst_111 = arith.constant 1.000000e+00 : f32
    %330 = vector.broadcast %cst_111 : f32 to vector<8x384xf32>
    %331 = arith.addf %330, %329 : vector<8x384xf32>
    %332 = arith.divf %330, %331 : vector<8x384xf32>
    %333 = vector.extract_strided_slice %326 {offsets = [0, 384], sizes = [8, 128], strides = [1, 1]} : vector<8x512xf32> to vector<8x128xf32>
    %334 = math.tanh %333 : vector<8x128xf32>
    %335 = vector.extract_strided_slice %332 {offsets = [0, 0], sizes = [8, 128], strides = [1, 1]} : vector<8x384xf32> to vector<8x128xf32>
    %336 = vector.extract_strided_slice %332 {offsets = [0, 128], sizes = [8, 128], strides = [1, 1]} : vector<8x384xf32> to vector<8x128xf32>
    %337 = vector.extract_strided_slice %332 {offsets = [0, 256], sizes = [8, 128], strides = [1, 1]} : vector<8x384xf32> to vector<8x128xf32>
    %338 = arith.mulf %336, %291 : vector<8x128xf32>
    %339 = arith.mulf %335, %334 : vector<8x128xf32>
    %340 = arith.addf %338, %339 : vector<8x128xf32>
    %341 = math.tanh %340 : vector<8x128xf32>
    %342 = arith.mulf %337, %341 : vector<8x128xf32>
    %343 = arith.truncf %342 : vector<8x128xf32> to vector<8x128xbf16>
    %c6_112 = arith.constant 6 : index
    %c0_113 = arith.constant 0 : index
    %c0_114 = arith.constant 0 : index
    %344 = vector.load %arg6[%c6_112, %c0_113, %c0_114] : memref<8x8x128xf32, #tpu.memory_space<vmem>>, vector<1x8x128xf32>
    %345 = vector.shape_cast %344 : vector<1x8x128xf32> to vector<8x128xf32>
    %346 = vector.shape_cast %342 : vector<8x128xf32> to vector<1x8x128xf32>
    tpu.vector_store %arg6[%c6_112, %c0_113, %c0_114], %346 {strides = array<i32>} : memref<8x8x128xf32, #tpu.memory_space<vmem>>, vector<1x8x128xf32>,
    %c7 = arith.constant 7 : index
    %c0_115 = arith.constant 0 : index
    %347 = vector.load %arg0[%c7, %c0_115] : memref<15x512xf32, #tpu.memory_space<vmem>>, vector<8x512xf32>
    %c0_116 = arith.constant 0 : index
    %c0_117 = arith.constant 0 : index
    %348 = vector.load %arg1[%c0_116, %c0_117] : memref<128x512xbf16, #tpu.memory_space<vmem>>, vector<128x512xbf16>
    %cst_118 = arith.constant dense<0.000000e+00> : vector<8x512xf32>
    %349 = tpu.matmul %318, %348, %cst_118 {dimension_numbers = #tpu.dot_dimension_numbers<[1], [0], [0], [1], [0, 0, 1, 1], [], []>} : vector<8x128xbf16>, vector<128x512xbf16>, vector<8x512xf32> -> vector<8x512xf32>
    %350 = arith.addf %347, %349 : vector<8x512xf32>
    %351 = vector.extract_strided_slice %350 {offsets = [0, 0], sizes = [8, 384], strides = [1, 1]} : vector<8x512xf32> to vector<8x384xf32>
    %352 = arith.negf %351 : vector<8x384xf32>
    %353 = math.exp %352 : vector<8x384xf32>
    %cst_119 = arith.constant 1.000000e+00 : f32
    %354 = vector.broadcast %cst_119 : f32 to vector<8x384xf32>
    %355 = arith.addf %354, %353 : vector<8x384xf32>
    %356 = arith.divf %354, %355 : vector<8x384xf32>
    %357 = vector.extract_strided_slice %350 {offsets = [0, 384], sizes = [8, 128], strides = [1, 1]} : vector<8x512xf32> to vector<8x128xf32>
    %358 = math.tanh %357 : vector<8x128xf32>
    %359 = vector.extract_strided_slice %356 {offsets = [0, 0], sizes = [8, 128], strides = [1, 1]} : vector<8x384xf32> to vector<8x128xf32>
    %360 = vector.extract_strided_slice %356 {offsets = [0, 128], sizes = [8, 128], strides = [1, 1]} : vector<8x384xf32> to vector<8x128xf32>
    %361 = vector.extract_strided_slice %356 {offsets = [0, 256], sizes = [8, 128], strides = [1, 1]} : vector<8x384xf32> to vector<8x128xf32>
    %362 = arith.mulf %360, %315 : vector<8x128xf32>
    %363 = arith.mulf %359, %358 : vector<8x128xf32>
    %364 = arith.addf %362, %363 : vector<8x128xf32>
    %365 = math.tanh %364 : vector<8x128xf32>
    %366 = arith.mulf %361, %365 : vector<8x128xf32>
    %367 = arith.truncf %366 : vector<8x128xf32> to vector<8x128xbf16>
    %368 = tpu.concatenate %367, %343 in 1 : vector<8x128xbf16>, vector<8x128xbf16> -> vector<8x256xbf16>
    %c0_120 = arith.constant 0 : index
    %c0_121 = arith.constant 0 : index
    %c0_122 = arith.constant 0 : index
    %369 = vector.load %arg2[%c0_120, %c0_121, %c0_122] : memref<1x256x512xbf16, #tpu.memory_space<vmem>>, vector<1x256x512xbf16>
    %370 = vector.shape_cast %369 : vector<1x256x512xbf16> to vector<256x512xbf16>
    %cst_123 = arith.constant dense<0.000000e+00> : vector<8x512xf32>
    %371 = tpu.matmul %368, %370, %cst_123 {dimension_numbers = #tpu.dot_dimension_numbers<[1], [0], [0], [1], [0, 0, 1, 1], [], []>} : vector<8x256xbf16>, vector<256x512xbf16>, vector<8x512xf32> -> vector<8x512xf32>
    %c0_124 = arith.constant 0 : index
    %c0_125 = arith.constant 0 : index
    %c0_126 = arith.constant 0 : index
    %372 = vector.load %arg3[%c0_124, %c0_125, %c0_126] : memref<1x1x512xf32, #tpu.memory_space<vmem>>, vector<1x1x512xf32>
    %373 = vector.shape_cast %372 : vector<1x1x512xf32> to vector<1x512xf32>
    %374 = vector.broadcast %373 : vector<1x512xf32> to vector<8x512xf32>
    %375 = arith.addf %371, %374 : vector<8x512xf32>
    %376 = vector.extract_strided_slice %375 {offsets = [0, 0], sizes = [8, 384], strides = [1, 1]} : vector<8x512xf32> to vector<8x384xf32>
    %377 = arith.negf %376 : vector<8x384xf32>
    %378 = math.exp %377 : vector<8x384xf32>
    %cst_127 = arith.constant 1.000000e+00 : f32
    %379 = vector.broadcast %cst_127 : f32 to vector<8x384xf32>
    %380 = arith.addf %379, %378 : vector<8x384xf32>
    %381 = arith.divf %379, %380 : vector<8x384xf32>
    %382 = vector.extract_strided_slice %375 {offsets = [0, 384], sizes = [8, 128], strides = [1, 1]} : vector<8x512xf32> to vector<8x128xf32>
    %383 = math.tanh %382 : vector<8x128xf32>
    %384 = vector.extract_strided_slice %381 {offsets = [0, 0], sizes = [8, 128], strides = [1, 1]} : vector<8x384xf32> to vector<8x128xf32>
    %385 = vector.extract_strided_slice %381 {offsets = [0, 128], sizes = [8, 128], strides = [1, 1]} : vector<8x384xf32> to vector<8x128xf32>
    %386 = vector.extract_strided_slice %381 {offsets = [0, 256], sizes = [8, 128], strides = [1, 1]} : vector<8x384xf32> to vector<8x128xf32>
    %387 = arith.mulf %385, %340 : vector<8x128xf32>
    %388 = arith.mulf %384, %383 : vector<8x128xf32>
    %389 = arith.addf %387, %388 : vector<8x128xf32>
    %390 = math.tanh %389 : vector<8x128xf32>
    %391 = arith.mulf %386, %390 : vector<8x128xf32>
    %392 = arith.truncf %391 : vector<8x128xf32> to vector<8x128xbf16>
    %c7_128 = arith.constant 7 : index
    %c0_129 = arith.constant 0 : index
    %c0_130 = arith.constant 0 : index
    %393 = vector.load %arg6[%c7_128, %c0_129, %c0_130] : memref<8x8x128xf32, #tpu.memory_space<vmem>>, vector<1x8x128xf32>
    %394 = vector.shape_cast %393 : vector<1x8x128xf32> to vector<8x128xf32>
    %395 = vector.shape_cast %391 : vector<8x128xf32> to vector<1x8x128xf32>
    tpu.vector_store %arg6[%c7_128, %c0_129, %c0_130], %395 {strides = array<i32>} : memref<8x8x128xf32, #tpu.memory_space<vmem>>, vector<1x8x128xf32>,
    %c0_131 = arith.constant 0 : index
    %c0_132 = arith.constant 0 : index
    %396 = vector.load %arg4[%c0_131, %c0_132] : memref<128x128xbf16, #tpu.memory_space<vmem>>, vector<128x128xbf16>
    %cst_133 = arith.constant dense<0.000000e+00> : vector<8x128xf32>
    %397 = tpu.matmul %392, %396, %cst_133 {dimension_numbers = #tpu.dot_dimension_numbers<[1], [0], [0], [1], [0, 0, 1, 1], [], []>} : vector<8x128xbf16>, vector<128x128xbf16>, vector<8x128xf32> -> vector<8x128xf32>
    %c0_134 = arith.constant 0 : index
    %c0_135 = arith.constant 0 : index
    %398 = vector.load %arg5[%c0_134, %c0_135] : memref<1x128xf32, #tpu.memory_space<vmem>>, vector<1x128xf32>
    %399 = vector.broadcast %398 : vector<1x128xf32> to vector<8x128xf32>
    %400 = arith.addf %397, %399 : vector<8x128xf32>
    %c0_136 = arith.constant 0 : index
    %c0_137 = arith.constant 0 : index
    %401 = vector.load %arg7[%c0_136, %c0_137] : memref<8x128xf32, #tpu.memory_space<vmem>>, vector<8x128xf32>
    tpu.vector_store %arg7[%c0_136, %c0_137], %400 {strides = array<i32>} : memref<8x128xf32, #tpu.memory_space<vmem>>, vector<8x128xf32>,
    return
  }
}

</mosaic_0001>

<llo_original>
// kernel: tpu_custom_call.1
$region0: #{tpu_custom_call.1}
  #allocation0 [shape = 'u32[]', space=smem, size = 0x4, offset = 0x4, fixed_abs, tag = 'smem constant byte address 0x4 - core index']
  #allocation1 [shape = 'u32[144,128]{1,0:T(1,128)}', space=vmem, size = 0x12000, scoped, tag = 'internal scratch']
  %s0 = inlined_call_operand.hbm [shape: f32[15,512], index: 0, kind: input, shape index: {}]
  %s1 = inlined_call_operand.hbm [shape: bf16[128,512], index: 1, kind: input, shape index: {}]
  %s2 = inlined_call_operand.hbm [shape: bf16[1,256,512], index: 2, kind: input, shape index: {}]
  %s3 = inlined_call_operand.vmem [shape: f32[1,1,512], index: 3, kind: input, shape index: {}]
  %s4 = inlined_call_operand.hbm [shape: bf16[128,128], index: 4, kind: input, shape index: {}]
  %s5 = inlined_call_operand.vmem [shape: f32[1,128], index: 5, kind: input, shape index: {}]
  %s6 = inlined_call_operand.hbm [shape: f32[8,8,128], index: 6, kind: output, shape index: {0}]
  %s7 = inlined_call_operand.hbm [shape: f32[8,128], index: 7, kind: output, shape index: {1}]
  %8 = xla_tuple %s6, %s7
  %s9 = sld [smem:[#allocation0]]
  $region58: #{tpu_custom_call.1} parent=0
    _
  %s11 = ssub.s32 1, %s9
  %s12 = scalar_select 0, %s11, %s9
  $region1: #{tpu_custom_call.1} parent=0
    #allocation2 [shape = 'u8[32768]{0}', space=vmem, size = 0x8000, scoped, tag = 'input window, operand 0, single buffered']
    #allocation3 [shape = 's32[1]{0}', space=sflag, size = 0x4, scoped, tag = 'scoped memory for tpu_custom_call.1']
    #allocation4 [shape = 's32[1]{0}', space=sflag, size = 0x4, scoped, tag = 'scoped memory for tpu_custom_call.1']
    #allocation5 [shape = 'u8[131072]{0}', space=vmem, size = 0x20000, scoped, tag = 'input window, operand 1, single buffered']
    #allocation6 [shape = 's32[1]{0}', space=sflag, size = 0x4, scoped, tag = 'scoped memory for tpu_custom_call.1']
    #allocation7 [shape = 'u8[262144]{0}', space=vmem, size = 0x40000, scoped, tag = 'input window, operand 2, single buffered']
    #allocation8 [shape = 'u8[32768]{0}', space=vmem, size = 0x8000, scoped, tag = 'input window, operand 4, single buffered']
    #allocation9 [shape = 's32[1]{0}', space=sflag, size = 0x4, scoped, tag = 'scoped memory for tpu_custom_call.1']
    #allocation10 [shape = 'u8[32768]{0}', space=vmem, size = 0x8000, scoped, tag = 'output window, operand 0, single buffered']
    #allocation11 [shape = 'u8[4096]{0}', space=vmem, size = 0x1000, scoped, tag = 'output window, operand 1, single buffered']
    #allocation12 [shape = 's32[1]{0}', space=sflag, size = 0x4, scoped, tag = 'scoped memory for tpu_custom_call.1']
    %13 = vsyncpa [#allocation3], 0
    %14 = vsyncpa [#allocation6], 0
    %15 = vsyncpa [#allocation9], 0
    %16 = vsyncpa [#allocation4], 0
    %17 = vsyncpa [#allocation12], 0
    // Predicated region
    $region2: #{tpu_custom_call.1} parent=1 // pred_check
      _
    $region3: #{tpu_custom_call.1} parent=1 // pred_check_branch
      %19 = sbr.rel (0) target = $region5
    $region4: #{tpu_custom_call.1} parent=1 // pred_region
      %s21 = ssub.s32 1024, 1024
      %22 = vsyncadd [#allocation3], %s21
      %s23 = sshll.u32 [#allocation2], 4
      %s24 = int_to_ptr.vmem [resolvable:$true] %s23
      %29 = dma.hbm_to_vmem [thread:$0]  %s0, 1024, %s24, [#allocation3], 512, 512, 32
    $region5: #{tpu_custom_call.1} parent=1 // pred_fallthru
      _
    // Predicated region
    $region6: #{tpu_custom_call.1} parent=1 // pred_check
      _
    $region7: #{tpu_custom_call.1} parent=1 // pred_check_branch
      %31 = sbr.rel (0) target = $region9
    $region8: #{tpu_custom_call.1} parent=1 // pred_region
      %s33 = ssub.s32 4096, 4096
      %34 = vsyncadd [#allocation6], %s33
      %s35 = sshll.u32 [#allocation5], 4
      %s36 = int_to_ptr.vmem [resolvable:$true] %s35
      %41 = dma.hbm_to_vmem [thread:$0]  %s1, 4096, %s36, [#allocation6], 256, 256, 16
    $region9: #{tpu_custom_call.1} parent=1 // pred_fallthru
      _
    // Predicated region
    $region10: #{tpu_custom_call.1} parent=1 // pred_check
      _
    $region11: #{tpu_custom_call.1} parent=1 // pred_check_branch
      %43 = sbr.rel (0) target = $region13
    $region12: #{tpu_custom_call.1} parent=1 // pred_region
      %s45 = ssub.s32 8192, 8192
      %46 = vsyncadd [#allocation6], %s45
      %s47 = sshll.u32 [#allocation7], 4
      %s48 = int_to_ptr.vmem [resolvable:$true] %s47
      %53 = dma.hbm_to_vmem [thread:$0]  %s2, 8192, %s48, [#allocation6], 256, 256, 16
    $region13: #{tpu_custom_call.1} parent=1 // pred_fallthru
      _
    // Predicated region
    $region14: #{tpu_custom_call.1} parent=1 // pred_check
      _
    $region15: #{tpu_custom_call.1} parent=1 // pred_check_branch
      %55 = sbr.rel (0) target = $region17
    $region16: #{tpu_custom_call.1} parent=1 // pred_region
      _
    $region17: #{tpu_custom_call.1} parent=1 // pred_fallthru
      _
    // Predicated region
    $region18: #{tpu_custom_call.1} parent=1 // pred_check
      _
    $region19: #{tpu_custom_call.1} parent=1 // pred_check_branch
      %57 = sbr.rel (0) target = $region21
    $region20: #{tpu_custom_call.1} parent=1 // pred_region
      %s59 = ssub.s32 1024, 1024
      %60 = vsyncadd [#allocation9], %s59
      %s61 = sshll.u32 [#allocation8], 4
      %s62 = int_to_ptr.vmem [resolvable:$true] %s61
      %67 = dma.hbm_to_vmem [thread:$0]  %s4, 1024, %s62, [#allocation9], 64, 64, 4
    $region21: #{tpu_custom_call.1} parent=1 // pred_fallthru
      _
    // Predicated region
    $region22: #{tpu_custom_call.1} parent=1 // pred_check
      _
    $region23: #{tpu_custom_call.1} parent=1 // pred_check_branch
      %69 = sbr.rel (0) target = $region25
    $region24: #{tpu_custom_call.1} parent=1 // pred_region
      _
    $region25: #{tpu_custom_call.1} parent=1 // pred_fallthru
      _
    // Predicated region
    $region26: #{tpu_custom_call.1} parent=1 // pred_check
      _
    $region27: #{tpu_custom_call.1} parent=1 // pred_check_branch
      %71 = sbr.rel (0) target = $region29
    $region28: #{tpu_custom_call.1} parent=1 // pred_region
      %72 = dma.done [#allocation3], 1024
    $region29: #{tpu_custom_call.1} parent=1 // pred_fallthru
      _
    // Predicated region
    $region30: #{tpu_custom_call.1} parent=1 // pred_check
      _
    $region31: #{tpu_custom_call.1} parent=1 // pred_check_branch
      %74 = sbr.rel (0) target = $region33
    $region32: #{tpu_custom_call.1} parent=1 // pred_region
      %75 = dma.done [#allocation6], 4096
    $region33: #{tpu_custom_call.1} parent=1 // pred_fallthru
      _
    // Predicated region
    $region34: #{tpu_custom_call.1} parent=1 // pred_check
      _
    $region35: #{tpu_custom_call.1} parent=1 // pred_check_branch
      %77 = sbr.rel (0) target = $region37
    $region36: #{tpu_custom_call.1} parent=1 // pred_region
      %78 = dma.done [#allocation6], 8192
    $region37: #{tpu_custom_call.1} parent=1 // pred_fallthru
      _
    // Predicated region
    $region38: #{tpu_custom_call.1} parent=1 // pred_check
      _
    $region39: #{tpu_custom_call.1} parent=1 // pred_check_branch
      %80 = sbr.rel (0) target = $region41
    $region40: #{tpu_custom_call.1} parent=1 // pred_region
      %81 = dma.done [#allocation9], 1024
    $region41: #{tpu_custom_call.1} parent=1 // pred_fallthru
      _
    %v83 = vld [vmem:[#allocation2] sm:$0xff]
    %v84 = vld [vmem:[#allocation2 + $0x8] sm:$0xff]
    %v85 = vld [vmem:[#allocation2 + $0x10] sm:$0xff]
    %v86 = vld [vmem:[#allocation2 + $0x18] sm:$0xff]
    %v87 = vld [vmem:[#allocation5] sm:$0xff]
    %v88 = vld [vmem:[#allocation5 + $0x8] sm:$0xff]
    %v89 = vld [vmem:[#allocation5 + $0x10] sm:$0xff]
    %v90 = vld [vmem:[#allocation5 + $0x18] sm:$0xff]
    %v91 = vld [vmem:[#allocation5 + $0x20] sm:$0xff]
    %v92 = vld [vmem:[#allocation5 + $0x28] sm:$0xff]
    %v93 = vld [vmem:[#allocation5 + $0x30] sm:$0xff]
    %v94 = vld [vmem:[#allocation5 + $0x38] sm:$0xff]
    %v95 = vld [vmem:[#allocation5 + $0x40] sm:$0xff]
    %v96 = vld [vmem:[#allocation5 + $0x48] sm:$0xff]
    %v97 = vld [vmem:[#allocation5 + $0x50] sm:$0xff]
    %v98 = vld [vmem:[#allocation5 + $0x58] sm:$0xff]
    %v99 = vld [vmem:[#allocation5 + $0x60] sm:$0xff]
    %v100 = vld [vmem:[#allocation5 + $0x68] sm:$0xff]
    %v101 = vld [vmem:[#allocation5 + $0x70] sm:$0xff]
    %v102 = vld [vmem:[#allocation5 + $0x78] sm:$0xff]
    %v103 = vld [vmem:[#allocation5 + $0x80] sm:$0xff]
    %v104 = vld [vmem:[#allocation5 + $0x88] sm:$0xff]
    %v105 = vld [vmem:[#allocation5 + $0x90] sm:$0xff]
    %v106 = vld [vmem:[#allocation5 + $0x98] sm:$0xff]
    %v107 = vld [vmem:[#allocation5 + $0xa0] sm:$0xff]
    %v108 = vld [vmem:[#allocation5 + $0xa8] sm:$0xff]
    %v109 = vld [vmem:[#allocation5 + $0xb0] sm:$0xff]
    %v110 = vld [vmem:[#allocation5 + $0xb8] sm:$0xff]
    %v111 = vld [vmem:[#allocation5 + $0xc0] sm:$0xff]
    %v112 = vld [vmem:[#allocation5 + $0xc8] sm:$0xff]
    %v113 = vld [vmem:[#allocation5 + $0xd0] sm:$0xff]
    %v114 = vld [vmem:[#allocation5 + $0xd8] sm:$0xff]
    %v115 = vld [vmem:[#allocation5 + $0xe0] sm:$0xff]
    %v116 = vld [vmem:[#allocation5 + $0xe8] sm:$0xff]
    %v117 = vld [vmem:[#allocation5 + $0xf0] sm:$0xff]
    %v118 = vld [vmem:[#allocation5 + $0xf8] sm:$0xff]
    %v151 = vunpack.c.l.b16 %v87
    %v152 = vunpack.c.h.b16 %v87
    %v153 = vunpack.c.l.b16 %v88
    %v154 = vunpack.c.h.b16 %v88
    %v155 = vunpack.c.l.b16 %v89
    %v156 = vunpack.c.h.b16 %v89
    %v157 = vunpack.c.l.b16 %v90
    %v158 = vunpack.c.h.b16 %v90
    %v159 = vunpack.c.l.b16 %v91
    %v160 = vunpack.c.h.b16 %v91
    %v161 = vunpack.c.l.b16 %v92
    %v162 = vunpack.c.h.b16 %v92
    %v163 = vunpack.c.l.b16 %v93
    %v164 = vunpack.c.h.b16 %v93
    %v165 = vunpack.c.l.b16 %v94
    %v166 = vunpack.c.h.b16 %v94
    %v167 = vunpack.c.l.b16 %v95
    %v168 = vunpack.c.h.b16 %v95
    %v169 = vunpack.c.l.b16 %v96
    %v170 = vunpack.c.h.b16 %v96
    %v171 = vunpack.c.l.b16 %v97
    %v172 = vunpack.c.h.b16 %v97
    %v173 = vunpack.c.l.b16 %v98
    %v174 = vunpack.c.h.b16 %v98
    %v175 = vunpack.c.l.b16 %v99
    %v176 = vunpack.c.h.b16 %v99
    %v177 = vunpack.c.l.b16 %v100
    %v178 = vunpack.c.h.b16 %v100
    %v179 = vunpack.c.l.b16 %v101
    %v180 = vunpack.c.h.b16 %v101
    %v181 = vunpack.c.l.b16 %v102
    %v182 = vunpack.c.h.b16 %v102
    %v183 = vunpack.c.l.b16 %v103
    %v184 = vunpack.c.h.b16 %v103
    %v185 = vunpack.c.l.b16 %v104
    %v186 = vunpack.c.h.b16 %v104
    %v187 = vunpack.c.l.b16 %v105
    %v188 = vunpack.c.h.b16 %v105
    %v189 = vunpack.c.l.b16 %v106
    %v190 = vunpack.c.h.b16 %v106
    %v191 = vunpack.c.l.b16 %v107
    %v192 = vunpack.c.h.b16 %v107
    %v193 = vunpack.c.l.b16 %v108
    %v194 = vunpack.c.h.b16 %v108
    %v195 = vunpack.c.l.b16 %v109
    %v196 = vunpack.c.h.b16 %v109
    %v197 = vunpack.c.l.b16 %v110
    %v198 = vunpack.c.h.b16 %v110
    %v199 = vunpack.c.l.b16 %v111
    %v200 = vunpack.c.h.b16 %v111
    %v201 = vunpack.c.l.b16 %v112
    %v202 = vunpack.c.h.b16 %v112
    %v203 = vunpack.c.l.b16 %v113
    %v204 = vunpack.c.h.b16 %v113
    %v205 = vunpack.c.l.b16 %v114
    %v206 = vunpack.c.h.b16 %v114
    %v207 = vunpack.c.l.b16 %v115
    %v208 = vunpack.c.h.b16 %v115
    %v209 = vunpack.c.l.b16 %v116
    %v210 = vunpack.c.h.b16 %v116
    %v211 = vunpack.c.l.b16 %v117
    %v212 = vunpack.c.h.b16 %v117
    %v213 = vunpack.c.l.b16 %v118
    %v214 = vunpack.c.h.b16 %v118
    %v215 = vpack.c.b16 %v155, %v151
    %v216 = vpack.c.b16 %v156, %v152
    %v217 = vpack.c.b16 %v157, %v153
    %v218 = vpack.c.b16 %v158, %v154
    %v219 = vpack.c.b16 %v163, %v159
    %v220 = vpack.c.b16 %v164, %v160
    %v221 = vpack.c.b16 %v165, %v161
    %v222 = vpack.c.b16 %v166, %v162
    %v223 = vpack.c.b16 %v171, %v167
    %v224 = vpack.c.b16 %v172, %v168
    %v225 = vpack.c.b16 %v173, %v169
    %v226 = vpack.c.b16 %v174, %v170
    %v227 = vpack.c.b16 %v179, %v175
    %v228 = vpack.c.b16 %v180, %v176
    %v229 = vpack.c.b16 %v181, %v177
    %v230 = vpack.c.b16 %v182, %v178
    %v231 = vpack.c.b16 %v187, %v183
    %v232 = vpack.c.b16 %v188, %v184
    %v233 = vpack.c.b16 %v189, %v185
    %v234 = vpack.c.b16 %v190, %v186
    %v235 = vpack.c.b16 %v195, %v191
    %v236 = vpack.c.b16 %v196, %v192
    %v237 = vpack.c.b16 %v197, %v193
    %v238 = vpack.c.b16 %v198, %v194
    %v239 = vpack.c.b16 %v203, %v199
    %v240 = vpack.c.b16 %v204, %v200
    %v241 = vpack.c.b16 %v205, %v201
    %v242 = vpack.c.b16 %v206, %v202
    %v243 = vpack.c.b16 %v211, %v207
    %v244 = vpack.c.b16 %v212, %v208
    %v245 = vpack.c.b16 %v213, %v209
    %v246 = vpack.c.b16 %v214, %v210
    %279 = vmatprep.subr.bf16.mxu0 %v244
    %280 = vmatpush1.bf16.msra.mxu0 %v243
    %281 = vmatprep.subr.bf16.mxu0 %v240
    %282 = vmatpush1.bf16.msra.mxu0 %v239
    %283 = vmatprep.subr.bf16.mxu0 %v236
    %284 = vmatpush1.bf16.msra.mxu0 %v235
    %285 = vmatprep.subr.bf16.mxu0 %v232
    %286 = vmatpush1.bf16.msra.mxu0 %v231
    %287 = vmatprep.subr.bf16.mxu0 %v228
    %288 = vmatpush1.bf16.msra.mxu0 %v227
    %289 = vmatprep.subr.bf16.mxu0 %v224
    %290 = vmatpush1.bf16.msra.mxu0 %v223
    %291 = vmatprep.subr.bf16.mxu0 %v220
    %292 = vmatpush1.bf16.msra.mxu0 %v219
    %293 = vmatprep.subr.bf16.mxu0 %v216
    %294 = vmatpush1.bf16.msra.mxu0 %v215
    %295 = vmatprep.subr.bf16.mxu0 0
    %296 = vmatpush2.bf16.msra.mxu0 0
    %297 = vmatprep.subr.bf16.mxu0 0
    %298 = vmatpush2.bf16.msra.mxu0 0
    %299 = vmatprep.subr.bf16.mxu0 0
    %300 = vmatpush2.bf16.msra.mxu0 0
    %301 = vmatprep.subr.bf16.mxu0 0
    %302 = vmatpush2.bf16.msra.mxu0 0
    %303 = vmatprep.subr.bf16.mxu0 0
    %304 = vmatpush2.bf16.msra.mxu0 0
    %305 = vmatprep.subr.bf16.mxu0 0
    %306 = vmatpush2.bf16.msra.mxu0 0
    %307 = vmatprep.subr.bf16.mxu0 0
    %308 = vmatpush2.bf16.msra.mxu0 0
    %309 = vmatprep.subr.bf16.mxu0 0
    %310 = vmatpush2.bf16.msra.mxu0 0
    %311 = vmatprep.mubr.bf16.mxu0 0
    %312 = vmatmul.mubr.bf16.gmra.mxu0 0
    %v313 = vpop.f32.mrf.mxu0
    %v314 = vadd.f32 0.0, %v313
    %v315 = vpop.f32.mrf.mxu0
    %v316 = vadd.f32 0.0, %v315
    %v317 = vpop.f32.mrf.mxu0
    %v318 = vpop.f32.mrf.mxu0
    %319 = vdwg.mxu0
    %320 = vmatprep.subr.bf16.mxu0 %v246
    %321 = vmatpush1.bf16.msra.mxu0 %v245
    %322 = vmatprep.subr.bf16.mxu0 %v242
    %323 = vmatpush1.bf16.msra.mxu0 %v241
    %324 = vmatprep.subr.bf16.mxu0 %v238
    %325 = vmatpush1.bf16.msra.mxu0 %v237
    %326 = vmatprep.subr.bf16.mxu0 %v234
    %327 = vmatpush1.bf16.msra.mxu0 %v233
    %328 = vmatprep.subr.bf16.mxu0 %v230
    %329 = vmatpush1.bf16.msra.mxu0 %v229
    %330 = vmatprep.subr.bf16.mxu0 %v226
    %331 = vmatpush1.bf16.msra.mxu0 %v225
    %332 = vmatprep.subr.bf16.mxu0 %v222
    %333 = vmatpush1.bf16.msra.mxu0 %v221
    %334 = vmatprep.subr.bf16.mxu0 %v218
    %335 = vmatpush1.bf16.msra.mxu0 %v217
    %336 = vmatprep.subr.bf16.mxu0 0
    %337 = vmatpush2.bf16.msra.mxu0 0
    %338 = vmatprep.subr.bf16.mxu0 0
    %339 = vmatpush2.bf16.msra.mxu0 0
    %340 = vmatprep.subr.bf16.mxu0 0
    %341 = vmatpush2.bf16.msra.mxu0 0
    %342 = vmatprep.subr.bf16.mxu0 0
    %343 = vmatpush2.bf16.msra.mxu0 0
    %344 = vmatprep.subr.bf16.mxu0 0
    %345 = vmatpush2.bf16.msra.mxu0 0
    %346 = vmatprep.subr.bf16.mxu0 0
    %347 = vmatpush2.bf16.msra.mxu0 0
    %348 = vmatprep.subr.bf16.mxu0 0
    %349 = vmatpush2.bf16.msra.mxu0 0
    %350 = vmatprep.subr.bf16.mxu0 0
    %351 = vmatpush2.bf16.msra.mxu0 0
    %352 = vmatprep.mubr.bf16.mxu0 0
    %353 = vmatmul.mubr.bf16.gmra.mxu0 0
    %v354 = vpop.f32.mrf.mxu0
    %v355 = vadd.f32 0.0, %v354
    %v356 = vpop.f32.mrf.mxu0
    %v357 = vadd.f32 0.0, %v356
    %v358 = vpop.f32.mrf.mxu0
    %v359 = vpop.f32.mrf.mxu0
    %360 = vdwg.mxu0
    %v361 = vadd.f32 %v83, %v314
    %v362 = vadd.f32 %v84, %v316
    %v363 = vadd.f32 %v85, %v355
    %v364 = vadd.f32 %v86, %v357
    %v365 = vxor.u32 %v361, 2147483648
    %v366 = vxor.u32 %v362, 2147483648
    %v367 = vxor.u32 %v363, 2147483648
    %v368 = vmul.f32 %v365, 1.442695
    %v369 = vpow.pop %v368
    %v370 = vmul.f32 %v366, 1.442695
    %v371 = vpow.pop %v370
    %v372 = vmul.f32 %v367, 1.442695
    %v373 = vpow.pop %v372
    %v374 = vadd.f32 %v369, 1.0
    %v375 = vadd.f32 %v371, 1.0
    %v376 = vadd.f32 %v373, 1.0
    %v377 = vrcp.pop %v374
    %v378 = vmul.f32 1.0, %v377
    %v379 = vrcp.pop %v375
    %v380 = vmul.f32 1.0, %v379
    %v381 = vrcp.pop %v376
    %v382 = vmul.f32 1.0, %v381
    %v383 = vtanh.pop %v364
    %v384 = vmul.f32 %v380, 0.0
    %v385 = vmul.f32 %v378, %v383
    %v386 = vadd.f32 %v384, %v385
    %v387 = vtanh.pop %v386
    %v388 = vmul.f32 %v382, %v387
    %v389 = vpack.c.bf16 %v388, %v388
    %v390 = vld [vmem:[#allocation7] sm:$0xff]
    %v391 = vld [vmem:[#allocation7 + $0x8] sm:$0xff]
    %v392 = vld [vmem:[#allocation7 + $0x10] sm:$0xff]
    %v393 = vld [vmem:[#allocation7 + $0x18] sm:$0xff]
    %v394 = vld [vmem:[#allocation7 + $0x20] sm:$0xff]
    %v395 = vld [vmem:[#allocation7 + $0x28] sm:$0xff]
    %v396 = vld [vmem:[#allocation7 + $0x30] sm:$0xff]
    %v397 = vld [vmem:[#allocation7 + $0x38] sm:$0xff]
    %v398 = vld [vmem:[#allocation7 + $0x40] sm:$0xff]
    %v399 = vld [vmem:[#allocation7 + $0x48] sm:$0xff]
    %v400 = vld [vmem:[#allocation7 + $0x50] sm:$0xff]
    %v401 = vld [vmem:[#allocation7 + $0x58] sm:$0xff]
    %v402 = vld [vmem:[#allocation7 + $0x60] sm:$0xff]
    %v403 = vld [vmem:[#allocation7 + $0x68] sm:$0xff]
    %v404 = vld [vmem:[#allocation7 + $0x70] sm:$0xff]
    %v405 = vld [vmem:[#allocation7 + $0x78] sm:$0xff]
    %v406 = vld [vmem:[#allocation7 + $0x80] sm:$0xff]
    %v407 = vld [vmem:[#allocation7 + $0x88] sm:$0xff]
    %v408 = vld [vmem:[#allocation7 + $0x90] sm:$0xff]
    %v409 = vld [vmem:[#allocation7 + $0x98] sm:$0xff]
    %v410 = vld [vmem:[#allocation7 + $0xa0] sm:$0xff]
    %v411 = vld [vmem:[#allocation7 + $0xa8] sm:$0xff]
    %v412 = vld [vmem:[#allocation7 + $0xb0] sm:$0xff]
    %v413 = vld [vmem:[#allocation7 + $0xb8] sm:$0xff]
    %v414 = vld [vmem:[#allocation7 + $0xc0] sm:$0xff]
    %v415 = vld [vmem:[#allocation7 + $0xc8] sm:$0xff]
    %v416 = vld [vmem:[#allocation7 + $0xd0] sm:$0xff]
    %v417 = vld [vmem:[#allocation7 + $0xd8] sm:$0xff]
    %v418 = vld [vmem:[#allocation7 + $0xe0] sm:$0xff]
    %v419 = vld [vmem:[#allocation7 + $0xe8] sm:$0xff]
    %v420 = vld [vmem:[#allocation7 + $0xf0] sm:$0xff]
    %v421 = vld [vmem:[#allocation7 + $0xf8] sm:$0xff]
    %v422 = vld [vmem:[#allocation7 + $0x100] sm:$0xff]
    %v423 = vld [vmem:[#allocation7 + $0x108] sm:$0xff]
    %v424 = vld [vmem:[#allocation7 + $0x110] sm:$0xff]
    %v425 = vld [vmem:[#allocation7 + $0x118] sm:$0xff]
    %v426 = vld [vmem:[#allocation7 + $0x120] sm:$0xff]
    %v427 = vld [vmem:[#allocation7 + $0x128] sm:$0xff]
    %v428 = vld [vmem:[#allocation7 + $0x130] sm:$0xff]
    %v429 = vld [vmem:[#allocation7 + $0x138] sm:$0xff]
    %v430 = vld [vmem:[#allocation7 + $0x140] sm:$0xff]
    %v431 = vld [vmem:[#allocation7 + $0x148] sm:$0xff]
    %v432 = vld [vmem:[#allocation7 + $0x150] sm:$0xff]
    %v433 = vld [vmem:[#allocation7 + $0x158] sm:$0xff]
    %v434 = vld [vmem:[#allocation7 + $0x160] sm:$0xff]
    %v435 = vld [vmem:[#allocation7 + $0x168] sm:$0xff]
    %v436 = vld [vmem:[#allocation7 + $0x170] sm:$0xff]
    %v437 = vld [vmem:[#allocation7 + $0x178] sm:$0xff]
    %v438 = vld [vmem:[#allocation7 + $0x180] sm:$0xff]
    %v439 = vld [vmem:[#allocation7 + $0x188] sm:$0xff]
    %v440 = vld [vmem:[#allocation7 + $0x190] sm:$0xff]
    %v441 = vld [vmem:[#allocation7 + $0x198] sm:$0xff]
    %v442 = vld [vmem:[#allocation7 + $0x1a0] sm:$0xff]
    %v443 = vld [vmem:[#allocation7 + $0x1a8] sm:$0xff]
    %v444 = vld [vmem:[#allocation7 + $0x1b0] sm:$0xff]
    %v445 = vld [vmem:[#allocation7 + $0x1b8] sm:$0xff]
    %v446 = vld [vmem:[#allocation7 + $0x1c0] sm:$0xff]
    %v447 = vld [vmem:[#allocation7 + $0x1c8] sm:$0xff]
    %v448 = vld [vmem:[#allocation7 + $0x1d0] sm:$0xff]
    %v449 = vld [vmem:[#allocation7 + $0x1d8] sm:$0xff]
    %v450 = vld [vmem:[#allocation7 + $0x1e0] sm:$0xff]
    %v451 = vld [vmem:[#allocation7 + $0x1e8] sm:$0xff]
    %v452 = vld [vmem:[#allocation7 + $0x1f0] sm:$0xff]
    %v453 = vld [vmem:[#allocation7 + $0x1f8] sm:$0xff]
    %v454 = vld [vmem:[%s3] sm:$0xf]
    %v456 = vlaneseq
    %v457 = vshrl.u32 %v456, 7
    %v458 = vsub.s32 0, %v457
    %v459 = vrot.slane %v454, %v458
    %v460 = vlaneseq
    %v461 = vshrl.u32 %v460, 7
    %v462 = vsub.s32 1, %v461
    %v463 = vrot.slane %v454, %v462
    %v464 = vlaneseq
    %v465 = vshrl.u32 %v464, 7
    %v466 = vsub.s32 2, %v465
    %v467 = vrot.slane %v454, %v466
    %v468 = vlaneseq
    %v469 = vshrl.u32 %v468, 7
    %v470 = vsub.s32 3, %v469
    %v471 = vrot.slane %v454, %v470
    %v540 = vunpack.c.l.b16 %v390
    %v541 = vunpack.c.h.b16 %v390
    %v542 = vunpack.c.l.b16 %v391
    %v543 = vunpack.c.h.b16 %v391
    %v544 = vunpack.c.l.b16 %v392
    %v545 = vunpack.c.h.b16 %v392
    %v546 = vunpack.c.l.b16 %v393
    %v547 = vunpack.c.h.b16 %v393
    %v548 = vunpack.c.l.b16 %v394
    %v549 = vunpack.c.h.b16 %v394
    %v550 = vunpack.c.l.b16 %v395
    %v551 = vunpack.c.h.b16 %v395
    %v552 = vunpack.c.l.b16 %v396
    %v553 = vunpack.c.h.b16 %v396
    %v554 = vunpack.c.l.b16 %v397
    %v555 = vunpack.c.h.b16 %v397
    %v556 = vunpack.c.l.b16 %v398
    %v557 = vunpack.c.h.b16 %v398
    %v558 = vunpack.c.l.b16 %v399
    %v559 = vunpack.c.h.b16 %v399
    %v560 = vunpack.c.l.b16 %v400
    %v561 = vunpack.c.h.b16 %v400
    %v562 = vunpack.c.l.b16 %v401
    %v563 = vunpack.c.h.b16 %v401
    %v564 = vunpack.c.l.b16 %v402
    %v565 = vunpack.c.h.b16 %v402
    %v566 = vunpack.c.l.b16 %v403
    %v567 = vunpack.c.h.b16 %v403
    %v568 = vunpack.c.l.b16 %v404
    %v569 = vunpack.c.h.b16 %v404
    %v570 = vunpack.c.l.b16 %v405
    %v571 = vunpack.c.h.b16 %v405
    %v572 = vunpack.c.l.b16 %v406
    %v573 = vunpack.c.h.b16 %v406
    %v574 = vunpack.c.l.b16 %v407
    %v575 = vunpack.c.h.b16 %v407
    %v576 = vunpack.c.l.b16 %v408
    %v577 = vunpack.c.h.b16 %v408
    %v578 = vunpack.c.l.b16 %v409
    %v579 = vunpack.c.h.b16 %v409
    %v580 = vunpack.c.l.b16 %v410
    %v581 = vunpack.c.h.b16 %v410
    %v582 = vunpack.c.l.b16 %v411
    %v583 = vunpack.c.h.b16 %v411
    %v584 = vunpack.c.l.b16 %v412
    %v585 = vunpack.c.h.b16 %v412
    %v586 = vunpack.c.l.b16 %v413
    %v587 = vunpack.c.h.b16 %v413
    %v588 = vunpack.c.l.b16 %v414
    %v589 = vunpack.c.h.b16 %v414
    %v590 = vunpack.c.l.b16 %v415
    %v591 = vunpack.c.h.b16 %v415
    %v592 = vunpack.c.l.b16 %v416
    %v593 = vunpack.c.h.b16 %v416
    %v594 = vunpack.c.l.b16 %v417
    %v595 = vunpack.c.h.b16 %v417
    %v596 = vunpack.c.l.b16 %v418
    %v597 = vunpack.c.h.b16 %v418
    %v598 = vunpack.c.l.b16 %v419
    %v599 = vunpack.c.h.b16 %v419
    %v600 = vunpack.c.l.b16 %v420
    %v601 = vunpack.c.h.b16 %v420
    %v602 = vunpack.c.l.b16 %v421
    %v603 = vunpack.c.h.b16 %v421
    %v604 = vunpack.c.l.b16 %v422
    %v605 = vunpack.c.h.b16 %v422
    %v606 = vunpack.c.l.b16 %v423
    %v607 = vunpack.c.h.b16 %v423
    %v608 = vunpack.c.l.b16 %v424
    %v609 = vunpack.c.h.b16 %v424
    %v610 = vunpack.c.l.b16 %v425
    %v611 = vunpack.c.h.b16 %v425
    %v612 = vunpack.c.l.b16 %v426
    %v613 = vunpack.c.h.b16 %v426
    %v614 = vunpack.c.l.b16 %v427
    %v615 = vunpack.c.h.b16 %v427
    %v616 = vunpack.c.l.b16 %v428
    %v617 = vunpack.c.h.b16 %v428
    %v618 = vunpack.c.l.b16 %v429
    %v619 = vunpack.c.h.b16 %v429
    %v620 = vunpack.c.l.b16 %v430
    %v621 = vunpack.c.h.b16 %v430
    %v622 = vunpack.c.l.b16 %v431
    %v623 = vunpack.c.h.b16 %v431
    %v624 = vunpack.c.l.b16 %v432
    %v625 = vunpack.c.h.b16 %v432
    %v626 = vunpack.c.l.b16 %v433
    %v627 = vunpack.c.h.b16 %v433
    %v628 = vunpack.c.l.b16 %v434
    %v629 = vunpack.c.h.b16 %v434
    %v630 = vunpack.c.l.b16 %v435
    %v631 = vunpack.c.h.b16 %v435
    %v632 = vunpack.c.l.b16 %v436
    %v633 = vunpack.c.h.b16 %v436
    %v634 = vunpack.c.l.b16 %v437
    %v635 = vunpack.c.h.b16 %v437
    %v636 = vunpack.c.l.b16 %v438
    %v637 = vunpack.c.h.b16 %v438
    %v638 = vunpack.c.l.b16 %v439
    %v639 = vunpack.c.h.b16 %v439
    %v640 = vunpack.c.l.b16 %v440
    %v641 = vunpack.c.h.b16 %v440
    %v642 = vunpack.c.l.b16 %v441
    %v643 = vunpack.c.h.b16 %v441
    %v644 = vunpack.c.l.b16 %v442
    %v645 = vunpack.c.h.b16 %v442
    %v646 = vunpack.c.l.b16 %v443
    %v647 = vunpack.c.h.b16 %v443
    %v648 = vunpack.c.l.b16 %v444
    %v649 = vunpack.c.h.b16 %v444
    %v650 = vunpack.c.l.b16 %v445
    %v651 = vunpack.c.h.b16 %v445
    %v652 = vunpack.c.l.b16 %v446
    %v653 = vunpack.c.h.b16 %v446
    %v654 = vunpack.c.l.b16 %v447
    %v655 = vunpack.c.h.b16 %v447
    %v656 = vunpack.c.l.b16 %v448
    %v657 = vunpack.c.h.b16 %v448
    %v658 = vunpack.c.l.b16 %v449
    %v659 = vunpack.c.h.b16 %v449
    %v660 = vunpack.c.l.b16 %v450
    %v661 = vunpack.c.h.b16 %v450
    %v662 = vunpack.c.l.b16 %v451
    %v663 = vunpack.c.h.b16 %v451
    %v664 = vunpack.c.l.b16 %v452
    %v665 = vunpack.c.h.b16 %v452
    %v666 = vunpack.c.l.b16 %v453
    %v667 = vunpack.c.h.b16 %v453
    %v668 = vpack.c.b16 %v544, %v540
    %v669 = vpack.c.b16 %v545, %v541
    %v670 = vpack.c.b16 %v546, %v542
    %v671 = vpack.c.b16 %v547, %v543
    %v672 = vpack.c.b16 %v552, %v548
    %v673 = vpack.c.b16 %v553, %v549
    %v674 = vpack.c.b16 %v554, %v550
    %v675 = vpack.c.b16 %v555, %v551
    %v676 = vpack.c.b16 %v560, %v556
    %v677 = vpack.c.b16 %v561, %v557
    %v678 = vpack.c.b16 %v562, %v558
    %v679 = vpack.c.b16 %v563, %v559
    %v680 = vpack.c.b16 %v568, %v564
    %v681 = vpack.c.b16 %v569, %v565
    %v682 = vpack.c.b16 %v570, %v566
    %v683 = vpack.c.b16 %v571, %v567
    %v684 = vpack.c.b16 %v576, %v572
    %v685 = vpack.c.b16 %v577, %v573
    %v686 = vpack.c.b16 %v578, %v574
    %v687 = vpack.c.b16 %v579, %v575
    %v688 = vpack.c.b16 %v584, %v580
    %v689 = vpack.c.b16 %v585, %v581
    %v690 = vpack.c.b16 %v586, %v582
    %v691 = vpack.c.b16 %v587, %v583
    %v692 = vpack.c.b16 %v592, %v588
    %v693 = vpack.c.b16 %v593, %v589
    %v694 = vpack.c.b16 %v594, %v590
    %v695 = vpack.c.b16 %v595, %v591
    %v696 = vpack.c.b16 %v600, %v596
    %v697 = vpack.c.b16 %v601, %v597
    %v698 = vpack.c.b16 %v602, %v598
    %v699 = vpack.c.b16 %v603, %v599
    %v700 = vpack.c.b16 %v608, %v604
    %v701 = vpack.c.b16 %v609, %v605
    %v702 = vpack.c.b16 %v610, %v606
    %v703 = vpack.c.b16 %v611, %v607
    %v704 = vpack.c.b16 %v616, %v612
    %v705 = vpack.c.b16 %v617, %v613
    %v706 = vpack.c.b16 %v618, %v614
    %v707 = vpack.c.b16 %v619, %v615
    %v708 = vpack.c.b16 %v624, %v620
    %v709 = vpack.c.b16 %v625, %v621
    %v710 = vpack.c.b16 %v626, %v622
    %v711 = vpack.c.b16 %v627, %v623
    %v712 = vpack.c.b16 %v632, %v628
    %v713 = vpack.c.b16 %v633, %v629
    %v714 = vpack.c.b16 %v634, %v630
    %v715 = vpack.c.b16 %v635, %v631
    %v716 = vpack.c.b16 %v640, %v636
    %v717 = vpack.c.b16 %v641, %v637
    %v718 = vpack.c.b16 %v642, %v638
    %v719 = vpack.c.b16 %v643, %v639
    %v720 = vpack.c.b16 %v648, %v644
    %v721 = vpack.c.b16 %v649, %v645
    %v722 = vpack.c.b16 %v650, %v646
    %v723 = vpack.c.b16 %v651, %v647
    %v724 = vpack.c.b16 %v656, %v652
    %v725 = vpack.c.b16 %v657, %v653
    %v726 = vpack.c.b16 %v658, %v654
    %v727 = vpack.c.b16 %v659, %v655
    %v728 = vpack.c.b16 %v664, %v660
    %v729 = vpack.c.b16 %v665, %v661
    %v730 = vpack.c.b16 %v666, %v662
    %v731 = vpack.c.b16 %v667, %v663
    %796 = vmatprep.subr.bf16.mxu0 %v697
    %797 = vmatpush1.bf16.msra.mxu0 %v696
    %798 = vmatprep.subr.bf16.mxu0 %v693
    %799 = vmatpush1.bf16.msra.mxu0 %v692
    %800 = vmatprep.subr.bf16.mxu0 %v689
    %801 = vmatpush1.bf16.msra.mxu0 %v688
    %802 = vmatprep.subr.bf16.mxu0 %v685
    %803 = vmatpush1.bf16.msra.mxu0 %v684
    %804 = vmatprep.subr.bf16.mxu0 %v681
    %805 = vmatpush1.bf16.msra.mxu0 %v680
    %806 = vmatprep.subr.bf16.mxu0 %v677
    %807 = vmatpush1.bf16.msra.mxu0 %v676
    %808 = vmatprep.subr.bf16.mxu0 %v673
    %809 = vmatpush1.bf16.msra.mxu0 %v672
    %810 = vmatprep.subr.bf16.mxu0 %v669
    %811 = vmatpush1.bf16.msra.mxu0 %v668
    %812 = vmatprep.subr.bf16.mxu0 %v729
    %813 = vmatpush2.bf16.msra.mxu0 %v728
    %814 = vmatprep.subr.bf16.mxu0 %v725
    %815 = vmatpush2.bf16.msra.mxu0 %v724
    %816 = vmatprep.subr.bf16.mxu0 %v721
    %817 = vmatpush2.bf16.msra.mxu0 %v720
    %818 = vmatprep.subr.bf16.mxu0 %v717
    %819 = vmatpush2.bf16.msra.mxu0 %v716
    %820 = vmatprep.subr.bf16.mxu0 %v713
    %821 = vmatpush2.bf16.msra.mxu0 %v712
    %822 = vmatprep.subr.bf16.mxu0 %v709
    %823 = vmatpush2.bf16.msra.mxu0 %v708
    %824 = vmatprep.subr.bf16.mxu0 %v705
    %825 = vmatpush2.bf16.msra.mxu0 %v704
    %826 = vmatprep.subr.bf16.mxu0 %v701
    %827 = vmatpush2.bf16.msra.mxu0 %v700
    %828 = vmatprep.mubr.bf16.mxu0 0
    %829 = vmatmul.mubr.bf16.gmra.mxu0 %v389
    %v830 = vpop.f32.mrf.mxu0
    %v831 = vadd.f32 %v459, %v830
    %v832 = vpop.f32.mrf.mxu0
    %v833 = vadd.f32 %v463, %v832
    %v834 = vpop.f32.mrf.mxu0
    %v835 = vpop.f32.mrf.mxu0
    %836 = vdwg.mxu0
    %837 = vmatprep.subr.bf16.mxu0 %v699
    %838 = vmatpush1.bf16.msra.mxu0 %v698
    %839 = vmatprep.subr.bf16.mxu0 %v695
    %840 = vmatpush1.bf16.msra.mxu0 %v694
    %841 = vmatprep.subr.bf16.mxu0 %v691
    %842 = vmatpush1.bf16.msra.mxu0 %v690
    %843 = vmatprep.subr.bf16.mxu0 %v687
    %844 = vmatpush1.bf16.msra.mxu0 %v686
    %845 = vmatprep.subr.bf16.mxu0 %v683
    %846 = vmatpush1.bf16.msra.mxu0 %v682
    %847 = vmatprep.subr.bf16.mxu0 %v679
    %848 = vmatpush1.bf16.msra.mxu0 %v678
    %849 = vmatprep.subr.bf16.mxu0 %v675
    %850 = vmatpush1.bf16.msra.mxu0 %v674
    %851 = vmatprep.subr.bf16.mxu0 %v671
    %852 = vmatpush1.bf16.msra.mxu0 %v670
    %853 = vmatprep.subr.bf16.mxu0 %v731
    %854 = vmatpush2.bf16.msra.mxu0 %v730
    %855 = vmatprep.subr.bf16.mxu0 %v727
    %856 = vmatpush2.bf16.msra.mxu0 %v726
    %857 = vmatprep.subr.bf16.mxu0 %v723
    %858 = vmatpush2.bf16.msra.mxu0 %v722
    %859 = vmatprep.subr.bf16.mxu0 %v719
    %860 = vmatpush2.bf16.msra.mxu0 %v718
    %861 = vmatprep.subr.bf16.mxu0 %v715
    %862 = vmatpush2.bf16.msra.mxu0 %v714
    %863 = vmatprep.subr.bf16.mxu0 %v711
    %864 = vmatpush2.bf16.msra.mxu0 %v710
    %865 = vmatprep.subr.bf16.mxu0 %v707
    %866 = vmatpush2.bf16.msra.mxu0 %v706
    %867 = vmatprep.subr.bf16.mxu0 %v703
    %868 = vmatpush2.bf16.msra.mxu0 %v702
    %869 = vmatprep.mubr.bf16.mxu0 0
    %870 = vmatmul.mubr.bf16.gmra.mxu0 %v389
    %v871 = vpop.f32.mrf.mxu0
    %v872 = vadd.f32 %v467, %v871
    %v873 = vpop.f32.mrf.mxu0
    %v874 = vadd.f32 %v471, %v873
    %v875 = vpop.f32.mrf.mxu0
    %v876 = vpop.f32.mrf.mxu0
    %877 = vdwg.mxu0
    %v878 = vxor.u32 %v831, 2147483648
    %v879 = vxor.u32 %v833, 2147483648
    %v880 = vxor.u32 %v872, 2147483648
    %v881 = vmul.f32 %v878, 1.442695
    %v882 = vpow.pop %v881
    %v883 = vmul.f32 %v879, 1.442695
    %v884 = vpow.pop %v883
    %v885 = vmul.f32 %v880, 1.442695
    %v886 = vpow.pop %v885
    %v887 = vadd.f32 %v882, 1.0
    %v888 = vadd.f32 %v884, 1.0
    %v889 = vadd.f32 %v886, 1.0
    %v890 = vrcp.pop %v887
    %v891 = vmul.f32 1.0, %v890
    %v892 = vrcp.pop %v888
    %v893 = vmul.f32 1.0, %v892
    %v894 = vrcp.pop %v889
    %v895 = vmul.f32 1.0, %v894
    %v896 = vtanh.pop %v874
    %v897 = vmul.f32 %v893, 0.0
    %v898 = vmul.f32 %v891, %v896
    %v899 = vadd.f32 %v897, %v898
    %v900 = vtanh.pop %v899
    %v901 = vmul.f32 %v895, %v900
    %v902 = vpack.c.bf16 %v901, %v901
    %903 = vst [vmem:[#allocation10] sm:$0xff] %v901
    %v904 = vld [vmem:[#allocation2] sm:$0xfe]
    %v905 = vld [vmem:[#allocation2 + $0x8] sm:$0xfe]
    %v906 = vld [vmem:[#allocation2 + $0x10] sm:$0xfe]
    %v907 = vld [vmem:[#allocation2 + $0x18] sm:$0xfe]
    %v908 = vld [vmem:[#allocation2 + $0x20] sm:$0x1]
    %v909 = vld [vmem:[#allocation2 + $0x28] sm:$0x1]
    %v910 = vld [vmem:[#allocation2 + $0x30] sm:$0x1]
    %v911 = vld [vmem:[#allocation2 + $0x38] sm:$0x1]
    %v912 = vld [vmem:[#allocation5] sm:$0xff]
    %v913 = vld [vmem:[#allocation5 + $0x8] sm:$0xff]
    %v914 = vld [vmem:[#allocation5 + $0x10] sm:$0xff]
    %v915 = vld [vmem:[#allocation5 + $0x18] sm:$0xff]
    %v916 = vld [vmem:[#allocation5 + $0x20] sm:$0xff]
    %v917 = vld [vmem:[#allocation5 + $0x28] sm:$0xff]
    %v918 = vld [vmem:[#allocation5 + $0x30] sm:$0xff]
    %v919 = vld [vmem:[#allocation5 + $0x38] sm:$0xff]
    %v920 = vld [vmem:[#allocation5 + $0x40] sm:$0xff]
    %v921 = vld [vmem:[#allocation5 + $0x48] sm:$0xff]
    %v922 = vld [vmem:[#allocation5 + $0x50] sm:$0xff]
    %v923 = vld [vmem:[#allocation5 + $0x58] sm:$0xff]
    %v924 = vld [vmem:[#allocation5 + $0x60] sm:$0xff]
    %v925 = vld [vmem:[#allocation5 + $0x68] sm:$0xff]
    %v926 = vld [vmem:[#allocation5 + $0x70] sm:$0xff]
    %v927 = vld [vmem:[#allocation5 + $0x78] sm:$0xff]
    %v928 = vld [vmem:[#allocation5 + $0x80] sm:$0xff]
    %v929 = vld [vmem:[#allocation5 + $0x88] sm:$0xff]
    %v930 = vld [vmem:[#allocation5 + $0x90] sm:$0xff]
    %v931 = vld [vmem:[#allocation5 + $0x98] sm:$0xff]
    %v932 = vld [vmem:[#allocation5 + $0xa0] sm:$0xff]
    %v933 = vld [vmem:[#allocation5 + $0xa8] sm:$0xff]
    %v934 = vld [vmem:[#allocation5 + $0xb0] sm:$0xff]
    %v935 = vld [vmem:[#allocation5 + $0xb8] sm:$0xff]
    %v936 = vld [vmem:[#allocation5 + $0xc0] sm:$0xff]
    %v937 = vld [vmem:[#allocation5 + $0xc8] sm:$0xff]
    %v938 = vld [vmem:[#allocation5 + $0xd0] sm:$0xff]
    %v939 = vld [vmem:[#allocation5 + $0xd8] sm:$0xff]
    %v940 = vld [vmem:[#allocation5 + $0xe0] sm:$0xff]
    %v941 = vld [vmem:[#allocation5 + $0xe8] sm:$0xff]
    %v942 = vld [vmem:[#allocation5 + $0xf0] sm:$0xff]
    %v943 = vld [vmem:[#allocation5 + $0xf8] sm:$0xff]
    %v976 = vunpack.c.l.b16 %v912
    %v977 = vunpack.c.h.b16 %v912
    %v978 = vunpack.c.l.b16 %v913
    %v979 = vunpack.c.h.b16 %v913
    %v980 = vunpack.c.l.b16 %v914
    %v981 = vunpack.c.h.b16 %v914
    %v982 = vunpack.c.l.b16 %v915
    %v983 = vunpack.c.h.b16 %v915
    %v984 = vunpack.c.l.b16 %v916
    %v985 = vunpack.c.h.b16 %v916
    %v986 = vunpack.c.l.b16 %v917
    %v987 = vunpack.c.h.b16 %v917
    %v988 = vunpack.c.l.b16 %v918
    %v989 = vunpack.c.h.b16 %v918
    %v990 = vunpack.c.l.b16 %v919
    %v991 = vunpack.c.h.b16 %v919
    %v992 = vunpack.c.l.b16 %v920
    %v993 = vunpack.c.h.b16 %v920
    %v994 = vunpack.c.l.b16 %v921
    %v995 = vunpack.c.h.b16 %v921
    %v996 = vunpack.c.l.b16 %v922
    %v997 = vunpack.c.h.b16 %v922
    %v998 = vunpack.c.l.b16 %v923
    %v999 = vunpack.c.h.b16 %v923
    %v1000 = vunpack.c.l.b16 %v924
    %v1001 = vunpack.c.h.b16 %v924
    %v1002 = vunpack.c.l.b16 %v925
    %v1003 = vunpack.c.h.b16 %v925
    %v1004 = vunpack.c.l.b16 %v926
    %v1005 = vunpack.c.h.b16 %v926
    %v1006 = vunpack.c.l.b16 %v927
    %v1007 = vunpack.c.h.b16 %v927
    %v1008 = vunpack.c.l.b16 %v928
    %v1009 = vunpack.c.h.b16 %v928
    %v1010 = vunpack.c.l.b16 %v929
    %v1011 = vunpack.c.h.b16 %v929
    %v1012 = vunpack.c.l.b16 %v930
    %v1013 = vunpack.c.h.b16 %v930
    %v1014 = vunpack.c.l.b16 %v931
    %v1015 = vunpack.c.h.b16 %v931
    %v1016 = vunpack.c.l.b16 %v932
    %v1017 = vunpack.c.h.b16 %v932
    %v1018 = vunpack.c.l.b16 %v933
    %v1019 = vunpack.c.h.b16 %v933
    %v1020 = vunpack.c.l.b16 %v934
    %v1021 = vunpack.c.h.b16 %v934
    %v1022 = vunpack.c.l.b16 %v935
    %v1023 = vunpack.c.h.b16 %v935
    %v1024 = vunpack.c.l.b16 %v936
    %v1025 = vunpack.c.h.b16 %v936
    %v1026 = vunpack.c.l.b16 %v937
    %v1027 = vunpack.c.h.b16 %v937
    %v1028 = vunpack.c.l.b16 %v938
    %v1029 = vunpack.c.h.b16 %v938
    %v1030 = vunpack.c.l.b16 %v939
    %v1031 = vunpack.c.h.b16 %v939
    %v1032 = vunpack.c.l.b16 %v940
    %v1033 = vunpack.c.h.b16 %v940
    %v1034 = vunpack.c.l.b16 %v941
    %v1035 = vunpack.c.h.b16 %v941
    %v1036 = vunpack.c.l.b16 %v942
    %v1037 = vunpack.c.h.b16 %v942
    %v1038 = vunpack.c.l.b16 %v943
    %v1039 = vunpack.c.h.b16 %v943
    %v1040 = vpack.c.b16 %v980, %v976
    %v1041 = vpack.c.b16 %v981, %v977
    %v1042 = vpack.c.b16 %v982, %v978
    %v1043 = vpack.c.b16 %v983, %v979
    %v1044 = vpack.c.b16 %v988, %v984
    %v1045 = vpack.c.b16 %v989, %v985
    %v1046 = vpack.c.b16 %v990, %v986
    %v1047 = vpack.c.b16 %v991, %v987
    %v1048 = vpack.c.b16 %v996, %v992
    %v1049 = vpack.c.b16 %v997, %v993
    %v1050 = vpack.c.b16 %v998, %v994
    %v1051 = vpack.c.b16 %v999, %v995
    %v1052 = vpack.c.b16 %v1004, %v1000
    %v1053 = vpack.c.b16 %v1005, %v1001
    %v1054 = vpack.c.b16 %v1006, %v1002
    %v1055 = vpack.c.b16 %v1007, %v1003
    %v1056 = vpack.c.b16 %v1012, %v1008
    %v1057 = vpack.c.b16 %v1013, %v1009
    %v1058 = vpack.c.b16 %v1014, %v1010
    %v1059 = vpack.c.b16 %v1015, %v1011
    %v1060 = vpack.c.b16 %v1020, %v1016
    %v1061 = vpack.c.b16 %v1021, %v1017
    %v1062 = vpack.c.b16 %v1022, %v1018
    %v1063 = vpack.c.b16 %v1023, %v1019
    %v1064 = vpack.c.b16 %v1028, %v1024
    %v1065 = vpack.c.b16 %v1029, %v1025
    %v1066 = vpack.c.b16 %v1030, %v1026
    %v1067 = vpack.c.b16 %v1031, %v1027
    %v1068 = vpack.c.b16 %v1036, %v1032
    %v1069 = vpack.c.b16 %v1037, %v1033
    %v1070 = vpack.c.b16 %v1038, %v1034
    %v1071 = vpack.c.b16 %v1039, %v1035
    %1104 = vmatprep.subr.bf16.mxu0 %v1069
    %1105 = vmatpush1.bf16.msra.mxu0 %v1068
    %1106 = vmatprep.subr.bf16.mxu0 %v1065
    %1107 = vmatpush1.bf16.msra.mxu0 %v1064
    %1108 = vmatprep.subr.bf16.mxu0 %v1061
    %1109 = vmatpush1.bf16.msra.mxu0 %v1060
    %1110 = vmatprep.subr.bf16.mxu0 %v1057
    %1111 = vmatpush1.bf16.msra.mxu0 %v1056
    %1112 = vmatprep.subr.bf16.mxu0 %v1053
    %1113 = vmatpush1.bf16.msra.mxu0 %v1052
    %1114 = vmatprep.subr.bf16.mxu0 %v1049
    %1115 = vmatpush1.bf16.msra.mxu0 %v1048
    %1116 = vmatprep.subr.bf16.mxu0 %v1045
    %1117 = vmatpush1.bf16.msra.mxu0 %v1044
    %1118 = vmatprep.subr.bf16.mxu0 %v1041
    %1119 = vmatpush1.bf16.msra.mxu0 %v1040
    %1120 = vmatprep.subr.bf16.mxu0 0
    %1121 = vmatpush2.bf16.msra.mxu0 0
    %1122 = vmatprep.subr.bf16.mxu0 0
    %1123 = vmatpush2.bf16.msra.mxu0 0
    %1124 = vmatprep.subr.bf16.mxu0 0
    %1125 = vmatpush2.bf16.msra.mxu0 0
    %1126 = vmatprep.subr.bf16.mxu0 0
    %1127 = vmatpush2.bf16.msra.mxu0 0
    %1128 = vmatprep.subr.bf16.mxu0 0
    %1129 = vmatpush2.bf16.msra.mxu0 0
    %1130 = vmatprep.subr.bf16.mxu0 0
    %1131 = vmatpush2.bf16.msra.mxu0 0
    %1132 = vmatprep.subr.bf16.mxu0 0
    %1133 = vmatpush2.bf16.msra.mxu0 0
    %1134 = vmatprep.subr.bf16.mxu0 0
    %1135 = vmatpush2.bf16.msra.mxu0 0
    %1136 = vmatprep.mubr.bf16.mxu0 0
    %1137 = vmatmul.mubr.bf16.gmra.mxu0 %v389
    %v1138 = vpop.f32.mrf.mxu0
    %v1139 = vadd.f32 0.0, %v1138
    %v1140 = vpop.f32.mrf.mxu0
    %v1141 = vadd.f32 0.0, %v1140
    %v1142 = vpop.f32.mrf.mxu0
    %v1143 = vpop.f32.mrf.mxu0
    %1144 = vdwg.mxu0
    %1145 = vmatprep.subr.bf16.mxu0 %v1071
    %1146 = vmatpush1.bf16.msra.mxu0 %v1070
    %1147 = vmatprep.subr.bf16.mxu0 %v1067
    %1148 = vmatpush1.bf16.msra.mxu0 %v1066
    %1149 = vmatprep.subr.bf16.mxu0 %v1063
    %1150 = vmatpush1.bf16.msra.mxu0 %v1062
    %1151 = vmatprep.subr.bf16.mxu0 %v1059
    %1152 = vmatpush1.bf16.msra.mxu0 %v1058
    %1153 = vmatprep.subr.bf16.mxu0 %v1055
    %1154 = vmatpush1.bf16.msra.mxu0 %v1054
    %1155 = vmatprep.subr.bf16.mxu0 %v1051
    %1156 = vmatpush1.bf16.msra.mxu0 %v1050
    %1157 = vmatprep.subr.bf16.mxu0 %v1047
    %1158 = vmatpush1.bf16.msra.mxu0 %v1046
    %1159 = vmatprep.subr.bf16.mxu0 %v1043
    %1160 = vmatpush1.bf16.msra.mxu0 %v1042
    %1161 = vmatprep.subr.bf16.mxu0 0
    %1162 = vmatpush2.bf16.msra.mxu0 0
    %1163 = vmatprep.subr.bf16.mxu0 0
    %1164 = vmatpush2.bf16.msra.mxu0 0
    %1165 = vmatprep.subr.bf16.mxu0 0
    %1166 = vmatpush2.bf16.msra.mxu0 0
    %1167 = vmatprep.subr.bf16.mxu0 0
    %1168 = vmatpush2.bf16.msra.mxu0 0
    %1169 = vmatprep.subr.bf16.mxu0 0
    %1170 = vmatpush2.bf16.msra.mxu0 0
    %1171 = vmatprep.subr.bf16.mxu0 0
    %1172 = vmatpush2.bf16.msra.mxu0 0
    %1173 = vmatprep.subr.bf16.mxu0 0
    %1174 = vmatpush2.bf16.msra.mxu0 0
    %1175 = vmatprep.subr.bf16.mxu0 0
    %1176 = vmatpush2.bf16.msra.mxu0 0
    %1177 = vmatprep.mubr.bf16.mxu0 0
    %1178 = vmatmul.mubr.bf16.gmra.mxu0 %v389
    %v1179 = vpop.f32.mrf.mxu0
    %v1180 = vadd.f32 0.0, %v1179
    %v1181 = vpop.f32.mrf.mxu0
    %v1182 = vadd.f32 0.0, %v1181
    %v1183 = vpop.f32.mrf.mxu0
    %v1184 = vpop.f32.mrf.mxu0
    %1185 = vdwg.mxu0
    %v1190 = vrot.slane %v1139, 7
    %v1191 = vrot.slane %v1141, 7
    %v1192 = vrot.slane %v1180, 7
    %v1193 = vrot.slane %v1182, 7
    %v1198 = vadd.f32 %v904, %v1190
    %v1199 = vadd.f32 %v905, %v1191
    %v1200 = vadd.f32 %v906, %v1192
    %v1201 = vadd.f32 %v907, %v1193
    %v1202 = vadd.f32 %v908, %v1190
    %v1203 = vadd.f32 %v909, %v1191
    %v1204 = vadd.f32 %v910, %v1192
    %v1205 = vadd.f32 %v911, %v1193
    %v1206 = vxor.u32 %v1198, 2147483648
    %v1207 = vxor.u32 %v1199, 2147483648
    %v1208 = vxor.u32 %v1200, 2147483648
    %v1209 = vxor.u32 %v1202, 2147483648
    %v1210 = vxor.u32 %v1203, 2147483648
    %v1211 = vxor.u32 %v1204, 2147483648
    %v1212 = vmul.f32 %v1206, 1.442695
    %v1213 = vpow.pop %v1212
    %v1214 = vmul.f32 %v1207, 1.442695
    %v1215 = vpow.pop %v1214
    %v1216 = vmul.f32 %v1208, 1.442695
    %v1217 = vpow.pop %v1216
    %v1218 = vmul.f32 %v1209, 1.442695
    %v1219 = vpow.pop %v1218
    %v1220 = vmul.f32 %v1210, 1.442695
    %v1221 = vpow.pop %v1220
    %v1222 = vmul.f32 %v1211, 1.442695
    %v1223 = vpow.pop %v1222
    %v1224 = vadd.f32 %v1213, 1.0
    %v1225 = vadd.f32 %v1215, 1.0
    %v1226 = vadd.f32 %v1217, 1.0
    %v1227 = vadd.f32 %v1219, 1.0
    %v1228 = vadd.f32 %v1221, 1.0
    %v1229 = vadd.f32 %v1223, 1.0
    %v1230 = vrcp.pop %v1224
    %v1231 = vmul.f32 1.0, %v1230
    %v1232 = vrcp.pop %v1225
    %v1233 = vmul.f32 1.0, %v1232
    %v1234 = vrcp.pop %v1226
    %v1235 = vmul.f32 1.0, %v1234
    %v1236 = vrcp.pop %v1227
    %v1237 = vmul.f32 1.0, %v1236
    %v1238 = vrcp.pop %v1228
    %v1239 = vmul.f32 1.0, %v1238
    %v1240 = vrcp.pop %v1229
    %v1241 = vmul.f32 1.0, %v1240
    %v1242 = vtanh.pop %v1201
    %v1243 = vtanh.pop %v1205
    %v1245 = vrot.slane %v386, 7
    %v1247 = vmul.f32 %v1233, %v1245
    %v1248 = vmul.f32 %v1239, %v1245
    %v1249 = vmul.f32 %v1231, %v1242
    %v1250 = vmul.f32 %v1237, %v1243
    %v1251 = vadd.f32 %v1247, %v1249
    %v1252 = vadd.f32 %v1248, %v1250
    %v1253 = vtanh.pop %v1251
    %v1254 = vtanh.pop %v1252
    %v1255 = vmul.f32 %v1235, %v1253
    %v1256 = vmul.f32 %v1241, %v1254
    %v1257 = vpack.c.bf16 %v1256, %v1255
    %v1259 = vshrl.u32 %v902, 16
    %v1261 = vrot.slane %v1259, 7
    %v1262 = vshll.u32 %v902, 16
    %v1264 = vor.u32 %v1261, %v1262
    %v1265 = vld [vmem:[#allocation7] sm:$0xff]
    %v1266 = vld [vmem:[#allocation7 + $0x8] sm:$0xff]
    %v1267 = vld [vmem:[#allocation7 + $0x10] sm:$0xff]
    %v1268 = vld [vmem:[#allocation7 + $0x18] sm:$0xff]
    %v1269 = vld [vmem:[#allocation7 + $0x20] sm:$0xff]
    %v1270 = vld [vmem:[#allocation7 + $0x28] sm:$0xff]
    %v1271 = vld [vmem:[#allocation7 + $0x30] sm:$0xff]
    %v1272 = vld [vmem:[#allocation7 + $0x38] sm:$0xff]
    %v1273 = vld [vmem:[#allocation7 + $0x40] sm:$0xff]
    %v1274 = vld [vmem:[#allocation7 + $0x48] sm:$0xff]
    %v1275 = vld [vmem:[#allocation7 + $0x50] sm:$0xff]
    %v1276 = vld [vmem:[#allocation7 + $0x58] sm:$0xff]
    %v1277 = vld [vmem:[#allocation7 + $0x60] sm:$0xff]
    %v1278 = vld [vmem:[#allocation7 + $0x68] sm:$0xff]
    %v1279 = vld [vmem:[#allocation7 + $0x70] sm:$0xff]
    %v1280 = vld [vmem:[#allocation7 + $0x78] sm:$0xff]
    %v1281 = vld [vmem:[#allocation7 + $0x80] sm:$0xff]
    %v1282 = vld [vmem:[#allocation7 + $0x88] sm:$0xff]
    %v1283 = vld [vmem:[#allocation7 + $0x90] sm:$0xff]
    %v1284 = vld [vmem:[#allocation7 + $0x98] sm:$0xff]
    %v1285 = vld [vmem:[#allocation7 + $0xa0] sm:$0xff]
    %v1286 = vld [vmem:[#allocation7 + $0xa8] sm:$0xff]
    %v1287 = vld [vmem:[#allocation7 + $0xb0] sm:$0xff]
    %v1288 = vld [vmem:[#allocation7 + $0xb8] sm:$0xff]
    %v1289 = vld [vmem:[#allocation7 + $0xc0] sm:$0xff]
    %v1290 = vld [vmem:[#allocation7 + $0xc8] sm:$0xff]
    %v1291 = vld [vmem:[#allocation7 + $0xd0] sm:$0xff]
    %v1292 = vld [vmem:[#allocation7 + $0xd8] sm:$0xff]
    %v1293 = vld [vmem:[#allocation7 + $0xe0] sm:$0xff]
    %v1294 = vld [vmem:[#allocation7 + $0xe8] sm:$0xff]
    %v1295 = vld [vmem:[#allocation7 + $0xf0] sm:$0xff]
    %v1296 = vld [vmem:[#allocation7 + $0xf8] sm:$0xff]
    %v1297 = vld [vmem:[#allocation7 + $0x100] sm:$0xff]
    %v1298 = vld [vmem:[#allocation7 + $0x108] sm:$0xff]
    %v1299 = vld [vmem:[#allocation7 + $0x110] sm:$0xff]
    %v1300 = vld [vmem:[#allocation7 + $0x118] sm:$0xff]
    %v1301 = vld [vmem:[#allocation7 + $0x120] sm:$0xff]
    %v1302 = vld [vmem:[#allocation7 + $0x128] sm:$0xff]
    %v1303 = vld [vmem:[#allocation7 + $0x130] sm:$0xff]
    %v1304 = vld [vmem:[#allocation7 + $0x138] sm:$0xff]
    %v1305 = vld [vmem:[#allocation7 + $0x140] sm:$0xff]
    %v1306 = vld [vmem:[#allocation7 + $0x148] sm:$0xff]
    %v1307 = vld [vmem:[#allocation7 + $0x150] sm:$0xff]
    %v1308 = vld [vmem:[#allocation7 + $0x158] sm:$0xff]
    %v1309 = vld [vmem:[#allocation7 + $0x160] sm:$0xff]
    %v1310 = vld [vmem:[#allocation7 + $0x168] sm:$0xff]
    %v1311 = vld [vmem:[#allocation7 + $0x170] sm:$0xff]
    %v1312 = vld [vmem:[#allocation7 + $0x178] sm:$0xff]
    %v1313 = vld [vmem:[#allocation7 + $0x180] sm:$0xff]
    %v1314 = vld [vmem:[#allocation7 + $0x188] sm:$0xff]
    %v1315 = vld [vmem:[#allocation7 + $0x190] sm:$0xff]
    %v1316 = vld [vmem:[#allocation7 + $0x198] sm:$0xff]
    %v1317 = vld [vmem:[#allocation7 + $0x1a0] sm:$0xff]
    %v1318 = vld [vmem:[#allocation7 + $0x1a8] sm:$0xff]
    %v1319 = vld [vmem:[#allocation7 + $0x1b0] sm:$0xff]
    %v1320 = vld [vmem:[#allocation7 + $0x1b8] sm:$0xff]
    %v1321 = vld [vmem:[#allocation7 + $0x1c0] sm:$0xff]
    %v1322 = vld [vmem:[#allocation7 + $0x1c8] sm:$0xff]
    %v1323 = vld [vmem:[#allocation7 + $0x1d0] sm:$0xff]
    %v1324 = vld [vmem:[#allocation7 + $0x1d8] sm:$0xff]
    %v1325 = vld [vmem:[#allocation7 + $0x1e0] sm:$0xff]
    %v1326 = vld [vmem:[#allocation7 + $0x1e8] sm:$0xff]
    %v1327 = vld [vmem:[#allocation7 + $0x1f0] sm:$0xff]
    %v1328 = vld [vmem:[#allocation7 + $0x1f8] sm:$0xff]
    %v1329 = vld [vmem:[%s3] sm:$0xf]
    %v1331 = vlaneseq
    %v1332 = vshrl.u32 %v1331, 7
    %v1333 = vsub.s32 0, %v1332
    %v1334 = vrot.slane %v1329, %v1333
    %v1335 = vlaneseq
    %v1336 = vshrl.u32 %v1335, 7
    %v1337 = vsub.s32 1, %v1336
    %v1338 = vrot.slane %v1329, %v1337
    %v1339 = vlaneseq
    %v1340 = vshrl.u32 %v1339, 7
    %v1341 = vsub.s32 2, %v1340
    %v1342 = vrot.slane %v1329, %v1341
    %v1343 = vlaneseq
    %v1344 = vshrl.u32 %v1343, 7
    %v1345 = vsub.s32 3, %v1344
    %v1346 = vrot.slane %v1329, %v1345
    %v1352 = vshrl.u32 %v1257, 16
    %v1354 = vshll.u32 %v1257, 16
    %v1356 = vrot.slane %v1354, 1
    %v1357 = vor.u32 %v1352, %v1356
    %v1359 = vshrl.u32 %v1264, 16
    %v1361 = vshll.u32 %v1264, 16
    %v1363 = vrot.slane %v1361, 1
    %v1364 = vor.u32 %v1359, %v1363
    %v1431 = vunpack.c.l.b16 %v1265
    %v1432 = vunpack.c.h.b16 %v1265
    %v1433 = vunpack.c.l.b16 %v1266
    %v1434 = vunpack.c.h.b16 %v1266
    %v1435 = vunpack.c.l.b16 %v1267
    %v1436 = vunpack.c.h.b16 %v1267
    %v1437 = vunpack.c.l.b16 %v1268
    %v1438 = vunpack.c.h.b16 %v1268
    %v1439 = vunpack.c.l.b16 %v1269
    %v1440 = vunpack.c.h.b16 %v1269
    %v1441 = vunpack.c.l.b16 %v1270
    %v1442 = vunpack.c.h.b16 %v1270
    %v1443 = vunpack.c.l.b16 %v1271
    %v1444 = vunpack.c.h.b16 %v1271
    %v1445 = vunpack.c.l.b16 %v1272
    %v1446 = vunpack.c.h.b16 %v1272
    %v1447 = vunpack.c.l.b16 %v1273
    %v1448 = vunpack.c.h.b16 %v1273
    %v1449 = vunpack.c.l.b16 %v1274
    %v1450 = vunpack.c.h.b16 %v1274
    %v1451 = vunpack.c.l.b16 %v1275
    %v1452 = vunpack.c.h.b16 %v1275
    %v1453 = vunpack.c.l.b16 %v1276
    %v1454 = vunpack.c.h.b16 %v1276
    %v1455 = vunpack.c.l.b16 %v1277
    %v1456 = vunpack.c.h.b16 %v1277
    %v1457 = vunpack.c.l.b16 %v1278
    %v1458 = vunpack.c.h.b16 %v1278
    %v1459 = vunpack.c.l.b16 %v1279
    %v1460 = vunpack.c.h.b16 %v1279
    %v1461 = vunpack.c.l.b16 %v1280
    %v1462 = vunpack.c.h.b16 %v1280
    %v1463 = vunpack.c.l.b16 %v1281
    %v1464 = vunpack.c.h.b16 %v1281
    %v1465 = vunpack.c.l.b16 %v1282
    %v1466 = vunpack.c.h.b16 %v1282
    %v1467 = vunpack.c.l.b16 %v1283
    %v1468 = vunpack.c.h.b16 %v1283
    %v1469 = vunpack.c.l.b16 %v1284
    %v1470 = vunpack.c.h.b16 %v1284
    %v1471 = vunpack.c.l.b16 %v1285
    %v1472 = vunpack.c.h.b16 %v1285
    %v1473 = vunpack.c.l.b16 %v1286
    %v1474 = vunpack.c.h.b16 %v1286
    %v1475 = vunpack.c.l.b16 %v1287
    %v1476 = vunpack.c.h.b16 %v1287
    %v1477 = vunpack.c.l.b16 %v1288
    %v1478 = vunpack.c.h.b16 %v1288
    %v1479 = vunpack.c.l.b16 %v1289
    %v1480 = vunpack.c.h.b16 %v1289
    %v1481 = vunpack.c.l.b16 %v1290
    %v1482 = vunpack.c.h.b16 %v1290
    %v1483 = vunpack.c.l.b16 %v1291
    %v1484 = vunpack.c.h.b16 %v1291
    %v1485 = vunpack.c.l.b16 %v1292
    %v1486 = vunpack.c.h.b16 %v1292
    %v1487 = vunpack.c.l.b16 %v1293
    %v1488 = vunpack.c.h.b16 %v1293
    %v1489 = vunpack.c.l.b16 %v1294
    %v1490 = vunpack.c.h.b16 %v1294
    %v1491 = vunpack.c.l.b16 %v1295
    %v1492 = vunpack.c.h.b16 %v1295
    %v1493 = vunpack.c.l.b16 %v1296
    %v1494 = vunpack.c.h.b16 %v1296
    %v1495 = vunpack.c.l.b16 %v1297
    %v1496 = vunpack.c.h.b16 %v1297
    %v1497 = vunpack.c.l.b16 %v1298
    %v1498 = vunpack.c.h.b16 %v1298
    %v1499 = vunpack.c.l.b16 %v1299
    %v1500 = vunpack.c.h.b16 %v1299
    %v1501 = vunpack.c.l.b16 %v1300
    %v1502 = vunpack.c.h.b16 %v1300
    %v1503 = vunpack.c.l.b16 %v1301
    %v1504 = vunpack.c.h.b16 %v1301
    %v1505 = vunpack.c.l.b16 %v1302
    %v1506 = vunpack.c.h.b16 %v1302
    %v1507 = vunpack.c.l.b16 %v1303
    %v1508 = vunpack.c.h.b16 %v1303
    %v1509 = vunpack.c.l.b16 %v1304
    %v1510 = vunpack.c.h.b16 %v1304
    %v1511 = vunpack.c.l.b16 %v1305
    %v1512 = vunpack.c.h.b16 %v1305
    %v1513 = vunpack.c.l.b16 %v1306
    %v1514 = vunpack.c.h.b16 %v1306
    %v1515 = vunpack.c.l.b16 %v1307
    %v1516 = vunpack.c.h.b16 %v1307
    %v1517 = vunpack.c.l.b16 %v1308
    %v1518 = vunpack.c.h.b16 %v1308
    %v1519 = vunpack.c.l.b16 %v1309
    %v1520 = vunpack.c.h.b16 %v1309
    %v1521 = vunpack.c.l.b16 %v1310
    %v1522 = vunpack.c.h.b16 %v1310
    %v1523 = vunpack.c.l.b16 %v1311
    %v1524 = vunpack.c.h.b16 %v1311
    %v1525 = vunpack.c.l.b16 %v1312
    %v1526 = vunpack.c.h.b16 %v1312
    %v1527 = vunpack.c.l.b16 %v1313
    %v1528 = vunpack.c.h.b16 %v1313
    %v1529 = vunpack.c.l.b16 %v1314
    %v1530 = vunpack.c.h.b16 %v1314
    %v1531 = vunpack.c.l.b16 %v1315
    %v1532 = vunpack.c.h.b16 %v1315
    %v1533 = vunpack.c.l.b16 %v1316
    %v1534 = vunpack.c.h.b16 %v1316
    %v1535 = vunpack.c.l.b16 %v1317
    %v1536 = vunpack.c.h.b16 %v1317
    %v1537 = vunpack.c.l.b16 %v1318
    %v1538 = vunpack.c.h.b16 %v1318
    %v1539 = vunpack.c.l.b16 %v1319
    %v1540 = vunpack.c.h.b16 %v1319
    %v1541 = vunpack.c.l.b16 %v1320
    %v1542 = vunpack.c.h.b16 %v1320
    %v1543 = vunpack.c.l.b16 %v1321
    %v1544 = vunpack.c.h.b16 %v1321
    %v1545 = vunpack.c.l.b16 %v1322
    %v1546 = vunpack.c.h.b16 %v1322
    %v1547 = vunpack.c.l.b16 %v1323
    %v1548 = vunpack.c.h.b16 %v1323
    %v1549 = vunpack.c.l.b16 %v1324
    %v1550 = vunpack.c.h.b16 %v1324
    %v1551 = vunpack.c.l.b16 %v1325
    %v1552 = vunpack.c.h.b16 %v1325
    %v1553 = vunpack.c.l.b16 %v1326
    %v1554 = vunpack.c.h.b16 %v1326
    %v1555 = vunpack.c.l.b16 %v1327
    %v1556 = vunpack.c.h.b16 %v1327
    %v1557 = vunpack.c.l.b16 %v1328
    %v1558 = vunpack.c.h.b16 %v1328
    %v1559 = vpack.c.b16 %v1435, %v1431
    %v1560 = vpack.c.b16 %v1436, %v1432
    %v1561 = vpack.c.b16 %v1437, %v1433
    %v1562 = vpack.c.b16 %v1438, %v1434
    %v1563 = vpack.c.b16 %v1443, %v1439
    %v1564 = vpack.c.b16 %v1444, %v1440
    %v1565 = vpack.c.b16 %v1445, %v1441
    %v1566 = vpack.c.b16 %v1446, %v1442
    %v1567 = vpack.c.b16 %v1451, %v1447
    %v1568 = vpack.c.b16 %v1452, %v1448
    %v1569 = vpack.c.b16 %v1453, %v1449
    %v1570 = vpack.c.b16 %v1454, %v1450
    %v1571 = vpack.c.b16 %v1459, %v1455
    %v1572 = vpack.c.b16 %v1460, %v1456
    %v1573 = vpack.c.b16 %v1461, %v1457
    %v1574 = vpack.c.b16 %v1462, %v1458
    %v1575 = vpack.c.b16 %v1467, %v1463
    %v1576 = vpack.c.b16 %v1468, %v1464
    %v1577 = vpack.c.b16 %v1469, %v1465
    %v1578 = vpack.c.b16 %v1470, %v1466
    %v1579 = vpack.c.b16 %v1475, %v1471
    %v1580 = vpack.c.b16 %v1476, %v1472
    %v1581 = vpack.c.b16 %v1477, %v1473
    %v1582 = vpack.c.b16 %v1478, %v1474
    %v1583 = vpack.c.b16 %v1483, %v1479
    %v1584 = vpack.c.b16 %v1484, %v1480
    %v1585 = vpack.c.b16 %v1485, %v1481
    %v1586 = vpack.c.b16 %v1486, %v1482
    %v1587 = vpack.c.b16 %v1491, %v1487
    %v1588 = vpack.c.b16 %v1492, %v1488
    %v1589 = vpack.c.b16 %v1493, %v1489
    %v1590 = vpack.c.b16 %v1494, %v1490
    %v1591 = vpack.c.b16 %v1499, %v1495
    %v1592 = vpack.c.b16 %v1500, %v1496
    %v1593 = vpack.c.b16 %v1501, %v1497
    %v1594 = vpack.c.b16 %v1502, %v1498
    %v1595 = vpack.c.b16 %v1507, %v1503
    %v1596 = vpack.c.b16 %v1508, %v1504
    %v1597 = vpack.c.b16 %v1509, %v1505
    %v1598 = vpack.c.b16 %v1510, %v1506
    %v1599 = vpack.c.b16 %v1515, %v1511
    %v1600 = vpack.c.b16 %v1516, %v1512
    %v1601 = vpack.c.b16 %v1517, %v1513
    %v1602 = vpack.c.b16 %v1518, %v1514
    %v1603 = vpack.c.b16 %v1523, %v1519
    %v1604 = vpack.c.b16 %v1524, %v1520
    %v1605 = vpack.c.b16 %v1525, %v1521
    %v1606 = vpack.c.b16 %v1526, %v1522
    %v1607 = vpack.c.b16 %v1531, %v1527
    %v1608 = vpack.c.b16 %v1532, %v1528
    %v1609 = vpack.c.b16 %v1533, %v1529
    %v1610 = vpack.c.b16 %v1534, %v1530
    %v1611 = vpack.c.b16 %v1539, %v1535
    %v1612 = vpack.c.b16 %v1540, %v1536
    %v1613 = vpack.c.b16 %v1541, %v1537
    %v1614 = vpack.c.b16 %v1542, %v1538
    %v1615 = vpack.c.b16 %v1547, %v1543
    %v1616 = vpack.c.b16 %v1548, %v1544
    %v1617 = vpack.c.b16 %v1549, %v1545
    %v1618 = vpack.c.b16 %v1550, %v1546
    %v1619 = vpack.c.b16 %v1555, %v1551
    %v1620 = vpack.c.b16 %v1556, %v1552
    %v1621 = vpack.c.b16 %v1557, %v1553
    %v1622 = vpack.c.b16 %v1558, %v1554
    %1687 = vmatprep.subr.bf16.mxu0 %v1588
    %1688 = vmatpush1.bf16.msra.mxu0 %v1587
    %1689 = vmatprep.subr.bf16.mxu0 %v1584
    %1690 = vmatpush1.bf16.msra.mxu0 %v1583
    %1691 = vmatprep.subr.bf16.mxu0 %v1580
    %1692 = vmatpush1.bf16.msra.mxu0 %v1579
    %1693 = vmatprep.subr.bf16.mxu0 %v1576
    %1694 = vmatpush1.bf16.msra.mxu0 %v1575
    %1695 = vmatprep.subr.bf16.mxu0 %v1572
    %1696 = vmatpush1.bf16.msra.mxu0 %v1571
    %1697 = vmatprep.subr.bf16.mxu0 %v1568
    %1698 = vmatpush1.bf16.msra.mxu0 %v1567
    %1699 = vmatprep.subr.bf16.mxu0 %v1564
    %1700 = vmatpush1.bf16.msra.mxu0 %v1563
    %1701 = vmatprep.subr.bf16.mxu0 %v1560
    %1702 = vmatpush1.bf16.msra.mxu0 %v1559
    %1703 = vmatprep.subr.bf16.mxu0 %v1620
    %1704 = vmatpush2.bf16.msra.mxu0 %v1619
    %1705 = vmatprep.subr.bf16.mxu0 %v1616
    %1706 = vmatpush2.bf16.msra.mxu0 %v1615
    %1707 = vmatprep.subr.bf16.mxu0 %v1612
    %1708 = vmatpush2.bf16.msra.mxu0 %v1611
    %1709 = vmatprep.subr.bf16.mxu0 %v1608
    %1710 = vmatpush2.bf16.msra.mxu0 %v1607
    %1711 = vmatprep.subr.bf16.mxu0 %v1604
    %1712 = vmatpush2.bf16.msra.mxu0 %v1603
    %1713 = vmatprep.subr.bf16.mxu0 %v1600
    %1714 = vmatpush2.bf16.msra.mxu0 %v1599
    %1715 = vmatprep.subr.bf16.mxu0 %v1596
    %1716 = vmatpush2.bf16.msra.mxu0 %v1595
    %1717 = vmatprep.subr.bf16.mxu0 %v1592
    %1718 = vmatpush2.bf16.msra.mxu0 %v1591
    %1719 = vmatprep.mubr.bf16.mxu0 %v1364
    %1720 = vmatmul.mubr.bf16.gmra.mxu0 %v1357
    %v1721 = vpop.f32.mrf.mxu0
    %v1722 = vadd.f32 %v1334, %v1721
    %v1723 = vpop.f32.mrf.mxu0
    %v1724 = vadd.f32 %v1338, %v1723
    %v1725 = vpop.f32.mrf.mxu0
    %v1726 = vpop.f32.mrf.mxu0
    %1727 = vdwg.mxu0
    %1728 = vmatprep.subr.bf16.mxu0 %v1590
    %1729 = vmatpush1.bf16.msra.mxu0 %v1589
    %1730 = vmatprep.subr.bf16.mxu0 %v1586
    %1731 = vmatpush1.bf16.msra.mxu0 %v1585
    %1732 = vmatprep.subr.bf16.mxu0 %v1582
    %1733 = vmatpush1.bf16.msra.mxu0 %v1581
    %1734 = vmatprep.subr.bf16.mxu0 %v1578
    %1735 = vmatpush1.bf16.msra.mxu0 %v1577
    %1736 = vmatprep.subr.bf16.mxu0 %v1574
    %1737 = vmatpush1.bf16.msra.mxu0 %v1573
    %1738 = vmatprep.subr.bf16.mxu0 %v1570
    %1739 = vmatpush1.bf16.msra.mxu0 %v1569
    %1740 = vmatprep.subr.bf16.mxu0 %v1566
    %1741 = vmatpush1.bf16.msra.mxu0 %v1565
    %1742 = vmatprep.subr.bf16.mxu0 %v1562
    %1743 = vmatpush1.bf16.msra.mxu0 %v1561
    %1744 = vmatprep.subr.bf16.mxu0 %v1622
    %1745 = vmatpush2.bf16.msra.mxu0 %v1621
    %1746 = vmatprep.subr.bf16.mxu0 %v1618
    %1747 = vmatpush2.bf16.msra.mxu0 %v1617
    %1748 = vmatprep.subr.bf16.mxu0 %v1614
    %1749 = vmatpush2.bf16.msra.mxu0 %v1613
    %1750 = vmatprep.subr.bf16.mxu0 %v1610
    %1751 = vmatpush2.bf16.msra.mxu0 %v1609
    %1752 = vmatprep.subr.bf16.mxu0 %v1606
    %1753 = vmatpush2.bf16.msra.mxu0 %v1605
    %1754 = vmatprep.subr.bf16.mxu0 %v1602
    %1755 = vmatpush2.bf16.msra.mxu0 %v1601
    %1756 = vmatprep.subr.bf16.mxu0 %v1598
    %1757 = vmatpush2.bf16.msra.mxu0 %v1597
    %1758 = vmatprep.subr.bf16.mxu0 %v1594
    %1759 = vmatpush2.bf16.msra.mxu0 %v1593
    %1760 = vmatprep.mubr.bf16.mxu0 %v1364
    %1761 = vmatmul.mubr.bf16.gmra.mxu0 %v1357
    %v1762 = vpop.f32.mrf.mxu0
    %v1763 = vadd.f32 %v1342, %v1762
    %v1764 = vpop.f32.mrf.mxu0
    %v1765 = vadd.f32 %v1346, %v1764
    %v1766 = vpop.f32.mrf.mxu0
    %v1767 = vpop.f32.mrf.mxu0
    %1768 = vdwg.mxu0
    %v1769 = vxor.u32 %v1722, 2147483648
    %v1770 = vxor.u32 %v1724, 2147483648
    %v1771 = vxor.u32 %v1763, 2147483648
    %v1772 = vmul.f32 %v1769, 1.442695
    %v1773 = vpow.pop %v1772
    %v1774 = vmul.f32 %v1770, 1.442695
    %v1775 = vpow.pop %v1774
    %v1776 = vmul.f32 %v1771, 1.442695
    %v1777 = vpow.pop %v1776
    %v1778 = vadd.f32 %v1773, 1.0
    %v1779 = vadd.f32 %v1775, 1.0
    %v1780 = vadd.f32 %v1777, 1.0
    %v1781 = vrcp.pop %v1778
    %v1782 = vmul.f32 1.0, %v1781
    %v1783 = vrcp.pop %v1779
    %v1784 = vmul.f32 1.0, %v1783
    %v1785 = vrcp.pop %v1780
    %v1786 = vmul.f32 1.0, %v1785
    %v1787 = vtanh.pop %v1765
    %v1788 = vmul.f32 %v1784, %v899
    %v1789 = vmul.f32 %v1782, %v1787
    %v1790 = vadd.f32 %v1788, %v1789
    %v1791 = vtanh.pop %v1790
    %v1792 = vmul.f32 %v1786, %v1791
    %v1793 = vpack.c.bf16 %v1792, %v1792
    %s1794 = scalar_lea.vmem [#allocation10], 8
    %1795 = vst [vmem:[%s1794] sm:$0xff] %v1792
    %v1796 = vld [vmem:[#allocation2] sm:$0xfc]
    %v1797 = vld [vmem:[#allocation2 + $0x8] sm:$0xfc]
    %v1798 = vld [vmem:[#allocation2 + $0x10] sm:$0xfc]
    %v1799 = vld [vmem:[#allocation2 + $0x18] sm:$0xfc]
    %v1800 = vld [vmem:[#allocation2 + $0x20] sm:$0x3]
    %v1801 = vld [vmem:[#allocation2 + $0x28] sm:$0x3]
    %v1802 = vld [vmem:[#allocation2 + $0x30] sm:$0x3]
    %v1803 = vld [vmem:[#allocation2 + $0x38] sm:$0x3]
    %v1804 = vld [vmem:[#allocation5] sm:$0xff]
    %v1805 = vld [vmem:[#allocation5 + $0x8] sm:$0xff]
    %v1806 = vld [vmem:[#allocation5 + $0x10] sm:$0xff]
    %v1807 = vld [vmem:[#allocation5 + $0x18] sm:$0xff]
    %v1808 = vld [vmem:[#allocation5 + $0x20] sm:$0xff]
    %v1809 = vld [vmem:[#allocation5 + $0x28] sm:$0xff]
    %v1810 = vld [vmem:[#allocation5 + $0x30] sm:$0xff]
    %v1811 = vld [vmem:[#allocation5 + $0x38] sm:$0xff]
    %v1812 = vld [vmem:[#allocation5 + $0x40] sm:$0xff]
    %v1813 = vld [vmem:[#allocation5 + $0x48] sm:$0xff]
    %v1814 = vld [vmem:[#allocation5 + $0x50] sm:$0xff]
    %v1815 = vld [vmem:[#allocation5 + $0x58] sm:$0xff]
    %v1816 = vld [vmem:[#allocation5 + $0x60] sm:$0xff]
    %v1817 = vld [vmem:[#allocation5 + $0x68] sm:$0xff]
    %v1818 = vld [vmem:[#allocation5 + $0x70] sm:$0xff]
    %v1819 = vld [vmem:[#allocation5 + $0x78] sm:$0xff]
    %v1820 = vld [vmem:[#allocation5 + $0x80] sm:$0xff]
    %v1821 = vld [vmem:[#allocation5 + $0x88] sm:$0xff]
    %v1822 = vld [vmem:[#allocation5 + $0x90] sm:$0xff]
    %v1823 = vld [vmem:[#allocation5 + $0x98] sm:$0xff]
    %v1824 = vld [vmem:[#allocation5 + $0xa0] sm:$0xff]
    %v1825 = vld [vmem:[#allocation5 + $0xa8] sm:$0xff]
    %v1826 = vld [vmem:[#allocation5 + $0xb0] sm:$0xff]
    %v1827 = vld [vmem:[#allocation5 + $0xb8] sm:$0xff]
    %v1828 = vld [vmem:[#allocation5 + $0xc0] sm:$0xff]
    %v1829 = vld [vmem:[#allocation5 + $0xc8] sm:$0xff]
    %v1830 = vld [vmem:[#allocation5 + $0xd0] sm:$0xff]
    %v1831 = vld [vmem:[#allocation5 + $0xd8] sm:$0xff]
    %v1832 = vld [vmem:[#allocation5 + $0xe0] sm:$0xff]
    %v1833 = vld [vmem:[#allocation5 + $0xe8] sm:$0xff]
    %v1834 = vld [vmem:[#allocation5 + $0xf0] sm:$0xff]
    %v1835 = vld [vmem:[#allocation5 + $0xf8] sm:$0xff]
    %v1868 = vunpack.c.l.b16 %v1804
    %v1869 = vunpack.c.h.b16 %v1804
    %v1870 = vunpack.c.l.b16 %v1805
    %v1871 = vunpack.c.h.b16 %v1805
    %v1872 = vunpack.c.l.b16 %v1806
    %v1873 = vunpack.c.h.b16 %v1806
    %v1874 = vunpack.c.l.b16 %v1807
    %v1875 = vunpack.c.h.b16 %v1807
    %v1876 = vunpack.c.l.b16 %v1808
    %v1877 = vunpack.c.h.b16 %v1808
    %v1878 = vunpack.c.l.b16 %v1809
    %v1879 = vunpack.c.h.b16 %v1809
    %v1880 = vunpack.c.l.b16 %v1810
    %v1881 = vunpack.c.h.b16 %v1810
    %v1882 = vunpack.c.l.b16 %v1811
    %v1883 = vunpack.c.h.b16 %v1811
    %v1884 = vunpack.c.l.b16 %v1812
    %v1885 = vunpack.c.h.b16 %v1812
    %v1886 = vunpack.c.l.b16 %v1813
    %v1887 = vunpack.c.h.b16 %v1813
    %v1888 = vunpack.c.l.b16 %v1814
    %v1889 = vunpack.c.h.b16 %v1814
    %v1890 = vunpack.c.l.b16 %v1815
    %v1891 = vunpack.c.h.b16 %v1815
    %v1892 = vunpack.c.l.b16 %v1816
    %v1893 = vunpack.c.h.b16 %v1816
    %v1894 = vunpack.c.l.b16 %v1817
    %v1895 = vunpack.c.h.b16 %v1817
    %v1896 = vunpack.c.l.b16 %v1818
    %v1897 = vunpack.c.h.b16 %v1818
    %v1898 = vunpack.c.l.b16 %v1819
    %v1899 = vunpack.c.h.b16 %v1819
    %v1900 = vunpack.c.l.b16 %v1820
    %v1901 = vunpack.c.h.b16 %v1820
    %v1902 = vunpack.c.l.b16 %v1821
    %v1903 = vunpack.c.h.b16 %v1821
    %v1904 = vunpack.c.l.b16 %v1822
    %v1905 = vunpack.c.h.b16 %v1822
    %v1906 = vunpack.c.l.b16 %v1823
    %v1907 = vunpack.c.h.b16 %v1823
    %v1908 = vunpack.c.l.b16 %v1824
    %v1909 = vunpack.c.h.b16 %v1824
    %v1910 = vunpack.c.l.b16 %v1825
    %v1911 = vunpack.c.h.b16 %v1825
    %v1912 = vunpack.c.l.b16 %v1826
    %v1913 = vunpack.c.h.b16 %v1826
    %v1914 = vunpack.c.l.b16 %v1827
    %v1915 = vunpack.c.h.b16 %v1827
    %v1916 = vunpack.c.l.b16 %v1828
    %v1917 = vunpack.c.h.b16 %v1828
    %v1918 = vunpack.c.l.b16 %v1829
    %v1919 = vunpack.c.h.b16 %v1829
    %v1920 = vunpack.c.l.b16 %v1830
    %v1921 = vunpack.c.h.b16 %v1830
    %v1922 = vunpack.c.l.b16 %v1831
    %v1923 = vunpack.c.h.b16 %v1831
    %v1924 = vunpack.c.l.b16 %v1832
    %v1925 = vunpack.c.h.b16 %v1832
    %v1926 = vunpack.c.l.b16 %v1833
    %v1927 = vunpack.c.h.b16 %v1833
    %v1928 = vunpack.c.l.b16 %v1834
    %v1929 = vunpack.c.h.b16 %v1834
    %v1930 = vunpack.c.l.b16 %v1835
    %v1931 = vunpack.c.h.b16 %v1835
    %v1932 = vpack.c.b16 %v1872, %v1868
    %v1933 = vpack.c.b16 %v1873, %v1869
    %v1934 = vpack.c.b16 %v1874, %v1870
    %v1935 = vpack.c.b16 %v1875, %v1871
    %v1936 = vpack.c.b16 %v1880, %v1876
    %v1937 = vpack.c.b16 %v1881, %v1877
    %v1938 = vpack.c.b16 %v1882, %v1878
    %v1939 = vpack.c.b16 %v1883, %v1879
    %v1940 = vpack.c.b16 %v1888, %v1884
    %v1941 = vpack.c.b16 %v1889, %v1885
    %v1942 = vpack.c.b16 %v1890, %v1886
    %v1943 = vpack.c.b16 %v1891, %v1887
    %v1944 = vpack.c.b16 %v1896, %v1892
    %v1945 = vpack.c.b16 %v1897, %v1893
    %v1946 = vpack.c.b16 %v1898, %v1894
    %v1947 = vpack.c.b16 %v1899, %v1895
    %v1948 = vpack.c.b16 %v1904, %v1900
    %v1949 = vpack.c.b16 %v1905, %v1901
    %v1950 = vpack.c.b16 %v1906, %v1902
    %v1951 = vpack.c.b16 %v1907, %v1903
    %v1952 = vpack.c.b16 %v1912, %v1908
    %v1953 = vpack.c.b16 %v1913, %v1909
    %v1954 = vpack.c.b16 %v1914, %v1910
    %v1955 = vpack.c.b16 %v1915, %v1911
    %v1956 = vpack.c.b16 %v1920, %v1916
    %v1957 = vpack.c.b16 %v1921, %v1917
    %v1958 = vpack.c.b16 %v1922, %v1918
    %v1959 = vpack.c.b16 %v1923, %v1919
    %v1960 = vpack.c.b16 %v1928, %v1924
    %v1961 = vpack.c.b16 %v1929, %v1925
    %v1962 = vpack.c.b16 %v1930, %v1926
    %v1963 = vpack.c.b16 %v1931, %v1927
    %1996 = vmatprep.subr.bf16.mxu0 %v1961
    %1997 = vmatpush1.bf16.msra.mxu0 %v1960
    %1998 = vmatprep.subr.bf16.mxu0 %v1957
    %1999 = vmatpush1.bf16.msra.mxu0 %v1956
    %2000 = vmatprep.subr.bf16.mxu0 %v1953
    %2001 = vmatpush1.bf16.msra.mxu0 %v1952
    %2002 = vmatprep.subr.bf16.mxu0 %v1949
    %2003 = vmatpush1.bf16.msra.mxu0 %v1948
    %2004 = vmatprep.subr.bf16.mxu0 %v1945
    %2005 = vmatpush1.bf16.msra.mxu0 %v1944
    %2006 = vmatprep.subr.bf16.mxu0 %v1941
    %2007 = vmatpush1.bf16.msra.mxu0 %v1940
    %2008 = vmatprep.subr.bf16.mxu0 %v1937
    %2009 = vmatpush1.bf16.msra.mxu0 %v1936
    %2010 = vmatprep.subr.bf16.mxu0 %v1933
    %2011 = vmatpush1.bf16.msra.mxu0 %v1932
    %2012 = vmatprep.subr.bf16.mxu0 0
    %2013 = vmatpush2.bf16.msra.mxu0 0
    %2014 = vmatprep.subr.bf16.mxu0 0
    %2015 = vmatpush2.bf16.msra.mxu0 0
    %2016 = vmatprep.subr.bf16.mxu0 0
    %2017 = vmatpush2.bf16.msra.mxu0 0
    %2018 = vmatprep.subr.bf16.mxu0 0
    %2019 = vmatpush2.bf16.msra.mxu0 0
    %2020 = vmatprep.subr.bf16.mxu0 0
    %2021 = vmatpush2.bf16.msra.mxu0 0
    %2022 = vmatprep.subr.bf16.mxu0 0
    %2023 = vmatpush2.bf16.msra.mxu0 0
    %2024 = vmatprep.subr.bf16.mxu0 0
    %2025 = vmatpush2.bf16.msra.mxu0 0
    %2026 = vmatprep.subr.bf16.mxu0 0
    %2027 = vmatpush2.bf16.msra.mxu0 0
    %2028 = vmatprep.mubr.bf16.mxu0 0
    %2029 = vmatmul.mubr.bf16.gmra.mxu0 %v1357
    %v2030 = vpop.f32.mrf.mxu0
    %v2031 = vadd.f32 0.0, %v2030
    %v2032 = vpop.f32.mrf.mxu0
    %v2033 = vadd.f32 0.0, %v2032
    %v2034 = vpop.f32.mrf.mxu0
    %v2035 = vpop.f32.mrf.mxu0
    %2036 = vdwg.mxu0
    %2037 = vmatprep.subr.bf16.mxu0 %v1963
    %2038 = vmatpush1.bf16.msra.mxu0 %v1962
    %2039 = vmatprep.subr.bf16.mxu0 %v1959
    %2040 = vmatpush1.bf16.msra.mxu0 %v1958
    %2041 = vmatprep.subr.bf16.mxu0 %v1955
    %2042 = vmatpush1.bf16.msra.mxu0 %v1954
    %2043 = vmatprep.subr.bf16.mxu0 %v1951
    %2044 = vmatpush1.bf16.msra.mxu0 %v1950
    %2045 = vmatprep.subr.bf16.mxu0 %v1947
    %2046 = vmatpush1.bf16.msra.mxu0 %v1946
    %2047 = vmatprep.subr.bf16.mxu0 %v1943
    %2048 = vmatpush1.bf16.msra.mxu0 %v1942
    %2049 = vmatprep.subr.bf16.mxu0 %v1939
    %2050 = vmatpush1.bf16.msra.mxu0 %v1938
    %2051 = vmatprep.subr.bf16.mxu0 %v1935
    %2052 = vmatpush1.bf16.msra.mxu0 %v1934
    %2053 = vmatprep.subr.bf16.mxu0 0
    %2054 = vmatpush2.bf16.msra.mxu0 0
    %2055 = vmatprep.subr.bf16.mxu0 0
    %2056 = vmatpush2.bf16.msra.mxu0 0
    %2057 = vmatprep.subr.bf16.mxu0 0
    %2058 = vmatpush2.bf16.msra.mxu0 0
    %2059 = vmatprep.subr.bf16.mxu0 0
    %2060 = vmatpush2.bf16.msra.mxu0 0
    %2061 = vmatprep.subr.bf16.mxu0 0
    %2062 = vmatpush2.bf16.msra.mxu0 0
    %2063 = vmatprep.subr.bf16.mxu0 0
    %2064 = vmatpush2.bf16.msra.mxu0 0
    %2065 = vmatprep.subr.bf16.mxu0 0
    %2066 = vmatpush2.bf16.msra.mxu0 0
    %2067 = vmatprep.subr.bf16.mxu0 0
    %2068 = vmatpush2.bf16.msra.mxu0 0
    %2069 = vmatprep.mubr.bf16.mxu0 0
    %2070 = vmatmul.mubr.bf16.gmra.mxu0 %v1357
    %v2071 = vpop.f32.mrf.mxu0
    %v2072 = vadd.f32 0.0, %v2071
    %v2073 = vpop.f32.mrf.mxu0
    %v2074 = vadd.f32 0.0, %v2073
    %v2075 = vpop.f32.mrf.mxu0
    %v2076 = vpop.f32.mrf.mxu0
    %2077 = vdwg.mxu0
    %v2082 = vrot.slane %v2031, 6
    %v2083 = vrot.slane %v2033, 6
    %v2084 = vrot.slane %v2072, 6
    %v2085 = vrot.slane %v2074, 6
    %v2090 = vadd.f32 %v1796, %v2082
    %v2091 = vadd.f32 %v1797, %v2083
    %v2092 = vadd.f32 %v1798, %v2084
    %v2093 = vadd.f32 %v1799, %v2085
    %v2094 = vadd.f32 %v1800, %v2082
    %v2095 = vadd.f32 %v1801, %v2083
    %v2096 = vadd.f32 %v1802, %v2084
    %v2097 = vadd.f32 %v1803, %v2085
    %v2098 = vxor.u32 %v2090, 2147483648
    %v2099 = vxor.u32 %v2091, 2147483648
    %v2100 = vxor.u32 %v2092, 2147483648
    %v2101 = vxor.u32 %v2094, 2147483648
    %v2102 = vxor.u32 %v2095, 2147483648
    %v2103 = vxor.u32 %v2096, 2147483648
    %v2104 = vmul.f32 %v2098, 1.442695
    %v2105 = vpow.pop %v2104
    %v2106 = vmul.f32 %v2099, 1.442695
    %v2107 = vpow.pop %v2106
    %v2108 = vmul.f32 %v2100, 1.442695
    %v2109 = vpow.pop %v2108
    %v2110 = vmul.f32 %v2101, 1.442695
    %v2111 = vpow.pop %v2110
    %v2112 = vmul.f32 %v2102, 1.442695
    %v2113 = vpow.pop %v2112
    %v2114 = vmul.f32 %v2103, 1.442695
    %v2115 = vpow.pop %v2114
    %v2116 = vadd.f32 %v2105, 1.0
    %v2117 = vadd.f32 %v2107, 1.0
    %v2118 = vadd.f32 %v2109, 1.0
    %v2119 = vadd.f32 %v2111, 1.0
    %v2120 = vadd.f32 %v2113, 1.0
    %v2121 = vadd.f32 %v2115, 1.0
    %v2122 = vrcp.pop %v2116
    %v2123 = vmul.f32 1.0, %v2122
    %v2124 = vrcp.pop %v2117
    %v2125 = vmul.f32 1.0, %v2124
    %v2126 = vrcp.pop %v2118
    %v2127 = vmul.f32 1.0, %v2126
    %v2128 = vrcp.pop %v2119
    %v2129 = vmul.f32 1.0, %v2128
    %v2130 = vrcp.pop %v2120
    %v2131 = vmul.f32 1.0, %v2130
    %v2132 = vrcp.pop %v2121
    %v2133 = vmul.f32 1.0, %v2132
    %v2134 = vtanh.pop %v2093
    %v2135 = vtanh.pop %v2097
    %vm2138 = vcmask 1040384
    %v2139 = vrot.slane %v1251, 7
    %v2140 = vrot.slane %v1252, 7
    %v2141 = vsel %vm2138, %v2139, %v2140
    %v2144 = vmul.f32 %v2125, %v2139
    %v2145 = vmul.f32 %v2131, %v2141
    %v2146 = vmul.f32 %v2123, %v2134
    %v2147 = vmul.f32 %v2129, %v2135
    %v2148 = vadd.f32 %v2144, %v2146
    %v2149 = vadd.f32 %v2145, %v2147
    %v2150 = vtanh.pop %v2148
    %v2151 = vtanh.pop %v2149
    %v2152 = vmul.f32 %v2127, %v2150
    %v2153 = vmul.f32 %v2133, %v2151
    %v2154 = vpack.c.bf16 %v2153, %v2152
    %v2156 = vrot.slane %v1793, 7
    %v2157 = vld [vmem:[#allocation7] sm:$0xff]
    %v2158 = vld [vmem:[#allocation7 + $0x8] sm:$0xff]
    %v2159 = vld [vmem:[#allocation7 + $0x10] sm:$0xff]
    %v2160 = vld [vmem:[#allocation7 + $0x18] sm:$0xff]
    %v2161 = vld [vmem:[#allocation7 + $0x20] sm:$0xff]
    %v2162 = vld [vmem:[#allocation7 + $0x28] sm:$0xff]
    %v2163 = vld [vmem:[#allocation7 + $0x30] sm:$0xff]
    %v2164 = vld [vmem:[#allocation7 + $0x38] sm:$0xff]
    %v2165 = vld [vmem:[#allocation7 + $0x40] sm:$0xff]
    %v2166 = vld [vmem:[#allocation7 + $0x48] sm:$0xff]
    %v2167 = vld [vmem:[#allocation7 + $0x50] sm:$0xff]
    %v2168 = vld [vmem:[#allocation7 + $0x58] sm:$0xff]
    %v2169 = vld [vmem:[#allocation7 + $0x60] sm:$0xff]
    %v2170 = vld [vmem:[#allocation7 + $0x68] sm:$0xff]
    %v2171 = vld [vmem:[#allocation7 + $0x70] sm:$0xff]
    %v2172 = vld [vmem:[#allocation7 + $0x78] sm:$0xff]
    %v2173 = vld [vmem:[#allocation7 + $0x80] sm:$0xff]
    %v2174 = vld [vmem:[#allocation7 + $0x88] sm:$0xff]
    %v2175 = vld [vmem:[#allocation7 + $0x90] sm:$0xff]
    %v2176 = vld [vmem:[#allocation7 + $0x98] sm:$0xff]
    %v2177 = vld [vmem:[#allocation7 + $0xa0] sm:$0xff]
    %v2178 = vld [vmem:[#allocation7 + $0xa8] sm:$0xff]
    %v2179 = vld [vmem:[#allocation7 + $0xb0] sm:$0xff]
    %v2180 = vld [vmem:[#allocation7 + $0xb8] sm:$0xff]
    %v2181 = vld [vmem:[#allocation7 + $0xc0] sm:$0xff]
    %v2182 = vld [vmem:[#allocation7 + $0xc8] sm:$0xff]
    %v2183 = vld [vmem:[#allocation7 + $0xd0] sm:$0xff]
    %v2184 = vld [vmem:[#allocation7 + $0xd8] sm:$0xff]
    %v2185 = vld [vmem:[#allocation7 + $0xe0] sm:$0xff]
    %v2186 = vld [vmem:[#allocation7 + $0xe8] sm:$0xff]
    %v2187 = vld [vmem:[#allocation7 + $0xf0] sm:$0xff]
    %v2188 = vld [vmem:[#allocation7 + $0xf8] sm:$0xff]
    %v2189 = vld [vmem:[#allocation7 + $0x100] sm:$0xff]
    %v2190 = vld [vmem:[#allocation7 + $0x108] sm:$0xff]
    %v2191 = vld [vmem:[#allocation7 + $0x110] sm:$0xff]
    %v2192 = vld [vmem:[#allocation7 + $0x118] sm:$0xff]
    %v2193 = vld [vmem:[#allocation7 + $0x120] sm:$0xff]
    %v2194 = vld [vmem:[#allocation7 + $0x128] sm:$0xff]
    %v2195 = vld [vmem:[#allocation7 + $0x130] sm:$0xff]
    %v2196 = vld [vmem:[#allocation7 + $0x138] sm:$0xff]
    %v2197 = vld [vmem:[#allocation7 + $0x140] sm:$0xff]
    %v2198 = vld [vmem:[#allocation7 + $0x148] sm:$0xff]
    %v2199 = vld [vmem:[#allocation7 + $0x150] sm:$0xff]
    %v2200 = vld [vmem:[#allocation7 + $0x158] sm:$0xff]
    %v2201 = vld [vmem:[#allocation7 + $0x160] sm:$0xff]
    %v2202 = vld [vmem:[#allocation7 + $0x168] sm:$0xff]
    %v2203 = vld [vmem:[#allocation7 + $0x170] sm:$0xff]
    %v2204 = vld [vmem:[#allocation7 + $0x178] sm:$0xff]
    %v2205 = vld [vmem:[#allocation7 + $0x180] sm:$0xff]
    %v2206 = vld [vmem:[#allocation7 + $0x188] sm:$0xff]
    %v2207 = vld [vmem:[#allocation7 + $0x190] sm:$0xff]
    %v2208 = vld [vmem:[#allocation7 + $0x198] sm:$0xff]
    %v2209 = vld [vmem:[#allocation7 + $0x1a0] sm:$0xff]
    %v2210 = vld [vmem:[#allocation7 + $0x1a8] sm:$0xff]
    %v2211 = vld [vmem:[#allocation7 + $0x1b0] sm:$0xff]
    %v2212 = vld [vmem:[#allocation7 + $0x1b8] sm:$0xff]
    %v2213 = vld [vmem:[#allocation7 + $0x1c0] sm:$0xff]
    %v2214 = vld [vmem:[#allocation7 + $0x1c8] sm:$0xff]
    %v2215 = vld [vmem:[#allocation7 + $0x1d0] sm:$0xff]
    %v2216 = vld [vmem:[#allocation7 + $0x1d8] sm:$0xff]
    %v2217 = vld [vmem:[#allocation7 + $0x1e0] sm:$0xff]
    %v2218 = vld [vmem:[#allocation7 + $0x1e8] sm:$0xff]
    %v2219 = vld [vmem:[#allocation7 + $0x1f0] sm:$0xff]
    %v2220 = vld [vmem:[#allocation7 + $0x1f8] sm:$0xff]
    %v2221 = vld [vmem:[%s3] sm:$0xf]
    %v2223 = vlaneseq
    %v2224 = vshrl.u32 %v2223, 7
    %v2225 = vsub.s32 0, %v2224
    %v2226 = vrot.slane %v2221, %v2225
    %v2227 = vlaneseq
    %v2228 = vshrl.u32 %v2227, 7
    %v2229 = vsub.s32 1, %v2228
    %v2230 = vrot.slane %v2221, %v2229
    %v2231 = vlaneseq
    %v2232 = vshrl.u32 %v2231, 7
    %v2233 = vsub.s32 2, %v2232
    %v2234 = vrot.slane %v2221, %v2233
    %v2235 = vlaneseq
    %v2236 = vshrl.u32 %v2235, 7
    %v2237 = vsub.s32 3, %v2236
    %v2238 = vrot.slane %v2221, %v2237
    %v2244 = vrot.slane %v2154, 1
    %v2245 = vrot.slane %v2156, 1
    %v2312 = vunpack.c.l.b16 %v2157
    %v2313 = vunpack.c.h.b16 %v2157
    %v2314 = vunpack.c.l.b16 %v2158
    %v2315 = vunpack.c.h.b16 %v2158
    %v2316 = vunpack.c.l.b16 %v2159
    %v2317 = vunpack.c.h.b16 %v2159
    %v2318 = vunpack.c.l.b16 %v2160
    %v2319 = vunpack.c.h.b16 %v2160
    %v2320 = vunpack.c.l.b16 %v2161
    %v2321 = vunpack.c.h.b16 %v2161
    %v2322 = vunpack.c.l.b16 %v2162
    %v2323 = vunpack.c.h.b16 %v2162
    %v2324 = vunpack.c.l.b16 %v2163
    %v2325 = vunpack.c.h.b16 %v2163
    %v2326 = vunpack.c.l.b16 %v2164
    %v2327 = vunpack.c.h.b16 %v2164
    %v2328 = vunpack.c.l.b16 %v2165
    %v2329 = vunpack.c.h.b16 %v2165
    %v2330 = vunpack.c.l.b16 %v2166
    %v2331 = vunpack.c.h.b16 %v2166
    %v2332 = vunpack.c.l.b16 %v2167
    %v2333 = vunpack.c.h.b16 %v2167
    %v2334 = vunpack.c.l.b16 %v2168
    %v2335 = vunpack.c.h.b16 %v2168
    %v2336 = vunpack.c.l.b16 %v2169
    %v2337 = vunpack.c.h.b16 %v2169
    %v2338 = vunpack.c.l.b16 %v2170
    %v2339 = vunpack.c.h.b16 %v2170
    %v2340 = vunpack.c.l.b16 %v2171
    %v2341 = vunpack.c.h.b16 %v2171
    %v2342 = vunpack.c.l.b16 %v2172
    %v2343 = vunpack.c.h.b16 %v2172
    %v2344 = vunpack.c.l.b16 %v2173
    %v2345 = vunpack.c.h.b16 %v2173
    %v2346 = vunpack.c.l.b16 %v2174
    %v2347 = vunpack.c.h.b16 %v2174
    %v2348 = vunpack.c.l.b16 %v2175
    %v2349 = vunpack.c.h.b16 %v2175
    %v2350 = vunpack.c.l.b16 %v2176
    %v2351 = vunpack.c.h.b16 %v2176
    %v2352 = vunpack.c.l.b16 %v2177
    %v2353 = vunpack.c.h.b16 %v2177
    %v2354 = vunpack.c.l.b16 %v2178
    %v2355 = vunpack.c.h.b16 %v2178
    %v2356 = vunpack.c.l.b16 %v2179
    %v2357 = vunpack.c.h.b16 %v2179
    %v2358 = vunpack.c.l.b16 %v2180
    %v2359 = vunpack.c.h.b16 %v2180
    %v2360 = vunpack.c.l.b16 %v2181
    %v2361 = vunpack.c.h.b16 %v2181
    %v2362 = vunpack.c.l.b16 %v2182
    %v2363 = vunpack.c.h.b16 %v2182
    %v2364 = vunpack.c.l.b16 %v2183
    %v2365 = vunpack.c.h.b16 %v2183
    %v2366 = vunpack.c.l.b16 %v2184
    %v2367 = vunpack.c.h.b16 %v2184
    %v2368 = vunpack.c.l.b16 %v2185
    %v2369 = vunpack.c.h.b16 %v2185
    %v2370 = vunpack.c.l.b16 %v2186
    %v2371 = vunpack.c.h.b16 %v2186
    %v2372 = vunpack.c.l.b16 %v2187
    %v2373 = vunpack.c.h.b16 %v2187
    %v2374 = vunpack.c.l.b16 %v2188
    %v2375 = vunpack.c.h.b16 %v2188
    %v2376 = vunpack.c.l.b16 %v2189
    %v2377 = vunpack.c.h.b16 %v2189
    %v2378 = vunpack.c.l.b16 %v2190
    %v2379 = vunpack.c.h.b16 %v2190
    %v2380 = vunpack.c.l.b16 %v2191
    %v2381 = vunpack.c.h.b16 %v2191
    %v2382 = vunpack.c.l.b16 %v2192
    %v2383 = vunpack.c.h.b16 %v2192
    %v2384 = vunpack.c.l.b16 %v2193
    %v2385 = vunpack.c.h.b16 %v2193
    %v2386 = vunpack.c.l.b16 %v2194
    %v2387 = vunpack.c.h.b16 %v2194
    %v2388 = vunpack.c.l.b16 %v2195
    %v2389 = vunpack.c.h.b16 %v2195
    %v2390 = vunpack.c.l.b16 %v2196
    %v2391 = vunpack.c.h.b16 %v2196
    %v2392 = vunpack.c.l.b16 %v2197
    %v2393 = vunpack.c.h.b16 %v2197
    %v2394 = vunpack.c.l.b16 %v2198
    %v2395 = vunpack.c.h.b16 %v2198
    %v2396 = vunpack.c.l.b16 %v2199
    %v2397 = vunpack.c.h.b16 %v2199
    %v2398 = vunpack.c.l.b16 %v2200
    %v2399 = vunpack.c.h.b16 %v2200
    %v2400 = vunpack.c.l.b16 %v2201
    %v2401 = vunpack.c.h.b16 %v2201
    %v2402 = vunpack.c.l.b16 %v2202
    %v2403 = vunpack.c.h.b16 %v2202
    %v2404 = vunpack.c.l.b16 %v2203
    %v2405 = vunpack.c.h.b16 %v2203
    %v2406 = vunpack.c.l.b16 %v2204
    %v2407 = vunpack.c.h.b16 %v2204
    %v2408 = vunpack.c.l.b16 %v2205
    %v2409 = vunpack.c.h.b16 %v2205
    %v2410 = vunpack.c.l.b16 %v2206
    %v2411 = vunpack.c.h.b16 %v2206
    %v2412 = vunpack.c.l.b16 %v2207
    %v2413 = vunpack.c.h.b16 %v2207
    %v2414 = vunpack.c.l.b16 %v2208
    %v2415 = vunpack.c.h.b16 %v2208
    %v2416 = vunpack.c.l.b16 %v2209
    %v2417 = vunpack.c.h.b16 %v2209
    %v2418 = vunpack.c.l.b16 %v2210
    %v2419 = vunpack.c.h.b16 %v2210
    %v2420 = vunpack.c.l.b16 %v2211
    %v2421 = vunpack.c.h.b16 %v2211
    %v2422 = vunpack.c.l.b16 %v2212
    %v2423 = vunpack.c.h.b16 %v2212
    %v2424 = vunpack.c.l.b16 %v2213
    %v2425 = vunpack.c.h.b16 %v2213
    %v2426 = vunpack.c.l.b16 %v2214
    %v2427 = vunpack.c.h.b16 %v2214
    %v2428 = vunpack.c.l.b16 %v2215
    %v2429 = vunpack.c.h.b16 %v2215
    %v2430 = vunpack.c.l.b16 %v2216
    %v2431 = vunpack.c.h.b16 %v2216
    %v2432 = vunpack.c.l.b16 %v2217
    %v2433 = vunpack.c.h.b16 %v2217
    %v2434 = vunpack.c.l.b16 %v2218
    %v2435 = vunpack.c.h.b16 %v2218
    %v2436 = vunpack.c.l.b16 %v2219
    %v2437 = vunpack.c.h.b16 %v2219
    %v2438 = vunpack.c.l.b16 %v2220
    %v2439 = vunpack.c.h.b16 %v2220
    %v2440 = vpack.c.b16 %v2316, %v2312
    %v2441 = vpack.c.b16 %v2317, %v2313
    %v2442 = vpack.c.b16 %v2318, %v2314
    %v2443 = vpack.c.b16 %v2319, %v2315
    %v2444 = vpack.c.b16 %v2324, %v2320
    %v2445 = vpack.c.b16 %v2325, %v2321
    %v2446 = vpack.c.b16 %v2326, %v2322
    %v2447 = vpack.c.b16 %v2327, %v2323
    %v2448 = vpack.c.b16 %v2332, %v2328
    %v2449 = vpack.c.b16 %v2333, %v2329
    %v2450 = vpack.c.b16 %v2334, %v2330
    %v2451 = vpack.c.b16 %v2335, %v2331
    %v2452 = vpack.c.b16 %v2340, %v2336
    %v2453 = vpack.c.b16 %v2341, %v2337
    %v2454 = vpack.c.b16 %v2342, %v2338
    %v2455 = vpack.c.b16 %v2343, %v2339
    %v2456 = vpack.c.b16 %v2348, %v2344
    %v2457 = vpack.c.b16 %v2349, %v2345
    %v2458 = vpack.c.b16 %v2350, %v2346
    %v2459 = vpack.c.b16 %v2351, %v2347
    %v2460 = vpack.c.b16 %v2356, %v2352
    %v2461 = vpack.c.b16 %v2357, %v2353
    %v2462 = vpack.c.b16 %v2358, %v2354
    %v2463 = vpack.c.b16 %v2359, %v2355
    %v2464 = vpack.c.b16 %v2364, %v2360
    %v2465 = vpack.c.b16 %v2365, %v2361
    %v2466 = vpack.c.b16 %v2366, %v2362
    %v2467 = vpack.c.b16 %v2367, %v2363
    %v2468 = vpack.c.b16 %v2372, %v2368
    %v2469 = vpack.c.b16 %v2373, %v2369
    %v2470 = vpack.c.b16 %v2374, %v2370
    %v2471 = vpack.c.b16 %v2375, %v2371
    %v2472 = vpack.c.b16 %v2380, %v2376
    %v2473 = vpack.c.b16 %v2381, %v2377
    %v2474 = vpack.c.b16 %v2382, %v2378
    %v2475 = vpack.c.b16 %v2383, %v2379
    %v2476 = vpack.c.b16 %v2388, %v2384
    %v2477 = vpack.c.b16 %v2389, %v2385
    %v2478 = vpack.c.b16 %v2390, %v2386
    %v2479 = vpack.c.b16 %v2391, %v2387
    %v2480 = vpack.c.b16 %v2396, %v2392
    %v2481 = vpack.c.b16 %v2397, %v2393
    %v2482 = vpack.c.b16 %v2398, %v2394
    %v2483 = vpack.c.b16 %v2399, %v2395
    %v2484 = vpack.c.b16 %v2404, %v2400
    %v2485 = vpack.c.b16 %v2405, %v2401
    %v2486 = vpack.c.b16 %v2406, %v2402
    %v2487 = vpack.c.b16 %v2407, %v2403
    %v2488 = vpack.c.b16 %v2412, %v2408
    %v2489 = vpack.c.b16 %v2413, %v2409
    %v2490 = vpack.c.b16 %v2414, %v2410
    %v2491 = vpack.c.b16 %v2415, %v2411
    %v2492 = vpack.c.b16 %v2420, %v2416
    %v2493 = vpack.c.b16 %v2421, %v2417
    %v2494 = vpack.c.b16 %v2422, %v2418
    %v2495 = vpack.c.b16 %v2423, %v2419
    %v2496 = vpack.c.b16 %v2428, %v2424
    %v2497 = vpack.c.b16 %v2429, %v2425
    %v2498 = vpack.c.b16 %v2430, %v2426
    %v2499 = vpack.c.b16 %v2431, %v2427
    %v2500 = vpack.c.b16 %v2436, %v2432
    %v2501 = vpack.c.b16 %v2437, %v2433
    %v2502 = vpack.c.b16 %v2438, %v2434
    %v2503 = vpack.c.b16 %v2439, %v2435
    %2568 = vmatprep.subr.bf16.mxu0 %v2469
    %2569 = vmatpush1.bf16.msra.mxu0 %v2468
    %2570 = vmatprep.subr.bf16.mxu0 %v2465
    %2571 = vmatpush1.bf16.msra.mxu0 %v2464
    %2572 = vmatprep.subr.bf16.mxu0 %v2461
    %2573 = vmatpush1.bf16.msra.mxu0 %v2460
    %2574 = vmatprep.subr.bf16.mxu0 %v2457
    %2575 = vmatpush1.bf16.msra.mxu0 %v2456
    %2576 = vmatprep.subr.bf16.mxu0 %v2453
    %2577 = vmatpush1.bf16.msra.mxu0 %v2452
    %2578 = vmatprep.subr.bf16.mxu0 %v2449
    %2579 = vmatpush1.bf16.msra.mxu0 %v2448
    %2580 = vmatprep.subr.bf16.mxu0 %v2445
    %2581 = vmatpush1.bf16.msra.mxu0 %v2444
    %2582 = vmatprep.subr.bf16.mxu0 %v2441
    %2583 = vmatpush1.bf16.msra.mxu0 %v2440
    %2584 = vmatprep.subr.bf16.mxu0 %v2501
    %2585 = vmatpush2.bf16.msra.mxu0 %v2500
    %2586 = vmatprep.subr.bf16.mxu0 %v2497
    %2587 = vmatpush2.bf16.msra.mxu0 %v2496
    %2588 = vmatprep.subr.bf16.mxu0 %v2493
    %2589 = vmatpush2.bf16.msra.mxu0 %v2492
    %2590 = vmatprep.subr.bf16.mxu0 %v2489
    %2591 = vmatpush2.bf16.msra.mxu0 %v2488
    %2592 = vmatprep.subr.bf16.mxu0 %v2485
    %2593 = vmatpush2.bf16.msra.mxu0 %v2484
    %2594 = vmatprep.subr.bf16.mxu0 %v2481
    %2595 = vmatpush2.bf16.msra.mxu0 %v2480
    %2596 = vmatprep.subr.bf16.mxu0 %v2477
    %2597 = vmatpush2.bf16.msra.mxu0 %v2476
    %2598 = vmatprep.subr.bf16.mxu0 %v2473
    %2599 = vmatpush2.bf16.msra.mxu0 %v2472
    %2600 = vmatprep.mubr.bf16.mxu0 %v2245
    %2601 = vmatmul.mubr.bf16.gmra.mxu0 %v2244
    %v2602 = vpop.f32.mrf.mxu0
    %v2603 = vadd.f32 %v2226, %v2602
    %v2604 = vpop.f32.mrf.mxu0
    %v2605 = vadd.f32 %v2230, %v2604
    %v2606 = vpop.f32.mrf.mxu0
    %v2607 = vpop.f32.mrf.mxu0
    %2608 = vdwg.mxu0
    %2609 = vmatprep.subr.bf16.mxu0 %v2471
    %2610 = vmatpush1.bf16.msra.mxu0 %v2470
    %2611 = vmatprep.subr.bf16.mxu0 %v2467
    %2612 = vmatpush1.bf16.msra.mxu0 %v2466
    %2613 = vmatprep.subr.bf16.mxu0 %v2463
    %2614 = vmatpush1.bf16.msra.mxu0 %v2462
    %2615 = vmatprep.subr.bf16.mxu0 %v2459
    %2616 = vmatpush1.bf16.msra.mxu0 %v2458
    %2617 = vmatprep.subr.bf16.mxu0 %v2455
    %2618 = vmatpush1.bf16.msra.mxu0 %v2454
    %2619 = vmatprep.subr.bf16.mxu0 %v2451
    %2620 = vmatpush1.bf16.msra.mxu0 %v2450
    %2621 = vmatprep.subr.bf16.mxu0 %v2447
    %2622 = vmatpush1.bf16.msra.mxu0 %v2446
    %2623 = vmatprep.subr.bf16.mxu0 %v2443
    %2624 = vmatpush1.bf16.msra.mxu0 %v2442
    %2625 = vmatprep.subr.bf16.mxu0 %v2503
    %2626 = vmatpush2.bf16.msra.mxu0 %v2502
    %2627 = vmatprep.subr.bf16.mxu0 %v2499
    %2628 = vmatpush2.bf16.msra.mxu0 %v2498
    %2629 = vmatprep.subr.bf16.mxu0 %v2495
    %2630 = vmatpush2.bf16.msra.mxu0 %v2494
    %2631 = vmatprep.subr.bf16.mxu0 %v2491
    %2632 = vmatpush2.bf16.msra.mxu0 %v2490
    %2633 = vmatprep.subr.bf16.mxu0 %v2487
    %2634 = vmatpush2.bf16.msra.mxu0 %v2486
    %2635 = vmatprep.subr.bf16.mxu0 %v2483
    %2636 = vmatpush2.bf16.msra.mxu0 %v2482
    %2637 = vmatprep.subr.bf16.mxu0 %v2479
    %2638 = vmatpush2.bf16.msra.mxu0 %v2478
    %2639 = vmatprep.subr.bf16.mxu0 %v2475
    %2640 = vmatpush2.bf16.msra.mxu0 %v2474
    %2641 = vmatprep.mubr.bf16.mxu0 %v2245
    %2642 = vmatmul.mubr.bf16.gmra.mxu0 %v2244
    %v2643 = vpop.f32.mrf.mxu0
    %v2644 = vadd.f32 %v2234, %v2643
    %v2645 = vpop.f32.mrf.mxu0
    %v2646 = vadd.f32 %v2238, %v2645
    %v2647 = vpop.f32.mrf.mxu0
    %v2648 = vpop.f32.mrf.mxu0
    %2649 = vdwg.mxu0
    %v2650 = vxor.u32 %v2603, 2147483648
    %v2651 = vxor.u32 %v2605, 2147483648
    %v2652 = vxor.u32 %v2644, 2147483648
    %v2653 = vmul.f32 %v2650, 1.442695
    %v2654 = vpow.pop %v2653
    %v2655 = vmul.f32 %v2651, 1.442695
    %v2656 = vpow.pop %v2655
    %v2657 = vmul.f32 %v2652, 1.442695
    %v2658 = vpow.pop %v2657
    %v2659 = vadd.f32 %v2654, 1.0
    %v2660 = vadd.f32 %v2656, 1.0
    %v2661 = vadd.f32 %v2658, 1.0
    %v2662 = vrcp.pop %v2659
    %v2663 = vmul.f32 1.0, %v2662
    %v2664 = vrcp.pop %v2660
    %v2665 = vmul.f32 1.0, %v2664
    %v2666 = vrcp.pop %v2661
    %v2667 = vmul.f32 1.0, %v2666
    %v2668 = vtanh.pop %v2646
    %v2669 = vmul.f32 %v2665, %v1790
    %v2670 = vmul.f32 %v2663, %v2668
    %v2671 = vadd.f32 %v2669, %v2670
    %v2672 = vtanh.pop %v2671
    %v2673 = vmul.f32 %v2667, %v2672
    %v2674 = vpack.c.bf16 %v2673, %v2673
    %s2675 = scalar_lea.vmem [#allocation10], 16
    %2676 = vst [vmem:[%s2675] sm:$0xff] %v2673
    %v2677 = vld [vmem:[#allocation2] sm:$0xf8]
    %v2678 = vld [vmem:[#allocation2 + $0x8] sm:$0xf8]
    %v2679 = vld [vmem:[#allocation2 + $0x10] sm:$0xf8]
    %v2680 = vld [vmem:[#allocation2 + $0x18] sm:$0xf8]
    %v2681 = vld [vmem:[#allocation2 + $0x20] sm:$0x7]
    %v2682 = vld [vmem:[#allocation2 + $0x28] sm:$0x7]
    %v2683 = vld [vmem:[#allocation2 + $0x30] sm:$0x7]
    %v2684 = vld [vmem:[#allocation2 + $0x38] sm:$0x7]
    %v2685 = vld [vmem:[#allocation5] sm:$0xff]
    %v2686 = vld [vmem:[#allocation5 + $0x8] sm:$0xff]
    %v2687 = vld [vmem:[#allocation5 + $0x10] sm:$0xff]
    %v2688 = vld [vmem:[#allocation5 + $0x18] sm:$0xff]
    %v2689 = vld [vmem:[#allocation5 + $0x20] sm:$0xff]
    %v2690 = vld [vmem:[#allocation5 + $0x28] sm:$0xff]
    %v2691 = vld [vmem:[#allocation5 + $0x30] sm:$0xff]
    %v2692 = vld [vmem:[#allocation5 + $0x38] sm:$0xff]
    %v2693 = vld [vmem:[#allocation5 + $0x40] sm:$0xff]
    %v2694 = vld [vmem:[#allocation5 + $0x48] sm:$0xff]
    %v2695 = vld [vmem:[#allocation5 + $0x50] sm:$0xff]
    %v2696 = vld [vmem:[#allocation5 + $0x58] sm:$0xff]
    %v2697 = vld [vmem:[#allocation5 + $0x60] sm:$0xff]
    %v2698 = vld [vmem:[#allocation5 + $0x68] sm:$0xff]
    %v2699 = vld [vmem:[#allocation5 + $0x70] sm:$0xff]
    %v2700 = vld [vmem:[#allocation5 + $0x78] sm:$0xff]
    %v2701 = vld [vmem:[#allocation5 + $0x80] sm:$0xff]
    %v2702 = vld [vmem:[#allocation5 + $0x88] sm:$0xff]
    %v2703 = vld [vmem:[#allocation5 + $0x90] sm:$0xff]
    %v2704 = vld [vmem:[#allocation5 + $0x98] sm:$0xff]
    %v2705 = vld [vmem:[#allocation5 + $0xa0] sm:$0xff]
    %v2706 = vld [vmem:[#allocation5 + $0xa8] sm:$0xff]
    %v2707 = vld [vmem:[#allocation5 + $0xb0] sm:$0xff]
    %v2708 = vld [vmem:[#allocation5 + $0xb8] sm:$0xff]
    %v2709 = vld [vmem:[#allocation5 + $0xc0] sm:$0xff]
    %v2710 = vld [vmem:[#allocation5 + $0xc8] sm:$0xff]
    %v2711 = vld [vmem:[#allocation5 + $0xd0] sm:$0xff]
    %v2712 = vld [vmem:[#allocation5 + $0xd8] sm:$0xff]
    %v2713 = vld [vmem:[#allocation5 + $0xe0] sm:$0xff]
    %v2714 = vld [vmem:[#allocation5 + $0xe8] sm:$0xff]
    %v2715 = vld [vmem:[#allocation5 + $0xf0] sm:$0xff]
    %v2716 = vld [vmem:[#allocation5 + $0xf8] sm:$0xff]
    %v2749 = vunpack.c.l.b16 %v2685
    %v2750 = vunpack.c.h.b16 %v2685
    %v2751 = vunpack.c.l.b16 %v2686
    %v2752 = vunpack.c.h.b16 %v2686
    %v2753 = vunpack.c.l.b16 %v2687
    %v2754 = vunpack.c.h.b16 %v2687
    %v2755 = vunpack.c.l.b16 %v2688
    %v2756 = vunpack.c.h.b16 %v2688
    %v2757 = vunpack.c.l.b16 %v2689
    %v2758 = vunpack.c.h.b16 %v2689
    %v2759 = vunpack.c.l.b16 %v2690
    %v2760 = vunpack.c.h.b16 %v2690
    %v2761 = vunpack.c.l.b16 %v2691
    %v2762 = vunpack.c.h.b16 %v2691
    %v2763 = vunpack.c.l.b16 %v2692
    %v2764 = vunpack.c.h.b16 %v2692
    %v2765 = vunpack.c.l.b16 %v2693
    %v2766 = vunpack.c.h.b16 %v2693
    %v2767 = vunpack.c.l.b16 %v2694
    %v2768 = vunpack.c.h.b16 %v2694
    %v2769 = vunpack.c.l.b16 %v2695
    %v2770 = vunpack.c.h.b16 %v2695
    %v2771 = vunpack.c.l.b16 %v2696
    %v2772 = vunpack.c.h.b16 %v2696
    %v2773 = vunpack.c.l.b16 %v2697
    %v2774 = vunpack.c.h.b16 %v2697
    %v2775 = vunpack.c.l.b16 %v2698
    %v2776 = vunpack.c.h.b16 %v2698
    %v2777 = vunpack.c.l.b16 %v2699
    %v2778 = vunpack.c.h.b16 %v2699
    %v2779 = vunpack.c.l.b16 %v2700
    %v2780 = vunpack.c.h.b16 %v2700
    %v2781 = vunpack.c.l.b16 %v2701
    %v2782 = vunpack.c.h.b16 %v2701
    %v2783 = vunpack.c.l.b16 %v2702
    %v2784 = vunpack.c.h.b16 %v2702
    %v2785 = vunpack.c.l.b16 %v2703
    %v2786 = vunpack.c.h.b16 %v2703
    %v2787 = vunpack.c.l.b16 %v2704
    %v2788 = vunpack.c.h.b16 %v2704
    %v2789 = vunpack.c.l.b16 %v2705
    %v2790 = vunpack.c.h.b16 %v2705
    %v2791 = vunpack.c.l.b16 %v2706
    %v2792 = vunpack.c.h.b16 %v2706
    %v2793 = vunpack.c.l.b16 %v2707
    %v2794 = vunpack.c.h.b16 %v2707
    %v2795 = vunpack.c.l.b16 %v2708
    %v2796 = vunpack.c.h.b16 %v2708
    %v2797 = vunpack.c.l.b16 %v2709
    %v2798 = vunpack.c.h.b16 %v2709
    %v2799 = vunpack.c.l.b16 %v2710
    %v2800 = vunpack.c.h.b16 %v2710
    %v2801 = vunpack.c.l.b16 %v2711
    %v2802 = vunpack.c.h.b16 %v2711
    %v2803 = vunpack.c.l.b16 %v2712
    %v2804 = vunpack.c.h.b16 %v2712
    %v2805 = vunpack.c.l.b16 %v2713
    %v2806 = vunpack.c.h.b16 %v2713
    %v2807 = vunpack.c.l.b16 %v2714
    %v2808 = vunpack.c.h.b16 %v2714
    %v2809 = vunpack.c.l.b16 %v2715
    %v2810 = vunpack.c.h.b16 %v2715
    %v2811 = vunpack.c.l.b16 %v2716
    %v2812 = vunpack.c.h.b16 %v2716
    %v2813 = vpack.c.b16 %v2753, %v2749
    %v2814 = vpack.c.b16 %v2754, %v2750
    %v2815 = vpack.c.b16 %v2755, %v2751
    %v2816 = vpack.c.b16 %v2756, %v2752
    %v2817 = vpack.c.b16 %v2761, %v2757
    %v2818 = vpack.c.b16 %v2762, %v2758
    %v2819 = vpack.c.b16 %v2763, %v2759
    %v2820 = vpack.c.b16 %v2764, %v2760
    %v2821 = vpack.c.b16 %v2769, %v2765
    %v2822 = vpack.c.b16 %v2770, %v2766
    %v2823 = vpack.c.b16 %v2771, %v2767
    %v2824 = vpack.c.b16 %v2772, %v2768
    %v2825 = vpack.c.b16 %v2777, %v2773
    %v2826 = vpack.c.b16 %v2778, %v2774
    %v2827 = vpack.c.b16 %v2779, %v2775
    %v2828 = vpack.c.b16 %v2780, %v2776
    %v2829 = vpack.c.b16 %v2785, %v2781
    %v2830 = vpack.c.b16 %v2786, %v2782
    %v2831 = vpack.c.b16 %v2787, %v2783
    %v2832 = vpack.c.b16 %v2788, %v2784
    %v2833 = vpack.c.b16 %v2793, %v2789
    %v2834 = vpack.c.b16 %v2794, %v2790
    %v2835 = vpack.c.b16 %v2795, %v2791
    %v2836 = vpack.c.b16 %v2796, %v2792
    %v2837 = vpack.c.b16 %v2801, %v2797
    %v2838 = vpack.c.b16 %v2802, %v2798
    %v2839 = vpack.c.b16 %v2803, %v2799
    %v2840 = vpack.c.b16 %v2804, %v2800
    %v2841 = vpack.c.b16 %v2809, %v2805
    %v2842 = vpack.c.b16 %v2810, %v2806
    %v2843 = vpack.c.b16 %v2811, %v2807
    %v2844 = vpack.c.b16 %v2812, %v2808
    %2877 = vmatprep.subr.bf16.mxu0 %v2842
    %2878 = vmatpush1.bf16.msra.mxu0 %v2841
    %2879 = vmatprep.subr.bf16.mxu0 %v2838
    %2880 = vmatpush1.bf16.msra.mxu0 %v2837
    %2881 = vmatprep.subr.bf16.mxu0 %v2834
    %2882 = vmatpush1.bf16.msra.mxu0 %v2833
    %2883 = vmatprep.subr.bf16.mxu0 %v2830
    %2884 = vmatpush1.bf16.msra.mxu0 %v2829
    %2885 = vmatprep.subr.bf16.mxu0 %v2826
    %2886 = vmatpush1.bf16.msra.mxu0 %v2825
    %2887 = vmatprep.subr.bf16.mxu0 %v2822
    %2888 = vmatpush1.bf16.msra.mxu0 %v2821
    %2889 = vmatprep.subr.bf16.mxu0 %v2818
    %2890 = vmatpush1.bf16.msra.mxu0 %v2817
    %2891 = vmatprep.subr.bf16.mxu0 %v2814
    %2892 = vmatpush1.bf16.msra.mxu0 %v2813
    %2893 = vmatprep.subr.bf16.mxu0 0
    %2894 = vmatpush2.bf16.msra.mxu0 0
    %2895 = vmatprep.subr.bf16.mxu0 0
    %2896 = vmatpush2.bf16.msra.mxu0 0
    %2897 = vmatprep.subr.bf16.mxu0 0
    %2898 = vmatpush2.bf16.msra.mxu0 0
    %2899 = vmatprep.subr.bf16.mxu0 0
    %2900 = vmatpush2.bf16.msra.mxu0 0
    %2901 = vmatprep.subr.bf16.mxu0 0
    %2902 = vmatpush2.bf16.msra.mxu0 0
    %2903 = vmatprep.subr.bf16.mxu0 0
    %2904 = vmatpush2.bf16.msra.mxu0 0
    %2905 = vmatprep.subr.bf16.mxu0 0
    %2906 = vmatpush2.bf16.msra.mxu0 0
    %2907 = vmatprep.subr.bf16.mxu0 0
    %2908 = vmatpush2.bf16.msra.mxu0 0
    %2909 = vmatprep.mubr.bf16.mxu0 0
    %2910 = vmatmul.mubr.bf16.gmra.mxu0 %v2244
    %v2911 = vpop.f32.mrf.mxu0
    %v2912 = vadd.f32 0.0, %v2911
    %v2913 = vpop.f32.mrf.mxu0
    %v2914 = vadd.f32 0.0, %v2913
    %v2915 = vpop.f32.mrf.mxu0
    %v2916 = vpop.f32.mrf.mxu0
    %2917 = vdwg.mxu0
    %2918 = vmatprep.subr.bf16.mxu0 %v2844
    %2919 = vmatpush1.bf16.msra.mxu0 %v2843
    %2920 = vmatprep.subr.bf16.mxu0 %v2840
    %2921 = vmatpush1.bf16.msra.mxu0 %v2839
    %2922 = vmatprep.subr.bf16.mxu0 %v2836
    %2923 = vmatpush1.bf16.msra.mxu0 %v2835
    %2924 = vmatprep.subr.bf16.mxu0 %v2832
    %2925 = vmatpush1.bf16.msra.mxu0 %v2831
    %2926 = vmatprep.subr.bf16.mxu0 %v2828
    %2927 = vmatpush1.bf16.msra.mxu0 %v2827
    %2928 = vmatprep.subr.bf16.mxu0 %v2824
    %2929 = vmatpush1.bf16.msra.mxu0 %v2823
    %2930 = vmatprep.subr.bf16.mxu0 %v2820
    %2931 = vmatpush1.bf16.msra.mxu0 %v2819
    %2932 = vmatprep.subr.bf16.mxu0 %v2816
    %2933 = vmatpush1.bf16.msra.mxu0 %v2815
    %2934 = vmatprep.subr.bf16.mxu0 0
    %2935 = vmatpush2.bf16.msra.mxu0 0
    %2936 = vmatprep.subr.bf16.mxu0 0
    %2937 = vmatpush2.bf16.msra.mxu0 0
    %2938 = vmatprep.subr.bf16.mxu0 0
    %2939 = vmatpush2.bf16.msra.mxu0 0
    %2940 = vmatprep.subr.bf16.mxu0 0
    %2941 = vmatpush2.bf16.msra.mxu0 0
    %2942 = vmatprep.subr.bf16.mxu0 0
    %2943 = vmatpush2.bf16.msra.mxu0 0
    %2944 = vmatprep.subr.bf16.mxu0 0
    %2945 = vmatpush2.bf16.msra.mxu0 0
    %2946 = vmatprep.subr.bf16.mxu0 0
    %2947 = vmatpush2.bf16.msra.mxu0 0
    %2948 = vmatprep.subr.bf16.mxu0 0
    %2949 = vmatpush2.bf16.msra.mxu0 0
    %2950 = vmatprep.mubr.bf16.mxu0 0
    %2951 = vmatmul.mubr.bf16.gmra.mxu0 %v2244
    %v2952 = vpop.f32.mrf.mxu0
    %v2953 = vadd.f32 0.0, %v2952
    %v2954 = vpop.f32.mrf.mxu0
    %v2955 = vadd.f32 0.0, %v2954
    %v2956 = vpop.f32.mrf.mxu0
    %v2957 = vpop.f32.mrf.mxu0
    %2958 = vdwg.mxu0
    %v2963 = vrot.slane %v2912, 5
    %v2964 = vrot.slane %v2914, 5
    %v2965 = vrot.slane %v2953, 5
    %v2966 = vrot.slane %v2955, 5
    %v2971 = vadd.f32 %v2677, %v2963
    %v2972 = vadd.f32 %v2678, %v2964
    %v2973 = vadd.f32 %v2679, %v2965
    %v2974 = vadd.f32 %v2680, %v2966
    %v2975 = vadd.f32 %v2681, %v2963
    %v2976 = vadd.f32 %v2682, %v2964
    %v2977 = vadd.f32 %v2683, %v2965
    %v2978 = vadd.f32 %v2684, %v2966
    %v2979 = vxor.u32 %v2971, 2147483648
    %v2980 = vxor.u32 %v2972, 2147483648
    %v2981 = vxor.u32 %v2973, 2147483648
    %v2982 = vxor.u32 %v2975, 2147483648
    %v2983 = vxor.u32 %v2976, 2147483648
    %v2984 = vxor.u32 %v2977, 2147483648
    %v2985 = vmul.f32 %v2979, 1.442695
    %v2986 = vpow.pop %v2985
    %v2987 = vmul.f32 %v2980, 1.442695
    %v2988 = vpow.pop %v2987
    %v2989 = vmul.f32 %v2981, 1.442695
    %v2990 = vpow.pop %v2989
    %v2991 = vmul.f32 %v2982, 1.442695
    %v2992 = vpow.pop %v2991
    %v2993 = vmul.f32 %v2983, 1.442695
    %v2994 = vpow.pop %v2993
    %v2995 = vmul.f32 %v2984, 1.442695
    %v2996 = vpow.pop %v2995
    %v2997 = vadd.f32 %v2986, 1.0
    %v2998 = vadd.f32 %v2988, 1.0
    %v2999 = vadd.f32 %v2990, 1.0
    %v3000 = vadd.f32 %v2992, 1.0
    %v3001 = vadd.f32 %v2994, 1.0
    %v3002 = vadd.f32 %v2996, 1.0
    %v3003 = vrcp.pop %v2997
    %v3004 = vmul.f32 1.0, %v3003
    %v3005 = vrcp.pop %v2998
    %v3006 = vmul.f32 1.0, %v3005
    %v3007 = vrcp.pop %v2999
    %v3008 = vmul.f32 1.0, %v3007
    %v3009 = vrcp.pop %v3000
    %v3010 = vmul.f32 1.0, %v3009
    %v3011 = vrcp.pop %v3001
    %v3012 = vmul.f32 1.0, %v3011
    %v3013 = vrcp.pop %v3002
    %v3014 = vmul.f32 1.0, %v3013
    %v3015 = vtanh.pop %v2974
    %v3016 = vtanh.pop %v2978
    %v3019 = vrot.slane %v2148, 7
    %v3020 = vrot.slane %v2149, 7
    %v3021 = vsel %vm2138, %v3019, %v3020
    %v3024 = vmul.f32 %v3006, %v3019
    %v3025 = vmul.f32 %v3012, %v3021
    %v3026 = vmul.f32 %v3004, %v3015
    %v3027 = vmul.f32 %v3010, %v3016
    %v3028 = vadd.f32 %v3024, %v3026
    %v3029 = vadd.f32 %v3025, %v3027
    %v3030 = vtanh.pop %v3028
    %v3031 = vtanh.pop %v3029
    %v3032 = vmul.f32 %v3008, %v3030
    %v3033 = vmul.f32 %v3014, %v3031
    %v3034 = vpack.c.bf16 %v3033, %v3032
    %v3036 = vshrl.u32 %v2674, 16
    %v3038 = vrot.slane %v3036, 6
    %v3039 = vshll.u32 %v2674, 16
    %v3041 = vrot.slane %v3039, 7
    %v3042 = vor.u32 %v3038, %v3041
    %v3043 = vld [vmem:[#allocation7] sm:$0xff]
    %v3044 = vld [vmem:[#allocation7 + $0x8] sm:$0xff]
    %v3045 = vld [vmem:[#allocation7 + $0x10] sm:$0xff]
    %v3046 = vld [vmem:[#allocation7 + $0x18] sm:$0xff]
    %v3047 = vld [vmem:[#allocation7 + $0x20] sm:$0xff]
    %v3048 = vld [vmem:[#allocation7 + $0x28] sm:$0xff]
    %v3049 = vld [vmem:[#allocation7 + $0x30] sm:$0xff]
    %v3050 = vld [vmem:[#allocation7 + $0x38] sm:$0xff]
    %v3051 = vld [vmem:[#allocation7 + $0x40] sm:$0xff]
    %v3052 = vld [vmem:[#allocation7 + $0x48] sm:$0xff]
    %v3053 = vld [vmem:[#allocation7 + $0x50] sm:$0xff]
    %v3054 = vld [vmem:[#allocation7 + $0x58] sm:$0xff]
    %v3055 = vld [vmem:[#allocation7 + $0x60] sm:$0xff]
    %v3056 = vld [vmem:[#allocation7 + $0x68] sm:$0xff]
    %v3057 = vld [vmem:[#allocation7 + $0x70] sm:$0xff]
    %v3058 = vld [vmem:[#allocation7 + $0x78] sm:$0xff]
    %v3059 = vld [vmem:[#allocation7 + $0x80] sm:$0xff]
    %v3060 = vld [vmem:[#allocation7 + $0x88] sm:$0xff]
    %v3061 = vld [vmem:[#allocation7 + $0x90] sm:$0xff]
    %v3062 = vld [vmem:[#allocation7 + $0x98] sm:$0xff]
    %v3063 = vld [vmem:[#allocation7 + $0xa0] sm:$0xff]
    %v3064 = vld [vmem:[#allocation7 + $0xa8] sm:$0xff]
    %v3065 = vld [vmem:[#allocation7 + $0xb0] sm:$0xff]
    %v3066 = vld [vmem:[#allocation7 + $0xb8] sm:$0xff]
    %v3067 = vld [vmem:[#allocation7 + $0xc0] sm:$0xff]
    %v3068 = vld [vmem:[#allocation7 + $0xc8] sm:$0xff]
    %v3069 = vld [vmem:[#allocation7 + $0xd0] sm:$0xff]
    %v3070 = vld [vmem:[#allocation7 + $0xd8] sm:$0xff]
    %v3071 = vld [vmem:[#allocation7 + $0xe0] sm:$0xff]
    %v3072 = vld [vmem:[#allocation7 + $0xe8] sm:$0xff]
    %v3073 = vld [vmem:[#allocation7 + $0xf0] sm:$0xff]
    %v3074 = vld [vmem:[#allocation7 + $0xf8] sm:$0xff]
    %v3075 = vld [vmem:[#allocation7 + $0x100] sm:$0xff]
    %v3076 = vld [vmem:[#allocation7 + $0x108] sm:$0xff]
    %v3077 = vld [vmem:[#allocation7 + $0x110] sm:$0xff]
    %v3078 = vld [vmem:[#allocation7 + $0x118] sm:$0xff]
    %v3079 = vld [vmem:[#allocation7 + $0x120] sm:$0xff]
    %v3080 = vld [vmem:[#allocation7 + $0x128] sm:$0xff]
    %v3081 = vld [vmem:[#allocation7 + $0x130] sm:$0xff]
    %v3082 = vld [vmem:[#allocation7 + $0x138] sm:$0xff]
    %v3083 = vld [vmem:[#allocation7 + $0x140] sm:$0xff]
    %v3084 = vld [vmem:[#allocation7 + $0x148] sm:$0xff]
    %v3085 = vld [vmem:[#allocation7 + $0x150] sm:$0xff]
    %v3086 = vld [vmem:[#allocation7 + $0x158] sm:$0xff]
    %v3087 = vld [vmem:[#allocation7 + $0x160] sm:$0xff]
    %v3088 = vld [vmem:[#allocation7 + $0x168] sm:$0xff]
    %v3089 = vld [vmem:[#allocation7 + $0x170] sm:$0xff]
    %v3090 = vld [vmem:[#allocation7 + $0x178] sm:$0xff]
    %v3091 = vld [vmem:[#allocation7 + $0x180] sm:$0xff]
    %v3092 = vld [vmem:[#allocation7 + $0x188] sm:$0xff]
    %v3093 = vld [vmem:[#allocation7 + $0x190] sm:$0xff]
    %v3094 = vld [vmem:[#allocation7 + $0x198] sm:$0xff]
    %v3095 = vld [vmem:[#allocation7 + $0x1a0] sm:$0xff]
    %v3096 = vld [vmem:[#allocation7 + $0x1a8] sm:$0xff]
    %v3097 = vld [vmem:[#allocation7 + $0x1b0] sm:$0xff]
    %v3098 = vld [vmem:[#allocation7 + $0x1b8] sm:$0xff]
    %v3099 = vld [vmem:[#allocation7 + $0x1c0] sm:$0xff]
    %v3100 = vld [vmem:[#allocation7 + $0x1c8] sm:$0xff]
    %v3101 = vld [vmem:[#allocation7 + $0x1d0] sm:$0xff]
    %v3102 = vld [vmem:[#allocation7 + $0x1d8] sm:$0xff]
    %v3103 = vld [vmem:[#allocation7 + $0x1e0] sm:$0xff]
    %v3104 = vld [vmem:[#allocation7 + $0x1e8] sm:$0xff]
    %v3105 = vld [vmem:[#allocation7 + $0x1f0] sm:$0xff]
    %v3106 = vld [vmem:[#allocation7 + $0x1f8] sm:$0xff]
    %v3107 = vld [vmem:[%s3] sm:$0xf]
    %v3109 = vlaneseq
    %v3110 = vshrl.u32 %v3109, 7
    %v3111 = vsub.s32 0, %v3110
    %v3112 = vrot.slane %v3107, %v3111
    %v3113 = vlaneseq
    %v3114 = vshrl.u32 %v3113, 7
    %v3115 = vsub.s32 1, %v3114
    %v3116 = vrot.slane %v3107, %v3115
    %v3117 = vlaneseq
    %v3118 = vshrl.u32 %v3117, 7
    %v3119 = vsub.s32 2, %v3118
    %v3120 = vrot.slane %v3107, %v3119
    %v3121 = vlaneseq
    %v3122 = vshrl.u32 %v3121, 7
    %v3123 = vsub.s32 3, %v3122
    %v3124 = vrot.slane %v3107, %v3123
    %v3130 = vshrl.u32 %v3034, 16
    %v3132 = vrot.slane %v3130, 1
    %v3133 = vshll.u32 %v3034, 16
    %v3135 = vrot.slane %v3133, 2
    %v3136 = vor.u32 %v3132, %v3135
    %v3138 = vshrl.u32 %v3042, 16
    %v3140 = vrot.slane %v3138, 1
    %v3141 = vshll.u32 %v3042, 16
    %v3143 = vrot.slane %v3141, 2
    %v3144 = vor.u32 %v3140, %v3143
    %v3211 = vunpack.c.l.b16 %v3043
    %v3212 = vunpack.c.h.b16 %v3043
    %v3213 = vunpack.c.l.b16 %v3044
    %v3214 = vunpack.c.h.b16 %v3044
    %v3215 = vunpack.c.l.b16 %v3045
    %v3216 = vunpack.c.h.b16 %v3045
    %v3217 = vunpack.c.l.b16 %v3046
    %v3218 = vunpack.c.h.b16 %v3046
    %v3219 = vunpack.c.l.b16 %v3047
    %v3220 = vunpack.c.h.b16 %v3047
    %v3221 = vunpack.c.l.b16 %v3048
    %v3222 = vunpack.c.h.b16 %v3048
    %v3223 = vunpack.c.l.b16 %v3049
    %v3224 = vunpack.c.h.b16 %v3049
    %v3225 = vunpack.c.l.b16 %v3050
    %v3226 = vunpack.c.h.b16 %v3050
    %v3227 = vunpack.c.l.b16 %v3051
    %v3228 = vunpack.c.h.b16 %v3051
    %v3229 = vunpack.c.l.b16 %v3052
    %v3230 = vunpack.c.h.b16 %v3052
    %v3231 = vunpack.c.l.b16 %v3053
    %v3232 = vunpack.c.h.b16 %v3053
    %v3233 = vunpack.c.l.b16 %v3054
    %v3234 = vunpack.c.h.b16 %v3054
    %v3235 = vunpack.c.l.b16 %v3055
    %v3236 = vunpack.c.h.b16 %v3055
    %v3237 = vunpack.c.l.b16 %v3056
    %v3238 = vunpack.c.h.b16 %v3056
    %v3239 = vunpack.c.l.b16 %v3057
    %v3240 = vunpack.c.h.b16 %v3057
    %v3241 = vunpack.c.l.b16 %v3058
    %v3242 = vunpack.c.h.b16 %v3058
    %v3243 = vunpack.c.l.b16 %v3059
    %v3244 = vunpack.c.h.b16 %v3059
    %v3245 = vunpack.c.l.b16 %v3060
    %v3246 = vunpack.c.h.b16 %v3060
    %v3247 = vunpack.c.l.b16 %v3061
    %v3248 = vunpack.c.h.b16 %v3061
    %v3249 = vunpack.c.l.b16 %v3062
    %v3250 = vunpack.c.h.b16 %v3062
    %v3251 = vunpack.c.l.b16 %v3063
    %v3252 = vunpack.c.h.b16 %v3063
    %v3253 = vunpack.c.l.b16 %v3064
    %v3254 = vunpack.c.h.b16 %v3064
    %v3255 = vunpack.c.l.b16 %v3065
    %v3256 = vunpack.c.h.b16 %v3065
    %v3257 = vunpack.c.l.b16 %v3066
    %v3258 = vunpack.c.h.b16 %v3066
    %v3259 = vunpack.c.l.b16 %v3067
    %v3260 = vunpack.c.h.b16 %v3067
    %v3261 = vunpack.c.l.b16 %v3068
    %v3262 = vunpack.c.h.b16 %v3068
    %v3263 = vunpack.c.l.b16 %v3069
    %v3264 = vunpack.c.h.b16 %v3069
    %v3265 = vunpack.c.l.b16 %v3070
    %v3266 = vunpack.c.h.b16 %v3070
    %v3267 = vunpack.c.l.b16 %v3071
    %v3268 = vunpack.c.h.b16 %v3071
    %v3269 = vunpack.c.l.b16 %v3072
    %v3270 = vunpack.c.h.b16 %v3072
    %v3271 = vunpack.c.l.b16 %v3073
    %v3272 = vunpack.c.h.b16 %v3073
    %v3273 = vunpack.c.l.b16 %v3074
    %v3274 = vunpack.c.h.b16 %v3074
    %v3275 = vunpack.c.l.b16 %v3075
    %v3276 = vunpack.c.h.b16 %v3075
    %v3277 = vunpack.c.l.b16 %v3076
    %v3278 = vunpack.c.h.b16 %v3076
    %v3279 = vunpack.c.l.b16 %v3077
    %v3280 = vunpack.c.h.b16 %v3077
    %v3281 = vunpack.c.l.b16 %v3078
    %v3282 = vunpack.c.h.b16 %v3078
    %v3283 = vunpack.c.l.b16 %v3079
    %v3284 = vunpack.c.h.b16 %v3079
    %v3285 = vunpack.c.l.b16 %v3080
    %v3286 = vunpack.c.h.b16 %v3080
    %v3287 = vunpack.c.l.b16 %v3081
    %v3288 = vunpack.c.h.b16 %v3081
    %v3289 = vunpack.c.l.b16 %v3082
    %v3290 = vunpack.c.h.b16 %v3082
    %v3291 = vunpack.c.l.b16 %v3083
    %v3292 = vunpack.c.h.b16 %v3083
    %v3293 = vunpack.c.l.b16 %v3084
    %v3294 = vunpack.c.h.b16 %v3084
    %v3295 = vunpack.c.l.b16 %v3085
    %v3296 = vunpack.c.h.b16 %v3085
    %v3297 = vunpack.c.l.b16 %v3086
    %v3298 = vunpack.c.h.b16 %v3086
    %v3299 = vunpack.c.l.b16 %v3087
    %v3300 = vunpack.c.h.b16 %v3087
    %v3301 = vunpack.c.l.b16 %v3088
    %v3302 = vunpack.c.h.b16 %v3088
    %v3303 = vunpack.c.l.b16 %v3089
    %v3304 = vunpack.c.h.b16 %v3089
    %v3305 = vunpack.c.l.b16 %v3090
    %v3306 = vunpack.c.h.b16 %v3090
    %v3307 = vunpack.c.l.b16 %v3091
    %v3308 = vunpack.c.h.b16 %v3091
    %v3309 = vunpack.c.l.b16 %v3092
    %v3310 = vunpack.c.h.b16 %v3092
    %v3311 = vunpack.c.l.b16 %v3093
    %v3312 = vunpack.c.h.b16 %v3093
    %v3313 = vunpack.c.l.b16 %v3094
    %v3314 = vunpack.c.h.b16 %v3094
    %v3315 = vunpack.c.l.b16 %v3095
    %v3316 = vunpack.c.h.b16 %v3095
    %v3317 = vunpack.c.l.b16 %v3096
    %v3318 = vunpack.c.h.b16 %v3096
    %v3319 = vunpack.c.l.b16 %v3097
    %v3320 = vunpack.c.h.b16 %v3097
    %v3321 = vunpack.c.l.b16 %v3098
    %v3322 = vunpack.c.h.b16 %v3098
    %v3323 = vunpack.c.l.b16 %v3099
    %v3324 = vunpack.c.h.b16 %v3099
    %v3325 = vunpack.c.l.b16 %v3100
    %v3326 = vunpack.c.h.b16 %v3100
    %v3327 = vunpack.c.l.b16 %v3101
    %v3328 = vunpack.c.h.b16 %v3101
    %v3329 = vunpack.c.l.b16 %v3102
    %v3330 = vunpack.c.h.b16 %v3102
    %v3331 = vunpack.c.l.b16 %v3103
    %v3332 = vunpack.c.h.b16 %v3103
    %v3333 = vunpack.c.l.b16 %v3104
    %v3334 = vunpack.c.h.b16 %v3104
    %v3335 = vunpack.c.l.b16 %v3105
    %v3336 = vunpack.c.h.b16 %v3105
    %v3337 = vunpack.c.l.b16 %v3106
    %v3338 = vunpack.c.h.b16 %v3106
    %v3339 = vpack.c.b16 %v3215, %v3211
    %v3340 = vpack.c.b16 %v3216, %v3212
    %v3341 = vpack.c.b16 %v3217, %v3213
    %v3342 = vpack.c.b16 %v3218, %v3214
    %v3343 = vpack.c.b16 %v3223, %v3219
    %v3344 = vpack.c.b16 %v3224, %v3220
    %v3345 = vpack.c.b16 %v3225, %v3221
    %v3346 = vpack.c.b16 %v3226, %v3222
    %v3347 = vpack.c.b16 %v3231, %v3227
    %v3348 = vpack.c.b16 %v3232, %v3228
    %v3349 = vpack.c.b16 %v3233, %v3229
    %v3350 = vpack.c.b16 %v3234, %v3230
    %v3351 = vpack.c.b16 %v3239, %v3235
    %v3352 = vpack.c.b16 %v3240, %v3236
    %v3353 = vpack.c.b16 %v3241, %v3237
    %v3354 = vpack.c.b16 %v3242, %v3238
    %v3355 = vpack.c.b16 %v3247, %v3243
    %v3356 = vpack.c.b16 %v3248, %v3244
    %v3357 = vpack.c.b16 %v3249, %v3245
    %v3358 = vpack.c.b16 %v3250, %v3246
    %v3359 = vpack.c.b16 %v3255, %v3251
    %v3360 = vpack.c.b16 %v3256, %v3252
    %v3361 = vpack.c.b16 %v3257, %v3253
    %v3362 = vpack.c.b16 %v3258, %v3254
    %v3363 = vpack.c.b16 %v3263, %v3259
    %v3364 = vpack.c.b16 %v3264, %v3260
    %v3365 = vpack.c.b16 %v3265, %v3261
    %v3366 = vpack.c.b16 %v3266, %v3262
    %v3367 = vpack.c.b16 %v3271, %v3267
    %v3368 = vpack.c.b16 %v3272, %v3268
    %v3369 = vpack.c.b16 %v3273, %v3269
    %v3370 = vpack.c.b16 %v3274, %v3270
    %v3371 = vpack.c.b16 %v3279, %v3275
    %v3372 = vpack.c.b16 %v3280, %v3276
    %v3373 = vpack.c.b16 %v3281, %v3277
    %v3374 = vpack.c.b16 %v3282, %v3278
    %v3375 = vpack.c.b16 %v3287, %v3283
    %v3376 = vpack.c.b16 %v3288, %v3284
    %v3377 = vpack.c.b16 %v3289, %v3285
    %v3378 = vpack.c.b16 %v3290, %v3286
    %v3379 = vpack.c.b16 %v3295, %v3291
    %v3380 = vpack.c.b16 %v3296, %v3292
    %v3381 = vpack.c.b16 %v3297, %v3293
    %v3382 = vpack.c.b16 %v3298, %v3294
    %v3383 = vpack.c.b16 %v3303, %v3299
    %v3384 = vpack.c.b16 %v3304, %v3300
    %v3385 = vpack.c.b16 %v3305, %v3301
    %v3386 = vpack.c.b16 %v3306, %v3302
    %v3387 = vpack.c.b16 %v3311, %v3307
    %v3388 = vpack.c.b16 %v3312, %v3308
    %v3389 = vpack.c.b16 %v3313, %v3309
    %v3390 = vpack.c.b16 %v3314, %v3310
    %v3391 = vpack.c.b16 %v3319, %v3315
    %v3392 = vpack.c.b16 %v3320, %v3316
    %v3393 = vpack.c.b16 %v3321, %v3317
    %v3394 = vpack.c.b16 %v3322, %v3318
    %v3395 = vpack.c.b16 %v3327, %v3323
    %v3396 = vpack.c.b16 %v3328, %v3324
    %v3397 = vpack.c.b16 %v3329, %v3325
    %v3398 = vpack.c.b16 %v3330, %v3326
    %v3399 = vpack.c.b16 %v3335, %v3331
    %v3400 = vpack.c.b16 %v3336, %v3332
    %v3401 = vpack.c.b16 %v3337, %v3333
    %v3402 = vpack.c.b16 %v3338, %v3334
    %3467 = vmatprep.subr.bf16.mxu0 %v3368
    %3468 = vmatpush1.bf16.msra.mxu0 %v3367
    %3469 = vmatprep.subr.bf16.mxu0 %v3364
    %3470 = vmatpush1.bf16.msra.mxu0 %v3363
    %3471 = vmatprep.subr.bf16.mxu0 %v3360
    %3472 = vmatpush1.bf16.msra.mxu0 %v3359
    %3473 = vmatprep.subr.bf16.mxu0 %v3356
    %3474 = vmatpush1.bf16.msra.mxu0 %v3355
    %3475 = vmatprep.subr.bf16.mxu0 %v3352
    %3476 = vmatpush1.bf16.msra.mxu0 %v3351
    %3477 = vmatprep.subr.bf16.mxu0 %v3348
    %3478 = vmatpush1.bf16.msra.mxu0 %v3347
    %3479 = vmatprep.subr.bf16.mxu0 %v3344
    %3480 = vmatpush1.bf16.msra.mxu0 %v3343
    %3481 = vmatprep.subr.bf16.mxu0 %v3340
    %3482 = vmatpush1.bf16.msra.mxu0 %v3339
    %3483 = vmatprep.subr.bf16.mxu0 %v3400
    %3484 = vmatpush2.bf16.msra.mxu0 %v3399
    %3485 = vmatprep.subr.bf16.mxu0 %v3396
    %3486 = vmatpush2.bf16.msra.mxu0 %v3395
    %3487 = vmatprep.subr.bf16.mxu0 %v3392
    %3488 = vmatpush2.bf16.msra.mxu0 %v3391
    %3489 = vmatprep.subr.bf16.mxu0 %v3388
    %3490 = vmatpush2.bf16.msra.mxu0 %v3387
    %3491 = vmatprep.subr.bf16.mxu0 %v3384
    %3492 = vmatpush2.bf16.msra.mxu0 %v3383
    %3493 = vmatprep.subr.bf16.mxu0 %v3380
    %3494 = vmatpush2.bf16.msra.mxu0 %v3379
    %3495 = vmatprep.subr.bf16.mxu0 %v3376
    %3496 = vmatpush2.bf16.msra.mxu0 %v3375
    %3497 = vmatprep.subr.bf16.mxu0 %v3372
    %3498 = vmatpush2.bf16.msra.mxu0 %v3371
    %3499 = vmatprep.mubr.bf16.mxu0 %v3144
    %3500 = vmatmul.mubr.bf16.gmra.mxu0 %v3136
    %v3501 = vpop.f32.mrf.mxu0
    %v3502 = vadd.f32 %v3112, %v3501
    %v3503 = vpop.f32.mrf.mxu0
    %v3504 = vadd.f32 %v3116, %v3503
    %v3505 = vpop.f32.mrf.mxu0
    %v3506 = vpop.f32.mrf.mxu0
    %3507 = vdwg.mxu0
    %3508 = vmatprep.subr.bf16.mxu0 %v3370
    %3509 = vmatpush1.bf16.msra.mxu0 %v3369
    %3510 = vmatprep.subr.bf16.mxu0 %v3366
    %3511 = vmatpush1.bf16.msra.mxu0 %v3365
    %3512 = vmatprep.subr.bf16.mxu0 %v3362
    %3513 = vmatpush1.bf16.msra.mxu0 %v3361
    %3514 = vmatprep.subr.bf16.mxu0 %v3358
    %3515 = vmatpush1.bf16.msra.mxu0 %v3357
    %3516 = vmatprep.subr.bf16.mxu0 %v3354
    %3517 = vmatpush1.bf16.msra.mxu0 %v3353
    %3518 = vmatprep.subr.bf16.mxu0 %v3350
    %3519 = vmatpush1.bf16.msra.mxu0 %v3349
    %3520 = vmatprep.subr.bf16.mxu0 %v3346
    %3521 = vmatpush1.bf16.msra.mxu0 %v3345
    %3522 = vmatprep.subr.bf16.mxu0 %v3342
    %3523 = vmatpush1.bf16.msra.mxu0 %v3341
    %3524 = vmatprep.subr.bf16.mxu0 %v3402
    %3525 = vmatpush2.bf16.msra.mxu0 %v3401
    %3526 = vmatprep.subr.bf16.mxu0 %v3398
    %3527 = vmatpush2.bf16.msra.mxu0 %v3397
    %3528 = vmatprep.subr.bf16.mxu0 %v3394
    %3529 = vmatpush2.bf16.msra.mxu0 %v3393
    %3530 = vmatprep.subr.bf16.mxu0 %v3390
    %3531 = vmatpush2.bf16.msra.mxu0 %v3389
    %3532 = vmatprep.subr.bf16.mxu0 %v3386
    %3533 = vmatpush2.bf16.msra.mxu0 %v3385
    %3534 = vmatprep.subr.bf16.mxu0 %v3382
    %3535 = vmatpush2.bf16.msra.mxu0 %v3381
    %3536 = vmatprep.subr.bf16.mxu0 %v3378
    %3537 = vmatpush2.bf16.msra.mxu0 %v3377
    %3538 = vmatprep.subr.bf16.mxu0 %v3374
    %3539 = vmatpush2.bf16.msra.mxu0 %v3373
    %3540 = vmatprep.mubr.bf16.mxu0 %v3144
    %3541 = vmatmul.mubr.bf16.gmra.mxu0 %v3136
    %v3542 = vpop.f32.mrf.mxu0
    %v3543 = vadd.f32 %v3120, %v3542
    %v3544 = vpop.f32.mrf.mxu0
    %v3545 = vadd.f32 %v3124, %v3544
    %v3546 = vpop.f32.mrf.mxu0
    %v3547 = vpop.f32.mrf.mxu0
    %3548 = vdwg.mxu0
    %v3549 = vxor.u32 %v3502, 2147483648
    %v3550 = vxor.u32 %v3504, 2147483648
    %v3551 = vxor.u32 %v3543, 2147483648
    %v3552 = vmul.f32 %v3549, 1.442695
    %v3553 = vpow.pop %v3552
    %v3554 = vmul.f32 %v3550, 1.442695
    %v3555 = vpow.pop %v3554
    %v3556 = vmul.f32 %v3551, 1.442695
    %v3557 = vpow.pop %v3556
    %v3558 = vadd.f32 %v3553, 1.0
    %v3559 = vadd.f32 %v3555, 1.0
    %v3560 = vadd.f32 %v3557, 1.0
    %v3561 = vrcp.pop %v3558
    %v3562 = vmul.f32 1.0, %v3561
    %v3563 = vrcp.pop %v3559
    %v3564 = vmul.f32 1.0, %v3563
    %v3565 = vrcp.pop %v3560
    %v3566 = vmul.f32 1.0, %v3565
    %v3567 = vtanh.pop %v3545
    %v3568 = vmul.f32 %v3564, %v2671
    %v3569 = vmul.f32 %v3562, %v3567
    %v3570 = vadd.f32 %v3568, %v3569
    %v3571 = vtanh.pop %v3570
    %v3572 = vmul.f32 %v3566, %v3571
    %v3573 = vpack.c.bf16 %v3572, %v3572
    %s3574 = scalar_lea.vmem [#allocation10], 24
    %3575 = vst [vmem:[%s3574] sm:$0xff] %v3572
    %v3576 = vld [vmem:[#allocation2] sm:$0xf0]
    %v3577 = vld [vmem:[#allocation2 + $0x8] sm:$0xf0]
    %v3578 = vld [vmem:[#allocation2 + $0x10] sm:$0xf0]
    %v3579 = vld [vmem:[#allocation2 + $0x18] sm:$0xf0]
    %v3580 = vld [vmem:[#allocation2 + $0x20] sm:$0xf]
    %v3581 = vld [vmem:[#allocation2 + $0x28] sm:$0xf]
    %v3582 = vld [vmem:[#allocation2 + $0x30] sm:$0xf]
    %v3583 = vld [vmem:[#allocation2 + $0x38] sm:$0xf]
    %v3584 = vld [vmem:[#allocation5] sm:$0xff]
    %v3585 = vld [vmem:[#allocation5 + $0x8] sm:$0xff]
    %v3586 = vld [vmem:[#allocation5 + $0x10] sm:$0xff]
    %v3587 = vld [vmem:[#allocation5 + $0x18] sm:$0xff]
    %v3588 = vld [vmem:[#allocation5 + $0x20] sm:$0xff]
    %v3589 = vld [vmem:[#allocation5 + $0x28] sm:$0xff]
    %v3590 = vld [vmem:[#allocation5 + $0x30] sm:$0xff]
    %v3591 = vld [vmem:[#allocation5 + $0x38] sm:$0xff]
    %v3592 = vld [vmem:[#allocation5 + $0x40] sm:$0xff]
    %v3593 = vld [vmem:[#allocation5 + $0x48] sm:$0xff]
    %v3594 = vld [vmem:[#allocation5 + $0x50] sm:$0xff]
    %v3595 = vld [vmem:[#allocation5 + $0x58] sm:$0xff]
    %v3596 = vld [vmem:[#allocation5 + $0x60] sm:$0xff]
    %v3597 = vld [vmem:[#allocation5 + $0x68] sm:$0xff]
    %v3598 = vld [vmem:[#allocation5 + $0x70] sm:$0xff]
    %v3599 = vld [vmem:[#allocation5 + $0x78] sm:$0xff]
    %v3600 = vld [vmem:[#allocation5 + $0x80] sm:$0xff]
    %v3601 = vld [vmem:[#allocation5 + $0x88] sm:$0xff]
    %v3602 = vld [vmem:[#allocation5 + $0x90] sm:$0xff]
    %v3603 = vld [vmem:[#allocation5 + $0x98] sm:$0xff]
    %v3604 = vld [vmem:[#allocation5 + $0xa0] sm:$0xff]
    %v3605 = vld [vmem:[#allocation5 + $0xa8] sm:$0xff]
    %v3606 = vld [vmem:[#allocation5 + $0xb0] sm:$0xff]
    %v3607 = vld [vmem:[#allocation5 + $0xb8] sm:$0xff]
    %v3608 = vld [vmem:[#allocation5 + $0xc0] sm:$0xff]
    %v3609 = vld [vmem:[#allocation5 + $0xc8] sm:$0xff]
    %v3610 = vld [vmem:[#allocation5 + $0xd0] sm:$0xff]
    %v3611 = vld [vmem:[#allocation5 + $0xd8] sm:$0xff]
    %v3612 = vld [vmem:[#allocation5 + $0xe0] sm:$0xff]
    %v3613 = vld [vmem:[#allocation5 + $0xe8] sm:$0xff]
    %v3614 = vld [vmem:[#allocation5 + $0xf0] sm:$0xff]
    %v3615 = vld [vmem:[#allocation5 + $0xf8] sm:$0xff]
    %v3648 = vunpack.c.l.b16 %v3584
    %v3649 = vunpack.c.h.b16 %v3584
    %v3650 = vunpack.c.l.b16 %v3585
    %v3651 = vunpack.c.h.b16 %v3585
    %v3652 = vunpack.c.l.b16 %v3586
    %v3653 = vunpack.c.h.b16 %v3586
    %v3654 = vunpack.c.l.b16 %v3587
    %v3655 = vunpack.c.h.b16 %v3587
    %v3656 = vunpack.c.l.b16 %v3588
    %v3657 = vunpack.c.h.b16 %v3588
    %v3658 = vunpack.c.l.b16 %v3589
    %v3659 = vunpack.c.h.b16 %v3589
    %v3660 = vunpack.c.l.b16 %v3590
    %v3661 = vunpack.c.h.b16 %v3590
    %v3662 = vunpack.c.l.b16 %v3591
    %v3663 = vunpack.c.h.b16 %v3591
    %v3664 = vunpack.c.l.b16 %v3592
    %v3665 = vunpack.c.h.b16 %v3592
    %v3666 = vunpack.c.l.b16 %v3593
    %v3667 = vunpack.c.h.b16 %v3593
    %v3668 = vunpack.c.l.b16 %v3594
    %v3669 = vunpack.c.h.b16 %v3594
    %v3670 = vunpack.c.l.b16 %v3595
    %v3671 = vunpack.c.h.b16 %v3595
    %v3672 = vunpack.c.l.b16 %v3596
    %v3673 = vunpack.c.h.b16 %v3596
    %v3674 = vunpack.c.l.b16 %v3597
    %v3675 = vunpack.c.h.b16 %v3597
    %v3676 = vunpack.c.l.b16 %v3598
    %v3677 = vunpack.c.h.b16 %v3598
    %v3678 = vunpack.c.l.b16 %v3599
    %v3679 = vunpack.c.h.b16 %v3599
    %v3680 = vunpack.c.l.b16 %v3600
    %v3681 = vunpack.c.h.b16 %v3600
    %v3682 = vunpack.c.l.b16 %v3601
    %v3683 = vunpack.c.h.b16 %v3601
    %v3684 = vunpack.c.l.b16 %v3602
    %v3685 = vunpack.c.h.b16 %v3602
    %v3686 = vunpack.c.l.b16 %v3603
    %v3687 = vunpack.c.h.b16 %v3603
    %v3688 = vunpack.c.l.b16 %v3604
    %v3689 = vunpack.c.h.b16 %v3604
    %v3690 = vunpack.c.l.b16 %v3605
    %v3691 = vunpack.c.h.b16 %v3605
    %v3692 = vunpack.c.l.b16 %v3606
    %v3693 = vunpack.c.h.b16 %v3606
    %v3694 = vunpack.c.l.b16 %v3607
    %v3695 = vunpack.c.h.b16 %v3607
    %v3696 = vunpack.c.l.b16 %v3608
    %v3697 = vunpack.c.h.b16 %v3608
    %v3698 = vunpack.c.l.b16 %v3609
    %v3699 = vunpack.c.h.b16 %v3609
    %v3700 = vunpack.c.l.b16 %v3610
    %v3701 = vunpack.c.h.b16 %v3610
    %v3702 = vunpack.c.l.b16 %v3611
    %v3703 = vunpack.c.h.b16 %v3611
    %v3704 = vunpack.c.l.b16 %v3612
    %v3705 = vunpack.c.h.b16 %v3612
    %v3706 = vunpack.c.l.b16 %v3613
    %v3707 = vunpack.c.h.b16 %v3613
    %v3708 = vunpack.c.l.b16 %v3614
    %v3709 = vunpack.c.h.b16 %v3614
    %v3710 = vunpack.c.l.b16 %v3615
    %v3711 = vunpack.c.h.b16 %v3615
    %v3712 = vpack.c.b16 %v3652, %v3648
    %v3713 = vpack.c.b16 %v3653, %v3649
    %v3714 = vpack.c.b16 %v3654, %v3650
    %v3715 = vpack.c.b16 %v3655, %v3651
    %v3716 = vpack.c.b16 %v3660, %v3656
    %v3717 = vpack.c.b16 %v3661, %v3657
    %v3718 = vpack.c.b16 %v3662, %v3658
    %v3719 = vpack.c.b16 %v3663, %v3659
    %v3720 = vpack.c.b16 %v3668, %v3664
    %v3721 = vpack.c.b16 %v3669, %v3665
    %v3722 = vpack.c.b16 %v3670, %v3666
    %v3723 = vpack.c.b16 %v3671, %v3667
    %v3724 = vpack.c.b16 %v3676, %v3672
    %v3725 = vpack.c.b16 %v3677, %v3673
    %v3726 = vpack.c.b16 %v3678, %v3674
    %v3727 = vpack.c.b16 %v3679, %v3675
    %v3728 = vpack.c.b16 %v3684, %v3680
    %v3729 = vpack.c.b16 %v3685, %v3681
    %v3730 = vpack.c.b16 %v3686, %v3682
    %v3731 = vpack.c.b16 %v3687, %v3683
    %v3732 = vpack.c.b16 %v3692, %v3688
    %v3733 = vpack.c.b16 %v3693, %v3689
    %v3734 = vpack.c.b16 %v3694, %v3690
    %v3735 = vpack.c.b16 %v3695, %v3691
    %v3736 = vpack.c.b16 %v3700, %v3696
    %v3737 = vpack.c.b16 %v3701, %v3697
    %v3738 = vpack.c.b16 %v3702, %v3698
    %v3739 = vpack.c.b16 %v3703, %v3699
    %v3740 = vpack.c.b16 %v3708, %v3704
    %v3741 = vpack.c.b16 %v3709, %v3705
    %v3742 = vpack.c.b16 %v3710, %v3706
    %v3743 = vpack.c.b16 %v3711, %v3707
    %3776 = vmatprep.subr.bf16.mxu0 %v3741
    %3777 = vmatpush1.bf16.msra.mxu0 %v3740
    %3778 = vmatprep.subr.bf16.mxu0 %v3737
    %3779 = vmatpush1.bf16.msra.mxu0 %v3736
    %3780 = vmatprep.subr.bf16.mxu0 %v3733
    %3781 = vmatpush1.bf16.msra.mxu0 %v3732
    %3782 = vmatprep.subr.bf16.mxu0 %v3729
    %3783 = vmatpush1.bf16.msra.mxu0 %v3728
    %3784 = vmatprep.subr.bf16.mxu0 %v3725
    %3785 = vmatpush1.bf16.msra.mxu0 %v3724
    %3786 = vmatprep.subr.bf16.mxu0 %v3721
    %3787 = vmatpush1.bf16.msra.mxu0 %v3720
    %3788 = vmatprep.subr.bf16.mxu0 %v3717
    %3789 = vmatpush1.bf16.msra.mxu0 %v3716
    %3790 = vmatprep.subr.bf16.mxu0 %v3713
    %3791 = vmatpush1.bf16.msra.mxu0 %v3712
    %3792 = vmatprep.subr.bf16.mxu0 0
    %3793 = vmatpush2.bf16.msra.mxu0 0
    %3794 = vmatprep.subr.bf16.mxu0 0
    %3795 = vmatpush2.bf16.msra.mxu0 0
    %3796 = vmatprep.subr.bf16.mxu0 0
    %3797 = vmatpush2.bf16.msra.mxu0 0
    %3798 = vmatprep.subr.bf16.mxu0 0
    %3799 = vmatpush2.bf16.msra.mxu0 0
    %3800 = vmatprep.subr.bf16.mxu0 0
    %3801 = vmatpush2.bf16.msra.mxu0 0
    %3802 = vmatprep.subr.bf16.mxu0 0
    %3803 = vmatpush2.bf16.msra.mxu0 0
    %3804 = vmatprep.subr.bf16.mxu0 0
    %3805 = vmatpush2.bf16.msra.mxu0 0
    %3806 = vmatprep.subr.bf16.mxu0 0
    %3807 = vmatpush2.bf16.msra.mxu0 0
    %3808 = vmatprep.mubr.bf16.mxu0 0
    %3809 = vmatmul.mubr.bf16.gmra.mxu0 %v3136
    %v3810 = vpop.f32.mrf.mxu0
    %v3811 = vadd.f32 0.0, %v3810
    %v3812 = vpop.f32.mrf.mxu0
    %v3813 = vadd.f32 0.0, %v3812
    %v3814 = vpop.f32.mrf.mxu0
    %v3815 = vpop.f32.mrf.mxu0
    %3816 = vdwg.mxu0
    %3817 = vmatprep.subr.bf16.mxu0 %v3743
    %3818 = vmatpush1.bf16.msra.mxu0 %v3742
    %3819 = vmatprep.subr.bf16.mxu0 %v3739
    %3820 = vmatpush1.bf16.msra.mxu0 %v3738
    %3821 = vmatprep.subr.bf16.mxu0 %v3735
    %3822 = vmatpush1.bf16.msra.mxu0 %v3734
    %3823 = vmatprep.subr.bf16.mxu0 %v3731
    %3824 = vmatpush1.bf16.msra.mxu0 %v3730
    %3825 = vmatprep.subr.bf16.mxu0 %v3727
    %3826 = vmatpush1.bf16.msra.mxu0 %v3726
    %3827 = vmatprep.subr.bf16.mxu0 %v3723
    %3828 = vmatpush1.bf16.msra.mxu0 %v3722
    %3829 = vmatprep.subr.bf16.mxu0 %v3719
    %3830 = vmatpush1.bf16.msra.mxu0 %v3718
    %3831 = vmatprep.subr.bf16.mxu0 %v3715
    %3832 = vmatpush1.bf16.msra.mxu0 %v3714
    %3833 = vmatprep.subr.bf16.mxu0 0
    %3834 = vmatpush2.bf16.msra.mxu0 0
    %3835 = vmatprep.subr.bf16.mxu0 0
    %3836 = vmatpush2.bf16.msra.mxu0 0
    %3837 = vmatprep.subr.bf16.mxu0 0
    %3838 = vmatpush2.bf16.msra.mxu0 0
    %3839 = vmatprep.subr.bf16.mxu0 0
    %3840 = vmatpush2.bf16.msra.mxu0 0
    %3841 = vmatprep.subr.bf16.mxu0 0
    %3842 = vmatpush2.bf16.msra.mxu0 0
    %3843 = vmatprep.subr.bf16.mxu0 0
    %3844 = vmatpush2.bf16.msra.mxu0 0
    %3845 = vmatprep.subr.bf16.mxu0 0
    %3846 = vmatpush2.bf16.msra.mxu0 0
    %3847 = vmatprep.subr.bf16.mxu0 0
    %3848 = vmatpush2.bf16.msra.mxu0 0
    %3849 = vmatprep.mubr.bf16.mxu0 0
    %3850 = vmatmul.mubr.bf16.gmra.mxu0 %v3136
    %v3851 = vpop.f32.mrf.mxu0
    %v3852 = vadd.f32 0.0, %v3851
    %v3853 = vpop.f32.mrf.mxu0
    %v3854 = vadd.f32 0.0, %v3853
    %v3855 = vpop.f32.mrf.mxu0
    %v3856 = vpop.f32.mrf.mxu0
    %3857 = vdwg.mxu0
    %v3862 = vrot.slane %v3811, 4
    %v3863 = vrot.slane %v3813, 4
    %v3864 = vrot.slane %v3852, 4
    %v3865 = vrot.slane %v3854, 4
    %v3870 = vadd.f32 %v3576, %v3862
    %v3871 = vadd.f32 %v3577, %v3863
    %v3872 = vadd.f32 %v3578, %v3864
    %v3873 = vadd.f32 %v3579, %v3865
    %v3874 = vadd.f32 %v3580, %v3862
    %v3875 = vadd.f32 %v3581, %v3863
    %v3876 = vadd.f32 %v3582, %v3864
    %v3877 = vadd.f32 %v3583, %v3865
    %v3878 = vxor.u32 %v3870, 2147483648
    %v3879 = vxor.u32 %v3871, 2147483648
    %v3880 = vxor.u32 %v3872, 2147483648
    %v3881 = vxor.u32 %v3874, 2147483648
    %v3882 = vxor.u32 %v3875, 2147483648
    %v3883 = vxor.u32 %v3876, 2147483648
    %v3884 = vmul.f32 %v3878, 1.442695
    %v3885 = vpow.pop %v3884
    %v3886 = vmul.f32 %v3879, 1.442695
    %v3887 = vpow.pop %v3886
    %v3888 = vmul.f32 %v3880, 1.442695
    %v3889 = vpow.pop %v3888
    %v3890 = vmul.f32 %v3881, 1.442695
    %v3891 = vpow.pop %v3890
    %v3892 = vmul.f32 %v3882, 1.442695
    %v3893 = vpow.pop %v3892
    %v3894 = vmul.f32 %v3883, 1.442695
    %v3895 = vpow.pop %v3894
    %v3896 = vadd.f32 %v3885, 1.0
    %v3897 = vadd.f32 %v3887, 1.0
    %v3898 = vadd.f32 %v3889, 1.0
    %v3899 = vadd.f32 %v3891, 1.0
    %v3900 = vadd.f32 %v3893, 1.0
    %v3901 = vadd.f32 %v3895, 1.0
    %v3902 = vrcp.pop %v3896
    %v3903 = vmul.f32 1.0, %v3902
    %v3904 = vrcp.pop %v3897
    %v3905 = vmul.f32 1.0, %v3904
    %v3906 = vrcp.pop %v3898
    %v3907 = vmul.f32 1.0, %v3906
    %v3908 = vrcp.pop %v3899
    %v3909 = vmul.f32 1.0, %v3908
    %v3910 = vrcp.pop %v3900
    %v3911 = vmul.f32 1.0, %v3910
    %v3912 = vrcp.pop %v3901
    %v3913 = vmul.f32 1.0, %v3912
    %v3914 = vtanh.pop %v3873
    %v3915 = vtanh.pop %v3877
    %v3918 = vrot.slane %v3028, 7
    %v3919 = vrot.slane %v3029, 7
    %v3920 = vsel %vm2138, %v3918, %v3919
    %v3923 = vmul.f32 %v3905, %v3918
    %v3924 = vmul.f32 %v3911, %v3920
    %v3925 = vmul.f32 %v3903, %v3914
    %v3926 = vmul.f32 %v3909, %v3915
    %v3927 = vadd.f32 %v3923, %v3925
    %v3928 = vadd.f32 %v3924, %v3926
    %v3929 = vtanh.pop %v3927
    %v3930 = vtanh.pop %v3928
    %v3931 = vmul.f32 %v3907, %v3929
    %v3932 = vmul.f32 %v3913, %v3930
    %v3933 = vpack.c.bf16 %v3932, %v3931
    %v3935 = vrot.slane %v3573, 6
    %v3936 = vld [vmem:[#allocation7] sm:$0xff]
    %v3937 = vld [vmem:[#allocation7 + $0x8] sm:$0xff]
    %v3938 = vld [vmem:[#allocation7 + $0x10] sm:$0xff]
    %v3939 = vld [vmem:[#allocation7 + $0x18] sm:$0xff]
    %v3940 = vld [vmem:[#allocation7 + $0x20] sm:$0xff]
    %v3941 = vld [vmem:[#allocation7 + $0x28] sm:$0xff]
    %v3942 = vld [vmem:[#allocation7 + $0x30] sm:$0xff]
    %v3943 = vld [vmem:[#allocation7 + $0x38] sm:$0xff]
    %v3944 = vld [vmem:[#allocation7 + $0x40] sm:$0xff]
    %v3945 = vld [vmem:[#allocation7 + $0x48] sm:$0xff]
    %v3946 = vld [vmem:[#allocation7 + $0x50] sm:$0xff]
    %v3947 = vld [vmem:[#allocation7 + $0x58] sm:$0xff]
    %v3948 = vld [vmem:[#allocation7 + $0x60] sm:$0xff]
    %v3949 = vld [vmem:[#allocation7 + $0x68] sm:$0xff]
    %v3950 = vld [vmem:[#allocation7 + $0x70] sm:$0xff]
    %v3951 = vld [vmem:[#allocation7 + $0x78] sm:$0xff]
    %v3952 = vld [vmem:[#allocation7 + $0x80] sm:$0xff]
    %v3953 = vld [vmem:[#allocation7 + $0x88] sm:$0xff]
    %v3954 = vld [vmem:[#allocation7 + $0x90] sm:$0xff]
    %v3955 = vld [vmem:[#allocation7 + $0x98] sm:$0xff]
    %v3956 = vld [vmem:[#allocation7 + $0xa0] sm:$0xff]
    %v3957 = vld [vmem:[#allocation7 + $0xa8] sm:$0xff]
    %v3958 = vld [vmem:[#allocation7 + $0xb0] sm:$0xff]
    %v3959 = vld [vmem:[#allocation7 + $0xb8] sm:$0xff]
    %v3960 = vld [vmem:[#allocation7 + $0xc0] sm:$0xff]
    %v3961 = vld [vmem:[#allocation7 + $0xc8] sm:$0xff]
    %v3962 = vld [vmem:[#allocation7 + $0xd0] sm:$0xff]
    %v3963 = vld [vmem:[#allocation7 + $0xd8] sm:$0xff]
    %v3964 = vld [vmem:[#allocation7 + $0xe0] sm:$0xff]
    %v3965 = vld [vmem:[#allocation7 + $0xe8] sm:$0xff]
    %v3966 = vld [vmem:[#allocation7 + $0xf0] sm:$0xff]
    %v3967 = vld [vmem:[#allocation7 + $0xf8] sm:$0xff]
    %v3968 = vld [vmem:[#allocation7 + $0x100] sm:$0xff]
    %v3969 = vld [vmem:[#allocation7 + $0x108] sm:$0xff]
    %v3970 = vld [vmem:[#allocation7 + $0x110] sm:$0xff]
    %v3971 = vld [vmem:[#allocation7 + $0x118] sm:$0xff]
    %v3972 = vld [vmem:[#allocation7 + $0x120] sm:$0xff]
    %v3973 = vld [vmem:[#allocation7 + $0x128] sm:$0xff]
    %v3974 = vld [vmem:[#allocation7 + $0x130] sm:$0xff]
    %v3975 = vld [vmem:[#allocation7 + $0x138] sm:$0xff]
    %v3976 = vld [vmem:[#allocation7 + $0x140] sm:$0xff]
    %v3977 = vld [vmem:[#allocation7 + $0x148] sm:$0xff]
    %v3978 = vld [vmem:[#allocation7 + $0x150] sm:$0xff]
    %v3979 = vld [vmem:[#allocation7 + $0x158] sm:$0xff]
    %v3980 = vld [vmem:[#allocation7 + $0x160] sm:$0xff]
    %v3981 = vld [vmem:[#allocation7 + $0x168] sm:$0xff]
    %v3982 = vld [vmem:[#allocation7 + $0x170] sm:$0xff]
    %v3983 = vld [vmem:[#allocation7 + $0x178] sm:$0xff]
    %v3984 = vld [vmem:[#allocation7 + $0x180] sm:$0xff]
    %v3985 = vld [vmem:[#allocation7 + $0x188] sm:$0xff]
    %v3986 = vld [vmem:[#allocation7 + $0x190] sm:$0xff]
    %v3987 = vld [vmem:[#allocation7 + $0x198] sm:$0xff]
    %v3988 = vld [vmem:[#allocation7 + $0x1a0] sm:$0xff]
    %v3989 = vld [vmem:[#allocation7 + $0x1a8] sm:$0xff]
    %v3990 = vld [vmem:[#allocation7 + $0x1b0] sm:$0xff]
    %v3991 = vld [vmem:[#allocation7 + $0x1b8] sm:$0xff]
    %v3992 = vld [vmem:[#allocation7 + $0x1c0] sm:$0xff]
    %v3993 = vld [vmem:[#allocation7 + $0x1c8] sm:$0xff]
    %v3994 = vld [vmem:[#allocation7 + $0x1d0] sm:$0xff]
    %v3995 = vld [vmem:[#allocation7 + $0x1d8] sm:$0xff]
    %v3996 = vld [vmem:[#allocation7 + $0x1e0] sm:$0xff]
    %v3997 = vld [vmem:[#allocation7 + $0x1e8] sm:$0xff]
    %v3998 = vld [vmem:[#allocation7 + $0x1f0] sm:$0xff]
    %v3999 = vld [vmem:[#allocation7 + $0x1f8] sm:$0xff]
    %v4000 = vld [vmem:[%s3] sm:$0xf]
    %v4002 = vlaneseq
    %v4003 = vshrl.u32 %v4002, 7
    %v4004 = vsub.s32 0, %v4003
    %v4005 = vrot.slane %v4000, %v4004
    %v4006 = vlaneseq
    %v4007 = vshrl.u32 %v4006, 7
    %v4008 = vsub.s32 1, %v4007
    %v4009 = vrot.slane %v4000, %v4008
    %v4010 = vlaneseq
    %v4011 = vshrl.u32 %v4010, 7
    %v4012 = vsub.s32 2, %v4011
    %v4013 = vrot.slane %v4000, %v4012
    %v4014 = vlaneseq
    %v4015 = vshrl.u32 %v4014, 7
    %v4016 = vsub.s32 3, %v4015
    %v4017 = vrot.slane %v4000, %v4016
    %v4023 = vrot.slane %v3933, 2
    %v4024 = vrot.slane %v3935, 2
    %v4091 = vunpack.c.l.b16 %v3936
    %v4092 = vunpack.c.h.b16 %v3936
    %v4093 = vunpack.c.l.b16 %v3937
    %v4094 = vunpack.c.h.b16 %v3937
    %v4095 = vunpack.c.l.b16 %v3938
    %v4096 = vunpack.c.h.b16 %v3938
    %v4097 = vunpack.c.l.b16 %v3939
    %v4098 = vunpack.c.h.b16 %v3939
    %v4099 = vunpack.c.l.b16 %v3940
    %v4100 = vunpack.c.h.b16 %v3940
    %v4101 = vunpack.c.l.b16 %v3941
    %v4102 = vunpack.c.h.b16 %v3941
    %v4103 = vunpack.c.l.b16 %v3942
    %v4104 = vunpack.c.h.b16 %v3942
    %v4105 = vunpack.c.l.b16 %v3943
    %v4106 = vunpack.c.h.b16 %v3943
    %v4107 = vunpack.c.l.b16 %v3944
    %v4108 = vunpack.c.h.b16 %v3944
    %v4109 = vunpack.c.l.b16 %v3945
    %v4110 = vunpack.c.h.b16 %v3945
    %v4111 = vunpack.c.l.b16 %v3946
    %v4112 = vunpack.c.h.b16 %v3946
    %v4113 = vunpack.c.l.b16 %v3947
    %v4114 = vunpack.c.h.b16 %v3947
    %v4115 = vunpack.c.l.b16 %v3948
    %v4116 = vunpack.c.h.b16 %v3948
    %v4117 = vunpack.c.l.b16 %v3949
    %v4118 = vunpack.c.h.b16 %v3949
    %v4119 = vunpack.c.l.b16 %v3950
    %v4120 = vunpack.c.h.b16 %v3950
    %v4121 = vunpack.c.l.b16 %v3951
    %v4122 = vunpack.c.h.b16 %v3951
    %v4123 = vunpack.c.l.b16 %v3952
    %v4124 = vunpack.c.h.b16 %v3952
    %v4125 = vunpack.c.l.b16 %v3953
    %v4126 = vunpack.c.h.b16 %v3953
    %v4127 = vunpack.c.l.b16 %v3954
    %v4128 = vunpack.c.h.b16 %v3954
    %v4129 = vunpack.c.l.b16 %v3955
    %v4130 = vunpack.c.h.b16 %v3955
    %v4131 = vunpack.c.l.b16 %v3956
    %v4132 = vunpack.c.h.b16 %v3956
    %v4133 = vunpack.c.l.b16 %v3957
    %v4134 = vunpack.c.h.b16 %v3957
    %v4135 = vunpack.c.l.b16 %v3958
    %v4136 = vunpack.c.h.b16 %v3958
    %v4137 = vunpack.c.l.b16 %v3959
    %v4138 = vunpack.c.h.b16 %v3959
    %v4139 = vunpack.c.l.b16 %v3960
    %v4140 = vunpack.c.h.b16 %v3960
    %v4141 = vunpack.c.l.b16 %v3961
    %v4142 = vunpack.c.h.b16 %v3961
    %v4143 = vunpack.c.l.b16 %v3962
    %v4144 = vunpack.c.h.b16 %v3962
    %v4145 = vunpack.c.l.b16 %v3963
    %v4146 = vunpack.c.h.b16 %v3963
    %v4147 = vunpack.c.l.b16 %v3964
    %v4148 = vunpack.c.h.b16 %v3964
    %v4149 = vunpack.c.l.b16 %v3965
    %v4150 = vunpack.c.h.b16 %v3965
    %v4151 = vunpack.c.l.b16 %v3966
    %v4152 = vunpack.c.h.b16 %v3966
    %v4153 = vunpack.c.l.b16 %v3967
    %v4154 = vunpack.c.h.b16 %v3967
    %v4155 = vunpack.c.l.b16 %v3968
    %v4156 = vunpack.c.h.b16 %v3968
    %v4157 = vunpack.c.l.b16 %v3969
    %v4158 = vunpack.c.h.b16 %v3969
    %v4159 = vunpack.c.l.b16 %v3970
    %v4160 = vunpack.c.h.b16 %v3970
    %v4161 = vunpack.c.l.b16 %v3971
    %v4162 = vunpack.c.h.b16 %v3971
    %v4163 = vunpack.c.l.b16 %v3972
    %v4164 = vunpack.c.h.b16 %v3972
    %v4165 = vunpack.c.l.b16 %v3973
    %v4166 = vunpack.c.h.b16 %v3973
    %v4167 = vunpack.c.l.b16 %v3974
    %v4168 = vunpack.c.h.b16 %v3974
    %v4169 = vunpack.c.l.b16 %v3975
    %v4170 = vunpack.c.h.b16 %v3975
    %v4171 = vunpack.c.l.b16 %v3976
    %v4172 = vunpack.c.h.b16 %v3976
    %v4173 = vunpack.c.l.b16 %v3977
    %v4174 = vunpack.c.h.b16 %v3977
    %v4175 = vunpack.c.l.b16 %v3978
    %v4176 = vunpack.c.h.b16 %v3978
    %v4177 = vunpack.c.l.b16 %v3979
    %v4178 = vunpack.c.h.b16 %v3979
    %v4179 = vunpack.c.l.b16 %v3980
    %v4180 = vunpack.c.h.b16 %v3980
    %v4181 = vunpack.c.l.b16 %v3981
    %v4182 = vunpack.c.h.b16 %v3981
    %v4183 = vunpack.c.l.b16 %v3982
    %v4184 = vunpack.c.h.b16 %v3982
    %v4185 = vunpack.c.l.b16 %v3983
    %v4186 = vunpack.c.h.b16 %v3983
    %v4187 = vunpack.c.l.b16 %v3984
    %v4188 = vunpack.c.h.b16 %v3984
    %v4189 = vunpack.c.l.b16 %v3985
    %v4190 = vunpack.c.h.b16 %v3985
    %v4191 = vunpack.c.l.b16 %v3986
    %v4192 = vunpack.c.h.b16 %v3986
    %v4193 = vunpack.c.l.b16 %v3987
    %v4194 = vunpack.c.h.b16 %v3987
    %v4195 = vunpack.c.l.b16 %v3988
    %v4196 = vunpack.c.h.b16 %v3988
    %v4197 = vunpack.c.l.b16 %v3989
    %v4198 = vunpack.c.h.b16 %v3989
    %v4199 = vunpack.c.l.b16 %v3990
    %v4200 = vunpack.c.h.b16 %v3990
    %v4201 = vunpack.c.l.b16 %v3991
    %v4202 = vunpack.c.h.b16 %v3991
    %v4203 = vunpack.c.l.b16 %v3992
    %v4204 = vunpack.c.h.b16 %v3992
    %v4205 = vunpack.c.l.b16 %v3993
    %v4206 = vunpack.c.h.b16 %v3993
    %v4207 = vunpack.c.l.b16 %v3994
    %v4208 = vunpack.c.h.b16 %v3994
    %v4209 = vunpack.c.l.b16 %v3995
    %v4210 = vunpack.c.h.b16 %v3995
    %v4211 = vunpack.c.l.b16 %v3996
    %v4212 = vunpack.c.h.b16 %v3996
    %v4213 = vunpack.c.l.b16 %v3997
    %v4214 = vunpack.c.h.b16 %v3997
    %v4215 = vunpack.c.l.b16 %v3998
    %v4216 = vunpack.c.h.b16 %v3998
    %v4217 = vunpack.c.l.b16 %v3999
    %v4218 = vunpack.c.h.b16 %v3999
    %v4219 = vpack.c.b16 %v4095, %v4091
    %v4220 = vpack.c.b16 %v4096, %v4092
    %v4221 = vpack.c.b16 %v4097, %v4093
    %v4222 = vpack.c.b16 %v4098, %v4094
    %v4223 = vpack.c.b16 %v4103, %v4099
    %v4224 = vpack.c.b16 %v4104, %v4100
    %v4225 = vpack.c.b16 %v4105, %v4101
    %v4226 = vpack.c.b16 %v4106, %v4102
    %v4227 = vpack.c.b16 %v4111, %v4107
    %v4228 = vpack.c.b16 %v4112, %v4108
    %v4229 = vpack.c.b16 %v4113, %v4109
    %v4230 = vpack.c.b16 %v4114, %v4110
    %v4231 = vpack.c.b16 %v4119, %v4115
    %v4232 = vpack.c.b16 %v4120, %v4116
    %v4233 = vpack.c.b16 %v4121, %v4117
    %v4234 = vpack.c.b16 %v4122, %v4118
    %v4235 = vpack.c.b16 %v4127, %v4123
    %v4236 = vpack.c.b16 %v4128, %v4124
    %v4237 = vpack.c.b16 %v4129, %v4125
    %v4238 = vpack.c.b16 %v4130, %v4126
    %v4239 = vpack.c.b16 %v4135, %v4131
    %v4240 = vpack.c.b16 %v4136, %v4132
    %v4241 = vpack.c.b16 %v4137, %v4133
    %v4242 = vpack.c.b16 %v4138, %v4134
    %v4243 = vpack.c.b16 %v4143, %v4139
    %v4244 = vpack.c.b16 %v4144, %v4140
    %v4245 = vpack.c.b16 %v4145, %v4141
    %v4246 = vpack.c.b16 %v4146, %v4142
    %v4247 = vpack.c.b16 %v4151, %v4147
    %v4248 = vpack.c.b16 %v4152, %v4148
    %v4249 = vpack.c.b16 %v4153, %v4149
    %v4250 = vpack.c.b16 %v4154, %v4150
    %v4251 = vpack.c.b16 %v4159, %v4155
    %v4252 = vpack.c.b16 %v4160, %v4156
    %v4253 = vpack.c.b16 %v4161, %v4157
    %v4254 = vpack.c.b16 %v4162, %v4158
    %v4255 = vpack.c.b16 %v4167, %v4163
    %v4256 = vpack.c.b16 %v4168, %v4164
    %v4257 = vpack.c.b16 %v4169, %v4165
    %v4258 = vpack.c.b16 %v4170, %v4166
    %v4259 = vpack.c.b16 %v4175, %v4171
    %v4260 = vpack.c.b16 %v4176, %v4172
    %v4261 = vpack.c.b16 %v4177, %v4173
    %v4262 = vpack.c.b16 %v4178, %v4174
    %v4263 = vpack.c.b16 %v4183, %v4179
    %v4264 = vpack.c.b16 %v4184, %v4180
    %v4265 = vpack.c.b16 %v4185, %v4181
    %v4266 = vpack.c.b16 %v4186, %v4182
    %v4267 = vpack.c.b16 %v4191, %v4187
    %v4268 = vpack.c.b16 %v4192, %v4188
    %v4269 = vpack.c.b16 %v4193, %v4189
    %v4270 = vpack.c.b16 %v4194, %v4190
    %v4271 = vpack.c.b16 %v4199, %v4195
    %v4272 = vpack.c.b16 %v4200, %v4196
    %v4273 = vpack.c.b16 %v4201, %v4197
    %v4274 = vpack.c.b16 %v4202, %v4198
    %v4275 = vpack.c.b16 %v4207, %v4203
    %v4276 = vpack.c.b16 %v4208, %v4204
    %v4277 = vpack.c.b16 %v4209, %v4205
    %v4278 = vpack.c.b16 %v4210, %v4206
    %v4279 = vpack.c.b16 %v4215, %v4211
    %v4280 = vpack.c.b16 %v4216, %v4212
    %v4281 = vpack.c.b16 %v4217, %v4213
    %v4282 = vpack.c.b16 %v4218, %v4214
    %4347 = vmatprep.subr.bf16.mxu0 %v4248
    %4348 = vmatpush1.bf16.msra.mxu0 %v4247
    %4349 = vmatprep.subr.bf16.mxu0 %v4244
    %4350 = vmatpush1.bf16.msra.mxu0 %v4243
    %4351 = vmatprep.subr.bf16.mxu0 %v4240
    %4352 = vmatpush1.bf16.msra.mxu0 %v4239
    %4353 = vmatprep.subr.bf16.mxu0 %v4236
    %4354 = vmatpush1.bf16.msra.mxu0 %v4235
    %4355 = vmatprep.subr.bf16.mxu0 %v4232
    %4356 = vmatpush1.bf16.msra.mxu0 %v4231
    %4357 = vmatprep.subr.bf16.mxu0 %v4228
    %4358 = vmatpush1.bf16.msra.mxu0 %v4227
    %4359 = vmatprep.subr.bf16.mxu0 %v4224
    %4360 = vmatpush1.bf16.msra.mxu0 %v4223
    %4361 = vmatprep.subr.bf16.mxu0 %v4220
    %4362 = vmatpush1.bf16.msra.mxu0 %v4219
    %4363 = vmatprep.subr.bf16.mxu0 %v4280
    %4364 = vmatpush2.bf16.msra.mxu0 %v4279
    %4365 = vmatprep.subr.bf16.mxu0 %v4276
    %4366 = vmatpush2.bf16.msra.mxu0 %v4275
    %4367 = vmatprep.subr.bf16.mxu0 %v4272
    %4368 = vmatpush2.bf16.msra.mxu0 %v4271
    %4369 = vmatprep.subr.bf16.mxu0 %v4268
    %4370 = vmatpush2.bf16.msra.mxu0 %v4267
    %4371 = vmatprep.subr.bf16.mxu0 %v4264
    %4372 = vmatpush2.bf16.msra.mxu0 %v4263
    %4373 = vmatprep.subr.bf16.mxu0 %v4260
    %4374 = vmatpush2.bf16.msra.mxu0 %v4259
    %4375 = vmatprep.subr.bf16.mxu0 %v4256
    %4376 = vmatpush2.bf16.msra.mxu0 %v4255
    %4377 = vmatprep.subr.bf16.mxu0 %v4252
    %4378 = vmatpush2.bf16.msra.mxu0 %v4251
    %4379 = vmatprep.mubr.bf16.mxu0 %v4024
    %4380 = vmatmul.mubr.bf16.gmra.mxu0 %v4023
    %v4381 = vpop.f32.mrf.mxu0
    %v4382 = vadd.f32 %v4005, %v4381
    %v4383 = vpop.f32.mrf.mxu0
    %v4384 = vadd.f32 %v4009, %v4383
    %v4385 = vpop.f32.mrf.mxu0
    %v4386 = vpop.f32.mrf.mxu0
    %4387 = vdwg.mxu0
    %4388 = vmatprep.subr.bf16.mxu0 %v4250
    %4389 = vmatpush1.bf16.msra.mxu0 %v4249
    %4390 = vmatprep.subr.bf16.mxu0 %v4246
    %4391 = vmatpush1.bf16.msra.mxu0 %v4245
    %4392 = vmatprep.subr.bf16.mxu0 %v4242
    %4393 = vmatpush1.bf16.msra.mxu0 %v4241
    %4394 = vmatprep.subr.bf16.mxu0 %v4238
    %4395 = vmatpush1.bf16.msra.mxu0 %v4237
    %4396 = vmatprep.subr.bf16.mxu0 %v4234
    %4397 = vmatpush1.bf16.msra.mxu0 %v4233
    %4398 = vmatprep.subr.bf16.mxu0 %v4230
    %4399 = vmatpush1.bf16.msra.mxu0 %v4229
    %4400 = vmatprep.subr.bf16.mxu0 %v4226
    %4401 = vmatpush1.bf16.msra.mxu0 %v4225
    %4402 = vmatprep.subr.bf16.mxu0 %v4222
    %4403 = vmatpush1.bf16.msra.mxu0 %v4221
    %4404 = vmatprep.subr.bf16.mxu0 %v4282
    %4405 = vmatpush2.bf16.msra.mxu0 %v4281
    %4406 = vmatprep.subr.bf16.mxu0 %v4278
    %4407 = vmatpush2.bf16.msra.mxu0 %v4277
    %4408 = vmatprep.subr.bf16.mxu0 %v4274
    %4409 = vmatpush2.bf16.msra.mxu0 %v4273
    %4410 = vmatprep.subr.bf16.mxu0 %v4270
    %4411 = vmatpush2.bf16.msra.mxu0 %v4269
    %4412 = vmatprep.subr.bf16.mxu0 %v4266
    %4413 = vmatpush2.bf16.msra.mxu0 %v4265
    %4414 = vmatprep.subr.bf16.mxu0 %v4262
    %4415 = vmatpush2.bf16.msra.mxu0 %v4261
    %4416 = vmatprep.subr.bf16.mxu0 %v4258
    %4417 = vmatpush2.bf16.msra.mxu0 %v4257
    %4418 = vmatprep.subr.bf16.mxu0 %v4254
    %4419 = vmatpush2.bf16.msra.mxu0 %v4253
    %4420 = vmatprep.mubr.bf16.mxu0 %v4024
    %4421 = vmatmul.mubr.bf16.gmra.mxu0 %v4023
    %v4422 = vpop.f32.mrf.mxu0
    %v4423 = vadd.f32 %v4013, %v4422
    %v4424 = vpop.f32.mrf.mxu0
    %v4425 = vadd.f32 %v4017, %v4424
    %v4426 = vpop.f32.mrf.mxu0
    %v4427 = vpop.f32.mrf.mxu0
    %4428 = vdwg.mxu0
    %v4429 = vxor.u32 %v4382, 2147483648
    %v4430 = vxor.u32 %v4384, 2147483648
    %v4431 = vxor.u32 %v4423, 2147483648
    %v4432 = vmul.f32 %v4429, 1.442695
    %v4433 = vpow.pop %v4432
    %v4434 = vmul.f32 %v4430, 1.442695
    %v4435 = vpow.pop %v4434
    %v4436 = vmul.f32 %v4431, 1.442695
    %v4437 = vpow.pop %v4436
    %v4438 = vadd.f32 %v4433, 1.0
    %v4439 = vadd.f32 %v4435, 1.0
    %v4440 = vadd.f32 %v4437, 1.0
    %v4441 = vrcp.pop %v4438
    %v4442 = vmul.f32 1.0, %v4441
    %v4443 = vrcp.pop %v4439
    %v4444 = vmul.f32 1.0, %v4443
    %v4445 = vrcp.pop %v4440
    %v4446 = vmul.f32 1.0, %v4445
    %v4447 = vtanh.pop %v4425
    %v4448 = vmul.f32 %v4444, %v3570
    %v4449 = vmul.f32 %v4442, %v4447
    %v4450 = vadd.f32 %v4448, %v4449
    %v4451 = vtanh.pop %v4450
    %v4452 = vmul.f32 %v4446, %v4451
    %v4453 = vpack.c.bf16 %v4452, %v4452
    %s4454 = scalar_lea.vmem [#allocation10], 32
    %4455 = vst [vmem:[%s4454] sm:$0xff] %v4452
    %v4456 = vld [vmem:[#allocation2] sm:$0xe0]
    %v4457 = vld [vmem:[#allocation2 + $0x8] sm:$0xe0]
    %v4458 = vld [vmem:[#allocation2 + $0x10] sm:$0xe0]
    %v4459 = vld [vmem:[#allocation2 + $0x18] sm:$0xe0]
    %v4460 = vld [vmem:[#allocation2 + $0x20] sm:$0x1f]
    %v4461 = vld [vmem:[#allocation2 + $0x28] sm:$0x1f]
    %v4462 = vld [vmem:[#allocation2 + $0x30] sm:$0x1f]
    %v4463 = vld [vmem:[#allocation2 + $0x38] sm:$0x1f]
    %v4464 = vld [vmem:[#allocation5] sm:$0xff]
    %v4465 = vld [vmem:[#allocation5 + $0x8] sm:$0xff]
    %v4466 = vld [vmem:[#allocation5 + $0x10] sm:$0xff]
    %v4467 = vld [vmem:[#allocation5 + $0x18] sm:$0xff]
    %v4468 = vld [vmem:[#allocation5 + $0x20] sm:$0xff]
    %v4469 = vld [vmem:[#allocation5 + $0x28] sm:$0xff]
    %v4470 = vld [vmem:[#allocation5 + $0x30] sm:$0xff]
    %v4471 = vld [vmem:[#allocation5 + $0x38] sm:$0xff]
    %v4472 = vld [vmem:[#allocation5 + $0x40] sm:$0xff]
    %v4473 = vld [vmem:[#allocation5 + $0x48] sm:$0xff]
    %v4474 = vld [vmem:[#allocation5 + $0x50] sm:$0xff]
    %v4475 = vld [vmem:[#allocation5 + $0x58] sm:$0xff]
    %v4476 = vld [vmem:[#allocation5 + $0x60] sm:$0xff]
    %v4477 = vld [vmem:[#allocation5 + $0x68] sm:$0xff]
    %v4478 = vld [vmem:[#allocation5 + $0x70] sm:$0xff]
    %v4479 = vld [vmem:[#allocation5 + $0x78] sm:$0xff]
    %v4480 = vld [vmem:[#allocation5 + $0x80] sm:$0xff]
    %v4481 = vld [vmem:[#allocation5 + $0x88] sm:$0xff]
    %v4482 = vld [vmem:[#allocation5 + $0x90] sm:$0xff]
    %v4483 = vld [vmem:[#allocation5 + $0x98] sm:$0xff]
    %v4484 = vld [vmem:[#allocation5 + $0xa0] sm:$0xff]
    %v4485 = vld [vmem:[#allocation5 + $0xa8] sm:$0xff]
    %v4486 = vld [vmem:[#allocation5 + $0xb0] sm:$0xff]
    %v4487 = vld [vmem:[#allocation5 + $0xb8] sm:$0xff]
    %v4488 = vld [vmem:[#allocation5 + $0xc0] sm:$0xff]
    %v4489 = vld [vmem:[#allocation5 + $0xc8] sm:$0xff]
    %v4490 = vld [vmem:[#allocation5 + $0xd0] sm:$0xff]
    %v4491 = vld [vmem:[#allocation5 + $0xd8] sm:$0xff]
    %v4492 = vld [vmem:[#allocation5 + $0xe0] sm:$0xff]
    %v4493 = vld [vmem:[#allocation5 + $0xe8] sm:$0xff]
    %v4494 = vld [vmem:[#allocation5 + $0xf0] sm:$0xff]
    %v4495 = vld [vmem:[#allocation5 + $0xf8] sm:$0xff]
    %v4528 = vunpack.c.l.b16 %v4464
    %v4529 = vunpack.c.h.b16 %v4464
    %v4530 = vunpack.c.l.b16 %v4465
    %v4531 = vunpack.c.h.b16 %v4465
    %v4532 = vunpack.c.l.b16 %v4466
    %v4533 = vunpack.c.h.b16 %v4466
    %v4534 = vunpack.c.l.b16 %v4467
    %v4535 = vunpack.c.h.b16 %v4467
    %v4536 = vunpack.c.l.b16 %v4468
    %v4537 = vunpack.c.h.b16 %v4468
    %v4538 = vunpack.c.l.b16 %v4469
    %v4539 = vunpack.c.h.b16 %v4469
    %v4540 = vunpack.c.l.b16 %v4470
    %v4541 = vunpack.c.h.b16 %v4470
    %v4542 = vunpack.c.l.b16 %v4471
    %v4543 = vunpack.c.h.b16 %v4471
    %v4544 = vunpack.c.l.b16 %v4472
    %v4545 = vunpack.c.h.b16 %v4472
    %v4546 = vunpack.c.l.b16 %v4473
    %v4547 = vunpack.c.h.b16 %v4473
    %v4548 = vunpack.c.l.b16 %v4474
    %v4549 = vunpack.c.h.b16 %v4474
    %v4550 = vunpack.c.l.b16 %v4475
    %v4551 = vunpack.c.h.b16 %v4475
    %v4552 = vunpack.c.l.b16 %v4476
    %v4553 = vunpack.c.h.b16 %v4476
    %v4554 = vunpack.c.l.b16 %v4477
    %v4555 = vunpack.c.h.b16 %v4477
    %v4556 = vunpack.c.l.b16 %v4478
    %v4557 = vunpack.c.h.b16 %v4478
    %v4558 = vunpack.c.l.b16 %v4479
    %v4559 = vunpack.c.h.b16 %v4479
    %v4560 = vunpack.c.l.b16 %v4480
    %v4561 = vunpack.c.h.b16 %v4480
    %v4562 = vunpack.c.l.b16 %v4481
    %v4563 = vunpack.c.h.b16 %v4481
    %v4564 = vunpack.c.l.b16 %v4482
    %v4565 = vunpack.c.h.b16 %v4482
    %v4566 = vunpack.c.l.b16 %v4483
    %v4567 = vunpack.c.h.b16 %v4483
    %v4568 = vunpack.c.l.b16 %v4484
    %v4569 = vunpack.c.h.b16 %v4484
    %v4570 = vunpack.c.l.b16 %v4485
    %v4571 = vunpack.c.h.b16 %v4485
    %v4572 = vunpack.c.l.b16 %v4486
    %v4573 = vunpack.c.h.b16 %v4486
    %v4574 = vunpack.c.l.b16 %v4487
    %v4575 = vunpack.c.h.b16 %v4487
    %v4576 = vunpack.c.l.b16 %v4488
    %v4577 = vunpack.c.h.b16 %v4488
    %v4578 = vunpack.c.l.b16 %v4489
    %v4579 = vunpack.c.h.b16 %v4489
    %v4580 = vunpack.c.l.b16 %v4490
    %v4581 = vunpack.c.h.b16 %v4490
    %v4582 = vunpack.c.l.b16 %v4491
    %v4583 = vunpack.c.h.b16 %v4491
    %v4584 = vunpack.c.l.b16 %v4492
    %v4585 = vunpack.c.h.b16 %v4492
    %v4586 = vunpack.c.l.b16 %v4493
    %v4587 = vunpack.c.h.b16 %v4493
    %v4588 = vunpack.c.l.b16 %v4494
    %v4589 = vunpack.c.h.b16 %v4494
    %v4590 = vunpack.c.l.b16 %v4495
    %v4591 = vunpack.c.h.b16 %v4495
    %v4592 = vpack.c.b16 %v4532, %v4528
    %v4593 = vpack.c.b16 %v4533, %v4529
    %v4594 = vpack.c.b16 %v4534, %v4530
    %v4595 = vpack.c.b16 %v4535, %v4531
    %v4596 = vpack.c.b16 %v4540, %v4536
    %v4597 = vpack.c.b16 %v4541, %v4537
    %v4598 = vpack.c.b16 %v4542, %v4538
    %v4599 = vpack.c.b16 %v4543, %v4539
    %v4600 = vpack.c.b16 %v4548, %v4544
    %v4601 = vpack.c.b16 %v4549, %v4545
    %v4602 = vpack.c.b16 %v4550, %v4546
    %v4603 = vpack.c.b16 %v4551, %v4547
    %v4604 = vpack.c.b16 %v4556, %v4552
    %v4605 = vpack.c.b16 %v4557, %v4553
    %v4606 = vpack.c.b16 %v4558, %v4554
    %v4607 = vpack.c.b16 %v4559, %v4555
    %v4608 = vpack.c.b16 %v4564, %v4560
    %v4609 = vpack.c.b16 %v4565, %v4561
    %v4610 = vpack.c.b16 %v4566, %v4562
    %v4611 = vpack.c.b16 %v4567, %v4563
    %v4612 = vpack.c.b16 %v4572, %v4568
    %v4613 = vpack.c.b16 %v4573, %v4569
    %v4614 = vpack.c.b16 %v4574, %v4570
    %v4615 = vpack.c.b16 %v4575, %v4571
    %v4616 = vpack.c.b16 %v4580, %v4576
    %v4617 = vpack.c.b16 %v4581, %v4577
    %v4618 = vpack.c.b16 %v4582, %v4578
    %v4619 = vpack.c.b16 %v4583, %v4579
    %v4620 = vpack.c.b16 %v4588, %v4584
    %v4621 = vpack.c.b16 %v4589, %v4585
    %v4622 = vpack.c.b16 %v4590, %v4586
    %v4623 = vpack.c.b16 %v4591, %v4587
    %4656 = vmatprep.subr.bf16.mxu0 %v4621
    %4657 = vmatpush1.bf16.msra.mxu0 %v4620
    %4658 = vmatprep.subr.bf16.mxu0 %v4617
    %4659 = vmatpush1.bf16.msra.mxu0 %v4616
    %4660 = vmatprep.subr.bf16.mxu0 %v4613
    %4661 = vmatpush1.bf16.msra.mxu0 %v4612
    %4662 = vmatprep.subr.bf16.mxu0 %v4609
    %4663 = vmatpush1.bf16.msra.mxu0 %v4608
    %4664 = vmatprep.subr.bf16.mxu0 %v4605
    %4665 = vmatpush1.bf16.msra.mxu0 %v4604
    %4666 = vmatprep.subr.bf16.mxu0 %v4601
    %4667 = vmatpush1.bf16.msra.mxu0 %v4600
    %4668 = vmatprep.subr.bf16.mxu0 %v4597
    %4669 = vmatpush1.bf16.msra.mxu0 %v4596
    %4670 = vmatprep.subr.bf16.mxu0 %v4593
    %4671 = vmatpush1.bf16.msra.mxu0 %v4592
    %4672 = vmatprep.subr.bf16.mxu0 0
    %4673 = vmatpush2.bf16.msra.mxu0 0
    %4674 = vmatprep.subr.bf16.mxu0 0
    %4675 = vmatpush2.bf16.msra.mxu0 0
    %4676 = vmatprep.subr.bf16.mxu0 0
    %4677 = vmatpush2.bf16.msra.mxu0 0
    %4678 = vmatprep.subr.bf16.mxu0 0
    %4679 = vmatpush2.bf16.msra.mxu0 0
    %4680 = vmatprep.subr.bf16.mxu0 0
    %4681 = vmatpush2.bf16.msra.mxu0 0
    %4682 = vmatprep.subr.bf16.mxu0 0
    %4683 = vmatpush2.bf16.msra.mxu0 0
    %4684 = vmatprep.subr.bf16.mxu0 0
    %4685 = vmatpush2.bf16.msra.mxu0 0
    %4686 = vmatprep.subr.bf16.mxu0 0
    %4687 = vmatpush2.bf16.msra.mxu0 0
    %4688 = vmatprep.mubr.bf16.mxu0 0
    %4689 = vmatmul.mubr.bf16.gmra.mxu0 %v4023
    %v4690 = vpop.f32.mrf.mxu0
    %v4691 = vadd.f32 0.0, %v4690
    %v4692 = vpop.f32.mrf.mxu0
    %v4693 = vadd.f32 0.0, %v4692
    %v4694 = vpop.f32.mrf.mxu0
    %v4695 = vpop.f32.mrf.mxu0
    %4696 = vdwg.mxu0
    %4697 = vmatprep.subr.bf16.mxu0 %v4623
    %4698 = vmatpush1.bf16.msra.mxu0 %v4622
    %4699 = vmatprep.subr.bf16.mxu0 %v4619
    %4700 = vmatpush1.bf16.msra.mxu0 %v4618
    %4701 = vmatprep.subr.bf16.mxu0 %v4615
    %4702 = vmatpush1.bf16.msra.mxu0 %v4614
    %4703 = vmatprep.subr.bf16.mxu0 %v4611
    %4704 = vmatpush1.bf16.msra.mxu0 %v4610
    %4705 = vmatprep.subr.bf16.mxu0 %v4607
    %4706 = vmatpush1.bf16.msra.mxu0 %v4606
    %4707 = vmatprep.subr.bf16.mxu0 %v4603
    %4708 = vmatpush1.bf16.msra.mxu0 %v4602
    %4709 = vmatprep.subr.bf16.mxu0 %v4599
    %4710 = vmatpush1.bf16.msra.mxu0 %v4598
    %4711 = vmatprep.subr.bf16.mxu0 %v4595
    %4712 = vmatpush1.bf16.msra.mxu0 %v4594
    %4713 = vmatprep.subr.bf16.mxu0 0
    %4714 = vmatpush2.bf16.msra.mxu0 0
    %4715 = vmatprep.subr.bf16.mxu0 0
    %4716 = vmatpush2.bf16.msra.mxu0 0
    %4717 = vmatprep.subr.bf16.mxu0 0
    %4718 = vmatpush2.bf16.msra.mxu0 0
    %4719 = vmatprep.subr.bf16.mxu0 0
    %4720 = vmatpush2.bf16.msra.mxu0 0
    %4721 = vmatprep.subr.bf16.mxu0 0
    %4722 = vmatpush2.bf16.msra.mxu0 0
    %4723 = vmatprep.subr.bf16.mxu0 0
    %4724 = vmatpush2.bf16.msra.mxu0 0
    %4725 = vmatprep.subr.bf16.mxu0 0
    %4726 = vmatpush2.bf16.msra.mxu0 0
    %4727 = vmatprep.subr.bf16.mxu0 0
    %4728 = vmatpush2.bf16.msra.mxu0 0
    %4729 = vmatprep.mubr.bf16.mxu0 0
    %4730 = vmatmul.mubr.bf16.gmra.mxu0 %v4023
    %v4731 = vpop.f32.mrf.mxu0
    %v4732 = vadd.f32 0.0, %v4731
    %v4733 = vpop.f32.mrf.mxu0
    %v4734 = vadd.f32 0.0, %v4733
    %v4735 = vpop.f32.mrf.mxu0
    %v4736 = vpop.f32.mrf.mxu0
    %4737 = vdwg.mxu0
    %v4742 = vrot.slane %v4691, 3
    %v4743 = vrot.slane %v4693, 3
    %v4744 = vrot.slane %v4732, 3
    %v4745 = vrot.slane %v4734, 3
    %v4750 = vadd.f32 %v4456, %v4742
    %v4751 = vadd.f32 %v4457, %v4743
    %v4752 = vadd.f32 %v4458, %v4744
    %v4753 = vadd.f32 %v4459, %v4745
    %v4754 = vadd.f32 %v4460, %v4742
    %v4755 = vadd.f32 %v4461, %v4743
    %v4756 = vadd.f32 %v4462, %v4744
    %v4757 = vadd.f32 %v4463, %v4745
    %v4758 = vxor.u32 %v4750, 2147483648
    %v4759 = vxor.u32 %v4751, 2147483648
    %v4760 = vxor.u32 %v4752, 2147483648
    %v4761 = vxor.u32 %v4754, 2147483648
    %v4762 = vxor.u32 %v4755, 2147483648
    %v4763 = vxor.u32 %v4756, 2147483648
    %v4764 = vmul.f32 %v4758, 1.442695
    %v4765 = vpow.pop %v4764
    %v4766 = vmul.f32 %v4759, 1.442695
    %v4767 = vpow.pop %v4766
    %v4768 = vmul.f32 %v4760, 1.442695
    %v4769 = vpow.pop %v4768
    %v4770 = vmul.f32 %v4761, 1.442695
    %v4771 = vpow.pop %v4770
    %v4772 = vmul.f32 %v4762, 1.442695
    %v4773 = vpow.pop %v4772
    %v4774 = vmul.f32 %v4763, 1.442695
    %v4775 = vpow.pop %v4774
    %v4776 = vadd.f32 %v4765, 1.0
    %v4777 = vadd.f32 %v4767, 1.0
    %v4778 = vadd.f32 %v4769, 1.0
    %v4779 = vadd.f32 %v4771, 1.0
    %v4780 = vadd.f32 %v4773, 1.0
    %v4781 = vadd.f32 %v4775, 1.0
    %v4782 = vrcp.pop %v4776
    %v4783 = vmul.f32 1.0, %v4782
    %v4784 = vrcp.pop %v4777
    %v4785 = vmul.f32 1.0, %v4784
    %v4786 = vrcp.pop %v4778
    %v4787 = vmul.f32 1.0, %v4786
    %v4788 = vrcp.pop %v4779
    %v4789 = vmul.f32 1.0, %v4788
    %v4790 = vrcp.pop %v4780
    %v4791 = vmul.f32 1.0, %v4790
    %v4792 = vrcp.pop %v4781
    %v4793 = vmul.f32 1.0, %v4792
    %v4794 = vtanh.pop %v4753
    %v4795 = vtanh.pop %v4757
    %v4798 = vrot.slane %v3927, 7
    %v4799 = vrot.slane %v3928, 7
    %v4800 = vsel %vm2138, %v4798, %v4799
    %v4803 = vmul.f32 %v4785, %v4798
    %v4804 = vmul.f32 %v4791, %v4800
    %v4805 = vmul.f32 %v4783, %v4794
    %v4806 = vmul.f32 %v4789, %v4795
    %v4807 = vadd.f32 %v4803, %v4805
    %v4808 = vadd.f32 %v4804, %v4806
    %v4809 = vtanh.pop %v4807
    %v4810 = vtanh.pop %v4808
    %v4811 = vmul.f32 %v4787, %v4809
    %v4812 = vmul.f32 %v4793, %v4810
    %v4813 = vpack.c.bf16 %v4812, %v4811
    %v4815 = vshrl.u32 %v4453, 16
    %v4817 = vrot.slane %v4815, 5
    %v4818 = vshll.u32 %v4453, 16
    %v4820 = vrot.slane %v4818, 6
    %v4821 = vor.u32 %v4817, %v4820
    %v4822 = vld [vmem:[#allocation7] sm:$0xff]
    %v4823 = vld [vmem:[#allocation7 + $0x8] sm:$0xff]
    %v4824 = vld [vmem:[#allocation7 + $0x10] sm:$0xff]
    %v4825 = vld [vmem:[#allocation7 + $0x18] sm:$0xff]
    %v4826 = vld [vmem:[#allocation7 + $0x20] sm:$0xff]
    %v4827 = vld [vmem:[#allocation7 + $0x28] sm:$0xff]
    %v4828 = vld [vmem:[#allocation7 + $0x30] sm:$0xff]
    %v4829 = vld [vmem:[#allocation7 + $0x38] sm:$0xff]
    %v4830 = vld [vmem:[#allocation7 + $0x40] sm:$0xff]
    %v4831 = vld [vmem:[#allocation7 + $0x48] sm:$0xff]
    %v4832 = vld [vmem:[#allocation7 + $0x50] sm:$0xff]
    %v4833 = vld [vmem:[#allocation7 + $0x58] sm:$0xff]
    %v4834 = vld [vmem:[#allocation7 + $0x60] sm:$0xff]
    %v4835 = vld [vmem:[#allocation7 + $0x68] sm:$0xff]
    %v4836 = vld [vmem:[#allocation7 + $0x70] sm:$0xff]
    %v4837 = vld [vmem:[#allocation7 + $0x78] sm:$0xff]
    %v4838 = vld [vmem:[#allocation7 + $0x80] sm:$0xff]
    %v4839 = vld [vmem:[#allocation7 + $0x88] sm:$0xff]
    %v4840 = vld [vmem:[#allocation7 + $0x90] sm:$0xff]
    %v4841 = vld [vmem:[#allocation7 + $0x98] sm:$0xff]
    %v4842 = vld [vmem:[#allocation7 + $0xa0] sm:$0xff]
    %v4843 = vld [vmem:[#allocation7 + $0xa8] sm:$0xff]
    %v4844 = vld [vmem:[#allocation7 + $0xb0] sm:$0xff]
    %v4845 = vld [vmem:[#allocation7 + $0xb8] sm:$0xff]
    %v4846 = vld [vmem:[#allocation7 + $0xc0] sm:$0xff]
    %v4847 = vld [vmem:[#allocation7 + $0xc8] sm:$0xff]
    %v4848 = vld [vmem:[#allocation7 + $0xd0] sm:$0xff]
    %v4849 = vld [vmem:[#allocation7 + $0xd8] sm:$0xff]
    %v4850 = vld [vmem:[#allocation7 + $0xe0] sm:$0xff]
    %v4851 = vld [vmem:[#allocation7 + $0xe8] sm:$0xff]
    %v4852 = vld [vmem:[#allocation7 + $0xf0] sm:$0xff]
    %v4853 = vld [vmem:[#allocation7 + $0xf8] sm:$0xff]
    %v4854 = vld [vmem:[#allocation7 + $0x100] sm:$0xff]
    %v4855 = vld [vmem:[#allocation7 + $0x108] sm:$0xff]
    %v4856 = vld [vmem:[#allocation7 + $0x110] sm:$0xff]
    %v4857 = vld [vmem:[#allocation7 + $0x118] sm:$0xff]
    %v4858 = vld [vmem:[#allocation7 + $0x120] sm:$0xff]
    %v4859 = vld [vmem:[#allocation7 + $0x128] sm:$0xff]
    %v4860 = vld [vmem:[#allocation7 + $0x130] sm:$0xff]
    %v4861 = vld [vmem:[#allocation7 + $0x138] sm:$0xff]
    %v4862 = vld [vmem:[#allocation7 + $0x140] sm:$0xff]
    %v4863 = vld [vmem:[#allocation7 + $0x148] sm:$0xff]
    %v4864 = vld [vmem:[#allocation7 + $0x150] sm:$0xff]
    %v4865 = vld [vmem:[#allocation7 + $0x158] sm:$0xff]
    %v4866 = vld [vmem:[#allocation7 + $0x160] sm:$0xff]
    %v4867 = vld [vmem:[#allocation7 + $0x168] sm:$0xff]
    %v4868 = vld [vmem:[#allocation7 + $0x170] sm:$0xff]
    %v4869 = vld [vmem:[#allocation7 + $0x178] sm:$0xff]
    %v4870 = vld [vmem:[#allocation7 + $0x180] sm:$0xff]
    %v4871 = vld [vmem:[#allocation7 + $0x188] sm:$0xff]
    %v4872 = vld [vmem:[#allocation7 + $0x190] sm:$0xff]
    %v4873 = vld [vmem:[#allocation7 + $0x198] sm:$0xff]
    %v4874 = vld [vmem:[#allocation7 + $0x1a0] sm:$0xff]
    %v4875 = vld [vmem:[#allocation7 + $0x1a8] sm:$0xff]
    %v4876 = vld [vmem:[#allocation7 + $0x1b0] sm:$0xff]
    %v4877 = vld [vmem:[#allocation7 + $0x1b8] sm:$0xff]
    %v4878 = vld [vmem:[#allocation7 + $0x1c0] sm:$0xff]
    %v4879 = vld [vmem:[#allocation7 + $0x1c8] sm:$0xff]
    %v4880 = vld [vmem:[#allocation7 + $0x1d0] sm:$0xff]
    %v4881 = vld [vmem:[#allocation7 + $0x1d8] sm:$0xff]
    %v4882 = vld [vmem:[#allocation7 + $0x1e0] sm:$0xff]
    %v4883 = vld [vmem:[#allocation7 + $0x1e8] sm:$0xff]
    %v4884 = vld [vmem:[#allocation7 + $0x1f0] sm:$0xff]
    %v4885 = vld [vmem:[#allocation7 + $0x1f8] sm:$0xff]
    %v4886 = vld [vmem:[%s3] sm:$0xf]
    %v4888 = vlaneseq
    %v4889 = vshrl.u32 %v4888, 7
    %v4890 = vsub.s32 0, %v4889
    %v4891 = vrot.slane %v4886, %v4890
    %v4892 = vlaneseq
    %v4893 = vshrl.u32 %v4892, 7
    %v4894 = vsub.s32 1, %v4893
    %v4895 = vrot.slane %v4886, %v4894
    %v4896 = vlaneseq
    %v4897 = vshrl.u32 %v4896, 7
    %v4898 = vsub.s32 2, %v4897
    %v4899 = vrot.slane %v4886, %v4898
    %v4900 = vlaneseq
    %v4901 = vshrl.u32 %v4900, 7
    %v4902 = vsub.s32 3, %v4901
    %v4903 = vrot.slane %v4886, %v4902
    %v4909 = vshrl.u32 %v4813, 16
    %v4911 = vrot.slane %v4909, 2
    %v4912 = vshll.u32 %v4813, 16
    %v4914 = vrot.slane %v4912, 3
    %v4915 = vor.u32 %v4911, %v4914
    %v4917 = vshrl.u32 %v4821, 16
    %v4919 = vrot.slane %v4917, 2
    %v4920 = vshll.u32 %v4821, 16
    %v4922 = vrot.slane %v4920, 3
    %v4923 = vor.u32 %v4919, %v4922
    %v4990 = vunpack.c.l.b16 %v4822
    %v4991 = vunpack.c.h.b16 %v4822
    %v4992 = vunpack.c.l.b16 %v4823
    %v4993 = vunpack.c.h.b16 %v4823
    %v4994 = vunpack.c.l.b16 %v4824
    %v4995 = vunpack.c.h.b16 %v4824
    %v4996 = vunpack.c.l.b16 %v4825
    %v4997 = vunpack.c.h.b16 %v4825
    %v4998 = vunpack.c.l.b16 %v4826
    %v4999 = vunpack.c.h.b16 %v4826
    %v5000 = vunpack.c.l.b16 %v4827
    %v5001 = vunpack.c.h.b16 %v4827
    %v5002 = vunpack.c.l.b16 %v4828
    %v5003 = vunpack.c.h.b16 %v4828
    %v5004 = vunpack.c.l.b16 %v4829
    %v5005 = vunpack.c.h.b16 %v4829
    %v5006 = vunpack.c.l.b16 %v4830
    %v5007 = vunpack.c.h.b16 %v4830
    %v5008 = vunpack.c.l.b16 %v4831
    %v5009 = vunpack.c.h.b16 %v4831
    %v5010 = vunpack.c.l.b16 %v4832
    %v5011 = vunpack.c.h.b16 %v4832
    %v5012 = vunpack.c.l.b16 %v4833
    %v5013 = vunpack.c.h.b16 %v4833
    %v5014 = vunpack.c.l.b16 %v4834
    %v5015 = vunpack.c.h.b16 %v4834
    %v5016 = vunpack.c.l.b16 %v4835
    %v5017 = vunpack.c.h.b16 %v4835
    %v5018 = vunpack.c.l.b16 %v4836
    %v5019 = vunpack.c.h.b16 %v4836
    %v5020 = vunpack.c.l.b16 %v4837
    %v5021 = vunpack.c.h.b16 %v4837
    %v5022 = vunpack.c.l.b16 %v4838
    %v5023 = vunpack.c.h.b16 %v4838
    %v5024 = vunpack.c.l.b16 %v4839
    %v5025 = vunpack.c.h.b16 %v4839
    %v5026 = vunpack.c.l.b16 %v4840
    %v5027 = vunpack.c.h.b16 %v4840
    %v5028 = vunpack.c.l.b16 %v4841
    %v5029 = vunpack.c.h.b16 %v4841
    %v5030 = vunpack.c.l.b16 %v4842
    %v5031 = vunpack.c.h.b16 %v4842
    %v5032 = vunpack.c.l.b16 %v4843
    %v5033 = vunpack.c.h.b16 %v4843
    %v5034 = vunpack.c.l.b16 %v4844
    %v5035 = vunpack.c.h.b16 %v4844
    %v5036 = vunpack.c.l.b16 %v4845
    %v5037 = vunpack.c.h.b16 %v4845
    %v5038 = vunpack.c.l.b16 %v4846
    %v5039 = vunpack.c.h.b16 %v4846
    %v5040 = vunpack.c.l.b16 %v4847
    %v5041 = vunpack.c.h.b16 %v4847
    %v5042 = vunpack.c.l.b16 %v4848
    %v5043 = vunpack.c.h.b16 %v4848
    %v5044 = vunpack.c.l.b16 %v4849
    %v5045 = vunpack.c.h.b16 %v4849
    %v5046 = vunpack.c.l.b16 %v4850
    %v5047 = vunpack.c.h.b16 %v4850
    %v5048 = vunpack.c.l.b16 %v4851
    %v5049 = vunpack.c.h.b16 %v4851
    %v5050 = vunpack.c.l.b16 %v4852
    %v5051 = vunpack.c.h.b16 %v4852
    %v5052 = vunpack.c.l.b16 %v4853
    %v5053 = vunpack.c.h.b16 %v4853
    %v5054 = vunpack.c.l.b16 %v4854
    %v5055 = vunpack.c.h.b16 %v4854
    %v5056 = vunpack.c.l.b16 %v4855
    %v5057 = vunpack.c.h.b16 %v4855
    %v5058 = vunpack.c.l.b16 %v4856
    %v5059 = vunpack.c.h.b16 %v4856
    %v5060 = vunpack.c.l.b16 %v4857
    %v5061 = vunpack.c.h.b16 %v4857
    %v5062 = vunpack.c.l.b16 %v4858
    %v5063 = vunpack.c.h.b16 %v4858
    %v5064 = vunpack.c.l.b16 %v4859
    %v5065 = vunpack.c.h.b16 %v4859
    %v5066 = vunpack.c.l.b16 %v4860
    %v5067 = vunpack.c.h.b16 %v4860
    %v5068 = vunpack.c.l.b16 %v4861
    %v5069 = vunpack.c.h.b16 %v4861
    %v5070 = vunpack.c.l.b16 %v4862
    %v5071 = vunpack.c.h.b16 %v4862
    %v5072 = vunpack.c.l.b16 %v4863
    %v5073 = vunpack.c.h.b16 %v4863
    %v5074 = vunpack.c.l.b16 %v4864
    %v5075 = vunpack.c.h.b16 %v4864
    %v5076 = vunpack.c.l.b16 %v4865
    %v5077 = vunpack.c.h.b16 %v4865
    %v5078 = vunpack.c.l.b16 %v4866
    %v5079 = vunpack.c.h.b16 %v4866
    %v5080 = vunpack.c.l.b16 %v4867
    %v5081 = vunpack.c.h.b16 %v4867
    %v5082 = vunpack.c.l.b16 %v4868
    %v5083 = vunpack.c.h.b16 %v4868
    %v5084 = vunpack.c.l.b16 %v4869
    %v5085 = vunpack.c.h.b16 %v4869
    %v5086 = vunpack.c.l.b16 %v4870
    %v5087 = vunpack.c.h.b16 %v4870
    %v5088 = vunpack.c.l.b16 %v4871
    %v5089 = vunpack.c.h.b16 %v4871
    %v5090 = vunpack.c.l.b16 %v4872
    %v5091 = vunpack.c.h.b16 %v4872
    %v5092 = vunpack.c.l.b16 %v4873
    %v5093 = vunpack.c.h.b16 %v4873
    %v5094 = vunpack.c.l.b16 %v4874
    %v5095 = vunpack.c.h.b16 %v4874
    %v5096 = vunpack.c.l.b16 %v4875
    %v5097 = vunpack.c.h.b16 %v4875
    %v5098 = vunpack.c.l.b16 %v4876
    %v5099 = vunpack.c.h.b16 %v4876
    %v5100 = vunpack.c.l.b16 %v4877
    %v5101 = vunpack.c.h.b16 %v4877
    %v5102 = vunpack.c.l.b16 %v4878
    %v5103 = vunpack.c.h.b16 %v4878
    %v5104 = vunpack.c.l.b16 %v4879
    %v5105 = vunpack.c.h.b16 %v4879
    %v5106 = vunpack.c.l.b16 %v4880
    %v5107 = vunpack.c.h.b16 %v4880
    %v5108 = vunpack.c.l.b16 %v4881
    %v5109 = vunpack.c.h.b16 %v4881
    %v5110 = vunpack.c.l.b16 %v4882
    %v5111 = vunpack.c.h.b16 %v4882
    %v5112 = vunpack.c.l.b16 %v4883
    %v5113 = vunpack.c.h.b16 %v4883
    %v5114 = vunpack.c.l.b16 %v4884
    %v5115 = vunpack.c.h.b16 %v4884
    %v5116 = vunpack.c.l.b16 %v4885
    %v5117 = vunpack.c.h.b16 %v4885
    %v5118 = vpack.c.b16 %v4994, %v4990
    %v5119 = vpack.c.b16 %v4995, %v4991
    %v5120 = vpack.c.b16 %v4996, %v4992
    %v5121 = vpack.c.b16 %v4997, %v4993
    %v5122 = vpack.c.b16 %v5002, %v4998
    %v5123 = vpack.c.b16 %v5003, %v4999
    %v5124 = vpack.c.b16 %v5004, %v5000
    %v5125 = vpack.c.b16 %v5005, %v5001
    %v5126 = vpack.c.b16 %v5010, %v5006
    %v5127 = vpack.c.b16 %v5011, %v5007
    %v5128 = vpack.c.b16 %v5012, %v5008
    %v5129 = vpack.c.b16 %v5013, %v5009
    %v5130 = vpack.c.b16 %v5018, %v5014
    %v5131 = vpack.c.b16 %v5019, %v5015
    %v5132 = vpack.c.b16 %v5020, %v5016
    %v5133 = vpack.c.b16 %v5021, %v5017
    %v5134 = vpack.c.b16 %v5026, %v5022
    %v5135 = vpack.c.b16 %v5027, %v5023
    %v5136 = vpack.c.b16 %v5028, %v5024
    %v5137 = vpack.c.b16 %v5029, %v5025
    %v5138 = vpack.c.b16 %v5034, %v5030
    %v5139 = vpack.c.b16 %v5035, %v5031
    %v5140 = vpack.c.b16 %v5036, %v5032
    %v5141 = vpack.c.b16 %v5037, %v5033
    %v5142 = vpack.c.b16 %v5042, %v5038
    %v5143 = vpack.c.b16 %v5043, %v5039
    %v5144 = vpack.c.b16 %v5044, %v5040
    %v5145 = vpack.c.b16 %v5045, %v5041
    %v5146 = vpack.c.b16 %v5050, %v5046
    %v5147 = vpack.c.b16 %v5051, %v5047
    %v5148 = vpack.c.b16 %v5052, %v5048
    %v5149 = vpack.c.b16 %v5053, %v5049
    %v5150 = vpack.c.b16 %v5058, %v5054
    %v5151 = vpack.c.b16 %v5059, %v5055
    %v5152 = vpack.c.b16 %v5060, %v5056
    %v5153 = vpack.c.b16 %v5061, %v5057
    %v5154 = vpack.c.b16 %v5066, %v5062
    %v5155 = vpack.c.b16 %v5067, %v5063
    %v5156 = vpack.c.b16 %v5068, %v5064
    %v5157 = vpack.c.b16 %v5069, %v5065
    %v5158 = vpack.c.b16 %v5074, %v5070
    %v5159 = vpack.c.b16 %v5075, %v5071
    %v5160 = vpack.c.b16 %v5076, %v5072
    %v5161 = vpack.c.b16 %v5077, %v5073
    %v5162 = vpack.c.b16 %v5082, %v5078
    %v5163 = vpack.c.b16 %v5083, %v5079
    %v5164 = vpack.c.b16 %v5084, %v5080
    %v5165 = vpack.c.b16 %v5085, %v5081
    %v5166 = vpack.c.b16 %v5090, %v5086
    %v5167 = vpack.c.b16 %v5091, %v5087
    %v5168 = vpack.c.b16 %v5092, %v5088
    %v5169 = vpack.c.b16 %v5093, %v5089
    %v5170 = vpack.c.b16 %v5098, %v5094
    %v5171 = vpack.c.b16 %v5099, %v5095
    %v5172 = vpack.c.b16 %v5100, %v5096
    %v5173 = vpack.c.b16 %v5101, %v5097
    %v5174 = vpack.c.b16 %v5106, %v5102
    %v5175 = vpack.c.b16 %v5107, %v5103
    %v5176 = vpack.c.b16 %v5108, %v5104
    %v5177 = vpack.c.b16 %v5109, %v5105
    %v5178 = vpack.c.b16 %v5114, %v5110
    %v5179 = vpack.c.b16 %v5115, %v5111
    %v5180 = vpack.c.b16 %v5116, %v5112
    %v5181 = vpack.c.b16 %v5117, %v5113
    %5246 = vmatprep.subr.bf16.mxu0 %v5147
    %5247 = vmatpush1.bf16.msra.mxu0 %v5146
    %5248 = vmatprep.subr.bf16.mxu0 %v5143
    %5249 = vmatpush1.bf16.msra.mxu0 %v5142
    %5250 = vmatprep.subr.bf16.mxu0 %v5139
    %5251 = vmatpush1.bf16.msra.mxu0 %v5138
    %5252 = vmatprep.subr.bf16.mxu0 %v5135
    %5253 = vmatpush1.bf16.msra.mxu0 %v5134
    %5254 = vmatprep.subr.bf16.mxu0 %v5131
    %5255 = vmatpush1.bf16.msra.mxu0 %v5130
    %5256 = vmatprep.subr.bf16.mxu0 %v5127
    %5257 = vmatpush1.bf16.msra.mxu0 %v5126
    %5258 = vmatprep.subr.bf16.mxu0 %v5123
    %5259 = vmatpush1.bf16.msra.mxu0 %v5122
    %5260 = vmatprep.subr.bf16.mxu0 %v5119
    %5261 = vmatpush1.bf16.msra.mxu0 %v5118
    %5262 = vmatprep.subr.bf16.mxu0 %v5179
    %5263 = vmatpush2.bf16.msra.mxu0 %v5178
    %5264 = vmatprep.subr.bf16.mxu0 %v5175
    %5265 = vmatpush2.bf16.msra.mxu0 %v5174
    %5266 = vmatprep.subr.bf16.mxu0 %v5171
    %5267 = vmatpush2.bf16.msra.mxu0 %v5170
    %5268 = vmatprep.subr.bf16.mxu0 %v5167
    %5269 = vmatpush2.bf16.msra.mxu0 %v5166
    %5270 = vmatprep.subr.bf16.mxu0 %v5163
    %5271 = vmatpush2.bf16.msra.mxu0 %v5162
    %5272 = vmatprep.subr.bf16.mxu0 %v5159
    %5273 = vmatpush2.bf16.msra.mxu0 %v5158
    %5274 = vmatprep.subr.bf16.mxu0 %v5155
    %5275 = vmatpush2.bf16.msra.mxu0 %v5154
    %5276 = vmatprep.subr.bf16.mxu0 %v5151
    %5277 = vmatpush2.bf16.msra.mxu0 %v5150
    %5278 = vmatprep.mubr.bf16.mxu0 %v4923
    %5279 = vmatmul.mubr.bf16.gmra.mxu0 %v4915
    %v5280 = vpop.f32.mrf.mxu0
    %v5281 = vadd.f32 %v4891, %v5280
    %v5282 = vpop.f32.mrf.mxu0
    %v5283 = vadd.f32 %v4895, %v5282
    %v5284 = vpop.f32.mrf.mxu0
    %v5285 = vpop.f32.mrf.mxu0
    %5286 = vdwg.mxu0
    %5287 = vmatprep.subr.bf16.mxu0 %v5149
    %5288 = vmatpush1.bf16.msra.mxu0 %v5148
    %5289 = vmatprep.subr.bf16.mxu0 %v5145
    %5290 = vmatpush1.bf16.msra.mxu0 %v5144
    %5291 = vmatprep.subr.bf16.mxu0 %v5141
    %5292 = vmatpush1.bf16.msra.mxu0 %v5140
    %5293 = vmatprep.subr.bf16.mxu0 %v5137
    %5294 = vmatpush1.bf16.msra.mxu0 %v5136
    %5295 = vmatprep.subr.bf16.mxu0 %v5133
    %5296 = vmatpush1.bf16.msra.mxu0 %v5132
    %5297 = vmatprep.subr.bf16.mxu0 %v5129
    %5298 = vmatpush1.bf16.msra.mxu0 %v5128
    %5299 = vmatprep.subr.bf16.mxu0 %v5125
    %5300 = vmatpush1.bf16.msra.mxu0 %v5124
    %5301 = vmatprep.subr.bf16.mxu0 %v5121
    %5302 = vmatpush1.bf16.msra.mxu0 %v5120
    %5303 = vmatprep.subr.bf16.mxu0 %v5181
    %5304 = vmatpush2.bf16.msra.mxu0 %v5180
    %5305 = vmatprep.subr.bf16.mxu0 %v5177
    %5306 = vmatpush2.bf16.msra.mxu0 %v5176
    %5307 = vmatprep.subr.bf16.mxu0 %v5173
    %5308 = vmatpush2.bf16.msra.mxu0 %v5172
    %5309 = vmatprep.subr.bf16.mxu0 %v5169
    %5310 = vmatpush2.bf16.msra.mxu0 %v5168
    %5311 = vmatprep.subr.bf16.mxu0 %v5165
    %5312 = vmatpush2.bf16.msra.mxu0 %v5164
    %5313 = vmatprep.subr.bf16.mxu0 %v5161
    %5314 = vmatpush2.bf16.msra.mxu0 %v5160
    %5315 = vmatprep.subr.bf16.mxu0 %v5157
    %5316 = vmatpush2.bf16.msra.mxu0 %v5156
    %5317 = vmatprep.subr.bf16.mxu0 %v5153
    %5318 = vmatpush2.bf16.msra.mxu0 %v5152
    %5319 = vmatprep.mubr.bf16.mxu0 %v4923
    %5320 = vmatmul.mubr.bf16.gmra.mxu0 %v4915
    %v5321 = vpop.f32.mrf.mxu0
    %v5322 = vadd.f32 %v4899, %v5321
    %v5323 = vpop.f32.mrf.mxu0
    %v5324 = vadd.f32 %v4903, %v5323
    %v5325 = vpop.f32.mrf.mxu0
    %v5326 = vpop.f32.mrf.mxu0
    %5327 = vdwg.mxu0
    %v5328 = vxor.u32 %v5281, 2147483648
    %v5329 = vxor.u32 %v5283, 2147483648
    %v5330 = vxor.u32 %v5322, 2147483648
    %v5331 = vmul.f32 %v5328, 1.442695
    %v5332 = vpow.pop %v5331
    %v5333 = vmul.f32 %v5329, 1.442695
    %v5334 = vpow.pop %v5333
    %v5335 = vmul.f32 %v5330, 1.442695
    %v5336 = vpow.pop %v5335
    %v5337 = vadd.f32 %v5332, 1.0
    %v5338 = vadd.f32 %v5334, 1.0
    %v5339 = vadd.f32 %v5336, 1.0
    %v5340 = vrcp.pop %v5337
    %v5341 = vmul.f32 1.0, %v5340
    %v5342 = vrcp.pop %v5338
    %v5343 = vmul.f32 1.0, %v5342
    %v5344 = vrcp.pop %v5339
    %v5345 = vmul.f32 1.0, %v5344
    %v5346 = vtanh.pop %v5324
    %v5347 = vmul.f32 %v5343, %v4450
    %v5348 = vmul.f32 %v5341, %v5346
    %v5349 = vadd.f32 %v5347, %v5348
    %v5350 = vtanh.pop %v5349
    %v5351 = vmul.f32 %v5345, %v5350
    %v5352 = vpack.c.bf16 %v5351, %v5351
    %s5353 = scalar_lea.vmem [#allocation10], 40
    %5354 = vst [vmem:[%s5353] sm:$0xff] %v5351
    %v5355 = vld [vmem:[#allocation2] sm:$0xc0]
    %v5356 = vld [vmem:[#allocation2 + $0x8] sm:$0xc0]
    %v5357 = vld [vmem:[#allocation2 + $0x10] sm:$0xc0]
    %v5358 = vld [vmem:[#allocation2 + $0x18] sm:$0xc0]
    %v5359 = vld [vmem:[#allocation2 + $0x20] sm:$0x3f]
    %v5360 = vld [vmem:[#allocation2 + $0x28] sm:$0x3f]
    %v5361 = vld [vmem:[#allocation2 + $0x30] sm:$0x3f]
    %v5362 = vld [vmem:[#allocation2 + $0x38] sm:$0x3f]
    %v5363 = vld [vmem:[#allocation5] sm:$0xff]
    %v5364 = vld [vmem:[#allocation5 + $0x8] sm:$0xff]
    %v5365 = vld [vmem:[#allocation5 + $0x10] sm:$0xff]
    %v5366 = vld [vmem:[#allocation5 + $0x18] sm:$0xff]
    %v5367 = vld [vmem:[#allocation5 + $0x20] sm:$0xff]
    %v5368 = vld [vmem:[#allocation5 + $0x28] sm:$0xff]
    %v5369 = vld [vmem:[#allocation5 + $0x30] sm:$0xff]
    %v5370 = vld [vmem:[#allocation5 + $0x38] sm:$0xff]
    %v5371 = vld [vmem:[#allocation5 + $0x40] sm:$0xff]
    %v5372 = vld [vmem:[#allocation5 + $0x48] sm:$0xff]
    %v5373 = vld [vmem:[#allocation5 + $0x50] sm:$0xff]
    %v5374 = vld [vmem:[#allocation5 + $0x58] sm:$0xff]
    %v5375 = vld [vmem:[#allocation5 + $0x60] sm:$0xff]
    %v5376 = vld [vmem:[#allocation5 + $0x68] sm:$0xff]
    %v5377 = vld [vmem:[#allocation5 + $0x70] sm:$0xff]
    %v5378 = vld [vmem:[#allocation5 + $0x78] sm:$0xff]
    %v5379 = vld [vmem:[#allocation5 + $0x80] sm:$0xff]
    %v5380 = vld [vmem:[#allocation5 + $0x88] sm:$0xff]
    %v5381 = vld [vmem:[#allocation5 + $0x90] sm:$0xff]
    %v5382 = vld [vmem:[#allocation5 + $0x98] sm:$0xff]
    %v5383 = vld [vmem:[#allocation5 + $0xa0] sm:$0xff]
    %v5384 = vld [vmem:[#allocation5 + $0xa8] sm:$0xff]
    %v5385 = vld [vmem:[#allocation5 + $0xb0] sm:$0xff]
    %v5386 = vld [vmem:[#allocation5 + $0xb8] sm:$0xff]
    %v5387 = vld [vmem:[#allocation5 + $0xc0] sm:$0xff]
    %v5388 = vld [vmem:[#allocation5 + $0xc8] sm:$0xff]
    %v5389 = vld [vmem:[#allocation5 + $0xd0] sm:$0xff]
    %v5390 = vld [vmem:[#allocation5 + $0xd8] sm:$0xff]
    %v5391 = vld [vmem:[#allocation5 + $0xe0] sm:$0xff]
    %v5392 = vld [vmem:[#allocation5 + $0xe8] sm:$0xff]
    %v5393 = vld [vmem:[#allocation5 + $0xf0] sm:$0xff]
    %v5394 = vld [vmem:[#allocation5 + $0xf8] sm:$0xff]
    %v5427 = vunpack.c.l.b16 %v5363
    %v5428 = vunpack.c.h.b16 %v5363
    %v5429 = vunpack.c.l.b16 %v5364
    %v5430 = vunpack.c.h.b16 %v5364
    %v5431 = vunpack.c.l.b16 %v5365
    %v5432 = vunpack.c.h.b16 %v5365
    %v5433 = vunpack.c.l.b16 %v5366
    %v5434 = vunpack.c.h.b16 %v5366
    %v5435 = vunpack.c.l.b16 %v5367
    %v5436 = vunpack.c.h.b16 %v5367
    %v5437 = vunpack.c.l.b16 %v5368
    %v5438 = vunpack.c.h.b16 %v5368
    %v5439 = vunpack.c.l.b16 %v5369
    %v5440 = vunpack.c.h.b16 %v5369
    %v5441 = vunpack.c.l.b16 %v5370
    %v5442 = vunpack.c.h.b16 %v5370
    %v5443 = vunpack.c.l.b16 %v5371
    %v5444 = vunpack.c.h.b16 %v5371
    %v5445 = vunpack.c.l.b16 %v5372
    %v5446 = vunpack.c.h.b16 %v5372
    %v5447 = vunpack.c.l.b16 %v5373
    %v5448 = vunpack.c.h.b16 %v5373
    %v5449 = vunpack.c.l.b16 %v5374
    %v5450 = vunpack.c.h.b16 %v5374
    %v5451 = vunpack.c.l.b16 %v5375
    %v5452 = vunpack.c.h.b16 %v5375
    %v5453 = vunpack.c.l.b16 %v5376
    %v5454 = vunpack.c.h.b16 %v5376
    %v5455 = vunpack.c.l.b16 %v5377
    %v5456 = vunpack.c.h.b16 %v5377
    %v5457 = vunpack.c.l.b16 %v5378
    %v5458 = vunpack.c.h.b16 %v5378
    %v5459 = vunpack.c.l.b16 %v5379
    %v5460 = vunpack.c.h.b16 %v5379
    %v5461 = vunpack.c.l.b16 %v5380
    %v5462 = vunpack.c.h.b16 %v5380
    %v5463 = vunpack.c.l.b16 %v5381
    %v5464 = vunpack.c.h.b16 %v5381
    %v5465 = vunpack.c.l.b16 %v5382
    %v5466 = vunpack.c.h.b16 %v5382
    %v5467 = vunpack.c.l.b16 %v5383
    %v5468 = vunpack.c.h.b16 %v5383
    %v5469 = vunpack.c.l.b16 %v5384
    %v5470 = vunpack.c.h.b16 %v5384
    %v5471 = vunpack.c.l.b16 %v5385
    %v5472 = vunpack.c.h.b16 %v5385
    %v5473 = vunpack.c.l.b16 %v5386
    %v5474 = vunpack.c.h.b16 %v5386
    %v5475 = vunpack.c.l.b16 %v5387
    %v5476 = vunpack.c.h.b16 %v5387
    %v5477 = vunpack.c.l.b16 %v5388
    %v5478 = vunpack.c.h.b16 %v5388
    %v5479 = vunpack.c.l.b16 %v5389
    %v5480 = vunpack.c.h.b16 %v5389
    %v5481 = vunpack.c.l.b16 %v5390
    %v5482 = vunpack.c.h.b16 %v5390
    %v5483 = vunpack.c.l.b16 %v5391
    %v5484 = vunpack.c.h.b16 %v5391
    %v5485 = vunpack.c.l.b16 %v5392
    %v5486 = vunpack.c.h.b16 %v5392
    %v5487 = vunpack.c.l.b16 %v5393
    %v5488 = vunpack.c.h.b16 %v5393
    %v5489 = vunpack.c.l.b16 %v5394
    %v5490 = vunpack.c.h.b16 %v5394
    %v5491 = vpack.c.b16 %v5431, %v5427
    %v5492 = vpack.c.b16 %v5432, %v5428
    %v5493 = vpack.c.b16 %v5433, %v5429
    %v5494 = vpack.c.b16 %v5434, %v5430
    %v5495 = vpack.c.b16 %v5439, %v5435
    %v5496 = vpack.c.b16 %v5440, %v5436
    %v5497 = vpack.c.b16 %v5441, %v5437
    %v5498 = vpack.c.b16 %v5442, %v5438
    %v5499 = vpack.c.b16 %v5447, %v5443
    %v5500 = vpack.c.b16 %v5448, %v5444
    %v5501 = vpack.c.b16 %v5449, %v5445
    %v5502 = vpack.c.b16 %v5450, %v5446
    %v5503 = vpack.c.b16 %v5455, %v5451
    %v5504 = vpack.c.b16 %v5456, %v5452
    %v5505 = vpack.c.b16 %v5457, %v5453
    %v5506 = vpack.c.b16 %v5458, %v5454
    %v5507 = vpack.c.b16 %v5463, %v5459
    %v5508 = vpack.c.b16 %v5464, %v5460
    %v5509 = vpack.c.b16 %v5465, %v5461
    %v5510 = vpack.c.b16 %v5466, %v5462
    %v5511 = vpack.c.b16 %v5471, %v5467
    %v5512 = vpack.c.b16 %v5472, %v5468
    %v5513 = vpack.c.b16 %v5473, %v5469
    %v5514 = vpack.c.b16 %v5474, %v5470
    %v5515 = vpack.c.b16 %v5479, %v5475
    %v5516 = vpack.c.b16 %v5480, %v5476
    %v5517 = vpack.c.b16 %v5481, %v5477
    %v5518 = vpack.c.b16 %v5482, %v5478
    %v5519 = vpack.c.b16 %v5487, %v5483
    %v5520 = vpack.c.b16 %v5488, %v5484
    %v5521 = vpack.c.b16 %v5489, %v5485
    %v5522 = vpack.c.b16 %v5490, %v5486
    %5555 = vmatprep.subr.bf16.mxu0 %v5520
    %5556 = vmatpush1.bf16.msra.mxu0 %v5519
    %5557 = vmatprep.subr.bf16.mxu0 %v5516
    %5558 = vmatpush1.bf16.msra.mxu0 %v5515
    %5559 = vmatprep.subr.bf16.mxu0 %v5512
    %5560 = vmatpush1.bf16.msra.mxu0 %v5511
    %5561 = vmatprep.subr.bf16.mxu0 %v5508
    %5562 = vmatpush1.bf16.msra.mxu0 %v5507
    %5563 = vmatprep.subr.bf16.mxu0 %v5504
    %5564 = vmatpush1.bf16.msra.mxu0 %v5503
    %5565 = vmatprep.subr.bf16.mxu0 %v5500
    %5566 = vmatpush1.bf16.msra.mxu0 %v5499
    %5567 = vmatprep.subr.bf16.mxu0 %v5496
    %5568 = vmatpush1.bf16.msra.mxu0 %v5495
    %5569 = vmatprep.subr.bf16.mxu0 %v5492
    %5570 = vmatpush1.bf16.msra.mxu0 %v5491
    %5571 = vmatprep.subr.bf16.mxu0 0
    %5572 = vmatpush2.bf16.msra.mxu0 0
    %5573 = vmatprep.subr.bf16.mxu0 0
    %5574 = vmatpush2.bf16.msra.mxu0 0
    %5575 = vmatprep.subr.bf16.mxu0 0
    %5576 = vmatpush2.bf16.msra.mxu0 0
    %5577 = vmatprep.subr.bf16.mxu0 0
    %5578 = vmatpush2.bf16.msra.mxu0 0
    %5579 = vmatprep.subr.bf16.mxu0 0
    %5580 = vmatpush2.bf16.msra.mxu0 0
    %5581 = vmatprep.subr.bf16.mxu0 0
    %5582 = vmatpush2.bf16.msra.mxu0 0
    %5583 = vmatprep.subr.bf16.mxu0 0
    %5584 = vmatpush2.bf16.msra.mxu0 0
    %5585 = vmatprep.subr.bf16.mxu0 0
    %5586 = vmatpush2.bf16.msra.mxu0 0
    %5587 = vmatprep.mubr.bf16.mxu0 0
    %5588 = vmatmul.mubr.bf16.gmra.mxu0 %v4915
    %v5589 = vpop.f32.mrf.mxu0
    %v5590 = vadd.f32 0.0, %v5589
    %v5591 = vpop.f32.mrf.mxu0
    %v5592 = vadd.f32 0.0, %v5591
    %v5593 = vpop.f32.mrf.mxu0
    %v5594 = vpop.f32.mrf.mxu0
    %5595 = vdwg.mxu0
    %5596 = vmatprep.subr.bf16.mxu0 %v5522
    %5597 = vmatpush1.bf16.msra.mxu0 %v5521
    %5598 = vmatprep.subr.bf16.mxu0 %v5518
    %5599 = vmatpush1.bf16.msra.mxu0 %v5517
    %5600 = vmatprep.subr.bf16.mxu0 %v5514
    %5601 = vmatpush1.bf16.msra.mxu0 %v5513
    %5602 = vmatprep.subr.bf16.mxu0 %v5510
    %5603 = vmatpush1.bf16.msra.mxu0 %v5509
    %5604 = vmatprep.subr.bf16.mxu0 %v5506
    %5605 = vmatpush1.bf16.msra.mxu0 %v5505
    %5606 = vmatprep.subr.bf16.mxu0 %v5502
    %5607 = vmatpush1.bf16.msra.mxu0 %v5501
    %5608 = vmatprep.subr.bf16.mxu0 %v5498
    %5609 = vmatpush1.bf16.msra.mxu0 %v5497
    %5610 = vmatprep.subr.bf16.mxu0 %v5494
    %5611 = vmatpush1.bf16.msra.mxu0 %v5493
    %5612 = vmatprep.subr.bf16.mxu0 0
    %5613 = vmatpush2.bf16.msra.mxu0 0
    %5614 = vmatprep.subr.bf16.mxu0 0
    %5615 = vmatpush2.bf16.msra.mxu0 0
    %5616 = vmatprep.subr.bf16.mxu0 0
    %5617 = vmatpush2.bf16.msra.mxu0 0
    %5618 = vmatprep.subr.bf16.mxu0 0
    %5619 = vmatpush2.bf16.msra.mxu0 0
    %5620 = vmatprep.subr.bf16.mxu0 0
    %5621 = vmatpush2.bf16.msra.mxu0 0
    %5622 = vmatprep.subr.bf16.mxu0 0
    %5623 = vmatpush2.bf16.msra.mxu0 0
    %5624 = vmatprep.subr.bf16.mxu0 0
    %5625 = vmatpush2.bf16.msra.mxu0 0
    %5626 = vmatprep.subr.bf16.mxu0 0
    %5627 = vmatpush2.bf16.msra.mxu0 0
    %5628 = vmatprep.mubr.bf16.mxu0 0
    %5629 = vmatmul.mubr.bf16.gmra.mxu0 %v4915
    %v5630 = vpop.f32.mrf.mxu0
    %v5631 = vadd.f32 0.0, %v5630
    %v5632 = vpop.f32.mrf.mxu0
    %v5633 = vadd.f32 0.0, %v5632
    %v5634 = vpop.f32.mrf.mxu0
    %v5635 = vpop.f32.mrf.mxu0
    %5636 = vdwg.mxu0
    %v5641 = vrot.slane %v5590, 2
    %v5642 = vrot.slane %v5592, 2
    %v5643 = vrot.slane %v5631, 2
    %v5644 = vrot.slane %v5633, 2
    %v5649 = vadd.f32 %v5355, %v5641
    %v5650 = vadd.f32 %v5356, %v5642
    %v5651 = vadd.f32 %v5357, %v5643
    %v5652 = vadd.f32 %v5358, %v5644
    %v5653 = vadd.f32 %v5359, %v5641
    %v5654 = vadd.f32 %v5360, %v5642
    %v5655 = vadd.f32 %v5361, %v5643
    %v5656 = vadd.f32 %v5362, %v5644
    %v5657 = vxor.u32 %v5649, 2147483648
    %v5658 = vxor.u32 %v5650, 2147483648
    %v5659 = vxor.u32 %v5651, 2147483648
    %v5660 = vxor.u32 %v5653, 2147483648
    %v5661 = vxor.u32 %v5654, 2147483648
    %v5662 = vxor.u32 %v5655, 2147483648
    %v5663 = vmul.f32 %v5657, 1.442695
    %v5664 = vpow.pop %v5663
    %v5665 = vmul.f32 %v5658, 1.442695
    %v5666 = vpow.pop %v5665
    %v5667 = vmul.f32 %v5659, 1.442695
    %v5668 = vpow.pop %v5667
    %v5669 = vmul.f32 %v5660, 1.442695
    %v5670 = vpow.pop %v5669
    %v5671 = vmul.f32 %v5661, 1.442695
    %v5672 = vpow.pop %v5671
    %v5673 = vmul.f32 %v5662, 1.442695
    %v5674 = vpow.pop %v5673
    %v5675 = vadd.f32 %v5664, 1.0
    %v5676 = vadd.f32 %v5666, 1.0
    %v5677 = vadd.f32 %v5668, 1.0
    %v5678 = vadd.f32 %v5670, 1.0
    %v5679 = vadd.f32 %v5672, 1.0
    %v5680 = vadd.f32 %v5674, 1.0
    %v5681 = vrcp.pop %v5675
    %v5682 = vmul.f32 1.0, %v5681
    %v5683 = vrcp.pop %v5676
    %v5684 = vmul.f32 1.0, %v5683
    %v5685 = vrcp.pop %v5677
    %v5686 = vmul.f32 1.0, %v5685
    %v5687 = vrcp.pop %v5678
    %v5688 = vmul.f32 1.0, %v5687
    %v5689 = vrcp.pop %v5679
    %v5690 = vmul.f32 1.0, %v5689
    %v5691 = vrcp.pop %v5680
    %v5692 = vmul.f32 1.0, %v5691
    %v5693 = vtanh.pop %v5652
    %v5694 = vtanh.pop %v5656
    %v5697 = vrot.slane %v4807, 7
    %v5698 = vrot.slane %v4808, 7
    %v5699 = vsel %vm2138, %v5697, %v5698
    %v5702 = vmul.f32 %v5684, %v5697
    %v5703 = vmul.f32 %v5690, %v5699
    %v5704 = vmul.f32 %v5682, %v5693
    %v5705 = vmul.f32 %v5688, %v5694
    %v5706 = vadd.f32 %v5702, %v5704
    %v5707 = vadd.f32 %v5703, %v5705
    %v5708 = vtanh.pop %v5706
    %v5709 = vtanh.pop %v5707
    %v5710 = vmul.f32 %v5686, %v5708
    %v5711 = vmul.f32 %v5692, %v5709
    %v5712 = vpack.c.bf16 %v5711, %v5710
    %v5714 = vrot.slane %v5352, 5
    %v5715 = vld [vmem:[#allocation7] sm:$0xff]
    %v5716 = vld [vmem:[#allocation7 + $0x8] sm:$0xff]
    %v5717 = vld [vmem:[#allocation7 + $0x10] sm:$0xff]
    %v5718 = vld [vmem:[#allocation7 + $0x18] sm:$0xff]
    %v5719 = vld [vmem:[#allocation7 + $0x20] sm:$0xff]
    %v5720 = vld [vmem:[#allocation7 + $0x28] sm:$0xff]
    %v5721 = vld [vmem:[#allocation7 + $0x30] sm:$0xff]
    %v5722 = vld [vmem:[#allocation7 + $0x38] sm:$0xff]
    %v5723 = vld [vmem:[#allocation7 + $0x40] sm:$0xff]
    %v5724 = vld [vmem:[#allocation7 + $0x48] sm:$0xff]
    %v5725 = vld [vmem:[#allocation7 + $0x50] sm:$0xff]
    %v5726 = vld [vmem:[#allocation7 + $0x58] sm:$0xff]
    %v5727 = vld [vmem:[#allocation7 + $0x60] sm:$0xff]
    %v5728 = vld [vmem:[#allocation7 + $0x68] sm:$0xff]
    %v5729 = vld [vmem:[#allocation7 + $0x70] sm:$0xff]
    %v5730 = vld [vmem:[#allocation7 + $0x78] sm:$0xff]
    %v5731 = vld [vmem:[#allocation7 + $0x80] sm:$0xff]
    %v5732 = vld [vmem:[#allocation7 + $0x88] sm:$0xff]
    %v5733 = vld [vmem:[#allocation7 + $0x90] sm:$0xff]
    %v5734 = vld [vmem:[#allocation7 + $0x98] sm:$0xff]
    %v5735 = vld [vmem:[#allocation7 + $0xa0] sm:$0xff]
    %v5736 = vld [vmem:[#allocation7 + $0xa8] sm:$0xff]
    %v5737 = vld [vmem:[#allocation7 + $0xb0] sm:$0xff]
    %v5738 = vld [vmem:[#allocation7 + $0xb8] sm:$0xff]
    %v5739 = vld [vmem:[#allocation7 + $0xc0] sm:$0xff]
    %v5740 = vld [vmem:[#allocation7 + $0xc8] sm:$0xff]
    %v5741 = vld [vmem:[#allocation7 + $0xd0] sm:$0xff]
    %v5742 = vld [vmem:[#allocation7 + $0xd8] sm:$0xff]
    %v5743 = vld [vmem:[#allocation7 + $0xe0] sm:$0xff]
    %v5744 = vld [vmem:[#allocation7 + $0xe8] sm:$0xff]
    %v5745 = vld [vmem:[#allocation7 + $0xf0] sm:$0xff]
    %v5746 = vld [vmem:[#allocation7 + $0xf8] sm:$0xff]
    %v5747 = vld [vmem:[#allocation7 + $0x100] sm:$0xff]
    %v5748 = vld [vmem:[#allocation7 + $0x108] sm:$0xff]
    %v5749 = vld [vmem:[#allocation7 + $0x110] sm:$0xff]
    %v5750 = vld [vmem:[#allocation7 + $0x118] sm:$0xff]
    %v5751 = vld [vmem:[#allocation7 + $0x120] sm:$0xff]
    %v5752 = vld [vmem:[#allocation7 + $0x128] sm:$0xff]
    %v5753 = vld [vmem:[#allocation7 + $0x130] sm:$0xff]
    %v5754 = vld [vmem:[#allocation7 + $0x138] sm:$0xff]
    %v5755 = vld [vmem:[#allocation7 + $0x140] sm:$0xff]
    %v5756 = vld [vmem:[#allocation7 + $0x148] sm:$0xff]
    %v5757 = vld [vmem:[#allocation7 + $0x150] sm:$0xff]
    %v5758 = vld [vmem:[#allocation7 + $0x158] sm:$0xff]
    %v5759 = vld [vmem:[#allocation7 + $0x160] sm:$0xff]
    %v5760 = vld [vmem:[#allocation7 + $0x168] sm:$0xff]
    %v5761 = vld [vmem:[#allocation7 + $0x170] sm:$0xff]
    %v5762 = vld [vmem:[#allocation7 + $0x178] sm:$0xff]
    %v5763 = vld [vmem:[#allocation7 + $0x180] sm:$0xff]
    %v5764 = vld [vmem:[#allocation7 + $0x188] sm:$0xff]
    %v5765 = vld [vmem:[#allocation7 + $0x190] sm:$0xff]
    %v5766 = vld [vmem:[#allocation7 + $0x198] sm:$0xff]
    %v5767 = vld [vmem:[#allocation7 + $0x1a0] sm:$0xff]
    %v5768 = vld [vmem:[#allocation7 + $0x1a8] sm:$0xff]
    %v5769 = vld [vmem:[#allocation7 + $0x1b0] sm:$0xff]
    %v5770 = vld [vmem:[#allocation7 + $0x1b8] sm:$0xff]
    %v5771 = vld [vmem:[#allocation7 + $0x1c0] sm:$0xff]
    %v5772 = vld [vmem:[#allocation7 + $0x1c8] sm:$0xff]
    %v5773 = vld [vmem:[#allocation7 + $0x1d0] sm:$0xff]
    %v5774 = vld [vmem:[#allocation7 + $0x1d8] sm:$0xff]
    %v5775 = vld [vmem:[#allocation7 + $0x1e0] sm:$0xff]
    %v5776 = vld [vmem:[#allocation7 + $0x1e8] sm:$0xff]
    %v5777 = vld [vmem:[#allocation7 + $0x1f0] sm:$0xff]
    %v5778 = vld [vmem:[#allocation7 + $0x1f8] sm:$0xff]
    %v5779 = vld [vmem:[%s3] sm:$0xf]
    %v5781 = vlaneseq
    %v5782 = vshrl.u32 %v5781, 7
    %v5783 = vsub.s32 0, %v5782
    %v5784 = vrot.slane %v5779, %v5783
    %v5785 = vlaneseq
    %v5786 = vshrl.u32 %v5785, 7
    %v5787 = vsub.s32 1, %v5786
    %v5788 = vrot.slane %v5779, %v5787
    %v5789 = vlaneseq
    %v5790 = vshrl.u32 %v5789, 7
    %v5791 = vsub.s32 2, %v5790
    %v5792 = vrot.slane %v5779, %v5791
    %v5793 = vlaneseq
    %v5794 = vshrl.u32 %v5793, 7
    %v5795 = vsub.s32 3, %v5794
    %v5796 = vrot.slane %v5779, %v5795
    %v5802 = vrot.slane %v5712, 3
    %v5803 = vrot.slane %v5714, 3
    %v5870 = vunpack.c.l.b16 %v5715
    %v5871 = vunpack.c.h.b16 %v5715
    %v5872 = vunpack.c.l.b16 %v5716
    %v5873 = vunpack.c.h.b16 %v5716
    %v5874 = vunpack.c.l.b16 %v5717
    %v5875 = vunpack.c.h.b16 %v5717
    %v5876 = vunpack.c.l.b16 %v5718
    %v5877 = vunpack.c.h.b16 %v5718
    %v5878 = vunpack.c.l.b16 %v5719
    %v5879 = vunpack.c.h.b16 %v5719
    %v5880 = vunpack.c.l.b16 %v5720
    %v5881 = vunpack.c.h.b16 %v5720
    %v5882 = vunpack.c.l.b16 %v5721
    %v5883 = vunpack.c.h.b16 %v5721
    %v5884 = vunpack.c.l.b16 %v5722
    %v5885 = vunpack.c.h.b16 %v5722
    %v5886 = vunpack.c.l.b16 %v5723
    %v5887 = vunpack.c.h.b16 %v5723
    %v5888 = vunpack.c.l.b16 %v5724
    %v5889 = vunpack.c.h.b16 %v5724
    %v5890 = vunpack.c.l.b16 %v5725
    %v5891 = vunpack.c.h.b16 %v5725
    %v5892 = vunpack.c.l.b16 %v5726
    %v5893 = vunpack.c.h.b16 %v5726
    %v5894 = vunpack.c.l.b16 %v5727
    %v5895 = vunpack.c.h.b16 %v5727
    %v5896 = vunpack.c.l.b16 %v5728
    %v5897 = vunpack.c.h.b16 %v5728
    %v5898 = vunpack.c.l.b16 %v5729
    %v5899 = vunpack.c.h.b16 %v5729
    %v5900 = vunpack.c.l.b16 %v5730
    %v5901 = vunpack.c.h.b16 %v5730
    %v5902 = vunpack.c.l.b16 %v5731
    %v5903 = vunpack.c.h.b16 %v5731
    %v5904 = vunpack.c.l.b16 %v5732
    %v5905 = vunpack.c.h.b16 %v5732
    %v5906 = vunpack.c.l.b16 %v5733
    %v5907 = vunpack.c.h.b16 %v5733
    %v5908 = vunpack.c.l.b16 %v5734
    %v5909 = vunpack.c.h.b16 %v5734
    %v5910 = vunpack.c.l.b16 %v5735
    %v5911 = vunpack.c.h.b16 %v5735
    %v5912 = vunpack.c.l.b16 %v5736
    %v5913 = vunpack.c.h.b16 %v5736
    %v5914 = vunpack.c.l.b16 %v5737
    %v5915 = vunpack.c.h.b16 %v5737
    %v5916 = vunpack.c.l.b16 %v5738
    %v5917 = vunpack.c.h.b16 %v5738
    %v5918 = vunpack.c.l.b16 %v5739
    %v5919 = vunpack.c.h.b16 %v5739
    %v5920 = vunpack.c.l.b16 %v5740
    %v5921 = vunpack.c.h.b16 %v5740
    %v5922 = vunpack.c.l.b16 %v5741
    %v5923 = vunpack.c.h.b16 %v5741
    %v5924 = vunpack.c.l.b16 %v5742
    %v5925 = vunpack.c.h.b16 %v5742
    %v5926 = vunpack.c.l.b16 %v5743
    %v5927 = vunpack.c.h.b16 %v5743
    %v5928 = vunpack.c.l.b16 %v5744
    %v5929 = vunpack.c.h.b16 %v5744
    %v5930 = vunpack.c.l.b16 %v5745
    %v5931 = vunpack.c.h.b16 %v5745
    %v5932 = vunpack.c.l.b16 %v5746
    %v5933 = vunpack.c.h.b16 %v5746
    %v5934 = vunpack.c.l.b16 %v5747
    %v5935 = vunpack.c.h.b16 %v5747
    %v5936 = vunpack.c.l.b16 %v5748
    %v5937 = vunpack.c.h.b16 %v5748
    %v5938 = vunpack.c.l.b16 %v5749
    %v5939 = vunpack.c.h.b16 %v5749
    %v5940 = vunpack.c.l.b16 %v5750
    %v5941 = vunpack.c.h.b16 %v5750
    %v5942 = vunpack.c.l.b16 %v5751
    %v5943 = vunpack.c.h.b16 %v5751
    %v5944 = vunpack.c.l.b16 %v5752
    %v5945 = vunpack.c.h.b16 %v5752
    %v5946 = vunpack.c.l.b16 %v5753
    %v5947 = vunpack.c.h.b16 %v5753
    %v5948 = vunpack.c.l.b16 %v5754
    %v5949 = vunpack.c.h.b16 %v5754
    %v5950 = vunpack.c.l.b16 %v5755
    %v5951 = vunpack.c.h.b16 %v5755
    %v5952 = vunpack.c.l.b16 %v5756
    %v5953 = vunpack.c.h.b16 %v5756
    %v5954 = vunpack.c.l.b16 %v5757
    %v5955 = vunpack.c.h.b16 %v5757
    %v5956 = vunpack.c.l.b16 %v5758
    %v5957 = vunpack.c.h.b16 %v5758
    %v5958 = vunpack.c.l.b16 %v5759
    %v5959 = vunpack.c.h.b16 %v5759
    %v5960 = vunpack.c.l.b16 %v5760
    %v5961 = vunpack.c.h.b16 %v5760
    %v5962 = vunpack.c.l.b16 %v5761
    %v5963 = vunpack.c.h.b16 %v5761
    %v5964 = vunpack.c.l.b16 %v5762
    %v5965 = vunpack.c.h.b16 %v5762
    %v5966 = vunpack.c.l.b16 %v5763
    %v5967 = vunpack.c.h.b16 %v5763
    %v5968 = vunpack.c.l.b16 %v5764
    %v5969 = vunpack.c.h.b16 %v5764
    %v5970 = vunpack.c.l.b16 %v5765
    %v5971 = vunpack.c.h.b16 %v5765
    %v5972 = vunpack.c.l.b16 %v5766
    %v5973 = vunpack.c.h.b16 %v5766
    %v5974 = vunpack.c.l.b16 %v5767
    %v5975 = vunpack.c.h.b16 %v5767
    %v5976 = vunpack.c.l.b16 %v5768
    %v5977 = vunpack.c.h.b16 %v5768
    %v5978 = vunpack.c.l.b16 %v5769
    %v5979 = vunpack.c.h.b16 %v5769
    %v5980 = vunpack.c.l.b16 %v5770
    %v5981 = vunpack.c.h.b16 %v5770
    %v5982 = vunpack.c.l.b16 %v5771
    %v5983 = vunpack.c.h.b16 %v5771
    %v5984 = vunpack.c.l.b16 %v5772
    %v5985 = vunpack.c.h.b16 %v5772
    %v5986 = vunpack.c.l.b16 %v5773
    %v5987 = vunpack.c.h.b16 %v5773
    %v5988 = vunpack.c.l.b16 %v5774
    %v5989 = vunpack.c.h.b16 %v5774
    %v5990 = vunpack.c.l.b16 %v5775
    %v5991 = vunpack.c.h.b16 %v5775
    %v5992 = vunpack.c.l.b16 %v5776
    %v5993 = vunpack.c.h.b16 %v5776
    %v5994 = vunpack.c.l.b16 %v5777
    %v5995 = vunpack.c.h.b16 %v5777
    %v5996 = vunpack.c.l.b16 %v5778
    %v5997 = vunpack.c.h.b16 %v5778
    %v5998 = vpack.c.b16 %v5874, %v5870
    %v5999 = vpack.c.b16 %v5875, %v5871
    %v6000 = vpack.c.b16 %v5876, %v5872
    %v6001 = vpack.c.b16 %v5877, %v5873
    %v6002 = vpack.c.b16 %v5882, %v5878
    %v6003 = vpack.c.b16 %v5883, %v5879
    %v6004 = vpack.c.b16 %v5884, %v5880
    %v6005 = vpack.c.b16 %v5885, %v5881
    %v6006 = vpack.c.b16 %v5890, %v5886
    %v6007 = vpack.c.b16 %v5891, %v5887
    %v6008 = vpack.c.b16 %v5892, %v5888
    %v6009 = vpack.c.b16 %v5893, %v5889
    %v6010 = vpack.c.b16 %v5898, %v5894
    %v6011 = vpack.c.b16 %v5899, %v5895
    %v6012 = vpack.c.b16 %v5900, %v5896
    %v6013 = vpack.c.b16 %v5901, %v5897
    %v6014 = vpack.c.b16 %v5906, %v5902
    %v6015 = vpack.c.b16 %v5907, %v5903
    %v6016 = vpack.c.b16 %v5908, %v5904
    %v6017 = vpack.c.b16 %v5909, %v5905
    %v6018 = vpack.c.b16 %v5914, %v5910
    %v6019 = vpack.c.b16 %v5915, %v5911
    %v6020 = vpack.c.b16 %v5916, %v5912
    %v6021 = vpack.c.b16 %v5917, %v5913
    %v6022 = vpack.c.b16 %v5922, %v5918
    %v6023 = vpack.c.b16 %v5923, %v5919
    %v6024 = vpack.c.b16 %v5924, %v5920
    %v6025 = vpack.c.b16 %v5925, %v5921
    %v6026 = vpack.c.b16 %v5930, %v5926
    %v6027 = vpack.c.b16 %v5931, %v5927
    %v6028 = vpack.c.b16 %v5932, %v5928
    %v6029 = vpack.c.b16 %v5933, %v5929
    %v6030 = vpack.c.b16 %v5938, %v5934
    %v6031 = vpack.c.b16 %v5939, %v5935
    %v6032 = vpack.c.b16 %v5940, %v5936
    %v6033 = vpack.c.b16 %v5941, %v5937
    %v6034 = vpack.c.b16 %v5946, %v5942
    %v6035 = vpack.c.b16 %v5947, %v5943
    %v6036 = vpack.c.b16 %v5948, %v5944
    %v6037 = vpack.c.b16 %v5949, %v5945
    %v6038 = vpack.c.b16 %v5954, %v5950
    %v6039 = vpack.c.b16 %v5955, %v5951
    %v6040 = vpack.c.b16 %v5956, %v5952
    %v6041 = vpack.c.b16 %v5957, %v5953
    %v6042 = vpack.c.b16 %v5962, %v5958
    %v6043 = vpack.c.b16 %v5963, %v5959
    %v6044 = vpack.c.b16 %v5964, %v5960
    %v6045 = vpack.c.b16 %v5965, %v5961
    %v6046 = vpack.c.b16 %v5970, %v5966
    %v6047 = vpack.c.b16 %v5971, %v5967
    %v6048 = vpack.c.b16 %v5972, %v5968
    %v6049 = vpack.c.b16 %v5973, %v5969
    %v6050 = vpack.c.b16 %v5978, %v5974
    %v6051 = vpack.c.b16 %v5979, %v5975
    %v6052 = vpack.c.b16 %v5980, %v5976
    %v6053 = vpack.c.b16 %v5981, %v5977
    %v6054 = vpack.c.b16 %v5986, %v5982
    %v6055 = vpack.c.b16 %v5987, %v5983
    %v6056 = vpack.c.b16 %v5988, %v5984
    %v6057 = vpack.c.b16 %v5989, %v5985
    %v6058 = vpack.c.b16 %v5994, %v5990
    %v6059 = vpack.c.b16 %v5995, %v5991
    %v6060 = vpack.c.b16 %v5996, %v5992
    %v6061 = vpack.c.b16 %v5997, %v5993
    %6126 = vmatprep.subr.bf16.mxu0 %v6027
    %6127 = vmatpush1.bf16.msra.mxu0 %v6026
    %6128 = vmatprep.subr.bf16.mxu0 %v6023
    %6129 = vmatpush1.bf16.msra.mxu0 %v6022
    %6130 = vmatprep.subr.bf16.mxu0 %v6019
    %6131 = vmatpush1.bf16.msra.mxu0 %v6018
    %6132 = vmatprep.subr.bf16.mxu0 %v6015
    %6133 = vmatpush1.bf16.msra.mxu0 %v6014
    %6134 = vmatprep.subr.bf16.mxu0 %v6011
    %6135 = vmatpush1.bf16.msra.mxu0 %v6010
    %6136 = vmatprep.subr.bf16.mxu0 %v6007
    %6137 = vmatpush1.bf16.msra.mxu0 %v6006
    %6138 = vmatprep.subr.bf16.mxu0 %v6003
    %6139 = vmatpush1.bf16.msra.mxu0 %v6002
    %6140 = vmatprep.subr.bf16.mxu0 %v5999
    %6141 = vmatpush1.bf16.msra.mxu0 %v5998
    %6142 = vmatprep.subr.bf16.mxu0 %v6059
    %6143 = vmatpush2.bf16.msra.mxu0 %v6058
    %6144 = vmatprep.subr.bf16.mxu0 %v6055
    %6145 = vmatpush2.bf16.msra.mxu0 %v6054
    %6146 = vmatprep.subr.bf16.mxu0 %v6051
    %6147 = vmatpush2.bf16.msra.mxu0 %v6050
    %6148 = vmatprep.subr.bf16.mxu0 %v6047
    %6149 = vmatpush2.bf16.msra.mxu0 %v6046
    %6150 = vmatprep.subr.bf16.mxu0 %v6043
    %6151 = vmatpush2.bf16.msra.mxu0 %v6042
    %6152 = vmatprep.subr.bf16.mxu0 %v6039
    %6153 = vmatpush2.bf16.msra.mxu0 %v6038
    %6154 = vmatprep.subr.bf16.mxu0 %v6035
    %6155 = vmatpush2.bf16.msra.mxu0 %v6034
    %6156 = vmatprep.subr.bf16.mxu0 %v6031
    %6157 = vmatpush2.bf16.msra.mxu0 %v6030
    %6158 = vmatprep.mubr.bf16.mxu0 %v5803
    %6159 = vmatmul.mubr.bf16.gmra.mxu0 %v5802
    %v6160 = vpop.f32.mrf.mxu0
    %v6161 = vadd.f32 %v5784, %v6160
    %v6162 = vpop.f32.mrf.mxu0
    %v6163 = vadd.f32 %v5788, %v6162
    %v6164 = vpop.f32.mrf.mxu0
    %v6165 = vpop.f32.mrf.mxu0
    %6166 = vdwg.mxu0
    %6167 = vmatprep.subr.bf16.mxu0 %v6029
    %6168 = vmatpush1.bf16.msra.mxu0 %v6028
    %6169 = vmatprep.subr.bf16.mxu0 %v6025
    %6170 = vmatpush1.bf16.msra.mxu0 %v6024
    %6171 = vmatprep.subr.bf16.mxu0 %v6021
    %6172 = vmatpush1.bf16.msra.mxu0 %v6020
    %6173 = vmatprep.subr.bf16.mxu0 %v6017
    %6174 = vmatpush1.bf16.msra.mxu0 %v6016
    %6175 = vmatprep.subr.bf16.mxu0 %v6013
    %6176 = vmatpush1.bf16.msra.mxu0 %v6012
    %6177 = vmatprep.subr.bf16.mxu0 %v6009
    %6178 = vmatpush1.bf16.msra.mxu0 %v6008
    %6179 = vmatprep.subr.bf16.mxu0 %v6005
    %6180 = vmatpush1.bf16.msra.mxu0 %v6004
    %6181 = vmatprep.subr.bf16.mxu0 %v6001
    %6182 = vmatpush1.bf16.msra.mxu0 %v6000
    %6183 = vmatprep.subr.bf16.mxu0 %v6061
    %6184 = vmatpush2.bf16.msra.mxu0 %v6060
    %6185 = vmatprep.subr.bf16.mxu0 %v6057
    %6186 = vmatpush2.bf16.msra.mxu0 %v6056
    %6187 = vmatprep.subr.bf16.mxu0 %v6053
    %6188 = vmatpush2.bf16.msra.mxu0 %v6052
    %6189 = vmatprep.subr.bf16.mxu0 %v6049
    %6190 = vmatpush2.bf16.msra.mxu0 %v6048
    %6191 = vmatprep.subr.bf16.mxu0 %v6045
    %6192 = vmatpush2.bf16.msra.mxu0 %v6044
    %6193 = vmatprep.subr.bf16.mxu0 %v6041
    %6194 = vmatpush2.bf16.msra.mxu0 %v6040
    %6195 = vmatprep.subr.bf16.mxu0 %v6037
    %6196 = vmatpush2.bf16.msra.mxu0 %v6036
    %6197 = vmatprep.subr.bf16.mxu0 %v6033
    %6198 = vmatpush2.bf16.msra.mxu0 %v6032
    %6199 = vmatprep.mubr.bf16.mxu0 %v5803
    %6200 = vmatmul.mubr.bf16.gmra.mxu0 %v5802
    %v6201 = vpop.f32.mrf.mxu0
    %v6202 = vadd.f32 %v5792, %v6201
    %v6203 = vpop.f32.mrf.mxu0
    %v6204 = vadd.f32 %v5796, %v6203
    %v6205 = vpop.f32.mrf.mxu0
    %v6206 = vpop.f32.mrf.mxu0
    %6207 = vdwg.mxu0
    %v6208 = vxor.u32 %v6161, 2147483648
    %v6209 = vxor.u32 %v6163, 2147483648
    %v6210 = vxor.u32 %v6202, 2147483648
    %v6211 = vmul.f32 %v6208, 1.442695
    %v6212 = vpow.pop %v6211
    %v6213 = vmul.f32 %v6209, 1.442695
    %v6214 = vpow.pop %v6213
    %v6215 = vmul.f32 %v6210, 1.442695
    %v6216 = vpow.pop %v6215
    %v6217 = vadd.f32 %v6212, 1.0
    %v6218 = vadd.f32 %v6214, 1.0
    %v6219 = vadd.f32 %v6216, 1.0
    %v6220 = vrcp.pop %v6217
    %v6221 = vmul.f32 1.0, %v6220
    %v6222 = vrcp.pop %v6218
    %v6223 = vmul.f32 1.0, %v6222
    %v6224 = vrcp.pop %v6219
    %v6225 = vmul.f32 1.0, %v6224
    %v6226 = vtanh.pop %v6204
    %v6227 = vmul.f32 %v6223, %v5349
    %v6228 = vmul.f32 %v6221, %v6226
    %v6229 = vadd.f32 %v6227, %v6228
    %v6230 = vtanh.pop %v6229
    %v6231 = vmul.f32 %v6225, %v6230
    %v6232 = vpack.c.bf16 %v6231, %v6231
    %s6233 = scalar_lea.vmem [#allocation10], 48
    %6234 = vst [vmem:[%s6233] sm:$0xff] %v6231
    %v6235 = vld [vmem:[#allocation2] sm:$0x80]
    %v6236 = vld [vmem:[#allocation2 + $0x8] sm:$0x80]
    %v6237 = vld [vmem:[#allocation2 + $0x10] sm:$0x80]
    %v6238 = vld [vmem:[#allocation2 + $0x18] sm:$0x80]
    %v6239 = vld [vmem:[#allocation2 + $0x20] sm:$0x7f]
    %v6240 = vld [vmem:[#allocation2 + $0x28] sm:$0x7f]
    %v6241 = vld [vmem:[#allocation2 + $0x30] sm:$0x7f]
    %v6242 = vld [vmem:[#allocation2 + $0x38] sm:$0x7f]
    %v6243 = vld [vmem:[#allocation5] sm:$0xff]
    %v6244 = vld [vmem:[#allocation5 + $0x8] sm:$0xff]
    %v6245 = vld [vmem:[#allocation5 + $0x10] sm:$0xff]
    %v6246 = vld [vmem:[#allocation5 + $0x18] sm:$0xff]
    %v6247 = vld [vmem:[#allocation5 + $0x20] sm:$0xff]
    %v6248 = vld [vmem:[#allocation5 + $0x28] sm:$0xff]
    %v6249 = vld [vmem:[#allocation5 + $0x30] sm:$0xff]
    %v6250 = vld [vmem:[#allocation5 + $0x38] sm:$0xff]
    %v6251 = vld [vmem:[#allocation5 + $0x40] sm:$0xff]
    %v6252 = vld [vmem:[#allocation5 + $0x48] sm:$0xff]
    %v6253 = vld [vmem:[#allocation5 + $0x50] sm:$0xff]
    %v6254 = vld [vmem:[#allocation5 + $0x58] sm:$0xff]
    %v6255 = vld [vmem:[#allocation5 + $0x60] sm:$0xff]
    %v6256 = vld [vmem:[#allocation5 + $0x68] sm:$0xff]
    %v6257 = vld [vmem:[#allocation5 + $0x70] sm:$0xff]
    %v6258 = vld [vmem:[#allocation5 + $0x78] sm:$0xff]
    %v6259 = vld [vmem:[#allocation5 + $0x80] sm:$0xff]
    %v6260 = vld [vmem:[#allocation5 + $0x88] sm:$0xff]
    %v6261 = vld [vmem:[#allocation5 + $0x90] sm:$0xff]
    %v6262 = vld [vmem:[#allocation5 + $0x98] sm:$0xff]
    %v6263 = vld [vmem:[#allocation5 + $0xa0] sm:$0xff]
    %v6264 = vld [vmem:[#allocation5 + $0xa8] sm:$0xff]
    %v6265 = vld [vmem:[#allocation5 + $0xb0] sm:$0xff]
    %v6266 = vld [vmem:[#allocation5 + $0xb8] sm:$0xff]
    %v6267 = vld [vmem:[#allocation5 + $0xc0] sm:$0xff]
    %v6268 = vld [vmem:[#allocation5 + $0xc8] sm:$0xff]
    %v6269 = vld [vmem:[#allocation5 + $0xd0] sm:$0xff]
    %v6270 = vld [vmem:[#allocation5 + $0xd8] sm:$0xff]
    %v6271 = vld [vmem:[#allocation5 + $0xe0] sm:$0xff]
    %v6272 = vld [vmem:[#allocation5 + $0xe8] sm:$0xff]
    %v6273 = vld [vmem:[#allocation5 + $0xf0] sm:$0xff]
    %v6274 = vld [vmem:[#allocation5 + $0xf8] sm:$0xff]
    %v6307 = vunpack.c.l.b16 %v6243
    %v6308 = vunpack.c.h.b16 %v6243
    %v6309 = vunpack.c.l.b16 %v6244
    %v6310 = vunpack.c.h.b16 %v6244
    %v6311 = vunpack.c.l.b16 %v6245
    %v6312 = vunpack.c.h.b16 %v6245
    %v6313 = vunpack.c.l.b16 %v6246
    %v6314 = vunpack.c.h.b16 %v6246
    %v6315 = vunpack.c.l.b16 %v6247
    %v6316 = vunpack.c.h.b16 %v6247
    %v6317 = vunpack.c.l.b16 %v6248
    %v6318 = vunpack.c.h.b16 %v6248
    %v6319 = vunpack.c.l.b16 %v6249
    %v6320 = vunpack.c.h.b16 %v6249
    %v6321 = vunpack.c.l.b16 %v6250
    %v6322 = vunpack.c.h.b16 %v6250
    %v6323 = vunpack.c.l.b16 %v6251
    %v6324 = vunpack.c.h.b16 %v6251
    %v6325 = vunpack.c.l.b16 %v6252
    %v6326 = vunpack.c.h.b16 %v6252
    %v6327 = vunpack.c.l.b16 %v6253
    %v6328 = vunpack.c.h.b16 %v6253
    %v6329 = vunpack.c.l.b16 %v6254
    %v6330 = vunpack.c.h.b16 %v6254
    %v6331 = vunpack.c.l.b16 %v6255
    %v6332 = vunpack.c.h.b16 %v6255
    %v6333 = vunpack.c.l.b16 %v6256
    %v6334 = vunpack.c.h.b16 %v6256
    %v6335 = vunpack.c.l.b16 %v6257
    %v6336 = vunpack.c.h.b16 %v6257
    %v6337 = vunpack.c.l.b16 %v6258
    %v6338 = vunpack.c.h.b16 %v6258
    %v6339 = vunpack.c.l.b16 %v6259
    %v6340 = vunpack.c.h.b16 %v6259
    %v6341 = vunpack.c.l.b16 %v6260
    %v6342 = vunpack.c.h.b16 %v6260
    %v6343 = vunpack.c.l.b16 %v6261
    %v6344 = vunpack.c.h.b16 %v6261
    %v6345 = vunpack.c.l.b16 %v6262
    %v6346 = vunpack.c.h.b16 %v6262
    %v6347 = vunpack.c.l.b16 %v6263
    %v6348 = vunpack.c.h.b16 %v6263
    %v6349 = vunpack.c.l.b16 %v6264
    %v6350 = vunpack.c.h.b16 %v6264
    %v6351 = vunpack.c.l.b16 %v6265
    %v6352 = vunpack.c.h.b16 %v6265
    %v6353 = vunpack.c.l.b16 %v6266
    %v6354 = vunpack.c.h.b16 %v6266
    %v6355 = vunpack.c.l.b16 %v6267
    %v6356 = vunpack.c.h.b16 %v6267
    %v6357 = vunpack.c.l.b16 %v6268
    %v6358 = vunpack.c.h.b16 %v6268
    %v6359 = vunpack.c.l.b16 %v6269
    %v6360 = vunpack.c.h.b16 %v6269
    %v6361 = vunpack.c.l.b16 %v6270
    %v6362 = vunpack.c.h.b16 %v6270
    %v6363 = vunpack.c.l.b16 %v6271
    %v6364 = vunpack.c.h.b16 %v6271
    %v6365 = vunpack.c.l.b16 %v6272
    %v6366 = vunpack.c.h.b16 %v6272
    %v6367 = vunpack.c.l.b16 %v6273
    %v6368 = vunpack.c.h.b16 %v6273
    %v6369 = vunpack.c.l.b16 %v6274
    %v6370 = vunpack.c.h.b16 %v6274
    %v6371 = vpack.c.b16 %v6311, %v6307
    %v6372 = vpack.c.b16 %v6312, %v6308
    %v6373 = vpack.c.b16 %v6313, %v6309
    %v6374 = vpack.c.b16 %v6314, %v6310
    %v6375 = vpack.c.b16 %v6319, %v6315
    %v6376 = vpack.c.b16 %v6320, %v6316
    %v6377 = vpack.c.b16 %v6321, %v6317
    %v6378 = vpack.c.b16 %v6322, %v6318
    %v6379 = vpack.c.b16 %v6327, %v6323
    %v6380 = vpack.c.b16 %v6328, %v6324
    %v6381 = vpack.c.b16 %v6329, %v6325
    %v6382 = vpack.c.b16 %v6330, %v6326
    %v6383 = vpack.c.b16 %v6335, %v6331
    %v6384 = vpack.c.b16 %v6336, %v6332
    %v6385 = vpack.c.b16 %v6337, %v6333
    %v6386 = vpack.c.b16 %v6338, %v6334
    %v6387 = vpack.c.b16 %v6343, %v6339
    %v6388 = vpack.c.b16 %v6344, %v6340
    %v6389 = vpack.c.b16 %v6345, %v6341
    %v6390 = vpack.c.b16 %v6346, %v6342
    %v6391 = vpack.c.b16 %v6351, %v6347
    %v6392 = vpack.c.b16 %v6352, %v6348
    %v6393 = vpack.c.b16 %v6353, %v6349
    %v6394 = vpack.c.b16 %v6354, %v6350
    %v6395 = vpack.c.b16 %v6359, %v6355
    %v6396 = vpack.c.b16 %v6360, %v6356
    %v6397 = vpack.c.b16 %v6361, %v6357
    %v6398 = vpack.c.b16 %v6362, %v6358
    %v6399 = vpack.c.b16 %v6367, %v6363
    %v6400 = vpack.c.b16 %v6368, %v6364
    %v6401 = vpack.c.b16 %v6369, %v6365
    %v6402 = vpack.c.b16 %v6370, %v6366
    %6435 = vmatprep.subr.bf16.mxu0 %v6400
    %6436 = vmatpush1.bf16.msra.mxu0 %v6399
    %6437 = vmatprep.subr.bf16.mxu0 %v6396
    %6438 = vmatpush1.bf16.msra.mxu0 %v6395
    %6439 = vmatprep.subr.bf16.mxu0 %v6392
    %6440 = vmatpush1.bf16.msra.mxu0 %v6391
    %6441 = vmatprep.subr.bf16.mxu0 %v6388
    %6442 = vmatpush1.bf16.msra.mxu0 %v6387
    %6443 = vmatprep.subr.bf16.mxu0 %v6384
    %6444 = vmatpush1.bf16.msra.mxu0 %v6383
    %6445 = vmatprep.subr.bf16.mxu0 %v6380
    %6446 = vmatpush1.bf16.msra.mxu0 %v6379
    %6447 = vmatprep.subr.bf16.mxu0 %v6376
    %6448 = vmatpush1.bf16.msra.mxu0 %v6375
    %6449 = vmatprep.subr.bf16.mxu0 %v6372
    %6450 = vmatpush1.bf16.msra.mxu0 %v6371
    %6451 = vmatprep.subr.bf16.mxu0 0
    %6452 = vmatpush2.bf16.msra.mxu0 0
    %6453 = vmatprep.subr.bf16.mxu0 0
    %6454 = vmatpush2.bf16.msra.mxu0 0
    %6455 = vmatprep.subr.bf16.mxu0 0
    %6456 = vmatpush2.bf16.msra.mxu0 0
    %6457 = vmatprep.subr.bf16.mxu0 0
    %6458 = vmatpush2.bf16.msra.mxu0 0
    %6459 = vmatprep.subr.bf16.mxu0 0
    %6460 = vmatpush2.bf16.msra.mxu0 0
    %6461 = vmatprep.subr.bf16.mxu0 0
    %6462 = vmatpush2.bf16.msra.mxu0 0
    %6463 = vmatprep.subr.bf16.mxu0 0
    %6464 = vmatpush2.bf16.msra.mxu0 0
    %6465 = vmatprep.subr.bf16.mxu0 0
    %6466 = vmatpush2.bf16.msra.mxu0 0
    %6467 = vmatprep.mubr.bf16.mxu0 0
    %6468 = vmatmul.mubr.bf16.gmra.mxu0 %v5802
    %v6469 = vpop.f32.mrf.mxu0
    %v6470 = vadd.f32 0.0, %v6469
    %v6471 = vpop.f32.mrf.mxu0
    %v6472 = vadd.f32 0.0, %v6471
    %v6473 = vpop.f32.mrf.mxu0
    %v6474 = vpop.f32.mrf.mxu0
    %6475 = vdwg.mxu0
    %6476 = vmatprep.subr.bf16.mxu0 %v6402
    %6477 = vmatpush1.bf16.msra.mxu0 %v6401
    %6478 = vmatprep.subr.bf16.mxu0 %v6398
    %6479 = vmatpush1.bf16.msra.mxu0 %v6397
    %6480 = vmatprep.subr.bf16.mxu0 %v6394
    %6481 = vmatpush1.bf16.msra.mxu0 %v6393
    %6482 = vmatprep.subr.bf16.mxu0 %v6390
    %6483 = vmatpush1.bf16.msra.mxu0 %v6389
    %6484 = vmatprep.subr.bf16.mxu0 %v6386
    %6485 = vmatpush1.bf16.msra.mxu0 %v6385
    %6486 = vmatprep.subr.bf16.mxu0 %v6382
    %6487 = vmatpush1.bf16.msra.mxu0 %v6381
    %6488 = vmatprep.subr.bf16.mxu0 %v6378
    %6489 = vmatpush1.bf16.msra.mxu0 %v6377
    %6490 = vmatprep.subr.bf16.mxu0 %v6374
    %6491 = vmatpush1.bf16.msra.mxu0 %v6373
    %6492 = vmatprep.subr.bf16.mxu0 0
    %6493 = vmatpush2.bf16.msra.mxu0 0
    %6494 = vmatprep.subr.bf16.mxu0 0
    %6495 = vmatpush2.bf16.msra.mxu0 0
    %6496 = vmatprep.subr.bf16.mxu0 0
    %6497 = vmatpush2.bf16.msra.mxu0 0
    %6498 = vmatprep.subr.bf16.mxu0 0
    %6499 = vmatpush2.bf16.msra.mxu0 0
    %6500 = vmatprep.subr.bf16.mxu0 0
    %6501 = vmatpush2.bf16.msra.mxu0 0
    %6502 = vmatprep.subr.bf16.mxu0 0
    %6503 = vmatpush2.bf16.msra.mxu0 0
    %6504 = vmatprep.subr.bf16.mxu0 0
    %6505 = vmatpush2.bf16.msra.mxu0 0
    %6506 = vmatprep.subr.bf16.mxu0 0
    %6507 = vmatpush2.bf16.msra.mxu0 0
    %6508 = vmatprep.mubr.bf16.mxu0 0
    %6509 = vmatmul.mubr.bf16.gmra.mxu0 %v5802
    %v6510 = vpop.f32.mrf.mxu0
    %v6511 = vadd.f32 0.0, %v6510
    %v6512 = vpop.f32.mrf.mxu0
    %v6513 = vadd.f32 0.0, %v6512
    %v6514 = vpop.f32.mrf.mxu0
    %v6515 = vpop.f32.mrf.mxu0
    %6516 = vdwg.mxu0
    %v6521 = vrot.slane %v6470, 1
    %v6522 = vrot.slane %v6472, 1
    %v6523 = vrot.slane %v6511, 1
    %v6524 = vrot.slane %v6513, 1
    %v6529 = vadd.f32 %v6235, %v6521
    %v6530 = vadd.f32 %v6236, %v6522
    %v6531 = vadd.f32 %v6237, %v6523
    %v6532 = vadd.f32 %v6238, %v6524
    %v6533 = vadd.f32 %v6239, %v6521
    %v6534 = vadd.f32 %v6240, %v6522
    %v6535 = vadd.f32 %v6241, %v6523
    %v6536 = vadd.f32 %v6242, %v6524
    %v6537 = vxor.u32 %v6529, 2147483648
    %v6538 = vxor.u32 %v6530, 2147483648
    %v6539 = vxor.u32 %v6531, 2147483648
    %v6540 = vxor.u32 %v6533, 2147483648
    %v6541 = vxor.u32 %v6534, 2147483648
    %v6542 = vxor.u32 %v6535, 2147483648
    %v6543 = vmul.f32 %v6537, 1.442695
    %v6544 = vpow.pop %v6543
    %v6545 = vmul.f32 %v6538, 1.442695
    %v6546 = vpow.pop %v6545
    %v6547 = vmul.f32 %v6539, 1.442695
    %v6548 = vpow.pop %v6547
    %v6549 = vmul.f32 %v6540, 1.442695
    %v6550 = vpow.pop %v6549
    %v6551 = vmul.f32 %v6541, 1.442695
    %v6552 = vpow.pop %v6551
    %v6553 = vmul.f32 %v6542, 1.442695
    %v6554 = vpow.pop %v6553
    %v6555 = vadd.f32 %v6544, 1.0
    %v6556 = vadd.f32 %v6546, 1.0
    %v6557 = vadd.f32 %v6548, 1.0
    %v6558 = vadd.f32 %v6550, 1.0
    %v6559 = vadd.f32 %v6552, 1.0
    %v6560 = vadd.f32 %v6554, 1.0
    %v6561 = vrcp.pop %v6555
    %v6562 = vmul.f32 1.0, %v6561
    %v6563 = vrcp.pop %v6556
    %v6564 = vmul.f32 1.0, %v6563
    %v6565 = vrcp.pop %v6557
    %v6566 = vmul.f32 1.0, %v6565
    %v6567 = vrcp.pop %v6558
    %v6568 = vmul.f32 1.0, %v6567
    %v6569 = vrcp.pop %v6559
    %v6570 = vmul.f32 1.0, %v6569
    %v6571 = vrcp.pop %v6560
    %v6572 = vmul.f32 1.0, %v6571
    %v6573 = vtanh.pop %v6532
    %v6574 = vtanh.pop %v6536
    %v6577 = vrot.slane %v5706, 7
    %v6578 = vrot.slane %v5707, 7
    %v6579 = vsel %vm2138, %v6577, %v6578
    %v6582 = vmul.f32 %v6564, %v6577
    %v6583 = vmul.f32 %v6570, %v6579
    %v6584 = vmul.f32 %v6562, %v6573
    %v6585 = vmul.f32 %v6568, %v6574
    %v6586 = vadd.f32 %v6582, %v6584
    %v6587 = vadd.f32 %v6583, %v6585
    %v6588 = vtanh.pop %v6586
    %v6589 = vtanh.pop %v6587
    %v6590 = vmul.f32 %v6566, %v6588
    %v6591 = vmul.f32 %v6572, %v6589
    %v6592 = vpack.c.bf16 %v6591, %v6590
    %v6594 = vshrl.u32 %v6232, 16
    %v6596 = vrot.slane %v6594, 4
    %v6597 = vshll.u32 %v6232, 16
    %v6599 = vrot.slane %v6597, 5
    %v6600 = vor.u32 %v6596, %v6599
    %v6601 = vld [vmem:[#allocation7] sm:$0xff]
    %v6602 = vld [vmem:[#allocation7 + $0x8] sm:$0xff]
    %v6603 = vld [vmem:[#allocation7 + $0x10] sm:$0xff]
    %v6604 = vld [vmem:[#allocation7 + $0x18] sm:$0xff]
    %v6605 = vld [vmem:[#allocation7 + $0x20] sm:$0xff]
    %v6606 = vld [vmem:[#allocation7 + $0x28] sm:$0xff]
    %v6607 = vld [vmem:[#allocation7 + $0x30] sm:$0xff]
    %v6608 = vld [vmem:[#allocation7 + $0x38] sm:$0xff]
    %v6609 = vld [vmem:[#allocation7 + $0x40] sm:$0xff]
    %v6610 = vld [vmem:[#allocation7 + $0x48] sm:$0xff]
    %v6611 = vld [vmem:[#allocation7 + $0x50] sm:$0xff]
    %v6612 = vld [vmem:[#allocation7 + $0x58] sm:$0xff]
    %v6613 = vld [vmem:[#allocation7 + $0x60] sm:$0xff]
    %v6614 = vld [vmem:[#allocation7 + $0x68] sm:$0xff]
    %v6615 = vld [vmem:[#allocation7 + $0x70] sm:$0xff]
    %v6616 = vld [vmem:[#allocation7 + $0x78] sm:$0xff]
    %v6617 = vld [vmem:[#allocation7 + $0x80] sm:$0xff]
    %v6618 = vld [vmem:[#allocation7 + $0x88] sm:$0xff]
    %v6619 = vld [vmem:[#allocation7 + $0x90] sm:$0xff]
    %v6620 = vld [vmem:[#allocation7 + $0x98] sm:$0xff]
    %v6621 = vld [vmem:[#allocation7 + $0xa0] sm:$0xff]
    %v6622 = vld [vmem:[#allocation7 + $0xa8] sm:$0xff]
    %v6623 = vld [vmem:[#allocation7 + $0xb0] sm:$0xff]
    %v6624 = vld [vmem:[#allocation7 + $0xb8] sm:$0xff]
    %v6625 = vld [vmem:[#allocation7 + $0xc0] sm:$0xff]
    %v6626 = vld [vmem:[#allocation7 + $0xc8] sm:$0xff]
    %v6627 = vld [vmem:[#allocation7 + $0xd0] sm:$0xff]
    %v6628 = vld [vmem:[#allocation7 + $0xd8] sm:$0xff]
    %v6629 = vld [vmem:[#allocation7 + $0xe0] sm:$0xff]
    %v6630 = vld [vmem:[#allocation7 + $0xe8] sm:$0xff]
    %v6631 = vld [vmem:[#allocation7 + $0xf0] sm:$0xff]
    %v6632 = vld [vmem:[#allocation7 + $0xf8] sm:$0xff]
    %v6633 = vld [vmem:[#allocation7 + $0x100] sm:$0xff]
    %v6634 = vld [vmem:[#allocation7 + $0x108] sm:$0xff]
    %v6635 = vld [vmem:[#allocation7 + $0x110] sm:$0xff]
    %v6636 = vld [vmem:[#allocation7 + $0x118] sm:$0xff]
    %v6637 = vld [vmem:[#allocation7 + $0x120] sm:$0xff]
    %v6638 = vld [vmem:[#allocation7 + $0x128] sm:$0xff]
    %v6639 = vld [vmem:[#allocation7 + $0x130] sm:$0xff]
    %v6640 = vld [vmem:[#allocation7 + $0x138] sm:$0xff]
    %v6641 = vld [vmem:[#allocation7 + $0x140] sm:$0xff]
    %v6642 = vld [vmem:[#allocation7 + $0x148] sm:$0xff]
    %v6643 = vld [vmem:[#allocation7 + $0x150] sm:$0xff]
    %v6644 = vld [vmem:[#allocation7 + $0x158] sm:$0xff]
    %v6645 = vld [vmem:[#allocation7 + $0x160] sm:$0xff]
    %v6646 = vld [vmem:[#allocation7 + $0x168] sm:$0xff]
    %v6647 = vld [vmem:[#allocation7 + $0x170] sm:$0xff]
    %v6648 = vld [vmem:[#allocation7 + $0x178] sm:$0xff]
    %v6649 = vld [vmem:[#allocation7 + $0x180] sm:$0xff]
    %v6650 = vld [vmem:[#allocation7 + $0x188] sm:$0xff]
    %v6651 = vld [vmem:[#allocation7 + $0x190] sm:$0xff]
    %v6652 = vld [vmem:[#allocation7 + $0x198] sm:$0xff]
    %v6653 = vld [vmem:[#allocation7 + $0x1a0] sm:$0xff]
    %v6654 = vld [vmem:[#allocation7 + $0x1a8] sm:$0xff]
    %v6655 = vld [vmem:[#allocation7 + $0x1b0] sm:$0xff]
    %v6656 = vld [vmem:[#allocation7 + $0x1b8] sm:$0xff]
    %v6657 = vld [vmem:[#allocation7 + $0x1c0] sm:$0xff]
    %v6658 = vld [vmem:[#allocation7 + $0x1c8] sm:$0xff]
    %v6659 = vld [vmem:[#allocation7 + $0x1d0] sm:$0xff]
    %v6660 = vld [vmem:[#allocation7 + $0x1d8] sm:$0xff]
    %v6661 = vld [vmem:[#allocation7 + $0x1e0] sm:$0xff]
    %v6662 = vld [vmem:[#allocation7 + $0x1e8] sm:$0xff]
    %v6663 = vld [vmem:[#allocation7 + $0x1f0] sm:$0xff]
    %v6664 = vld [vmem:[#allocation7 + $0x1f8] sm:$0xff]
    %v6665 = vld [vmem:[%s3] sm:$0xf]
    %v6667 = vlaneseq
    %v6668 = vshrl.u32 %v6667, 7
    %v6669 = vsub.s32 0, %v6668
    %v6670 = vrot.slane %v6665, %v6669
    %v6671 = vlaneseq
    %v6672 = vshrl.u32 %v6671, 7
    %v6673 = vsub.s32 1, %v6672
    %v6674 = vrot.slane %v6665, %v6673
    %v6675 = vlaneseq
    %v6676 = vshrl.u32 %v6675, 7
    %v6677 = vsub.s32 2, %v6676
    %v6678 = vrot.slane %v6665, %v6677
    %v6679 = vlaneseq
    %v6680 = vshrl.u32 %v6679, 7
    %v6681 = vsub.s32 3, %v6680
    %v6682 = vrot.slane %v6665, %v6681
    %v6688 = vshrl.u32 %v6592, 16
    %v6690 = vrot.slane %v6688, 3
    %v6691 = vshll.u32 %v6592, 16
    %v6693 = vrot.slane %v6691, 4
    %v6694 = vor.u32 %v6690, %v6693
    %v6696 = vshrl.u32 %v6600, 16
    %v6698 = vrot.slane %v6696, 3
    %v6699 = vshll.u32 %v6600, 16
    %v6701 = vrot.slane %v6699, 4
    %v6702 = vor.u32 %v6698, %v6701
    %v6769 = vunpack.c.l.b16 %v6601
    %v6770 = vunpack.c.h.b16 %v6601
    %v6771 = vunpack.c.l.b16 %v6602
    %v6772 = vunpack.c.h.b16 %v6602
    %v6773 = vunpack.c.l.b16 %v6603
    %v6774 = vunpack.c.h.b16 %v6603
    %v6775 = vunpack.c.l.b16 %v6604
    %v6776 = vunpack.c.h.b16 %v6604
    %v6777 = vunpack.c.l.b16 %v6605
    %v6778 = vunpack.c.h.b16 %v6605
    %v6779 = vunpack.c.l.b16 %v6606
    %v6780 = vunpack.c.h.b16 %v6606
    %v6781 = vunpack.c.l.b16 %v6607
    %v6782 = vunpack.c.h.b16 %v6607
    %v6783 = vunpack.c.l.b16 %v6608
    %v6784 = vunpack.c.h.b16 %v6608
    %v6785 = vunpack.c.l.b16 %v6609
    %v6786 = vunpack.c.h.b16 %v6609
    %v6787 = vunpack.c.l.b16 %v6610
    %v6788 = vunpack.c.h.b16 %v6610
    %v6789 = vunpack.c.l.b16 %v6611
    %v6790 = vunpack.c.h.b16 %v6611
    %v6791 = vunpack.c.l.b16 %v6612
    %v6792 = vunpack.c.h.b16 %v6612
    %v6793 = vunpack.c.l.b16 %v6613
    %v6794 = vunpack.c.h.b16 %v6613
    %v6795 = vunpack.c.l.b16 %v6614
    %v6796 = vunpack.c.h.b16 %v6614
    %v6797 = vunpack.c.l.b16 %v6615
    %v6798 = vunpack.c.h.b16 %v6615
    %v6799 = vunpack.c.l.b16 %v6616
    %v6800 = vunpack.c.h.b16 %v6616
    %v6801 = vunpack.c.l.b16 %v6617
    %v6802 = vunpack.c.h.b16 %v6617
    %v6803 = vunpack.c.l.b16 %v6618
    %v6804 = vunpack.c.h.b16 %v6618
    %v6805 = vunpack.c.l.b16 %v6619
    %v6806 = vunpack.c.h.b16 %v6619
    %v6807 = vunpack.c.l.b16 %v6620
    %v6808 = vunpack.c.h.b16 %v6620
    %v6809 = vunpack.c.l.b16 %v6621
    %v6810 = vunpack.c.h.b16 %v6621
    %v6811 = vunpack.c.l.b16 %v6622
    %v6812 = vunpack.c.h.b16 %v6622
    %v6813 = vunpack.c.l.b16 %v6623
    %v6814 = vunpack.c.h.b16 %v6623
    %v6815 = vunpack.c.l.b16 %v6624
    %v6816 = vunpack.c.h.b16 %v6624
    %v6817 = vunpack.c.l.b16 %v6625
    %v6818 = vunpack.c.h.b16 %v6625
    %v6819 = vunpack.c.l.b16 %v6626
    %v6820 = vunpack.c.h.b16 %v6626
    %v6821 = vunpack.c.l.b16 %v6627
    %v6822 = vunpack.c.h.b16 %v6627
    %v6823 = vunpack.c.l.b16 %v6628
    %v6824 = vunpack.c.h.b16 %v6628
    %v6825 = vunpack.c.l.b16 %v6629
    %v6826 = vunpack.c.h.b16 %v6629
    %v6827 = vunpack.c.l.b16 %v6630
    %v6828 = vunpack.c.h.b16 %v6630
    %v6829 = vunpack.c.l.b16 %v6631
    %v6830 = vunpack.c.h.b16 %v6631
    %v6831 = vunpack.c.l.b16 %v6632
    %v6832 = vunpack.c.h.b16 %v6632
    %v6833 = vunpack.c.l.b16 %v6633
    %v6834 = vunpack.c.h.b16 %v6633
    %v6835 = vunpack.c.l.b16 %v6634
    %v6836 = vunpack.c.h.b16 %v6634
    %v6837 = vunpack.c.l.b16 %v6635
    %v6838 = vunpack.c.h.b16 %v6635
    %v6839 = vunpack.c.l.b16 %v6636
    %v6840 = vunpack.c.h.b16 %v6636
    %v6841 = vunpack.c.l.b16 %v6637
    %v6842 = vunpack.c.h.b16 %v6637
    %v6843 = vunpack.c.l.b16 %v6638
    %v6844 = vunpack.c.h.b16 %v6638
    %v6845 = vunpack.c.l.b16 %v6639
    %v6846 = vunpack.c.h.b16 %v6639
    %v6847 = vunpack.c.l.b16 %v6640
    %v6848 = vunpack.c.h.b16 %v6640
    %v6849 = vunpack.c.l.b16 %v6641
    %v6850 = vunpack.c.h.b16 %v6641
    %v6851 = vunpack.c.l.b16 %v6642
    %v6852 = vunpack.c.h.b16 %v6642
    %v6853 = vunpack.c.l.b16 %v6643
    %v6854 = vunpack.c.h.b16 %v6643
    %v6855 = vunpack.c.l.b16 %v6644
    %v6856 = vunpack.c.h.b16 %v6644
    %v6857 = vunpack.c.l.b16 %v6645
    %v6858 = vunpack.c.h.b16 %v6645
    %v6859 = vunpack.c.l.b16 %v6646
    %v6860 = vunpack.c.h.b16 %v6646
    %v6861 = vunpack.c.l.b16 %v6647
    %v6862 = vunpack.c.h.b16 %v6647
    %v6863 = vunpack.c.l.b16 %v6648
    %v6864 = vunpack.c.h.b16 %v6648
    %v6865 = vunpack.c.l.b16 %v6649
    %v6866 = vunpack.c.h.b16 %v6649
    %v6867 = vunpack.c.l.b16 %v6650
    %v6868 = vunpack.c.h.b16 %v6650
    %v6869 = vunpack.c.l.b16 %v6651
    %v6870 = vunpack.c.h.b16 %v6651
    %v6871 = vunpack.c.l.b16 %v6652
    %v6872 = vunpack.c.h.b16 %v6652
    %v6873 = vunpack.c.l.b16 %v6653
    %v6874 = vunpack.c.h.b16 %v6653
    %v6875 = vunpack.c.l.b16 %v6654
    %v6876 = vunpack.c.h.b16 %v6654
    %v6877 = vunpack.c.l.b16 %v6655
    %v6878 = vunpack.c.h.b16 %v6655
    %v6879 = vunpack.c.l.b16 %v6656
    %v6880 = vunpack.c.h.b16 %v6656
    %v6881 = vunpack.c.l.b16 %v6657
    %v6882 = vunpack.c.h.b16 %v6657
    %v6883 = vunpack.c.l.b16 %v6658
    %v6884 = vunpack.c.h.b16 %v6658
    %v6885 = vunpack.c.l.b16 %v6659
    %v6886 = vunpack.c.h.b16 %v6659
    %v6887 = vunpack.c.l.b16 %v6660
    %v6888 = vunpack.c.h.b16 %v6660
    %v6889 = vunpack.c.l.b16 %v6661
    %v6890 = vunpack.c.h.b16 %v6661
    %v6891 = vunpack.c.l.b16 %v6662
    %v6892 = vunpack.c.h.b16 %v6662
    %v6893 = vunpack.c.l.b16 %v6663
    %v6894 = vunpack.c.h.b16 %v6663
    %v6895 = vunpack.c.l.b16 %v6664
    %v6896 = vunpack.c.h.b16 %v6664
    %v6897 = vpack.c.b16 %v6773, %v6769
    %v6898 = vpack.c.b16 %v6774, %v6770
    %v6899 = vpack.c.b16 %v6775, %v6771
    %v6900 = vpack.c.b16 %v6776, %v6772
    %v6901 = vpack.c.b16 %v6781, %v6777
    %v6902 = vpack.c.b16 %v6782, %v6778
    %v6903 = vpack.c.b16 %v6783, %v6779
    %v6904 = vpack.c.b16 %v6784, %v6780
    %v6905 = vpack.c.b16 %v6789, %v6785
    %v6906 = vpack.c.b16 %v6790, %v6786
    %v6907 = vpack.c.b16 %v6791, %v6787
    %v6908 = vpack.c.b16 %v6792, %v6788
    %v6909 = vpack.c.b16 %v6797, %v6793
    %v6910 = vpack.c.b16 %v6798, %v6794
    %v6911 = vpack.c.b16 %v6799, %v6795
    %v6912 = vpack.c.b16 %v6800, %v6796
    %v6913 = vpack.c.b16 %v6805, %v6801
    %v6914 = vpack.c.b16 %v6806, %v6802
    %v6915 = vpack.c.b16 %v6807, %v6803
    %v6916 = vpack.c.b16 %v6808, %v6804
    %v6917 = vpack.c.b16 %v6813, %v6809
    %v6918 = vpack.c.b16 %v6814, %v6810
    %v6919 = vpack.c.b16 %v6815, %v6811
    %v6920 = vpack.c.b16 %v6816, %v6812
    %v6921 = vpack.c.b16 %v6821, %v6817
    %v6922 = vpack.c.b16 %v6822, %v6818
    %v6923 = vpack.c.b16 %v6823, %v6819
    %v6924 = vpack.c.b16 %v6824, %v6820
    %v6925 = vpack.c.b16 %v6829, %v6825
    %v6926 = vpack.c.b16 %v6830, %v6826
    %v6927 = vpack.c.b16 %v6831, %v6827
    %v6928 = vpack.c.b16 %v6832, %v6828
    %v6929 = vpack.c.b16 %v6837, %v6833
    %v6930 = vpack.c.b16 %v6838, %v6834
    %v6931 = vpack.c.b16 %v6839, %v6835
    %v6932 = vpack.c.b16 %v6840, %v6836
    %v6933 = vpack.c.b16 %v6845, %v6841
    %v6934 = vpack.c.b16 %v6846, %v6842
    %v6935 = vpack.c.b16 %v6847, %v6843
    %v6936 = vpack.c.b16 %v6848, %v6844
    %v6937 = vpack.c.b16 %v6853, %v6849
    %v6938 = vpack.c.b16 %v6854, %v6850
    %v6939 = vpack.c.b16 %v6855, %v6851
    %v6940 = vpack.c.b16 %v6856, %v6852
    %v6941 = vpack.c.b16 %v6861, %v6857
    %v6942 = vpack.c.b16 %v6862, %v6858
    %v6943 = vpack.c.b16 %v6863, %v6859
    %v6944 = vpack.c.b16 %v6864, %v6860
    %v6945 = vpack.c.b16 %v6869, %v6865
    %v6946 = vpack.c.b16 %v6870, %v6866
    %v6947 = vpack.c.b16 %v6871, %v6867
    %v6948 = vpack.c.b16 %v6872, %v6868
    %v6949 = vpack.c.b16 %v6877, %v6873
    %v6950 = vpack.c.b16 %v6878, %v6874
    %v6951 = vpack.c.b16 %v6879, %v6875
    %v6952 = vpack.c.b16 %v6880, %v6876
    %v6953 = vpack.c.b16 %v6885, %v6881
    %v6954 = vpack.c.b16 %v6886, %v6882
    %v6955 = vpack.c.b16 %v6887, %v6883
    %v6956 = vpack.c.b16 %v6888, %v6884
    %v6957 = vpack.c.b16 %v6893, %v6889
    %v6958 = vpack.c.b16 %v6894, %v6890
    %v6959 = vpack.c.b16 %v6895, %v6891
    %v6960 = vpack.c.b16 %v6896, %v6892
    %7025 = vmatprep.subr.bf16.mxu0 %v6926
    %7026 = vmatpush1.bf16.msra.mxu0 %v6925
    %7027 = vmatprep.subr.bf16.mxu0 %v6922
    %7028 = vmatpush1.bf16.msra.mxu0 %v6921
    %7029 = vmatprep.subr.bf16.mxu0 %v6918
    %7030 = vmatpush1.bf16.msra.mxu0 %v6917
    %7031 = vmatprep.subr.bf16.mxu0 %v6914
    %7032 = vmatpush1.bf16.msra.mxu0 %v6913
    %7033 = vmatprep.subr.bf16.mxu0 %v6910
    %7034 = vmatpush1.bf16.msra.mxu0 %v6909
    %7035 = vmatprep.subr.bf16.mxu0 %v6906
    %7036 = vmatpush1.bf16.msra.mxu0 %v6905
    %7037 = vmatprep.subr.bf16.mxu0 %v6902
    %7038 = vmatpush1.bf16.msra.mxu0 %v6901
    %7039 = vmatprep.subr.bf16.mxu0 %v6898
    %7040 = vmatpush1.bf16.msra.mxu0 %v6897
    %7041 = vmatprep.subr.bf16.mxu0 %v6958
    %7042 = vmatpush2.bf16.msra.mxu0 %v6957
    %7043 = vmatprep.subr.bf16.mxu0 %v6954
    %7044 = vmatpush2.bf16.msra.mxu0 %v6953
    %7045 = vmatprep.subr.bf16.mxu0 %v6950
    %7046 = vmatpush2.bf16.msra.mxu0 %v6949
    %7047 = vmatprep.subr.bf16.mxu0 %v6946
    %7048 = vmatpush2.bf16.msra.mxu0 %v6945
    %7049 = vmatprep.subr.bf16.mxu0 %v6942
    %7050 = vmatpush2.bf16.msra.mxu0 %v6941
    %7051 = vmatprep.subr.bf16.mxu0 %v6938
    %7052 = vmatpush2.bf16.msra.mxu0 %v6937
    %7053 = vmatprep.subr.bf16.mxu0 %v6934
    %7054 = vmatpush2.bf16.msra.mxu0 %v6933
    %7055 = vmatprep.subr.bf16.mxu0 %v6930
    %7056 = vmatpush2.bf16.msra.mxu0 %v6929
    %7057 = vmatprep.mubr.bf16.mxu0 %v6702
    %7058 = vmatmul.mubr.bf16.gmra.mxu0 %v6694
    %v7059 = vpop.f32.mrf.mxu0
    %v7060 = vadd.f32 %v6670, %v7059
    %v7061 = vpop.f32.mrf.mxu0
    %v7062 = vadd.f32 %v6674, %v7061
    %v7063 = vpop.f32.mrf.mxu0
    %v7064 = vpop.f32.mrf.mxu0
    %7065 = vdwg.mxu0
    %7066 = vmatprep.subr.bf16.mxu0 %v6928
    %7067 = vmatpush1.bf16.msra.mxu0 %v6927
    %7068 = vmatprep.subr.bf16.mxu0 %v6924
    %7069 = vmatpush1.bf16.msra.mxu0 %v6923
    %7070 = vmatprep.subr.bf16.mxu0 %v6920
    %7071 = vmatpush1.bf16.msra.mxu0 %v6919
    %7072 = vmatprep.subr.bf16.mxu0 %v6916
    %7073 = vmatpush1.bf16.msra.mxu0 %v6915
    %7074 = vmatprep.subr.bf16.mxu0 %v6912
    %7075 = vmatpush1.bf16.msra.mxu0 %v6911
    %7076 = vmatprep.subr.bf16.mxu0 %v6908
    %7077 = vmatpush1.bf16.msra.mxu0 %v6907
    %7078 = vmatprep.subr.bf16.mxu0 %v6904
    %7079 = vmatpush1.bf16.msra.mxu0 %v6903
    %7080 = vmatprep.subr.bf16.mxu0 %v6900
    %7081 = vmatpush1.bf16.msra.mxu0 %v6899
    %7082 = vmatprep.subr.bf16.mxu0 %v6960
    %7083 = vmatpush2.bf16.msra.mxu0 %v6959
    %7084 = vmatprep.subr.bf16.mxu0 %v6956
    %7085 = vmatpush2.bf16.msra.mxu0 %v6955
    %7086 = vmatprep.subr.bf16.mxu0 %v6952
    %7087 = vmatpush2.bf16.msra.mxu0 %v6951
    %7088 = vmatprep.subr.bf16.mxu0 %v6948
    %7089 = vmatpush2.bf16.msra.mxu0 %v6947
    %7090 = vmatprep.subr.bf16.mxu0 %v6944
    %7091 = vmatpush2.bf16.msra.mxu0 %v6943
    %7092 = vmatprep.subr.bf16.mxu0 %v6940
    %7093 = vmatpush2.bf16.msra.mxu0 %v6939
    %7094 = vmatprep.subr.bf16.mxu0 %v6936
    %7095 = vmatpush2.bf16.msra.mxu0 %v6935
    %7096 = vmatprep.subr.bf16.mxu0 %v6932
    %7097 = vmatpush2.bf16.msra.mxu0 %v6931
    %7098 = vmatprep.mubr.bf16.mxu0 %v6702
    %7099 = vmatmul.mubr.bf16.gmra.mxu0 %v6694
    %v7100 = vpop.f32.mrf.mxu0
    %v7101 = vadd.f32 %v6678, %v7100
    %v7102 = vpop.f32.mrf.mxu0
    %v7103 = vadd.f32 %v6682, %v7102
    %v7104 = vpop.f32.mrf.mxu0
    %v7105 = vpop.f32.mrf.mxu0
    %7106 = vdwg.mxu0
    %v7107 = vxor.u32 %v7060, 2147483648
    %v7108 = vxor.u32 %v7062, 2147483648
    %v7109 = vxor.u32 %v7101, 2147483648
    %v7110 = vmul.f32 %v7107, 1.442695
    %v7111 = vpow.pop %v7110
    %v7112 = vmul.f32 %v7108, 1.442695
    %v7113 = vpow.pop %v7112
    %v7114 = vmul.f32 %v7109, 1.442695
    %v7115 = vpow.pop %v7114
    %v7116 = vadd.f32 %v7111, 1.0
    %v7117 = vadd.f32 %v7113, 1.0
    %v7118 = vadd.f32 %v7115, 1.0
    %v7119 = vrcp.pop %v7116
    %v7120 = vmul.f32 1.0, %v7119
    %v7121 = vrcp.pop %v7117
    %v7122 = vmul.f32 1.0, %v7121
    %v7123 = vrcp.pop %v7118
    %v7124 = vmul.f32 1.0, %v7123
    %v7125 = vtanh.pop %v7103
    %v7126 = vmul.f32 %v7122, %v6229
    %v7127 = vmul.f32 %v7120, %v7125
    %v7128 = vadd.f32 %v7126, %v7127
    %v7129 = vtanh.pop %v7128
    %v7130 = vmul.f32 %v7124, %v7129
    %v7131 = vpack.c.bf16 %v7130, %v7130
    %s7132 = scalar_lea.vmem [#allocation10], 56
    %7133 = vst [vmem:[%s7132] sm:$0xff] %v7130
    %v7134 = vld [vmem:[#allocation8] sm:$0xf]
    %v7135 = vld [vmem:[#allocation8 + $0x4] sm:$0xf]
    %v7136 = vld [vmem:[#allocation8 + $0x8] sm:$0xf]
    %v7137 = vld [vmem:[#allocation8 + $0xc] sm:$0xf]
    %v7138 = vld [vmem:[#allocation8 + $0x10] sm:$0xf]
    %v7139 = vld [vmem:[#allocation8 + $0x14] sm:$0xf]
    %v7140 = vld [vmem:[#allocation8 + $0x18] sm:$0xf]
    %v7141 = vld [vmem:[#allocation8 + $0x1c] sm:$0xf]
    %v7142 = vld [vmem:[#allocation8 + $0x20] sm:$0xf]
    %v7143 = vld [vmem:[#allocation8 + $0x24] sm:$0xf]
    %v7144 = vld [vmem:[#allocation8 + $0x28] sm:$0xf]
    %v7145 = vld [vmem:[#allocation8 + $0x2c] sm:$0xf]
    %v7146 = vld [vmem:[#allocation8 + $0x30] sm:$0xf]
    %v7147 = vld [vmem:[#allocation8 + $0x34] sm:$0xf]
    %v7148 = vld [vmem:[#allocation8 + $0x38] sm:$0xf]
    %v7149 = vld [vmem:[#allocation8 + $0x3c] sm:$0xf]
    %v7150 = vld [vmem:[%s5] sm:$0x1]
    %v7152 = vlaneseq
    %v7153 = vshrl.u32 %v7152, 7
    %v7154 = vsub.s32 0, %v7153
    %v7155 = vrot.slane %v7150, %v7154
    %v7173 = vunpack.c.l.b16 %v7134
    %v7174 = vunpack.c.l.b16 %v7135
    %v7175 = vunpack.c.l.b16 %v7136
    %v7176 = vunpack.c.l.b16 %v7137
    %v7177 = vunpack.c.l.b16 %v7138
    %v7178 = vunpack.c.l.b16 %v7139
    %v7179 = vunpack.c.l.b16 %v7140
    %v7180 = vunpack.c.l.b16 %v7141
    %v7181 = vunpack.c.l.b16 %v7142
    %v7182 = vunpack.c.l.b16 %v7143
    %v7183 = vunpack.c.l.b16 %v7144
    %v7184 = vunpack.c.l.b16 %v7145
    %v7185 = vunpack.c.l.b16 %v7146
    %v7186 = vunpack.c.l.b16 %v7147
    %v7187 = vunpack.c.l.b16 %v7148
    %v7188 = vunpack.c.l.b16 %v7149
    %v7189 = vpack.c.b16 %v7174, %v7173
    %v7190 = vpack.c.b16 %v7176, %v7175
    %v7191 = vpack.c.b16 %v7178, %v7177
    %v7192 = vpack.c.b16 %v7180, %v7179
    %v7193 = vpack.c.b16 %v7182, %v7181
    %v7194 = vpack.c.b16 %v7184, %v7183
    %v7195 = vpack.c.b16 %v7186, %v7185
    %v7196 = vpack.c.b16 %v7188, %v7187
    %7205 = vmatprep.subr.bf16.mxu0 0
    %7206 = vmatpush1.bf16.msra.mxu0 %v7196
    %7207 = vmatprep.subr.bf16.mxu0 0
    %7208 = vmatpush1.bf16.msra.mxu0 %v7195
    %7209 = vmatprep.subr.bf16.mxu0 0
    %7210 = vmatpush1.bf16.msra.mxu0 %v7194
    %7211 = vmatprep.subr.bf16.mxu0 0
    %7212 = vmatpush1.bf16.msra.mxu0 %v7193
    %7213 = vmatprep.subr.bf16.mxu0 0
    %7214 = vmatpush1.bf16.msra.mxu0 %v7192
    %7215 = vmatprep.subr.bf16.mxu0 0
    %7216 = vmatpush1.bf16.msra.mxu0 %v7191
    %7217 = vmatprep.subr.bf16.mxu0 0
    %7218 = vmatpush1.bf16.msra.mxu0 %v7190
    %7219 = vmatprep.subr.bf16.mxu0 0
    %7220 = vmatpush1.bf16.msra.mxu0 %v7189
    %7221 = vmatprep.subr.bf16.mxu0 0
    %7222 = vmatpush2.bf16.msra.mxu0 0
    %7223 = vmatprep.subr.bf16.mxu0 0
    %7224 = vmatpush2.bf16.msra.mxu0 0
    %7225 = vmatprep.subr.bf16.mxu0 0
    %7226 = vmatpush2.bf16.msra.mxu0 0
    %7227 = vmatprep.subr.bf16.mxu0 0
    %7228 = vmatpush2.bf16.msra.mxu0 0
    %7229 = vmatprep.subr.bf16.mxu0 0
    %7230 = vmatpush2.bf16.msra.mxu0 0
    %7231 = vmatprep.subr.bf16.mxu0 0
    %7232 = vmatpush2.bf16.msra.mxu0 0
    %7233 = vmatprep.subr.bf16.mxu0 0
    %7234 = vmatpush2.bf16.msra.mxu0 0
    %7235 = vmatprep.subr.bf16.mxu0 0
    %7236 = vmatpush2.bf16.msra.mxu0 0
    %7237 = vmatprep.mubr.bf16.mxu0 0
    %7238 = vmatmul.mubr.bf16.gmra.mxu0 %v7131
    %v7239 = vpop.f32.mrf.mxu0
    %v7240 = vadd.f32 %v7155, %v7239
    %v7241 = vpop.f32.mrf.mxu0
    %v7242 = vpop.f32.mrf.mxu0
    %v7243 = vpop.f32.mrf.mxu0
    %7244 = vdwg.mxu0
    %7245 = vst [vmem:[#allocation11] sm:$0xff] %v7240
    // Predicated region
    $region42: #{tpu_custom_call.1} parent=1 // pred_check
      _
    $region43: #{tpu_custom_call.1} parent=1 // pred_check_branch
      %7247 = sbr.rel (0) target = $region45
    $region44: #{tpu_custom_call.1} parent=1 // pred_region
      %s7249 = ssub.s32 1024, 1024
      %7250 = vsyncadd [#allocation4], %s7249
      %s7251 = sshll.u32 [#allocation10], 4
      %s7252 = int_to_ptr.vmem [resolvable:$true] %s7251
      %7257 = dma.vmem_to_hbm [thread:$0]  %s7252, 1024, %s6, [#allocation4], 128, 128, 8
    $region45: #{tpu_custom_call.1} parent=1 // pred_fallthru
      _
    // Predicated region
    $region46: #{tpu_custom_call.1} parent=1 // pred_check
      _
    $region47: #{tpu_custom_call.1} parent=1 // pred_check_branch
      %7259 = sbr.rel (0) target = $region49
    $region48: #{tpu_custom_call.1} parent=1 // pred_region
      %s7261 = ssub.s32 128, 128
      %7262 = vsyncadd [#allocation12], %s7261
      %s7264 = sshll.u32 [#allocation11], 4
      %s7265 = int_to_ptr.vmem [resolvable:$true] %s7264
      %7267 = dma.vmem_to_hbm [thread:$0]  %s7265, 128, %s7, [#allocation12]
    $region49: #{tpu_custom_call.1} parent=1 // pred_fallthru
      _
    // Predicated region
    $region50: #{tpu_custom_call.1} parent=1 // pred_check
      _
    $region51: #{tpu_custom_call.1} parent=1 // pred_check_branch
      %7269 = sbr.rel (0) target = $region53
    $region52: #{tpu_custom_call.1} parent=1 // pred_region
      %7270 = dma.done [#allocation4], 1024
    $region53: #{tpu_custom_call.1} parent=1 // pred_fallthru
      _
    // Predicated region
    $region54: #{tpu_custom_call.1} parent=1 // pred_check
      _
    $region55: #{tpu_custom_call.1} parent=1 // pred_check_branch
      %7272 = sbr.rel (0) target = $region57
    $region56: #{tpu_custom_call.1} parent=1 // pred_region
      %7273 = dma.done [#allocation12], 128
    $region57: #{tpu_custom_call.1} parent=1 // pred_fallthru
      _
    %7274 = vsyncpa [#allocation3], 1
    %7275 = vsyncpa [#allocation6], 1
    %7276 = vsyncpa [#allocation9], 1
    %7277 = vsyncpa [#allocation4], 1
    %7278 = vsyncpa [#allocation12], 1

</llo_original>
